<compile_context>
chip_gen: v6e
topology: v6e:2x2x1
jax: 0.10.0
libtpu: 0.0.40
codegen_flags: <defaults>
</compile_context>

<pallas_src>
import functools

import numpy as np

import jax
import jax.numpy as jnp
from jax import lax
from jax.experimental import pallas as pl
from jax.experimental.pallas import tpu as pltpu


# ---------------------------------------------------------------------------
# pltpu.roll convention probes (run once, eagerly).  +1 -> same convention as
# jnp.roll, -1 -> mirrored convention, 0 -> unavailable (slice+concat
# fallback).  Probed separately for the lane (minor) axis and the sublane
# axis at a shape representative of the kernel's working tiles.
# ---------------------------------------------------------------------------
def _probe_roll_sign(axis):
    try:
        def _kernel(x_ref, o_ref):
            o_ref[...] = pltpu.roll(x_ref[...], 1, axis=axis)

        n0, n1 = 16, 256
        x = (jnp.arange(n0, dtype=jnp.float32)[:, None] * 1000.0
             + jnp.arange(n1, dtype=jnp.float32)[None, :])
        y = pl.pallas_call(
            _kernel, out_shape=jax.ShapeDtypeStruct((n0, n1), jnp.float32))(x)
        v = int(round(float(y[0, 0])))
        if axis == 1:
            return 1 if v == n1 - 1 else (-1 if v == 1 else 0)
        return 1 if v == (n0 - 1) * 1000 else (-1 if v == 1000 else 0)
    except Exception:
        return 0


_LANE_ROLL_SIGN = _probe_roll_sign(1)
_SUB_ROLL_SIGN = _probe_roll_sign(0)


# ---------------------------------------------------------------------------
# Small host-side helpers (glue)
# ---------------------------------------------------------------------------
def _gaussian5_weights():
    """torchvision-style 5-tap Gaussian: sigma = 0.3*((5-1)*0.5 - 1) + 0.8."""
    ksize = 5
    sigma = 0.3 * ((ksize - 1) * 0.5 - 1.0) + 0.8
    xs = np.linspace(-(ksize - 1) / 2.0, (ksize - 1) / 2.0, ksize)
    pdf = np.exp(-0.5 * (xs / sigma) ** 2)
    k = pdf / pdf.sum()
    return float(k[2]), float(k[1]), float(k[0])   # (centre, +-1, +-2)


def _linear_interp_matrix(n_in, n_out):
    a = np.zeros((n_out, n_in), np.float32)
    if n_out == 1:
        a[0, 0] = 1.0
        return jnp.asarray(a)
    for j in range(n_out):
        p = j * (n_in - 1) / (n_out - 1)
        lo = min(int(np.floor(p)), n_in - 2)
        f = p - lo
        a[j, lo] += 1.0 - f
        a[j, lo + 1] += f
    return jnp.asarray(a)


def _resize_trilinear_align_corners(x, out_dhw):
    """F.interpolate(..., mode='trilinear', align_corners=True) equivalent."""
    do, ho, wo = out_dhw
    ad = _linear_interp_matrix(x.shape[2], do)
    ah = _linear_interp_matrix(x.shape[3], ho)
    aw = _linear_interp_matrix(x.shape[4], wo)
    x = jnp.einsum('od,bcdhw->bcohw', ad, x)
    x = jnp.einsum('ph,bcdhw->bcdpw', ah, x)
    x = jnp.einsum('qw,bcdhw->bcdhq', aw, x)
    return x


def _scale_inputs(deformation_field, image, scale):
    if scale == 1:
        return deformation_field, image[:, 0]
    _, _, d, h, w = deformation_field.shape
    out = (d // scale, h // scale, w // scale)   # recompute_scale_factor=True
    return (_resize_trilinear_align_corners(deformation_field, out),
            _resize_trilinear_align_corners(image, out)[:, 0])


def _det3(j):
    return (j[..., 0, 0] * (j[..., 1, 1] * j[..., 2, 2] - j[..., 1, 2] * j[..., 2, 1])
            - j[..., 0, 1] * (j[..., 1, 0] * j[..., 2, 2] - j[..., 1, 2] * j[..., 2, 0])
            + j[..., 0, 2] * (j[..., 1, 0] * j[..., 2, 1] - j[..., 1, 1] * j[..., 2, 0]))


def _center_jacobian_penalty(df):
    # TODO(synk): the PyTorch reference builds this with torch.autograd.functional.jacobian of an
    # integer-indexing closure (ill-defined / not runnable as written); approximated here by the
    # finite-difference spatial Jacobian of the deformation field at the centre voxel.
    _, _, d, h, w = df.shape
    cd, ch, cw = d // 2, h // 2, w // 2
    jx = 0.5 * (df[:, :, cd + 1, ch, cw] - df[:, :, cd - 1, ch, cw])
    jy = 0.5 * (df[:, :, cd, ch + 1, cw] - df[:, :, cd, ch - 1, cw])
    jz = 0.5 * (df[:, :, cd, ch, cw + 1] - df[:, :, cd, ch, cw - 1])
    jac = jnp.stack([jx, jy, jz], axis=-1)          # (B, 3, 3)
    det = _det3(jac)
    return jnp.mean(jnp.maximum(-det, 0.0))


# ---------------------------------------------------------------------------
# Hardware-aware knobs
# ---------------------------------------------------------------------------
def _vmem_limit_bytes():
    cap = 64 << 20                                 # conservative (v7x per-core VMEM)
    try:
        info = pltpu.get_tpu_info()
        cap = int(getattr(info, "vmem_capacity_bytes", cap)) or cap
    except Exception:
        pass
    # Leave headroom for the output pipeline and compiler-internal scratch.
    return max(32 << 20, min(cap - (16 << 20), 112 << 20))


def _pick_compute_dtype(in_dtype):
    """bf16 stencil math only on chips with a bf16 VPU/EUP (v6e / v7x); the
    masked energy reduction always accumulates in f32.  v5e (no bf16 VPU) and
    f32 inputs use f32 throughout."""
    if jnp.dtype(in_dtype) != jnp.dtype(jnp.bfloat16):
        return jnp.float32
    try:
        kind = jax.devices()[0].device_kind.lower()
    except Exception:
        return jnp.float32
    if any(t in kind for t in ("v6", "v7", "7x")):
        return jnp.bfloat16
    return jnp.float32


def _pick_tiling(d_sz, m_pad, def_bytes, img_bytes, cdt_bytes, vmem_limit,
                 halo, max_window):
    """Choose (t_d, window, n_dt).  window = t_d + 2*halo is kept a multiple
    of 8 (sublane-aligned shifts, low halo re-read amplification) and sized so
    a double-buffered slab plus the live compute temporaries fit VMEM."""
    def estimate(window):
        slabs = 2 * window * m_pad * (3 * def_bytes + img_bytes)   # double buffer
        temps = 14 * window * m_pad * cdt_bytes                    # live intermediates
        return slabs + temps

    cap = 16
    for cand in (64, 56, 48, 40, 32, 24, 16):
        if estimate(cand) <= 0.8 * vmem_limit:
            cap = cand
            break
    if max_window is not None:
        cap = max(8, min(cap, int(max_window)))
    if d_sz <= cap:
        return d_sz, d_sz, 1                       # single D tile
    t_d = cap - 2 * halo
    return t_d, cap, pl.cdiv(d_sz, t_d)


# ---------------------------------------------------------------------------
# Per-scale Pallas kernel: per-(batch, D-tile) sums of adaptive_weight * energy
# ---------------------------------------------------------------------------
def _scale_energy_sums(deform, image_chan, blur_w, *, lambda_0, mu_0,
                       kappa_lambda, kappa_mu, base_weight, gradient_scaling,
                       clamp_min, clamp_max, max_window=None):
    """deform: (B, 3, D, H, W);  image_chan: (B, D, H, W).  Returns f32 (B, nDT)."""
    b_sz, c_sz, d_sz, h_sz, w_sz = deform.shape
    assert c_sz == 3
    assert min(d_sz, h_sz, w_sz) >= 4, "spatial dims must be >= 4 at every scale"
    m_sz = h_sz * w_sz
    m_pad = ((m_sz + 127) // 128) * 128            # lane-dense, 128-aligned minor axis
    halo = 3                                       # 1 (gradient) + 2 (5-tap blur)

    cdt = _pick_compute_dtype(deform.dtype)
    vmem_limit = _vmem_limit_bytes()
    t_d, window, n_dt = _pick_tiling(
        d_sz, m_pad, jnp.dtype(deform.dtype).itemsize,
        jnp.dtype(image_chan.dtype).itemsize, jnp.dtype(cdt).itemsize,
        vmem_limit, halo, max_window)
    n_buf = 2 if n_dt > 1 else 1                   # double-buffer only when tiled

    # Lane-dense layout: fold H*W into the minor axis and zero-pad to a
    # multiple of 128 so lane shifts are XLU rolls and stores stay lane-dense.
    deform_f = deform.reshape(b_sz, 3, d_sz, m_sz)
    image_f = image_chan.reshape(b_sz, d_sz, m_sz)
    if m_pad != m_sz:
        deform_f = jnp.pad(deform_f, ((0, 0), (0, 0), (0, 0), (0, m_pad - m_sz)))
        image_f = jnp.pad(image_f, ((0, 0), (0, 0), (0, m_pad - m_sz)))

    # Static (H, W) indices of the folded lane axis; padded lanes carry a huge
    # sentinel so no boundary mask fires there and they read as invalid.
    idx_np = np.full((2, m_pad), np.int32(2 ** 30), dtype=np.int32)
    lin = np.arange(m_sz, dtype=np.int64)
    idx_np[0, :m_sz] = lin // w_sz
    idx_np[1, :m_sz] = lin % w_sz
    idx_hw = jnp.asarray(idx_np)

    w0, w1, w2 = blur_w

    def kernel(def_hbm, img_hbm, idx_ref, out_ref, def_slab, img_slab, sem):
        b = pl.program_id(0)
        dt = pl.program_id(1)
        slot = (dt % 2) if n_buf == 2 else 0

        def tile_start(t):
            return jnp.clip(t * t_d - halo, 0, d_sz - window)

        def issue(t, s):
            st = tile_start(t)
            pltpu.make_async_copy(
                def_hbm.at[b, :, pl.ds(st, window), :], def_slab.at[s],
                sem.at[s, 0]).start()
            pltpu.make_async_copy(
                img_hbm.at[b, pl.ds(st, window), :], img_slab.at[s],
                sem.at[s, 1]).start()

        @pl.when(dt == 0)
        def _():
            issue(0, 0)                      # first tile of this batch row

        if n_buf == 2:                       # prefetch next tile: its DMA overlaps
            @pl.when(dt + 1 < n_dt)          # this step's compute (hides HBM latency)
            def _():
                issue(dt + 1, 1 - slot)

        start = tile_start(dt)
        gidx = start + lax.broadcasted_iota(jnp.int32, (window, 1), 0)
        idx2 = idx_ref[...]
        idx_h = idx2[0:1, :]                                      # (1, M)
        idx_w = idx2[1:2, :]                                      # (1, M)

        def shift_rows(x, k):
            # y[i] = x[i + k] along the tiled D axis (out-of-slab rows hold
            # wrapped / clamped data which the boundary masks discard).
            if k == 0:
                return x
            n = x.shape[0]
            if _SUB_ROLL_SIGN != 0 and n % 8 == 0:
                return pltpu.roll(x, ((-k) * _SUB_ROLL_SIGN) % n, axis=0)
            if k > 0:
                return jnp.concatenate([x[k:], x[-k:]], axis=0)
            kk = -k
            return jnp.concatenate([x[:kk], x[:-kk]], axis=0)

        def shift_lanes(x, k):
            # y[..., m] = x[..., (m + k) mod n] along the folded H*W lane axis.
            n = x.shape[-1]
            k2 = k % n
            if k2 == 0:
                return x
            if _LANE_ROLL_SIGN != 0 and n % 128 == 0:
                return pltpu.roll(x, ((-k) * _LANE_ROLL_SIGN) % n, axis=x.ndim - 1)
            return jnp.concatenate([x[..., k2:], x[..., :k2]], axis=-1)

        def grad(x, axis):
            # torch.gradient (unit spacing, edge_order=1) along one spatial axis.
            if axis == 0:      # D (tiled / sublane)
                xp, xm, pos, n = shift_rows(x, 1), shift_rows(x, -1), gidx, d_sz
            elif axis == 1:    # H (stride W in the folded lane axis)
                xp, xm, pos, n = (shift_lanes(x, w_sz), shift_lanes(x, -w_sz),
                                  idx_h, h_sz)
            else:              # W (stride 1)
                xp, xm, pos, n = shift_lanes(x, 1), shift_lanes(x, -1), idx_w, w_sz
            g = 0.5 * (xp - xm)
            g = jnp.where(pos == 0, xp - x, g)
            g = jnp.where(pos == n - 1, x - xm, g)
            return g

        def blur(x, axis):
            # Separable 5-tap Gaussian with torchvision-style 'reflect' border.
            if axis == 0:
                sh, pos, n, s = shift_rows, gidx, d_sz, 1
            elif axis == 1:
                sh, pos, n, s = shift_lanes, idx_h, h_sz, w_sz
            else:
                sh, pos, n, s = shift_lanes, idx_w, w_sz, 1
            sp1, sp2 = sh(x, s), sh(x, 2 * s)
            sm1, sm2 = sh(x, -s), sh(x, -2 * s)
            y = w0 * x + w1 * (sp1 + sm1) + w2 * (sp2 + sm2)
            y = jnp.where(pos == 1, w1 * sm1 + (w0 + w2) * x + w1 * sp1 + w2 * sp2, y)
            y = jnp.where(pos == n - 2, w1 * sp1 + (w0 + w2) * x + w1 * sm1 + w2 * sm2, y)
            y = jnp.where(pos == 0, w0 * x + 2.0 * w1 * sp1 + 2.0 * w2 * sp2, y)
            y = jnp.where(pos == n - 1, w0 * x + 2.0 * w1 * sm1 + 2.0 * w2 * sm2, y)
            return y

        # ---- image-driven adaptive Lame parameters (overlaps deform DMA) ----
        pltpu.make_async_copy(img_hbm.at[b, pl.ds(0, window), :],
                              img_slab.at[slot], sem.at[slot, 1]).wait()
        img = img_slab[slot].astype(cdt)          # cast in VMEM (bf16 DMAs at bf16)
        ig2 = jnp.square(grad(img, 0))
        ig2 = ig2 + jnp.square(grad(img, 1))
        ig2 = ig2 + jnp.square(grad(img, 2))
        smoothed = blur(blur(blur(jnp.sqrt(ig2), 0), 1), 2)
        adaptive_lambda = jnp.clip(lambda_0 + kappa_lambda * smoothed,
                                   clamp_min, clamp_max)
        adaptive_mu = jnp.clip(mu_0 + kappa_mu * smoothed, clamp_min, clamp_max)
        adaptive_weight = base_weight + gradient_scaling * smoothed

        # ---- strain tensor & elastic energy (incrementally accumulated so the
        #      9 gradients / 6 strains are never all live at once) ----
        pltpu.make_async_copy(def_hbm.at[b, :, pl.ds(0, window), :],
                              def_slab.at[slot], sem.at[slot, 0]).wait()
        u = def_slab[slot, 0].astype(cdt)
        v = def_slab[slot, 1].astype(cdt)
        w_ = def_slab[slot, 2].astype(cdt)
        e_xx = grad(u, 0)
        e_yy = grad(v, 1)
        e_zz = grad(w_, 2)
        trace_e = e_xx + e_yy + e_zz
        quad = e_xx * e_xx + e_yy * e_yy + e_zz * e_zz
        e_xy = 0.5 * (grad(u, 1) + grad(v, 0))
        quad = quad + 2.0 * (e_xy * e_xy)
        e_xz = 0.5 * (grad(u, 2) + grad(w_, 0))
        quad = quad + 2.0 * (e_xz * e_xz)
        e_yz = 0.5 * (grad(v, 2) + grad(w_, 1))
        quad = quad + 2.0 * (e_yz * e_yz)
        weighted = adaptive_weight * (0.5 * adaptive_lambda * (trace_e * trace_e)
                                      + adaptive_mu * quad)

        # Fused masked reduction over this tile's interior planes and valid
        # lanes (halo planes, ragged last tile and padded lanes excluded);
        # always accumulated in f32.
        lo = dt * t_d
        hi = jnp.minimum(lo + t_d, d_sz)
        valid = jnp.logical_and(jnp.logical_and(gidx >= lo, gidx < hi),
                                idx_h < h_sz)
        part = jnp.sum(
            jnp.where(valid, weighted, jnp.zeros_like(weighted)).astype(jnp.float32),
            keepdims=True)                                            # (1, 1)
        out_ref[0, 0] = jnp.broadcast_to(part, (8, 128))

    out = pl.pallas_call(
        kernel,
        out_shape=jax.ShapeDtypeStruct((b_sz, n_dt, 8, 128), jnp.float32),
        grid=(b_sz, n_dt),
        in_specs=[
            pl.BlockSpec(memory_space=pl.ANY),        # deformation stays in HBM
            pl.BlockSpec(memory_space=pl.ANY),        # image stays in HBM
            pl.BlockSpec((2, m_pad), lambda b, d: (0, 0)),
        ],
        out_specs=pl.BlockSpec((1, 1, 8, 128), lambda b, d: (b, d, 0, 0)),
        scratch_shapes=[
            pltpu.VMEM((n_buf, 3, window, m_pad), deform.dtype),
            pltpu.VMEM((n_buf, window, m_pad), image_chan.dtype),
            pltpu.SemaphoreType.DMA((n_buf, 2)),
        ],
        compiler_params=pltpu.CompilerParams(
            # Batch axis feeds megacore; the D-tile axis carries the manual
            # double-buffered prefetch chain, so it stays sequential.
            dimension_semantics=("parallel", "arbitrary"),
            vmem_limit_bytes=vmem_limit),
    )(deform_f, image_f, idx_hw)
    return out[:, :, 0, 0]


# ---------------------------------------------------------------------------
# Full loss (wrapper)
# ---------------------------------------------------------------------------
def enhanced_multiscale_adaptive_elasticity_loss_with_lame(
        deformation_field, image, *, num_scales, lambda_0, mu_0, kappa_lambda,
        kappa_mu, base_weight, gradient_scaling, clamp_min=0.1, clamp_max=10.0,
        scale_weights=None, jacobian_penalty_weight=0.1, max_window=None):
    b_sz, c_sz, _, _, _ = deformation_field.shape
    assert c_sz == 3
    if scale_weights is None:
        scale_weights = [1.0] * num_scales
    blur_w = _gaussian5_weights()

    total = jnp.float32(0.0)
    for i in range(num_scales):
        scale = 2 ** i
        d_s, img_chan = _scale_inputs(deformation_field, image, scale)
        _, _, ds, hs, ws = d_s.shape
        part = _scale_energy_sums(
            d_s, img_chan, blur_w, lambda_0=float(lambda_0), mu_0=float(mu_0),
            kappa_lambda=float(kappa_lambda), kappa_mu=float(kappa_mu),
            base_weight=float(base_weight),
            gradient_scaling=float(gradient_scaling),
            clamp_min=float(clamp_min), clamp_max=float(clamp_max),
            max_window=max_window)
        mean_energy = jnp.sum(part) / float(b_sz * ds * hs * ws)
        total = total + jnp.float32(scale_weights[i]) * mean_energy

    total = total + jnp.float32(jacobian_penalty_weight) * _center_jacobian_penalty(
        deformation_field.astype(jnp.float32))
    return total


# ---------------------------------------------------------------------------
# Pure-JAX reference (independent formulation: slice-based gradients,
# reflect-padded convolution blur) used for the self-check.
# ---------------------------------------------------------------------------
def _grad_ref(x, axis):
    axis = axis % x.ndim
    n = x.shape[axis]
    center = 0.5 * (lax.slice_in_dim(x, 2, n, axis=axis)
                    - lax.slice_in_dim(x, 0, n - 2, axis=axis))
    lo = lax.slice_in_dim(x, 1, 2, axis=axis) - lax.slice_in_dim(x, 0, 1, axis=axis)
    hi = (lax.slice_in_dim(x, n - 1, n, axis=axis)
          - lax.slice_in_dim(x, n - 2, n - 1, axis=axis))
    return jnp.concatenate([lo, center, hi], axis=axis)


def _blur_ref(x, blur_w):
    w0, w1, w2 = blur_w
    taps = ((-2, w2), (-1, w1), (0, w0), (1, w1), (2, w2))
    for axis in (-3, -2, -1):
        a = axis % x.ndim
        pad = [(0, 0)] * x.ndim
        pad[a] = (2, 2)
        xp = jnp.pad(x, pad, mode='reflect')
        n = x.shape[a]
        acc = jnp.zeros_like(x)
        for off, wgt in taps:
            acc = acc + wgt * lax.slice_in_dim(xp, off + 2, off + 2 + n, axis=a)
        x = acc
    return x


def _scale_energy_mean_ref(d_s, img_chan, blur_w, *, lambda_0, mu_0,
                           kappa_lambda, kappa_mu, base_weight,
                           gradient_scaling, clamp_min, clamp_max):
    gix = _grad_ref(img_chan, -3)
    giy = _grad_ref(img_chan, -2)
    giz = _grad_ref(img_chan, -1)
    ig = jnp.sqrt(gix ** 2 + giy ** 2 + giz ** 2)
    igs = _blur_ref(ig, blur_w)
    lam = jnp.clip(lambda_0 + kappa_lambda * igs, clamp_min, clamp_max)
    mu = jnp.clip(mu_0 + kappa_mu * igs, clamp_min, clamp_max)
    aw = base_weight + gradient_scaling * igs
    u, v, w = d_s[:, 0], d_s[:, 1], d_s[:, 2]
    du = [_grad_ref(u, a) for a in (-3, -2, -1)]
    dv = [_grad_ref(v, a) for a in (-3, -2, -1)]
    dw = [_grad_ref(w, a) for a in (-3, -2, -1)]
    e_xx, e_yy, e_zz = du[0], dv[1], dw[2]
    e_xy = 0.5 * (du[1] + dv[0])
    e_xz = 0.5 * (du[2] + dw[0])
    e_yz = 0.5 * (dv[2] + dw[1])
    tr = e_xx + e_yy + e_zz
    energy = (0.5 * lam * tr ** 2
              + mu * (e_xx ** 2 + e_yy ** 2 + e_zz ** 2
                      + 2.0 * (e_xy ** 2 + e_xz ** 2 + e_yz ** 2)))
    return jnp.mean(aw * energy)


def _reference_loss(deformation_field, image, *, num_scales, lambda_0, mu_0,
                    kappa_lambda, kappa_mu, base_weight, gradient_scaling,
                    clamp_min=0.1, clamp_max=10.0, scale_weights=None,
                    jacobian_penalty_weight=0.1):
    if scale_weights is None:
        scale_weights = [1.0] * num_scales
    blur_w = _gaussian5_weights()
    deformation_field = deformation_field.astype(jnp.float32)
    image = image.astype(jnp.float32)
    total = jnp.float32(0.0)
    for i in range(num_scales):
        d_s, img_chan = _scale_inputs(deformation_field, image, 2 ** i)
        total = total + jnp.float32(scale_weights[i]) * _scale_energy_mean_ref(
            d_s, img_chan, blur_w, lambda_0=lambda_0, mu_0=mu_0,
            kappa_lambda=kappa_lambda, kappa_mu=kappa_mu,
            base_weight=base_weight, gradient_scaling=gradient_scaling,
            clamp_min=clamp_min, clamp_max=clamp_max)
    total = total + jnp.float32(jacobian_penalty_weight) * _center_jacobian_penalty(
        deformation_field)
    return total


if __name__ == "__main__":
    hp = dict(num_scales=2, lambda_0=1.0, mu_0=0.5, kappa_lambda=2.0,
              kappa_mu=1.5, base_weight=1.0, gradient_scaling=3.0,
              clamp_min=0.1, clamp_max=10.0, scale_weights=[1.0, 0.5],
              jacobian_penalty_weight=0.1)

    key = jax.random.PRNGKey(0)
    k_def, k_img = jax.random.split(key)
    batch, depth, height, width = 2, 16, 16, 16
    deformation_field = 0.1 * jax.random.normal(
        k_def, (batch, 3, depth, height, width), dtype=jnp.float32)
    image = jax.random.normal(
        k_img, (batch, 1, depth, height, width), dtype=jnp.float32)

    ref = jax.block_until_ready(_reference_loss(deformation_field, image, **hp))

    # Default path (auto window; single D tile per scale at this small size).
    run = jax.jit(functools.partial(
        enhanced_multiscale_adaptive_elasticity_loss_with_lame, **hp))
    loss = jax.block_until_ready(run(deformation_field, image))
    if not bool(jnp.allclose(loss, ref, rtol=1e-3, atol=1e-6)):
        raise AssertionError(
            f"mismatch (single-tile): pallas={float(loss):.6f} "
            f"reference={float(ref):.6f}")

    # Forced small window: exercises the D-tiled, double-buffered DMA path.
    run_tiled = jax.jit(functools.partial(
        enhanced_multiscale_adaptive_elasticity_loss_with_lame,
        max_window=8, **hp))
    loss_tiled = jax.block_until_ready(run_tiled(deformation_field, image))
    if not bool(jnp.allclose(loss_tiled, ref, rtol=1e-3, atol=1e-6)):
        raise AssertionError(
            f"mismatch (tiled): pallas={float(loss_tiled):.6f} "
            f"reference={float(ref):.6f}")

    print("KERNEL_OK")
</pallas_src>

<mosaic_0001>
module attributes {stable_mosaic.version = 11 : i64} {
  func.func @_kernel(%arg0: memref<16x256xf32, #tpu.memory_space<vmem>>, %arg1: memref<16x256xf32, #tpu.memory_space<vmem>>) attributes {dimension_semantics = [], scalar_prefetch = 0 : i64, scratch_operands = 0 : i64, tpu.core_type = #tpu.core_type<tc>} {
    %c0 = arith.constant 0 : index
    %c0_0 = arith.constant 0 : index
    %0 = vector.load %arg0[%c0, %c0_0] : memref<16x256xf32, #tpu.memory_space<vmem>>, vector<16x256xf32>
    %c1_i32 = arith.constant 1 : i32
    %1 = tpu.dynamic_rotate %0 by %c1_i32 dim 1 : vector<16x256xf32>, i32 -> vector<16x256xf32>
    %c0_1 = arith.constant 0 : index
    %c0_2 = arith.constant 0 : index
    %2 = vector.load %arg1[%c0_1, %c0_2] : memref<16x256xf32, #tpu.memory_space<vmem>>, vector<16x256xf32>
    tpu.vector_store %arg1[%c0_1, %c0_2], %1 {strides = array<i32>} : memref<16x256xf32, #tpu.memory_space<vmem>>, vector<16x256xf32>,
    return
  }
}

module attributes {stable_mosaic.version = 11 : i64} {
  func.func @_kernel(%arg0: memref<16x256xf32, #tpu.memory_space<vmem>>, %arg1: memref<16x256xf32, #tpu.memory_space<vmem>>) attributes {dimension_semantics = [], scalar_prefetch = 0 : i64, scratch_operands = 0 : i64, tpu.core_type = #tpu.core_type<tc>} {
    %c0 = arith.constant 0 : index
    %c0_0 = arith.constant 0 : index
    %0 = vector.load %arg0[%c0, %c0_0] : memref<16x256xf32, #tpu.memory_space<vmem>>, vector<16x256xf32>
    %c1_i32 = arith.constant 1 : i32
    %1 = tpu.dynamic_rotate %0 by %c1_i32 dim 0 : vector<16x256xf32>, i32 -> vector<16x256xf32>
    %c0_1 = arith.constant 0 : index
    %c0_2 = arith.constant 0 : index
    %2 = vector.load %arg1[%c0_1, %c0_2] : memref<16x256xf32, #tpu.memory_space<vmem>>, vector<16x256xf32>
    tpu.vector_store %arg1[%c0_1, %c0_2], %1 {strides = array<i32>} : memref<16x256xf32, #tpu.memory_space<vmem>>, vector<16x256xf32>,
    return
  }
}

module attributes {stable_mosaic.version = 11 : i64} {
  func.func @kernel(%arg0: i32, %arg1: i32, %arg2: memref<2x3x8x128xf32, #tpu.memory_space<any>>, %arg3: memref<2x8x128xf32, #tpu.memory_space<any>>, %arg4: memref<2x128xi32, #tpu.memory_space<vmem>>, %arg5: memref<1x1x8x128xf32, #tpu.memory_space<vmem>>, %arg6: memref<1x3x8x128xf32, #tpu.memory_space<vmem>>, %arg7: memref<1x8x128xf32, #tpu.memory_space<vmem>>, %arg8: memref<1x2x!tpu.dma_semaphore, #tpu.memory_space<semaphore_mem>>) attributes {dimension_semantics = [#tpu.dimension_semantics<parallel>, #tpu.dimension_semantics<arbitrary>], iteration_bounds = array<i64: 2, 1>, scalar_prefetch = 0 : i64, scratch_operands = 3 : i64, tpu.core_type = #tpu.core_type<tc>, window_params = [{}, {}, {pipeline_mode = #tpu.pipeline_mode<synchronous>, transform_indices = @transform_2, window_bounds = array<i64: 2, 128>}, {transform_indices = @transform_3, window_bounds = array<i64: 1, 1, 8, 128>}]} {
    %c0_i32 = arith.constant 0 : i32
    %0 = arith.cmpi eq, %arg1, %c0_i32 : i32
    %1 = arith.extui %0 : i1 to i32
    %c0_i32_0 = arith.constant 0 : i32
    %2 = arith.cmpi ne, %1, %c0_i32_0 : i32
    scf.if %2 {
      %c-3_i32 = arith.constant -3 : i32
      %c0_i32_155 = arith.constant 0 : i32
      %c0_i32_156 = arith.constant 0 : i32
      %611 = arith.maxsi %c0_i32_155, %c-3_i32 : i32
      %612 = arith.minsi %c0_i32_156, %611 : i32
      %c0_i32_157 = arith.constant 0 : i32
      %c0_i32_158 = arith.constant 0 : i32
      %c0_i32_159 = arith.constant 0 : i32
      %c0_i32_160 = arith.constant 0 : i32
      %c0_i32_161 = arith.constant 0 : i32
      %613 = tpu.memref_slice %arg2[%arg0, %c0_i32_160, %612, %c0_i32_161] : memref<2x3x8x128xf32, #tpu.memory_space<any>> -> memref<1x3x8x128xf32, #tpu.memory_space<any>>
      %614 = tpu.memref_squeeze %613 : memref<1x3x8x128xf32, #tpu.memory_space<any>> -> memref<3x8x128xf32, #tpu.memory_space<any>>
      %c0_i32_162 = arith.constant 0 : i32
      %c0_i32_163 = arith.constant 0 : i32
      %c0_i32_164 = arith.constant 0 : i32
      %615 = tpu.memref_slice %arg6[%c0_i32_157, %c0_i32_162, %c0_i32_163, %c0_i32_164] : memref<1x3x8x128xf32, #tpu.memory_space<vmem>> -> memref<1x3x8x128xf32, #tpu.memory_space<vmem>>
      %616 = tpu.memref_squeeze %615 : memref<1x3x8x128xf32, #tpu.memory_space<vmem>> -> memref<3x8x128xf32, #tpu.memory_space<vmem>>
      %617 = tpu.memref_slice %arg8[%c0_i32_158, %c0_i32_159] : memref<1x2x!tpu.dma_semaphore, #tpu.memory_space<semaphore_mem>> -> memref<1x1x!tpu.dma_semaphore, #tpu.memory_space<semaphore_mem>>
      %618 = tpu.memref_squeeze %617 : memref<1x1x!tpu.dma_semaphore, #tpu.memory_space<semaphore_mem>> -> memref<!tpu.dma_semaphore, #tpu.memory_space<semaphore_mem>>
      tpu.enqueue_dma source(%614 : memref<3x8x128xf32, #tpu.memory_space<any>>) target(%616 : memref<3x8x128xf32, #tpu.memory_space<vmem>>) target_semaphore(%618 : memref<!tpu.dma_semaphore, #tpu.memory_space<semaphore_mem>>)
      %c0_i32_165 = arith.constant 0 : i32
      %c0_i32_166 = arith.constant 0 : i32
      %c1_i32_167 = arith.constant 1 : i32
      %c0_i32_168 = arith.constant 0 : i32
      %619 = tpu.memref_slice %arg3[%arg0, %612, %c0_i32_168] : memref<2x8x128xf32, #tpu.memory_space<any>> -> memref<1x8x128xf32, #tpu.memory_space<any>>
      %620 = tpu.memref_squeeze %619 : memref<1x8x128xf32, #tpu.memory_space<any>> -> memref<8x128xf32, #tpu.memory_space<any>>
      %c0_i32_169 = arith.constant 0 : i32
      %c0_i32_170 = arith.constant 0 : i32
      %621 = tpu.memref_slice %arg7[%c0_i32_165, %c0_i32_169, %c0_i32_170] : memref<1x8x128xf32, #tpu.memory_space<vmem>> -> memref<1x8x128xf32, #tpu.memory_space<vmem>>
      %622 = tpu.memref_squeeze %621 : memref<1x8x128xf32, #tpu.memory_space<vmem>> -> memref<8x128xf32, #tpu.memory_space<vmem>>
      %623 = tpu.memref_slice %arg8[%c0_i32_166, %c1_i32_167] : memref<1x2x!tpu.dma_semaphore, #tpu.memory_space<semaphore_mem>> -> memref<1x1x!tpu.dma_semaphore, #tpu.memory_space<semaphore_mem>>
      %624 = tpu.memref_squeeze %623 : memref<1x1x!tpu.dma_semaphore, #tpu.memory_space<semaphore_mem>> -> memref<!tpu.dma_semaphore, #tpu.memory_space<semaphore_mem>>
      tpu.enqueue_dma source(%620 : memref<8x128xf32, #tpu.memory_space<any>>) target(%622 : memref<8x128xf32, #tpu.memory_space<vmem>>) target_semaphore(%624 : memref<!tpu.dma_semaphore, #tpu.memory_space<semaphore_mem>>)
    } else {
    }
    %c8_i32 = arith.constant 8 : i32
    %3 = arith.muli %arg1, %c8_i32 : i32
    %c3_i32 = arith.constant 3 : i32
    %4 = arith.subi %3, %c3_i32 : i32
    %c0_i32_1 = arith.constant 0 : i32
    %c0_i32_2 = arith.constant 0 : i32
    %5 = arith.maxsi %c0_i32_1, %4 : i32
    %6 = arith.minsi %c0_i32_2, %5 : i32
    %7 = tpu.iota {dimensions = array<i32: 0>} : vector<8x1xi32>
    %8 = vector.broadcast %6 : i32 to vector<8x1xi32>
    %9 = arith.addi %8, %7 : vector<8x1xi32>
    %c0 = arith.constant 0 : index
    %c0_3 = arith.constant 0 : index
    %10 = vector.load %arg4[%c0, %c0_3] : memref<2x128xi32, #tpu.memory_space<vmem>>, vector<2x128xi32>
    %11 = vector.extract_strided_slice %10 {offsets = [0, 0], sizes = [1, 128], strides = [1, 1]} : vector<2x128xi32> to vector<1x128xi32>
    %12 = vector.extract_strided_slice %10 {offsets = [1, 0], sizes = [1, 128], strides = [1, 1]} : vector<2x128xi32> to vector<1x128xi32>
    %c0_i32_4 = arith.constant 0 : i32
    %c0_i32_5 = arith.constant 0 : i32
    %c1_i32 = arith.constant 1 : i32
    %c0_i32_6 = arith.constant 0 : i32
    %c0_i32_7 = arith.constant 0 : i32
    %13 = tpu.memref_slice %arg3[%arg0, %c0_i32_6, %c0_i32_7] : memref<2x8x128xf32, #tpu.memory_space<any>> -> memref<1x8x128xf32, #tpu.memory_space<any>>
    %14 = tpu.memref_squeeze %13 : memref<1x8x128xf32, #tpu.memory_space<any>> -> memref<8x128xf32, #tpu.memory_space<any>>
    %c0_i32_8 = arith.constant 0 : i32
    %c0_i32_9 = arith.constant 0 : i32
    %15 = tpu.memref_slice %arg7[%c0_i32_4, %c0_i32_8, %c0_i32_9] : memref<1x8x128xf32, #tpu.memory_space<vmem>> -> memref<1x8x128xf32, #tpu.memory_space<vmem>>
    %16 = tpu.memref_squeeze %15 : memref<1x8x128xf32, #tpu.memory_space<vmem>> -> memref<8x128xf32, #tpu.memory_space<vmem>>
    %17 = tpu.memref_slice %arg8[%c0_i32_5, %c1_i32] : memref<1x2x!tpu.dma_semaphore, #tpu.memory_space<semaphore_mem>> -> memref<1x1x!tpu.dma_semaphore, #tpu.memory_space<semaphore_mem>>
    %18 = tpu.memref_squeeze %17 : memref<1x1x!tpu.dma_semaphore, #tpu.memory_space<semaphore_mem>> -> memref<!tpu.dma_semaphore, #tpu.memory_space<semaphore_mem>>
    tpu.wait_dma2 semaphore(%18 : memref<!tpu.dma_semaphore, #tpu.memory_space<semaphore_mem>>) src(%14 : memref<8x128xf32, #tpu.memory_space<any>>) dst(%16 : memref<8x128xf32, #tpu.memory_space<vmem>>)
    %c0_10 = arith.constant 0 : index
    %c0_11 = arith.constant 0 : index
    %c0_12 = arith.constant 0 : index
    %19 = vector.load %arg7[%c0_10, %c0_11, %c0_12] : memref<1x8x128xf32, #tpu.memory_space<vmem>>, vector<1x8x128xf32>
    %20 = vector.shape_cast %19 : vector<1x8x128xf32> to vector<8x128xf32>
    %21 = vector.extract_strided_slice %20 {offsets = [1, 0], sizes = [7, 128], strides = [1, 1]} : vector<8x128xf32> to vector<7x128xf32>
    %22 = vector.extract_strided_slice %20 {offsets = [7, 0], sizes = [1, 128], strides = [1, 1]} : vector<8x128xf32> to vector<1x128xf32>
    %23 = tpu.concatenate %21, %22 in 0 : vector<7x128xf32>, vector<1x128xf32> -> vector<8x128xf32>
    %24 = vector.extract_strided_slice %20 {offsets = [0, 0], sizes = [1, 128], strides = [1, 1]} : vector<8x128xf32> to vector<1x128xf32>
    %25 = vector.extract_strided_slice %20 {offsets = [0, 0], sizes = [7, 128], strides = [1, 1]} : vector<8x128xf32> to vector<7x128xf32>
    %26 = tpu.concatenate %24, %25 in 0 : vector<1x128xf32>, vector<7x128xf32> -> vector<8x128xf32>
    %27 = arith.subf %23, %26 : vector<8x128xf32>
    %cst = arith.constant 5.000000e-01 : f32
    %28 = vector.broadcast %cst : f32 to vector<8x128xf32>
    %29 = arith.mulf %28, %27 : vector<8x128xf32>
    %c0_i32_13 = arith.constant 0 : i32
    %30 = vector.broadcast %c0_i32_13 : i32 to vector<8x1xi32>
    %31 = arith.cmpi eq, %9, %30 : vector<8x1xi32>
    %32 = arith.subf %23, %20 : vector<8x128xf32>
    %33 = vector.shape_cast %31 : vector<8x1xi1> to vector<8x1xi1>
    %34 = vector.broadcast %33 : vector<8x1xi1> to vector<8x128xi1>
    %35 = arith.select %34, %32, %29 : vector<8x128xi1>, vector<8x128xf32>
    %c7_i32 = arith.constant 7 : i32
    %36 = vector.broadcast %c7_i32 : i32 to vector<8x1xi32>
    %37 = arith.cmpi eq, %9, %36 : vector<8x1xi32>
    %38 = arith.subf %20, %26 : vector<8x128xf32>
    %39 = vector.shape_cast %37 : vector<8x1xi1> to vector<8x1xi1>
    %40 = vector.broadcast %39 : vector<8x1xi1> to vector<8x128xi1>
    %41 = arith.select %40, %38, %35 : vector<8x128xi1>, vector<8x128xf32>
    %42 = arith.mulf %41, %41 : vector<8x128xf32>
    %43 = vector.extract_strided_slice %20 {offsets = [0, 8], sizes = [8, 120], strides = [1, 1]} : vector<8x128xf32> to vector<8x120xf32>
    %44 = vector.extract_strided_slice %20 {offsets = [0, 0], sizes = [8, 8], strides = [1, 1]} : vector<8x128xf32> to vector<8x8xf32>
    %45 = tpu.concatenate %43, %44 in 1 : vector<8x120xf32>, vector<8x8xf32> -> vector<8x128xf32>
    %46 = vector.extract_strided_slice %20 {offsets = [0, 120], sizes = [8, 8], strides = [1, 1]} : vector<8x128xf32> to vector<8x8xf32>
    %47 = vector.extract_strided_slice %20 {offsets = [0, 0], sizes = [8, 120], strides = [1, 1]} : vector<8x128xf32> to vector<8x120xf32>
    %48 = tpu.concatenate %46, %47 in 1 : vector<8x8xf32>, vector<8x120xf32> -> vector<8x128xf32>
    %49 = arith.subf %45, %48 : vector<8x128xf32>
    %cst_14 = arith.constant 5.000000e-01 : f32
    %50 = vector.broadcast %cst_14 : f32 to vector<8x128xf32>
    %51 = arith.mulf %50, %49 : vector<8x128xf32>
    %c0_i32_15 = arith.constant 0 : i32
    %52 = vector.broadcast %c0_i32_15 : i32 to vector<1x128xi32>
    %53 = arith.cmpi eq, %11, %52 : vector<1x128xi32>
    %54 = arith.subf %45, %20 : vector<8x128xf32>
    %55 = vector.shape_cast %53 : vector<1x128xi1> to vector<1x128xi1>
    %56 = vector.broadcast %55 : vector<1x128xi1> to vector<8x128xi1>
    %57 = arith.select %56, %54, %51 : vector<8x128xi1>, vector<8x128xf32>
    %c7_i32_16 = arith.constant 7 : i32
    %58 = vector.broadcast %c7_i32_16 : i32 to vector<1x128xi32>
    %59 = arith.cmpi eq, %11, %58 : vector<1x128xi32>
    %60 = arith.subf %20, %48 : vector<8x128xf32>
    %61 = vector.shape_cast %59 : vector<1x128xi1> to vector<1x128xi1>
    %62 = vector.broadcast %61 : vector<1x128xi1> to vector<8x128xi1>
    %63 = arith.select %62, %60, %57 : vector<8x128xi1>, vector<8x128xf32>
    %64 = arith.mulf %63, %63 : vector<8x128xf32>
    %65 = arith.addf %42, %64 : vector<8x128xf32>
    %66 = vector.extract_strided_slice %20 {offsets = [0, 1], sizes = [8, 127], strides = [1, 1]} : vector<8x128xf32> to vector<8x127xf32>
    %67 = vector.extract_strided_slice %20 {offsets = [0, 0], sizes = [8, 1], strides = [1, 1]} : vector<8x128xf32> to vector<8x1xf32>
    %68 = tpu.concatenate %66, %67 in 1 : vector<8x127xf32>, vector<8x1xf32> -> vector<8x128xf32>
    %69 = vector.extract_strided_slice %20 {offsets = [0, 127], sizes = [8, 1], strides = [1, 1]} : vector<8x128xf32> to vector<8x1xf32>
    %70 = vector.extract_strided_slice %20 {offsets = [0, 0], sizes = [8, 127], strides = [1, 1]} : vector<8x128xf32> to vector<8x127xf32>
    %71 = tpu.concatenate %69, %70 in 1 : vector<8x1xf32>, vector<8x127xf32> -> vector<8x128xf32>
    %72 = arith.subf %68, %71 : vector<8x128xf32>
    %cst_17 = arith.constant 5.000000e-01 : f32
    %73 = vector.broadcast %cst_17 : f32 to vector<8x128xf32>
    %74 = arith.mulf %73, %72 : vector<8x128xf32>
    %c0_i32_18 = arith.constant 0 : i32
    %75 = vector.broadcast %c0_i32_18 : i32 to vector<1x128xi32>
    %76 = arith.cmpi eq, %12, %75 : vector<1x128xi32>
    %77 = arith.subf %68, %20 : vector<8x128xf32>
    %78 = vector.shape_cast %76 : vector<1x128xi1> to vector<1x128xi1>
    %79 = vector.broadcast %78 : vector<1x128xi1> to vector<8x128xi1>
    %80 = arith.select %79, %77, %74 : vector<8x128xi1>, vector<8x128xf32>
    %c7_i32_19 = arith.constant 7 : i32
    %81 = vector.broadcast %c7_i32_19 : i32 to vector<1x128xi32>
    %82 = arith.cmpi eq, %12, %81 : vector<1x128xi32>
    %83 = arith.subf %20, %71 : vector<8x128xf32>
    %84 = vector.shape_cast %82 : vector<1x128xi1> to vector<1x128xi1>
    %85 = vector.broadcast %84 : vector<1x128xi1> to vector<8x128xi1>
    %86 = arith.select %85, %83, %80 : vector<8x128xi1>, vector<8x128xf32>
    %87 = arith.mulf %86, %86 : vector<8x128xf32>
    %88 = arith.addf %65, %87 : vector<8x128xf32>
    %89 = math.sqrt %88 : vector<8x128xf32>
    %90 = vector.extract_strided_slice %89 {offsets = [1, 0], sizes = [7, 128], strides = [1, 1]} : vector<8x128xf32> to vector<7x128xf32>
    %91 = vector.extract_strided_slice %89 {offsets = [7, 0], sizes = [1, 128], strides = [1, 1]} : vector<8x128xf32> to vector<1x128xf32>
    %92 = tpu.concatenate %90, %91 in 0 : vector<7x128xf32>, vector<1x128xf32> -> vector<8x128xf32>
    %93 = vector.extract_strided_slice %89 {offsets = [2, 0], sizes = [6, 128], strides = [1, 1]} : vector<8x128xf32> to vector<6x128xf32>
    %94 = vector.extract_strided_slice %89 {offsets = [6, 0], sizes = [2, 128], strides = [1, 1]} : vector<8x128xf32> to vector<2x128xf32>
    %95 = tpu.concatenate %93, %94 in 0 : vector<6x128xf32>, vector<2x128xf32> -> vector<8x128xf32>
    %96 = vector.extract_strided_slice %89 {offsets = [0, 0], sizes = [1, 128], strides = [1, 1]} : vector<8x128xf32> to vector<1x128xf32>
    %97 = vector.extract_strided_slice %89 {offsets = [0, 0], sizes = [7, 128], strides = [1, 1]} : vector<8x128xf32> to vector<7x128xf32>
    %98 = tpu.concatenate %96, %97 in 0 : vector<1x128xf32>, vector<7x128xf32> -> vector<8x128xf32>
    %99 = vector.extract_strided_slice %89 {offsets = [0, 0], sizes = [2, 128], strides = [1, 1]} : vector<8x128xf32> to vector<2x128xf32>
    %100 = vector.extract_strided_slice %89 {offsets = [0, 0], sizes = [6, 128], strides = [1, 1]} : vector<8x128xf32> to vector<6x128xf32>
    %101 = tpu.concatenate %99, %100 in 0 : vector<2x128xf32>, vector<6x128xf32> -> vector<8x128xf32>
    %cst_20 = arith.constant 0.369546473 : f32
    %102 = vector.broadcast %cst_20 : f32 to vector<8x128xf32>
    %103 = arith.mulf %102, %89 : vector<8x128xf32>
    %104 = arith.addf %92, %98 : vector<8x128xf32>
    %cst_21 = arith.constant 0.244460404 : f32
    %105 = vector.broadcast %cst_21 : f32 to vector<8x128xf32>
    %106 = arith.mulf %105, %104 : vector<8x128xf32>
    %107 = arith.addf %103, %106 : vector<8x128xf32>
    %108 = arith.addf %95, %101 : vector<8x128xf32>
    %cst_22 = arith.constant 0.0707663745 : f32
    %109 = vector.broadcast %cst_22 : f32 to vector<8x128xf32>
    %110 = arith.mulf %109, %108 : vector<8x128xf32>
    %111 = arith.addf %107, %110 : vector<8x128xf32>
    %c1_i32_23 = arith.constant 1 : i32
    %112 = vector.broadcast %c1_i32_23 : i32 to vector<8x1xi32>
    %113 = arith.cmpi eq, %9, %112 : vector<8x1xi32>
    %cst_24 = arith.constant 0.244460404 : f32
    %114 = vector.broadcast %cst_24 : f32 to vector<8x128xf32>
    %115 = arith.mulf %114, %98 : vector<8x128xf32>
    %cst_25 = arith.constant 0.440312833 : f32
    %116 = vector.broadcast %cst_25 : f32 to vector<8x128xf32>
    %117 = arith.mulf %116, %89 : vector<8x128xf32>
    %118 = arith.addf %115, %117 : vector<8x128xf32>
    %cst_26 = arith.constant 0.244460404 : f32
    %119 = vector.broadcast %cst_26 : f32 to vector<8x128xf32>
    %120 = arith.mulf %119, %92 : vector<8x128xf32>
    %121 = arith.addf %118, %120 : vector<8x128xf32>
    %cst_27 = arith.constant 0.0707663745 : f32
    %122 = vector.broadcast %cst_27 : f32 to vector<8x128xf32>
    %123 = arith.mulf %122, %95 : vector<8x128xf32>
    %124 = arith.addf %121, %123 : vector<8x128xf32>
    %125 = vector.shape_cast %113 : vector<8x1xi1> to vector<8x1xi1>
    %126 = vector.broadcast %125 : vector<8x1xi1> to vector<8x128xi1>
    %127 = arith.select %126, %124, %111 : vector<8x128xi1>, vector<8x128xf32>
    %c6_i32 = arith.constant 6 : i32
    %128 = vector.broadcast %c6_i32 : i32 to vector<8x1xi32>
    %129 = arith.cmpi eq, %9, %128 : vector<8x1xi32>
    %cst_28 = arith.constant 0.244460404 : f32
    %130 = vector.broadcast %cst_28 : f32 to vector<8x128xf32>
    %131 = arith.mulf %130, %92 : vector<8x128xf32>
    %cst_29 = arith.constant 0.440312833 : f32
    %132 = vector.broadcast %cst_29 : f32 to vector<8x128xf32>
    %133 = arith.mulf %132, %89 : vector<8x128xf32>
    %134 = arith.addf %131, %133 : vector<8x128xf32>
    %cst_30 = arith.constant 0.244460404 : f32
    %135 = vector.broadcast %cst_30 : f32 to vector<8x128xf32>
    %136 = arith.mulf %135, %98 : vector<8x128xf32>
    %137 = arith.addf %134, %136 : vector<8x128xf32>
    %cst_31 = arith.constant 0.0707663745 : f32
    %138 = vector.broadcast %cst_31 : f32 to vector<8x128xf32>
    %139 = arith.mulf %138, %101 : vector<8x128xf32>
    %140 = arith.addf %137, %139 : vector<8x128xf32>
    %141 = vector.shape_cast %129 : vector<8x1xi1> to vector<8x1xi1>
    %142 = vector.broadcast %141 : vector<8x1xi1> to vector<8x128xi1>
    %143 = arith.select %142, %140, %127 : vector<8x128xi1>, vector<8x128xf32>
    %c0_i32_32 = arith.constant 0 : i32
    %144 = vector.broadcast %c0_i32_32 : i32 to vector<8x1xi32>
    %145 = arith.cmpi eq, %9, %144 : vector<8x1xi32>
    %cst_33 = arith.constant 0.369546473 : f32
    %146 = vector.broadcast %cst_33 : f32 to vector<8x128xf32>
    %147 = arith.mulf %146, %89 : vector<8x128xf32>
    %cst_34 = arith.constant 0.488920808 : f32
    %148 = vector.broadcast %cst_34 : f32 to vector<8x128xf32>
    %149 = arith.mulf %148, %92 : vector<8x128xf32>
    %150 = arith.addf %147, %149 : vector<8x128xf32>
    %cst_35 = arith.constant 0.141532749 : f32
    %151 = vector.broadcast %cst_35 : f32 to vector<8x128xf32>
    %152 = arith.mulf %151, %95 : vector<8x128xf32>
    %153 = arith.addf %150, %152 : vector<8x128xf32>
    %154 = vector.shape_cast %145 : vector<8x1xi1> to vector<8x1xi1>
    %155 = vector.broadcast %154 : vector<8x1xi1> to vector<8x128xi1>
    %156 = arith.select %155, %153, %143 : vector<8x128xi1>, vector<8x128xf32>
    %c7_i32_36 = arith.constant 7 : i32
    %157 = vector.broadcast %c7_i32_36 : i32 to vector<8x1xi32>
    %158 = arith.cmpi eq, %9, %157 : vector<8x1xi32>
    %cst_37 = arith.constant 0.369546473 : f32
    %159 = vector.broadcast %cst_37 : f32 to vector<8x128xf32>
    %160 = arith.mulf %159, %89 : vector<8x128xf32>
    %cst_38 = arith.constant 0.488920808 : f32
    %161 = vector.broadcast %cst_38 : f32 to vector<8x128xf32>
    %162 = arith.mulf %161, %98 : vector<8x128xf32>
    %163 = arith.addf %160, %162 : vector<8x128xf32>
    %cst_39 = arith.constant 0.141532749 : f32
    %164 = vector.broadcast %cst_39 : f32 to vector<8x128xf32>
    %165 = arith.mulf %164, %101 : vector<8x128xf32>
    %166 = arith.addf %163, %165 : vector<8x128xf32>
    %167 = vector.shape_cast %158 : vector<8x1xi1> to vector<8x1xi1>
    %168 = vector.broadcast %167 : vector<8x1xi1> to vector<8x128xi1>
    %169 = arith.select %168, %166, %156 : vector<8x128xi1>, vector<8x128xf32>
    %170 = vector.extract_strided_slice %169 {offsets = [0, 8], sizes = [8, 120], strides = [1, 1]} : vector<8x128xf32> to vector<8x120xf32>
    %171 = vector.extract_strided_slice %169 {offsets = [0, 0], sizes = [8, 8], strides = [1, 1]} : vector<8x128xf32> to vector<8x8xf32>
    %172 = tpu.concatenate %170, %171 in 1 : vector<8x120xf32>, vector<8x8xf32> -> vector<8x128xf32>
    %173 = vector.extract_strided_slice %169 {offsets = [0, 16], sizes = [8, 112], strides = [1, 1]} : vector<8x128xf32> to vector<8x112xf32>
    %174 = vector.extract_strided_slice %169 {offsets = [0, 0], sizes = [8, 16], strides = [1, 1]} : vector<8x128xf32> to vector<8x16xf32>
    %175 = tpu.concatenate %173, %174 in 1 : vector<8x112xf32>, vector<8x16xf32> -> vector<8x128xf32>
    %176 = vector.extract_strided_slice %169 {offsets = [0, 120], sizes = [8, 8], strides = [1, 1]} : vector<8x128xf32> to vector<8x8xf32>
    %177 = vector.extract_strided_slice %169 {offsets = [0, 0], sizes = [8, 120], strides = [1, 1]} : vector<8x128xf32> to vector<8x120xf32>
    %178 = tpu.concatenate %176, %177 in 1 : vector<8x8xf32>, vector<8x120xf32> -> vector<8x128xf32>
    %179 = vector.extract_strided_slice %169 {offsets = [0, 112], sizes = [8, 16], strides = [1, 1]} : vector<8x128xf32> to vector<8x16xf32>
    %180 = vector.extract_strided_slice %169 {offsets = [0, 0], sizes = [8, 112], strides = [1, 1]} : vector<8x128xf32> to vector<8x112xf32>
    %181 = tpu.concatenate %179, %180 in 1 : vector<8x16xf32>, vector<8x112xf32> -> vector<8x128xf32>
    %cst_40 = arith.constant 0.369546473 : f32
    %182 = vector.broadcast %cst_40 : f32 to vector<8x128xf32>
    %183 = arith.mulf %182, %169 : vector<8x128xf32>
    %184 = arith.addf %172, %178 : vector<8x128xf32>
    %cst_41 = arith.constant 0.244460404 : f32
    %185 = vector.broadcast %cst_41 : f32 to vector<8x128xf32>
    %186 = arith.mulf %185, %184 : vector<8x128xf32>
    %187 = arith.addf %183, %186 : vector<8x128xf32>
    %188 = arith.addf %175, %181 : vector<8x128xf32>
    %cst_42 = arith.constant 0.0707663745 : f32
    %189 = vector.broadcast %cst_42 : f32 to vector<8x128xf32>
    %190 = arith.mulf %189, %188 : vector<8x128xf32>
    %191 = arith.addf %187, %190 : vector<8x128xf32>
    %c1_i32_43 = arith.constant 1 : i32
    %192 = vector.broadcast %c1_i32_43 : i32 to vector<1x128xi32>
    %193 = arith.cmpi eq, %11, %192 : vector<1x128xi32>
    %cst_44 = arith.constant 0.244460404 : f32
    %194 = vector.broadcast %cst_44 : f32 to vector<8x128xf32>
    %195 = arith.mulf %194, %178 : vector<8x128xf32>
    %cst_45 = arith.constant 0.440312833 : f32
    %196 = vector.broadcast %cst_45 : f32 to vector<8x128xf32>
    %197 = arith.mulf %196, %169 : vector<8x128xf32>
    %198 = arith.addf %195, %197 : vector<8x128xf32>
    %cst_46 = arith.constant 0.244460404 : f32
    %199 = vector.broadcast %cst_46 : f32 to vector<8x128xf32>
    %200 = arith.mulf %199, %172 : vector<8x128xf32>
    %201 = arith.addf %198, %200 : vector<8x128xf32>
    %cst_47 = arith.constant 0.0707663745 : f32
    %202 = vector.broadcast %cst_47 : f32 to vector<8x128xf32>
    %203 = arith.mulf %202, %175 : vector<8x128xf32>
    %204 = arith.addf %201, %203 : vector<8x128xf32>
    %205 = vector.shape_cast %193 : vector<1x128xi1> to vector<1x128xi1>
    %206 = vector.broadcast %205 : vector<1x128xi1> to vector<8x128xi1>
    %207 = arith.select %206, %204, %191 : vector<8x128xi1>, vector<8x128xf32>
    %c6_i32_48 = arith.constant 6 : i32
    %208 = vector.broadcast %c6_i32_48 : i32 to vector<1x128xi32>
    %209 = arith.cmpi eq, %11, %208 : vector<1x128xi32>
    %cst_49 = arith.constant 0.244460404 : f32
    %210 = vector.broadcast %cst_49 : f32 to vector<8x128xf32>
    %211 = arith.mulf %210, %172 : vector<8x128xf32>
    %cst_50 = arith.constant 0.440312833 : f32
    %212 = vector.broadcast %cst_50 : f32 to vector<8x128xf32>
    %213 = arith.mulf %212, %169 : vector<8x128xf32>
    %214 = arith.addf %211, %213 : vector<8x128xf32>
    %cst_51 = arith.constant 0.244460404 : f32
    %215 = vector.broadcast %cst_51 : f32 to vector<8x128xf32>
    %216 = arith.mulf %215, %178 : vector<8x128xf32>
    %217 = arith.addf %214, %216 : vector<8x128xf32>
    %cst_52 = arith.constant 0.0707663745 : f32
    %218 = vector.broadcast %cst_52 : f32 to vector<8x128xf32>
    %219 = arith.mulf %218, %181 : vector<8x128xf32>
    %220 = arith.addf %217, %219 : vector<8x128xf32>
    %221 = vector.shape_cast %209 : vector<1x128xi1> to vector<1x128xi1>
    %222 = vector.broadcast %221 : vector<1x128xi1> to vector<8x128xi1>
    %223 = arith.select %222, %220, %207 : vector<8x128xi1>, vector<8x128xf32>
    %c0_i32_53 = arith.constant 0 : i32
    %224 = vector.broadcast %c0_i32_53 : i32 to vector<1x128xi32>
    %225 = arith.cmpi eq, %11, %224 : vector<1x128xi32>
    %cst_54 = arith.constant 0.369546473 : f32
    %226 = vector.broadcast %cst_54 : f32 to vector<8x128xf32>
    %227 = arith.mulf %226, %169 : vector<8x128xf32>
    %cst_55 = arith.constant 0.488920808 : f32
    %228 = vector.broadcast %cst_55 : f32 to vector<8x128xf32>
    %229 = arith.mulf %228, %172 : vector<8x128xf32>
    %230 = arith.addf %227, %229 : vector<8x128xf32>
    %cst_56 = arith.constant 0.141532749 : f32
    %231 = vector.broadcast %cst_56 : f32 to vector<8x128xf32>
    %232 = arith.mulf %231, %175 : vector<8x128xf32>
    %233 = arith.addf %230, %232 : vector<8x128xf32>
    %234 = vector.shape_cast %225 : vector<1x128xi1> to vector<1x128xi1>
    %235 = vector.broadcast %234 : vector<1x128xi1> to vector<8x128xi1>
    %236 = arith.select %235, %233, %223 : vector<8x128xi1>, vector<8x128xf32>
    %c7_i32_57 = arith.constant 7 : i32
    %237 = vector.broadcast %c7_i32_57 : i32 to vector<1x128xi32>
    %238 = arith.cmpi eq, %11, %237 : vector<1x128xi32>
    %cst_58 = arith.constant 0.369546473 : f32
    %239 = vector.broadcast %cst_58 : f32 to vector<8x128xf32>
    %240 = arith.mulf %239, %169 : vector<8x128xf32>
    %cst_59 = arith.constant 0.488920808 : f32
    %241 = vector.broadcast %cst_59 : f32 to vector<8x128xf32>
    %242 = arith.mulf %241, %178 : vector<8x128xf32>
    %243 = arith.addf %240, %242 : vector<8x128xf32>
    %cst_60 = arith.constant 0.141532749 : f32
    %244 = vector.broadcast %cst_60 : f32 to vector<8x128xf32>
    %245 = arith.mulf %244, %181 : vector<8x128xf32>
    %246 = arith.addf %243, %245 : vector<8x128xf32>
    %247 = vector.shape_cast %238 : vector<1x128xi1> to vector<1x128xi1>
    %248 = vector.broadcast %247 : vector<1x128xi1> to vector<8x128xi1>
    %249 = arith.select %248, %246, %236 : vector<8x128xi1>, vector<8x128xf32>
    %250 = vector.extract_strided_slice %249 {offsets = [0, 1], sizes = [8, 127], strides = [1, 1]} : vector<8x128xf32> to vector<8x127xf32>
    %251 = vector.extract_strided_slice %249 {offsets = [0, 0], sizes = [8, 1], strides = [1, 1]} : vector<8x128xf32> to vector<8x1xf32>
    %252 = tpu.concatenate %250, %251 in 1 : vector<8x127xf32>, vector<8x1xf32> -> vector<8x128xf32>
    %253 = vector.extract_strided_slice %249 {offsets = [0, 2], sizes = [8, 126], strides = [1, 1]} : vector<8x128xf32> to vector<8x126xf32>
    %254 = vector.extract_strided_slice %249 {offsets = [0, 0], sizes = [8, 2], strides = [1, 1]} : vector<8x128xf32> to vector<8x2xf32>
    %255 = tpu.concatenate %253, %254 in 1 : vector<8x126xf32>, vector<8x2xf32> -> vector<8x128xf32>
    %256 = vector.extract_strided_slice %249 {offsets = [0, 127], sizes = [8, 1], strides = [1, 1]} : vector<8x128xf32> to vector<8x1xf32>
    %257 = vector.extract_strided_slice %249 {offsets = [0, 0], sizes = [8, 127], strides = [1, 1]} : vector<8x128xf32> to vector<8x127xf32>
    %258 = tpu.concatenate %256, %257 in 1 : vector<8x1xf32>, vector<8x127xf32> -> vector<8x128xf32>
    %259 = vector.extract_strided_slice %249 {offsets = [0, 126], sizes = [8, 2], strides = [1, 1]} : vector<8x128xf32> to vector<8x2xf32>
    %260 = vector.extract_strided_slice %249 {offsets = [0, 0], sizes = [8, 126], strides = [1, 1]} : vector<8x128xf32> to vector<8x126xf32>
    %261 = tpu.concatenate %259, %260 in 1 : vector<8x2xf32>, vector<8x126xf32> -> vector<8x128xf32>
    %cst_61 = arith.constant 0.369546473 : f32
    %262 = vector.broadcast %cst_61 : f32 to vector<8x128xf32>
    %263 = arith.mulf %262, %249 : vector<8x128xf32>
    %264 = arith.addf %252, %258 : vector<8x128xf32>
    %cst_62 = arith.constant 0.244460404 : f32
    %265 = vector.broadcast %cst_62 : f32 to vector<8x128xf32>
    %266 = arith.mulf %265, %264 : vector<8x128xf32>
    %267 = arith.addf %263, %266 : vector<8x128xf32>
    %268 = arith.addf %255, %261 : vector<8x128xf32>
    %cst_63 = arith.constant 0.0707663745 : f32
    %269 = vector.broadcast %cst_63 : f32 to vector<8x128xf32>
    %270 = arith.mulf %269, %268 : vector<8x128xf32>
    %271 = arith.addf %267, %270 : vector<8x128xf32>
    %c1_i32_64 = arith.constant 1 : i32
    %272 = vector.broadcast %c1_i32_64 : i32 to vector<1x128xi32>
    %273 = arith.cmpi eq, %12, %272 : vector<1x128xi32>
    %cst_65 = arith.constant 0.244460404 : f32
    %274 = vector.broadcast %cst_65 : f32 to vector<8x128xf32>
    %275 = arith.mulf %274, %258 : vector<8x128xf32>
    %cst_66 = arith.constant 0.440312833 : f32
    %276 = vector.broadcast %cst_66 : f32 to vector<8x128xf32>
    %277 = arith.mulf %276, %249 : vector<8x128xf32>
    %278 = arith.addf %275, %277 : vector<8x128xf32>
    %cst_67 = arith.constant 0.244460404 : f32
    %279 = vector.broadcast %cst_67 : f32 to vector<8x128xf32>
    %280 = arith.mulf %279, %252 : vector<8x128xf32>
    %281 = arith.addf %278, %280 : vector<8x128xf32>
    %cst_68 = arith.constant 0.0707663745 : f32
    %282 = vector.broadcast %cst_68 : f32 to vector<8x128xf32>
    %283 = arith.mulf %282, %255 : vector<8x128xf32>
    %284 = arith.addf %281, %283 : vector<8x128xf32>
    %285 = vector.shape_cast %273 : vector<1x128xi1> to vector<1x128xi1>
    %286 = vector.broadcast %285 : vector<1x128xi1> to vector<8x128xi1>
    %287 = arith.select %286, %284, %271 : vector<8x128xi1>, vector<8x128xf32>
    %c6_i32_69 = arith.constant 6 : i32
    %288 = vector.broadcast %c6_i32_69 : i32 to vector<1x128xi32>
    %289 = arith.cmpi eq, %12, %288 : vector<1x128xi32>
    %cst_70 = arith.constant 0.244460404 : f32
    %290 = vector.broadcast %cst_70 : f32 to vector<8x128xf32>
    %291 = arith.mulf %290, %252 : vector<8x128xf32>
    %cst_71 = arith.constant 0.440312833 : f32
    %292 = vector.broadcast %cst_71 : f32 to vector<8x128xf32>
    %293 = arith.mulf %292, %249 : vector<8x128xf32>
    %294 = arith.addf %291, %293 : vector<8x128xf32>
    %cst_72 = arith.constant 0.244460404 : f32
    %295 = vector.broadcast %cst_72 : f32 to vector<8x128xf32>
    %296 = arith.mulf %295, %258 : vector<8x128xf32>
    %297 = arith.addf %294, %296 : vector<8x128xf32>
    %cst_73 = arith.constant 0.0707663745 : f32
    %298 = vector.broadcast %cst_73 : f32 to vector<8x128xf32>
    %299 = arith.mulf %298, %261 : vector<8x128xf32>
    %300 = arith.addf %297, %299 : vector<8x128xf32>
    %301 = vector.shape_cast %289 : vector<1x128xi1> to vector<1x128xi1>
    %302 = vector.broadcast %301 : vector<1x128xi1> to vector<8x128xi1>
    %303 = arith.select %302, %300, %287 : vector<8x128xi1>, vector<8x128xf32>
    %c0_i32_74 = arith.constant 0 : i32
    %304 = vector.broadcast %c0_i32_74 : i32 to vector<1x128xi32>
    %305 = arith.cmpi eq, %12, %304 : vector<1x128xi32>
    %cst_75 = arith.constant 0.369546473 : f32
    %306 = vector.broadcast %cst_75 : f32 to vector<8x128xf32>
    %307 = arith.mulf %306, %249 : vector<8x128xf32>
    %cst_76 = arith.constant 0.488920808 : f32
    %308 = vector.broadcast %cst_76 : f32 to vector<8x128xf32>
    %309 = arith.mulf %308, %252 : vector<8x128xf32>
    %310 = arith.addf %307, %309 : vector<8x128xf32>
    %cst_77 = arith.constant 0.141532749 : f32
    %311 = vector.broadcast %cst_77 : f32 to vector<8x128xf32>
    %312 = arith.mulf %311, %255 : vector<8x128xf32>
    %313 = arith.addf %310, %312 : vector<8x128xf32>
    %314 = vector.shape_cast %305 : vector<1x128xi1> to vector<1x128xi1>
    %315 = vector.broadcast %314 : vector<1x128xi1> to vector<8x128xi1>
    %316 = arith.select %315, %313, %303 : vector<8x128xi1>, vector<8x128xf32>
    %c7_i32_78 = arith.constant 7 : i32
    %317 = vector.broadcast %c7_i32_78 : i32 to vector<1x128xi32>
    %318 = arith.cmpi eq, %12, %317 : vector<1x128xi32>
    %cst_79 = arith.constant 0.369546473 : f32
    %319 = vector.broadcast %cst_79 : f32 to vector<8x128xf32>
    %320 = arith.mulf %319, %249 : vector<8x128xf32>
    %cst_80 = arith.constant 0.488920808 : f32
    %321 = vector.broadcast %cst_80 : f32 to vector<8x128xf32>
    %322 = arith.mulf %321, %258 : vector<8x128xf32>
    %323 = arith.addf %320, %322 : vector<8x128xf32>
    %cst_81 = arith.constant 0.141532749 : f32
    %324 = vector.broadcast %cst_81 : f32 to vector<8x128xf32>
    %325 = arith.mulf %324, %261 : vector<8x128xf32>
    %326 = arith.addf %323, %325 : vector<8x128xf32>
    %327 = vector.shape_cast %318 : vector<1x128xi1> to vector<1x128xi1>
    %328 = vector.broadcast %327 : vector<1x128xi1> to vector<8x128xi1>
    %329 = arith.select %328, %326, %316 : vector<8x128xi1>, vector<8x128xf32>
    %cst_82 = arith.constant 2.000000e+00 : f32
    %330 = vector.broadcast %cst_82 : f32 to vector<8x128xf32>
    %331 = arith.mulf %330, %329 : vector<8x128xf32>
    %cst_83 = arith.constant 1.000000e+00 : f32
    %332 = vector.broadcast %cst_83 : f32 to vector<8x128xf32>
    %333 = arith.addf %332, %331 : vector<8x128xf32>
    %cst_84 = arith.constant 1.000000e-01 : f32
    %cst_85 = arith.constant 1.000000e+01 : f32
    %334 = vector.broadcast %cst_84 : f32 to vector<8x128xf32>
    %335 = arith.maximumf %334, %333 : vector<8x128xf32>
    %336 = vector.broadcast %cst_85 : f32 to vector<8x128xf32>
    %337 = arith.minimumf %336, %335 : vector<8x128xf32>
    %cst_86 = arith.constant 1.500000e+00 : f32
    %338 = vector.broadcast %cst_86 : f32 to vector<8x128xf32>
    %339 = arith.mulf %338, %329 : vector<8x128xf32>
    %cst_87 = arith.constant 5.000000e-01 : f32
    %340 = vector.broadcast %cst_87 : f32 to vector<8x128xf32>
    %341 = arith.addf %340, %339 : vector<8x128xf32>
    %cst_88 = arith.constant 1.000000e-01 : f32
    %cst_89 = arith.constant 1.000000e+01 : f32
    %342 = vector.broadcast %cst_88 : f32 to vector<8x128xf32>
    %343 = arith.maximumf %342, %341 : vector<8x128xf32>
    %344 = vector.broadcast %cst_89 : f32 to vector<8x128xf32>
    %345 = arith.minimumf %344, %343 : vector<8x128xf32>
    %cst_90 = arith.constant 3.000000e+00 : f32
    %346 = vector.broadcast %cst_90 : f32 to vector<8x128xf32>
    %347 = arith.mulf %346, %329 : vector<8x128xf32>
    %cst_91 = arith.constant 1.000000e+00 : f32
    %348 = vector.broadcast %cst_91 : f32 to vector<8x128xf32>
    %349 = arith.addf %348, %347 : vector<8x128xf32>
    %c0_i32_92 = arith.constant 0 : i32
    %c0_i32_93 = arith.constant 0 : i32
    %c0_i32_94 = arith.constant 0 : i32
    %c0_i32_95 = arith.constant 0 : i32
    %c0_i32_96 = arith.constant 0 : i32
    %c0_i32_97 = arith.constant 0 : i32
    %350 = tpu.memref_slice %arg2[%arg0, %c0_i32_95, %c0_i32_96, %c0_i32_97] : memref<2x3x8x128xf32, #tpu.memory_space<any>> -> memref<1x3x8x128xf32, #tpu.memory_space<any>>
    %351 = tpu.memref_squeeze %350 : memref<1x3x8x128xf32, #tpu.memory_space<any>> -> memref<3x8x128xf32, #tpu.memory_space<any>>
    %c0_i32_98 = arith.constant 0 : i32
    %c0_i32_99 = arith.constant 0 : i32
    %c0_i32_100 = arith.constant 0 : i32
    %352 = tpu.memref_slice %arg6[%c0_i32_92, %c0_i32_98, %c0_i32_99, %c0_i32_100] : memref<1x3x8x128xf32, #tpu.memory_space<vmem>> -> memref<1x3x8x128xf32, #tpu.memory_space<vmem>>
    %353 = tpu.memref_squeeze %352 : memref<1x3x8x128xf32, #tpu.memory_space<vmem>> -> memref<3x8x128xf32, #tpu.memory_space<vmem>>
    %354 = tpu.memref_slice %arg8[%c0_i32_93, %c0_i32_94] : memref<1x2x!tpu.dma_semaphore, #tpu.memory_space<semaphore_mem>> -> memref<1x1x!tpu.dma_semaphore, #tpu.memory_space<semaphore_mem>>
    %355 = tpu.memref_squeeze %354 : memref<1x1x!tpu.dma_semaphore, #tpu.memory_space<semaphore_mem>> -> memref<!tpu.dma_semaphore, #tpu.memory_space<semaphore_mem>>
    tpu.wait_dma2 semaphore(%355 : memref<!tpu.dma_semaphore, #tpu.memory_space<semaphore_mem>>) src(%351 : memref<3x8x128xf32, #tpu.memory_space<any>>) dst(%353 : memref<3x8x128xf32, #tpu.memory_space<vmem>>)
    %c0_101 = arith.constant 0 : index
    %c0_102 = arith.constant 0 : index
    %c0_103 = arith.constant 0 : index
    %c0_104 = arith.constant 0 : index
    %356 = vector.load %arg6[%c0_101, %c0_102, %c0_103, %c0_104] : memref<1x3x8x128xf32, #tpu.memory_space<vmem>>, vector<1x1x8x128xf32>
    %357 = vector.shape_cast %356 : vector<1x1x8x128xf32> to vector<8x128xf32>
    %c0_105 = arith.constant 0 : index
    %c1 = arith.constant 1 : index
    %c0_106 = arith.constant 0 : index
    %c0_107 = arith.constant 0 : index
    %358 = vector.load %arg6[%c0_105, %c1, %c0_106, %c0_107] : memref<1x3x8x128xf32, #tpu.memory_space<vmem>>, vector<1x1x8x128xf32>
    %359 = vector.shape_cast %358 : vector<1x1x8x128xf32> to vector<8x128xf32>
    %c0_108 = arith.constant 0 : index
    %c2 = arith.constant 2 : index
    %c0_109 = arith.constant 0 : index
    %c0_110 = arith.constant 0 : index
    %360 = vector.load %arg6[%c0_108, %c2, %c0_109, %c0_110] : memref<1x3x8x128xf32, #tpu.memory_space<vmem>>, vector<1x1x8x128xf32>
    %361 = vector.shape_cast %360 : vector<1x1x8x128xf32> to vector<8x128xf32>
    %362 = vector.extract_strided_slice %357 {offsets = [1, 0], sizes = [7, 128], strides = [1, 1]} : vector<8x128xf32> to vector<7x128xf32>
    %363 = vector.extract_strided_slice %357 {offsets = [7, 0], sizes = [1, 128], strides = [1, 1]} : vector<8x128xf32> to vector<1x128xf32>
    %364 = tpu.concatenate %362, %363 in 0 : vector<7x128xf32>, vector<1x128xf32> -> vector<8x128xf32>
    %365 = vector.extract_strided_slice %357 {offsets = [0, 0], sizes = [1, 128], strides = [1, 1]} : vector<8x128xf32> to vector<1x128xf32>
    %366 = vector.extract_strided_slice %357 {offsets = [0, 0], sizes = [7, 128], strides = [1, 1]} : vector<8x128xf32> to vector<7x128xf32>
    %367 = tpu.concatenate %365, %366 in 0 : vector<1x128xf32>, vector<7x128xf32> -> vector<8x128xf32>
    %368 = arith.subf %364, %367 : vector<8x128xf32>
    %cst_111 = arith.constant 5.000000e-01 : f32
    %369 = vector.broadcast %cst_111 : f32 to vector<8x128xf32>
    %370 = arith.mulf %369, %368 : vector<8x128xf32>
    %c0_i32_112 = arith.constant 0 : i32
    %371 = vector.broadcast %c0_i32_112 : i32 to vector<8x1xi32>
    %372 = arith.cmpi eq, %9, %371 : vector<8x1xi32>
    %373 = arith.subf %364, %357 : vector<8x128xf32>
    %374 = vector.shape_cast %372 : vector<8x1xi1> to vector<8x1xi1>
    %375 = vector.broadcast %374 : vector<8x1xi1> to vector<8x128xi1>
    %376 = arith.select %375, %373, %370 : vector<8x128xi1>, vector<8x128xf32>
    %c7_i32_113 = arith.constant 7 : i32
    %377 = vector.broadcast %c7_i32_113 : i32 to vector<8x1xi32>
    %378 = arith.cmpi eq, %9, %377 : vector<8x1xi32>
    %379 = arith.subf %357, %367 : vector<8x128xf32>
    %380 = vector.shape_cast %378 : vector<8x1xi1> to vector<8x1xi1>
    %381 = vector.broadcast %380 : vector<8x1xi1> to vector<8x128xi1>
    %382 = arith.select %381, %379, %376 : vector<8x128xi1>, vector<8x128xf32>
    %383 = vector.extract_strided_slice %359 {offsets = [0, 8], sizes = [8, 120], strides = [1, 1]} : vector<8x128xf32> to vector<8x120xf32>
    %384 = vector.extract_strided_slice %359 {offsets = [0, 0], sizes = [8, 8], strides = [1, 1]} : vector<8x128xf32> to vector<8x8xf32>
    %385 = tpu.concatenate %383, %384 in 1 : vector<8x120xf32>, vector<8x8xf32> -> vector<8x128xf32>
    %386 = vector.extract_strided_slice %359 {offsets = [0, 120], sizes = [8, 8], strides = [1, 1]} : vector<8x128xf32> to vector<8x8xf32>
    %387 = vector.extract_strided_slice %359 {offsets = [0, 0], sizes = [8, 120], strides = [1, 1]} : vector<8x128xf32> to vector<8x120xf32>
    %388 = tpu.concatenate %386, %387 in 1 : vector<8x8xf32>, vector<8x120xf32> -> vector<8x128xf32>
    %389 = arith.subf %385, %388 : vector<8x128xf32>
    %cst_114 = arith.constant 5.000000e-01 : f32
    %390 = vector.broadcast %cst_114 : f32 to vector<8x128xf32>
    %391 = arith.mulf %390, %389 : vector<8x128xf32>
    %c0_i32_115 = arith.constant 0 : i32
    %392 = vector.broadcast %c0_i32_115 : i32 to vector<1x128xi32>
    %393 = arith.cmpi eq, %11, %392 : vector<1x128xi32>
    %394 = arith.subf %385, %359 : vector<8x128xf32>
    %395 = vector.shape_cast %393 : vector<1x128xi1> to vector<1x128xi1>
    %396 = vector.broadcast %395 : vector<1x128xi1> to vector<8x128xi1>
    %397 = arith.select %396, %394, %391 : vector<8x128xi1>, vector<8x128xf32>
    %c7_i32_116 = arith.constant 7 : i32
    %398 = vector.broadcast %c7_i32_116 : i32 to vector<1x128xi32>
    %399 = arith.cmpi eq, %11, %398 : vector<1x128xi32>
    %400 = arith.subf %359, %388 : vector<8x128xf32>
    %401 = vector.shape_cast %399 : vector<1x128xi1> to vector<1x128xi1>
    %402 = vector.broadcast %401 : vector<1x128xi1> to vector<8x128xi1>
    %403 = arith.select %402, %400, %397 : vector<8x128xi1>, vector<8x128xf32>
    %404 = vector.extract_strided_slice %361 {offsets = [0, 1], sizes = [8, 127], strides = [1, 1]} : vector<8x128xf32> to vector<8x127xf32>
    %405 = vector.extract_strided_slice %361 {offsets = [0, 0], sizes = [8, 1], strides = [1, 1]} : vector<8x128xf32> to vector<8x1xf32>
    %406 = tpu.concatenate %404, %405 in 1 : vector<8x127xf32>, vector<8x1xf32> -> vector<8x128xf32>
    %407 = vector.extract_strided_slice %361 {offsets = [0, 127], sizes = [8, 1], strides = [1, 1]} : vector<8x128xf32> to vector<8x1xf32>
    %408 = vector.extract_strided_slice %361 {offsets = [0, 0], sizes = [8, 127], strides = [1, 1]} : vector<8x128xf32> to vector<8x127xf32>
    %409 = tpu.concatenate %407, %408 in 1 : vector<8x1xf32>, vector<8x127xf32> -> vector<8x128xf32>
    %410 = arith.subf %406, %409 : vector<8x128xf32>
    %cst_117 = arith.constant 5.000000e-01 : f32
    %411 = vector.broadcast %cst_117 : f32 to vector<8x128xf32>
    %412 = arith.mulf %411, %410 : vector<8x128xf32>
    %c0_i32_118 = arith.constant 0 : i32
    %413 = vector.broadcast %c0_i32_118 : i32 to vector<1x128xi32>
    %414 = arith.cmpi eq, %12, %413 : vector<1x128xi32>
    %415 = arith.subf %406, %361 : vector<8x128xf32>
    %416 = vector.shape_cast %414 : vector<1x128xi1> to vector<1x128xi1>
    %417 = vector.broadcast %416 : vector<1x128xi1> to vector<8x128xi1>
    %418 = arith.select %417, %415, %412 : vector<8x128xi1>, vector<8x128xf32>
    %c7_i32_119 = arith.constant 7 : i32
    %419 = vector.broadcast %c7_i32_119 : i32 to vector<1x128xi32>
    %420 = arith.cmpi eq, %12, %419 : vector<1x128xi32>
    %421 = arith.subf %361, %409 : vector<8x128xf32>
    %422 = vector.shape_cast %420 : vector<1x128xi1> to vector<1x128xi1>
    %423 = vector.broadcast %422 : vector<1x128xi1> to vector<8x128xi1>
    %424 = arith.select %423, %421, %418 : vector<8x128xi1>, vector<8x128xf32>
    %425 = arith.addf %382, %403 : vector<8x128xf32>
    %426 = arith.addf %425, %424 : vector<8x128xf32>
    %427 = arith.mulf %382, %382 : vector<8x128xf32>
    %428 = arith.mulf %403, %403 : vector<8x128xf32>
    %429 = arith.addf %427, %428 : vector<8x128xf32>
    %430 = arith.mulf %424, %424 : vector<8x128xf32>
    %431 = arith.addf %429, %430 : vector<8x128xf32>
    %432 = vector.extract_strided_slice %357 {offsets = [0, 8], sizes = [8, 120], strides = [1, 1]} : vector<8x128xf32> to vector<8x120xf32>
    %433 = vector.extract_strided_slice %357 {offsets = [0, 0], sizes = [8, 8], strides = [1, 1]} : vector<8x128xf32> to vector<8x8xf32>
    %434 = tpu.concatenate %432, %433 in 1 : vector<8x120xf32>, vector<8x8xf32> -> vector<8x128xf32>
    %435 = vector.extract_strided_slice %357 {offsets = [0, 120], sizes = [8, 8], strides = [1, 1]} : vector<8x128xf32> to vector<8x8xf32>
    %436 = vector.extract_strided_slice %357 {offsets = [0, 0], sizes = [8, 120], strides = [1, 1]} : vector<8x128xf32> to vector<8x120xf32>
    %437 = tpu.concatenate %435, %436 in 1 : vector<8x8xf32>, vector<8x120xf32> -> vector<8x128xf32>
    %438 = arith.subf %434, %437 : vector<8x128xf32>
    %cst_120 = arith.constant 5.000000e-01 : f32
    %439 = vector.broadcast %cst_120 : f32 to vector<8x128xf32>
    %440 = arith.mulf %439, %438 : vector<8x128xf32>
    %c0_i32_121 = arith.constant 0 : i32
    %441 = vector.broadcast %c0_i32_121 : i32 to vector<1x128xi32>
    %442 = arith.cmpi eq, %11, %441 : vector<1x128xi32>
    %443 = arith.subf %434, %357 : vector<8x128xf32>
    %444 = vector.shape_cast %442 : vector<1x128xi1> to vector<1x128xi1>
    %445 = vector.broadcast %444 : vector<1x128xi1> to vector<8x128xi1>
    %446 = arith.select %445, %443, %440 : vector<8x128xi1>, vector<8x128xf32>
    %c7_i32_122 = arith.constant 7 : i32
    %447 = vector.broadcast %c7_i32_122 : i32 to vector<1x128xi32>
    %448 = arith.cmpi eq, %11, %447 : vector<1x128xi32>
    %449 = arith.subf %357, %437 : vector<8x128xf32>
    %450 = vector.shape_cast %448 : vector<1x128xi1> to vector<1x128xi1>
    %451 = vector.broadcast %450 : vector<1x128xi1> to vector<8x128xi1>
    %452 = arith.select %451, %449, %446 : vector<8x128xi1>, vector<8x128xf32>
    %453 = vector.extract_strided_slice %359 {offsets = [1, 0], sizes = [7, 128], strides = [1, 1]} : vector<8x128xf32> to vector<7x128xf32>
    %454 = vector.extract_strided_slice %359 {offsets = [7, 0], sizes = [1, 128], strides = [1, 1]} : vector<8x128xf32> to vector<1x128xf32>
    %455 = tpu.concatenate %453, %454 in 0 : vector<7x128xf32>, vector<1x128xf32> -> vector<8x128xf32>
    %456 = vector.extract_strided_slice %359 {offsets = [0, 0], sizes = [1, 128], strides = [1, 1]} : vector<8x128xf32> to vector<1x128xf32>
    %457 = vector.extract_strided_slice %359 {offsets = [0, 0], sizes = [7, 128], strides = [1, 1]} : vector<8x128xf32> to vector<7x128xf32>
    %458 = tpu.concatenate %456, %457 in 0 : vector<1x128xf32>, vector<7x128xf32> -> vector<8x128xf32>
    %459 = arith.subf %455, %458 : vector<8x128xf32>
    %cst_123 = arith.constant 5.000000e-01 : f32
    %460 = vector.broadcast %cst_123 : f32 to vector<8x128xf32>
    %461 = arith.mulf %460, %459 : vector<8x128xf32>
    %c0_i32_124 = arith.constant 0 : i32
    %462 = vector.broadcast %c0_i32_124 : i32 to vector<8x1xi32>
    %463 = arith.cmpi eq, %9, %462 : vector<8x1xi32>
    %464 = arith.subf %455, %359 : vector<8x128xf32>
    %465 = vector.shape_cast %463 : vector<8x1xi1> to vector<8x1xi1>
    %466 = vector.broadcast %465 : vector<8x1xi1> to vector<8x128xi1>
    %467 = arith.select %466, %464, %461 : vector<8x128xi1>, vector<8x128xf32>
    %c7_i32_125 = arith.constant 7 : i32
    %468 = vector.broadcast %c7_i32_125 : i32 to vector<8x1xi32>
    %469 = arith.cmpi eq, %9, %468 : vector<8x1xi32>
    %470 = arith.subf %359, %458 : vector<8x128xf32>
    %471 = vector.shape_cast %469 : vector<8x1xi1> to vector<8x1xi1>
    %472 = vector.broadcast %471 : vector<8x1xi1> to vector<8x128xi1>
    %473 = arith.select %472, %470, %467 : vector<8x128xi1>, vector<8x128xf32>
    %474 = arith.addf %452, %473 : vector<8x128xf32>
    %cst_126 = arith.constant 5.000000e-01 : f32
    %475 = vector.broadcast %cst_126 : f32 to vector<8x128xf32>
    %476 = arith.mulf %475, %474 : vector<8x128xf32>
    %477 = arith.mulf %476, %476 : vector<8x128xf32>
    %cst_127 = arith.constant 2.000000e+00 : f32
    %478 = vector.broadcast %cst_127 : f32 to vector<8x128xf32>
    %479 = arith.mulf %478, %477 : vector<8x128xf32>
    %480 = arith.addf %431, %479 : vector<8x128xf32>
    %481 = vector.extract_strided_slice %357 {offsets = [0, 1], sizes = [8, 127], strides = [1, 1]} : vector<8x128xf32> to vector<8x127xf32>
    %482 = vector.extract_strided_slice %357 {offsets = [0, 0], sizes = [8, 1], strides = [1, 1]} : vector<8x128xf32> to vector<8x1xf32>
    %483 = tpu.concatenate %481, %482 in 1 : vector<8x127xf32>, vector<8x1xf32> -> vector<8x128xf32>
    %484 = vector.extract_strided_slice %357 {offsets = [0, 127], sizes = [8, 1], strides = [1, 1]} : vector<8x128xf32> to vector<8x1xf32>
    %485 = vector.extract_strided_slice %357 {offsets = [0, 0], sizes = [8, 127], strides = [1, 1]} : vector<8x128xf32> to vector<8x127xf32>
    %486 = tpu.concatenate %484, %485 in 1 : vector<8x1xf32>, vector<8x127xf32> -> vector<8x128xf32>
    %487 = arith.subf %483, %486 : vector<8x128xf32>
    %cst_128 = arith.constant 5.000000e-01 : f32
    %488 = vector.broadcast %cst_128 : f32 to vector<8x128xf32>
    %489 = arith.mulf %488, %487 : vector<8x128xf32>
    %c0_i32_129 = arith.constant 0 : i32
    %490 = vector.broadcast %c0_i32_129 : i32 to vector<1x128xi32>
    %491 = arith.cmpi eq, %12, %490 : vector<1x128xi32>
    %492 = arith.subf %483, %357 : vector<8x128xf32>
    %493 = vector.shape_cast %491 : vector<1x128xi1> to vector<1x128xi1>
    %494 = vector.broadcast %493 : vector<1x128xi1> to vector<8x128xi1>
    %495 = arith.select %494, %492, %489 : vector<8x128xi1>, vector<8x128xf32>
    %c7_i32_130 = arith.constant 7 : i32
    %496 = vector.broadcast %c7_i32_130 : i32 to vector<1x128xi32>
    %497 = arith.cmpi eq, %12, %496 : vector<1x128xi32>
    %498 = arith.subf %357, %486 : vector<8x128xf32>
    %499 = vector.shape_cast %497 : vector<1x128xi1> to vector<1x128xi1>
    %500 = vector.broadcast %499 : vector<1x128xi1> to vector<8x128xi1>
    %501 = arith.select %500, %498, %495 : vector<8x128xi1>, vector<8x128xf32>
    %502 = vector.extract_strided_slice %361 {offsets = [1, 0], sizes = [7, 128], strides = [1, 1]} : vector<8x128xf32> to vector<7x128xf32>
    %503 = vector.extract_strided_slice %361 {offsets = [7, 0], sizes = [1, 128], strides = [1, 1]} : vector<8x128xf32> to vector<1x128xf32>
    %504 = tpu.concatenate %502, %503 in 0 : vector<7x128xf32>, vector<1x128xf32> -> vector<8x128xf32>
    %505 = vector.extract_strided_slice %361 {offsets = [0, 0], sizes = [1, 128], strides = [1, 1]} : vector<8x128xf32> to vector<1x128xf32>
    %506 = vector.extract_strided_slice %361 {offsets = [0, 0], sizes = [7, 128], strides = [1, 1]} : vector<8x128xf32> to vector<7x128xf32>
    %507 = tpu.concatenate %505, %506 in 0 : vector<1x128xf32>, vector<7x128xf32> -> vector<8x128xf32>
    %508 = arith.subf %504, %507 : vector<8x128xf32>
    %cst_131 = arith.constant 5.000000e-01 : f32
    %509 = vector.broadcast %cst_131 : f32 to vector<8x128xf32>
    %510 = arith.mulf %509, %508 : vector<8x128xf32>
    %c0_i32_132 = arith.constant 0 : i32
    %511 = vector.broadcast %c0_i32_132 : i32 to vector<8x1xi32>
    %512 = arith.cmpi eq, %9, %511 : vector<8x1xi32>
    %513 = arith.subf %504, %361 : vector<8x128xf32>
    %514 = vector.shape_cast %512 : vector<8x1xi1> to vector<8x1xi1>
    %515 = vector.broadcast %514 : vector<8x1xi1> to vector<8x128xi1>
    %516 = arith.select %515, %513, %510 : vector<8x128xi1>, vector<8x128xf32>
    %c7_i32_133 = arith.constant 7 : i32
    %517 = vector.broadcast %c7_i32_133 : i32 to vector<8x1xi32>
    %518 = arith.cmpi eq, %9, %517 : vector<8x1xi32>
    %519 = arith.subf %361, %507 : vector<8x128xf32>
    %520 = vector.shape_cast %518 : vector<8x1xi1> to vector<8x1xi1>
    %521 = vector.broadcast %520 : vector<8x1xi1> to vector<8x128xi1>
    %522 = arith.select %521, %519, %516 : vector<8x128xi1>, vector<8x128xf32>
    %523 = arith.addf %501, %522 : vector<8x128xf32>
    %cst_134 = arith.constant 5.000000e-01 : f32
    %524 = vector.broadcast %cst_134 : f32 to vector<8x128xf32>
    %525 = arith.mulf %524, %523 : vector<8x128xf32>
    %526 = arith.mulf %525, %525 : vector<8x128xf32>
    %cst_135 = arith.constant 2.000000e+00 : f32
    %527 = vector.broadcast %cst_135 : f32 to vector<8x128xf32>
    %528 = arith.mulf %527, %526 : vector<8x128xf32>
    %529 = arith.addf %480, %528 : vector<8x128xf32>
    %530 = vector.extract_strided_slice %359 {offsets = [0, 1], sizes = [8, 127], strides = [1, 1]} : vector<8x128xf32> to vector<8x127xf32>
    %531 = vector.extract_strided_slice %359 {offsets = [0, 0], sizes = [8, 1], strides = [1, 1]} : vector<8x128xf32> to vector<8x1xf32>
    %532 = tpu.concatenate %530, %531 in 1 : vector<8x127xf32>, vector<8x1xf32> -> vector<8x128xf32>
    %533 = vector.extract_strided_slice %359 {offsets = [0, 127], sizes = [8, 1], strides = [1, 1]} : vector<8x128xf32> to vector<8x1xf32>
    %534 = vector.extract_strided_slice %359 {offsets = [0, 0], sizes = [8, 127], strides = [1, 1]} : vector<8x128xf32> to vector<8x127xf32>
    %535 = tpu.concatenate %533, %534 in 1 : vector<8x1xf32>, vector<8x127xf32> -> vector<8x128xf32>
    %536 = arith.subf %532, %535 : vector<8x128xf32>
    %cst_136 = arith.constant 5.000000e-01 : f32
    %537 = vector.broadcast %cst_136 : f32 to vector<8x128xf32>
    %538 = arith.mulf %537, %536 : vector<8x128xf32>
    %c0_i32_137 = arith.constant 0 : i32
    %539 = vector.broadcast %c0_i32_137 : i32 to vector<1x128xi32>
    %540 = arith.cmpi eq, %12, %539 : vector<1x128xi32>
    %541 = arith.subf %532, %359 : vector<8x128xf32>
    %542 = vector.shape_cast %540 : vector<1x128xi1> to vector<1x128xi1>
    %543 = vector.broadcast %542 : vector<1x128xi1> to vector<8x128xi1>
    %544 = arith.select %543, %541, %538 : vector<8x128xi1>, vector<8x128xf32>
    %c7_i32_138 = arith.constant 7 : i32
    %545 = vector.broadcast %c7_i32_138 : i32 to vector<1x128xi32>
    %546 = arith.cmpi eq, %12, %545 : vector<1x128xi32>
    %547 = arith.subf %359, %535 : vector<8x128xf32>
    %548 = vector.shape_cast %546 : vector<1x128xi1> to vector<1x128xi1>
    %549 = vector.broadcast %548 : vector<1x128xi1> to vector<8x128xi1>
    %550 = arith.select %549, %547, %544 : vector<8x128xi1>, vector<8x128xf32>
    %551 = vector.extract_strided_slice %361 {offsets = [0, 8], sizes = [8, 120], strides = [1, 1]} : vector<8x128xf32> to vector<8x120xf32>
    %552 = vector.extract_strided_slice %361 {offsets = [0, 0], sizes = [8, 8], strides = [1, 1]} : vector<8x128xf32> to vector<8x8xf32>
    %553 = tpu.concatenate %551, %552 in 1 : vector<8x120xf32>, vector<8x8xf32> -> vector<8x128xf32>
    %554 = vector.extract_strided_slice %361 {offsets = [0, 120], sizes = [8, 8], strides = [1, 1]} : vector<8x128xf32> to vector<8x8xf32>
    %555 = vector.extract_strided_slice %361 {offsets = [0, 0], sizes = [8, 120], strides = [1, 1]} : vector<8x128xf32> to vector<8x120xf32>
    %556 = tpu.concatenate %554, %555 in 1 : vector<8x8xf32>, vector<8x120xf32> -> vector<8x128xf32>
    %557 = arith.subf %553, %556 : vector<8x128xf32>
    %cst_139 = arith.constant 5.000000e-01 : f32
    %558 = vector.broadcast %cst_139 : f32 to vector<8x128xf32>
    %559 = arith.mulf %558, %557 : vector<8x128xf32>
    %c0_i32_140 = arith.constant 0 : i32
    %560 = vector.broadcast %c0_i32_140 : i32 to vector<1x128xi32>
    %561 = arith.cmpi eq, %11, %560 : vector<1x128xi32>
    %562 = arith.subf %553, %361 : vector<8x128xf32>
    %563 = vector.shape_cast %561 : vector<1x128xi1> to vector<1x128xi1>
    %564 = vector.broadcast %563 : vector<1x128xi1> to vector<8x128xi1>
    %565 = arith.select %564, %562, %559 : vector<8x128xi1>, vector<8x128xf32>
    %c7_i32_141 = arith.constant 7 : i32
    %566 = vector.broadcast %c7_i32_141 : i32 to vector<1x128xi32>
    %567 = arith.cmpi eq, %11, %566 : vector<1x128xi32>
    %568 = arith.subf %361, %556 : vector<8x128xf32>
    %569 = vector.shape_cast %567 : vector<1x128xi1> to vector<1x128xi1>
    %570 = vector.broadcast %569 : vector<1x128xi1> to vector<8x128xi1>
    %571 = arith.select %570, %568, %565 : vector<8x128xi1>, vector<8x128xf32>
    %572 = arith.addf %550, %571 : vector<8x128xf32>
    %cst_142 = arith.constant 5.000000e-01 : f32
    %573 = vector.broadcast %cst_142 : f32 to vector<8x128xf32>
    %574 = arith.mulf %573, %572 : vector<8x128xf32>
    %575 = arith.mulf %574, %574 : vector<8x128xf32>
    %cst_143 = arith.constant 2.000000e+00 : f32
    %576 = vector.broadcast %cst_143 : f32 to vector<8x128xf32>
    %577 = arith.mulf %576, %575 : vector<8x128xf32>
    %578 = arith.addf %529, %577 : vector<8x128xf32>
    %cst_144 = arith.constant 5.000000e-01 : f32
    %579 = vector.broadcast %cst_144 : f32 to vector<8x128xf32>
    %580 = arith.mulf %579, %337 : vector<8x128xf32>
    %581 = arith.mulf %426, %426 : vector<8x128xf32>
    %582 = arith.mulf %580, %581 : vector<8x128xf32>
    %583 = arith.mulf %345, %578 : vector<8x128xf32>
    %584 = arith.addf %582, %583 : vector<8x128xf32>
    %585 = arith.mulf %349, %584 : vector<8x128xf32>
    %c8_i32_145 = arith.constant 8 : i32
    %586 = arith.muli %arg1, %c8_i32_145 : i32
    %c8_i32_146 = arith.constant 8 : i32
    %587 = arith.addi %586, %c8_i32_146 : i32
    %c8_i32_147 = arith.constant 8 : i32
    %588 = arith.minsi %587, %c8_i32_147 : i32
    %589 = vector.broadcast %586 : i32 to vector<8x1xi32>
    %590 = arith.cmpi sge, %9, %589 : vector<8x1xi32>
    %591 = vector.broadcast %588 : i32 to vector<8x1xi32>
    %592 = arith.cmpi slt, %9, %591 : vector<8x1xi32>
    %593 = arith.andi %590, %592 : vector<8x1xi1>
    %c8_i32_148 = arith.constant 8 : i32
    %594 = vector.broadcast %c8_i32_148 : i32 to vector<1x128xi32>
    %595 = arith.cmpi slt, %11, %594 : vector<1x128xi32>
    %596 = vector.broadcast %593 : vector<8x1xi1> to vector<8x128xi1>
    %597 = vector.broadcast %595 : vector<1x128xi1> to vector<8x128xi1>
    %598 = arith.andi %596, %597 : vector<8x128xi1>
    %cst_149 = arith.constant 0.000000e+00 : f32
    %599 = vector.broadcast %cst_149 : f32 to vector<8x128xf32>
    %600 = arith.select %598, %585, %599 : vector<8x128xi1>, vector<8x128xf32>
    %601 = vector.shape_cast %600 : vector<8x128xf32> to vector<1x8x128xf32>
    %cst_150 = arith.constant dense<0.000000e+00> : vector<1xf32>
    %602 = vector.multi_reduction <add>, %601, %cst_150 [1, 2] : vector<1x8x128xf32> to vector<1xf32>
    %603 = vector.shape_cast %602 : vector<1xf32> to vector<1x1x1xf32>
    %604 = vector.extract %603[0, 0, 0] : f32 from vector<1x1x1xf32>
    %605 = vector.broadcast %604 : f32 to vector<1x1xf32>
    %606 = vector.shape_cast %605 : vector<1x1xf32> to vector<1x1xf32>
    %607 = vector.broadcast %606 : vector<1x1xf32> to vector<8x128xf32>
    %c0_151 = arith.constant 0 : index
    %c0_152 = arith.constant 0 : index
    %c0_153 = arith.constant 0 : index
    %c0_154 = arith.constant 0 : index
    %608 = vector.load %arg5[%c0_151, %c0_152, %c0_153, %c0_154] : memref<1x1x8x128xf32, #tpu.memory_space<vmem>>, vector<1x1x8x128xf32>
    %609 = vector.shape_cast %608 : vector<1x1x8x128xf32> to vector<8x128xf32>
    %610 = vector.shape_cast %607 : vector<8x128xf32> to vector<1x1x8x128xf32>
    tpu.vector_store %arg5[%c0_151, %c0_152, %c0_153, %c0_154], %610 {strides = array<i32>} : memref<1x1x8x128xf32, #tpu.memory_space<vmem>>, vector<1x1x8x128xf32>,
    return
  }
  func.func @transform_2(%arg0: i32, %arg1: i32) -> (i32, i32) {
    %c0_i32 = arith.constant 0 : i32
    %c0_i32_0 = arith.constant 0 : i32
    %c0_i32_1 = arith.constant 0 : i32
    return %c0_i32, %c0_i32_0 : i32, i32
  }
  func.func @transform_3(%arg0: i32, %arg1: i32) -> (i32, i32, i32, i32) {
    %c0_i32 = arith.constant 0 : i32
    %c0_i32_0 = arith.constant 0 : i32
    %c0_i32_1 = arith.constant 0 : i32
    return %arg0, %arg1, %c0_i32, %c0_i32_0 : i32, i32, i32, i32
  }
}

module attributes {stable_mosaic.version = 11 : i64} {
  func.func @kernel(%arg0: i32, %arg1: i32, %arg2: memref<2x3x16x256xf32, #tpu.memory_space<any>>, %arg3: memref<2x16x256xf32, #tpu.memory_space<any>>, %arg4: memref<2x256xi32, #tpu.memory_space<vmem>>, %arg5: memref<1x1x8x128xf32, #tpu.memory_space<vmem>>, %arg6: memref<1x3x16x256xf32, #tpu.memory_space<vmem>>, %arg7: memref<1x16x256xf32, #tpu.memory_space<vmem>>, %arg8: memref<1x2x!tpu.dma_semaphore, #tpu.memory_space<semaphore_mem>>) attributes {dimension_semantics = [#tpu.dimension_semantics<parallel>, #tpu.dimension_semantics<arbitrary>], iteration_bounds = array<i64: 2, 1>, scalar_prefetch = 0 : i64, scratch_operands = 3 : i64, tpu.core_type = #tpu.core_type<tc>, window_params = [{}, {}, {pipeline_mode = #tpu.pipeline_mode<synchronous>, transform_indices = @transform_2, window_bounds = array<i64: 2, 256>}, {transform_indices = @transform_3, window_bounds = array<i64: 1, 1, 8, 128>}]} {
    %c0_i32 = arith.constant 0 : i32
    %0 = arith.cmpi eq, %arg1, %c0_i32 : i32
    %1 = arith.extui %0 : i1 to i32
    %c0_i32_0 = arith.constant 0 : i32
    %2 = arith.cmpi ne, %1, %c0_i32_0 : i32
    scf.if %2 {
      %c-3_i32 = arith.constant -3 : i32
      %c0_i32_155 = arith.constant 0 : i32
      %c0_i32_156 = arith.constant 0 : i32
      %611 = arith.maxsi %c0_i32_155, %c-3_i32 : i32
      %612 = arith.minsi %c0_i32_156, %611 : i32
      %c0_i32_157 = arith.constant 0 : i32
      %c0_i32_158 = arith.constant 0 : i32
      %c0_i32_159 = arith.constant 0 : i32
      %c0_i32_160 = arith.constant 0 : i32
      %c0_i32_161 = arith.constant 0 : i32
      %613 = tpu.memref_slice %arg2[%arg0, %c0_i32_160, %612, %c0_i32_161] : memref<2x3x16x256xf32, #tpu.memory_space<any>> -> memref<1x3x16x256xf32, #tpu.memory_space<any>>
      %614 = tpu.memref_squeeze %613 : memref<1x3x16x256xf32, #tpu.memory_space<any>> -> memref<3x16x256xf32, #tpu.memory_space<any>>
      %c0_i32_162 = arith.constant 0 : i32
      %c0_i32_163 = arith.constant 0 : i32
      %c0_i32_164 = arith.constant 0 : i32
      %615 = tpu.memref_slice %arg6[%c0_i32_157, %c0_i32_162, %c0_i32_163, %c0_i32_164] : memref<1x3x16x256xf32, #tpu.memory_space<vmem>> -> memref<1x3x16x256xf32, #tpu.memory_space<vmem>>
      %616 = tpu.memref_squeeze %615 : memref<1x3x16x256xf32, #tpu.memory_space<vmem>> -> memref<3x16x256xf32, #tpu.memory_space<vmem>>
      %617 = tpu.memref_slice %arg8[%c0_i32_158, %c0_i32_159] : memref<1x2x!tpu.dma_semaphore, #tpu.memory_space<semaphore_mem>> -> memref<1x1x!tpu.dma_semaphore, #tpu.memory_space<semaphore_mem>>
      %618 = tpu.memref_squeeze %617 : memref<1x1x!tpu.dma_semaphore, #tpu.memory_space<semaphore_mem>> -> memref<!tpu.dma_semaphore, #tpu.memory_space<semaphore_mem>>
      tpu.enqueue_dma source(%614 : memref<3x16x256xf32, #tpu.memory_space<any>>) target(%616 : memref<3x16x256xf32, #tpu.memory_space<vmem>>) target_semaphore(%618 : memref<!tpu.dma_semaphore, #tpu.memory_space<semaphore_mem>>)
      %c0_i32_165 = arith.constant 0 : i32
      %c0_i32_166 = arith.constant 0 : i32
      %c1_i32_167 = arith.constant 1 : i32
      %c0_i32_168 = arith.constant 0 : i32
      %619 = tpu.memref_slice %arg3[%arg0, %612, %c0_i32_168] : memref<2x16x256xf32, #tpu.memory_space<any>> -> memref<1x16x256xf32, #tpu.memory_space<any>>
      %620 = tpu.memref_squeeze %619 : memref<1x16x256xf32, #tpu.memory_space<any>> -> memref<16x256xf32, #tpu.memory_space<any>>
      %c0_i32_169 = arith.constant 0 : i32
      %c0_i32_170 = arith.constant 0 : i32
      %621 = tpu.memref_slice %arg7[%c0_i32_165, %c0_i32_169, %c0_i32_170] : memref<1x16x256xf32, #tpu.memory_space<vmem>> -> memref<1x16x256xf32, #tpu.memory_space<vmem>>
      %622 = tpu.memref_squeeze %621 : memref<1x16x256xf32, #tpu.memory_space<vmem>> -> memref<16x256xf32, #tpu.memory_space<vmem>>
      %623 = tpu.memref_slice %arg8[%c0_i32_166, %c1_i32_167] : memref<1x2x!tpu.dma_semaphore, #tpu.memory_space<semaphore_mem>> -> memref<1x1x!tpu.dma_semaphore, #tpu.memory_space<semaphore_mem>>
      %624 = tpu.memref_squeeze %623 : memref<1x1x!tpu.dma_semaphore, #tpu.memory_space<semaphore_mem>> -> memref<!tpu.dma_semaphore, #tpu.memory_space<semaphore_mem>>
      tpu.enqueue_dma source(%620 : memref<16x256xf32, #tpu.memory_space<any>>) target(%622 : memref<16x256xf32, #tpu.memory_space<vmem>>) target_semaphore(%624 : memref<!tpu.dma_semaphore, #tpu.memory_space<semaphore_mem>>)
    } else {
    }
    %c16_i32 = arith.constant 16 : i32
    %3 = arith.muli %arg1, %c16_i32 : i32
    %c3_i32 = arith.constant 3 : i32
    %4 = arith.subi %3, %c3_i32 : i32
    %c0_i32_1 = arith.constant 0 : i32
    %c0_i32_2 = arith.constant 0 : i32
    %5 = arith.maxsi %c0_i32_1, %4 : i32
    %6 = arith.minsi %c0_i32_2, %5 : i32
    %7 = tpu.iota {dimensions = array<i32: 0>} : vector<16x1xi32>
    %8 = vector.broadcast %6 : i32 to vector<16x1xi32>
    %9 = arith.addi %8, %7 : vector<16x1xi32>
    %c0 = arith.constant 0 : index
    %c0_3 = arith.constant 0 : index
    %10 = vector.load %arg4[%c0, %c0_3] : memref<2x256xi32, #tpu.memory_space<vmem>>, vector<2x256xi32>
    %11 = vector.extract_strided_slice %10 {offsets = [0, 0], sizes = [1, 256], strides = [1, 1]} : vector<2x256xi32> to vector<1x256xi32>
    %12 = vector.extract_strided_slice %10 {offsets = [1, 0], sizes = [1, 256], strides = [1, 1]} : vector<2x256xi32> to vector<1x256xi32>
    %c0_i32_4 = arith.constant 0 : i32
    %c0_i32_5 = arith.constant 0 : i32
    %c1_i32 = arith.constant 1 : i32
    %c0_i32_6 = arith.constant 0 : i32
    %c0_i32_7 = arith.constant 0 : i32
    %13 = tpu.memref_slice %arg3[%arg0, %c0_i32_6, %c0_i32_7] : memref<2x16x256xf32, #tpu.memory_space<any>> -> memref<1x16x256xf32, #tpu.memory_space<any>>
    %14 = tpu.memref_squeeze %13 : memref<1x16x256xf32, #tpu.memory_space<any>> -> memref<16x256xf32, #tpu.memory_space<any>>
    %c0_i32_8 = arith.constant 0 : i32
    %c0_i32_9 = arith.constant 0 : i32
    %15 = tpu.memref_slice %arg7[%c0_i32_4, %c0_i32_8, %c0_i32_9] : memref<1x16x256xf32, #tpu.memory_space<vmem>> -> memref<1x16x256xf32, #tpu.memory_space<vmem>>
    %16 = tpu.memref_squeeze %15 : memref<1x16x256xf32, #tpu.memory_space<vmem>> -> memref<16x256xf32, #tpu.memory_space<vmem>>
    %17 = tpu.memref_slice %arg8[%c0_i32_5, %c1_i32] : memref<1x2x!tpu.dma_semaphore, #tpu.memory_space<semaphore_mem>> -> memref<1x1x!tpu.dma_semaphore, #tpu.memory_space<semaphore_mem>>
    %18 = tpu.memref_squeeze %17 : memref<1x1x!tpu.dma_semaphore, #tpu.memory_space<semaphore_mem>> -> memref<!tpu.dma_semaphore, #tpu.memory_space<semaphore_mem>>
    tpu.wait_dma2 semaphore(%18 : memref<!tpu.dma_semaphore, #tpu.memory_space<semaphore_mem>>) src(%14 : memref<16x256xf32, #tpu.memory_space<any>>) dst(%16 : memref<16x256xf32, #tpu.memory_space<vmem>>)
    %c0_10 = arith.constant 0 : index
    %c0_11 = arith.constant 0 : index
    %c0_12 = arith.constant 0 : index
    %19 = vector.load %arg7[%c0_10, %c0_11, %c0_12] : memref<1x16x256xf32, #tpu.memory_space<vmem>>, vector<1x16x256xf32>
    %20 = vector.shape_cast %19 : vector<1x16x256xf32> to vector<16x256xf32>
    %21 = vector.extract_strided_slice %20 {offsets = [1, 0], sizes = [15, 256], strides = [1, 1]} : vector<16x256xf32> to vector<15x256xf32>
    %22 = vector.extract_strided_slice %20 {offsets = [15, 0], sizes = [1, 256], strides = [1, 1]} : vector<16x256xf32> to vector<1x256xf32>
    %23 = tpu.concatenate %21, %22 in 0 : vector<15x256xf32>, vector<1x256xf32> -> vector<16x256xf32>
    %24 = vector.extract_strided_slice %20 {offsets = [0, 0], sizes = [1, 256], strides = [1, 1]} : vector<16x256xf32> to vector<1x256xf32>
    %25 = vector.extract_strided_slice %20 {offsets = [0, 0], sizes = [15, 256], strides = [1, 1]} : vector<16x256xf32> to vector<15x256xf32>
    %26 = tpu.concatenate %24, %25 in 0 : vector<1x256xf32>, vector<15x256xf32> -> vector<16x256xf32>
    %27 = arith.subf %23, %26 : vector<16x256xf32>
    %cst = arith.constant 5.000000e-01 : f32
    %28 = vector.broadcast %cst : f32 to vector<16x256xf32>
    %29 = arith.mulf %28, %27 : vector<16x256xf32>
    %c0_i32_13 = arith.constant 0 : i32
    %30 = vector.broadcast %c0_i32_13 : i32 to vector<16x1xi32>
    %31 = arith.cmpi eq, %9, %30 : vector<16x1xi32>
    %32 = arith.subf %23, %20 : vector<16x256xf32>
    %33 = vector.shape_cast %31 : vector<16x1xi1> to vector<16x1xi1>
    %34 = vector.broadcast %33 : vector<16x1xi1> to vector<16x256xi1>
    %35 = arith.select %34, %32, %29 : vector<16x256xi1>, vector<16x256xf32>
    %c15_i32 = arith.constant 15 : i32
    %36 = vector.broadcast %c15_i32 : i32 to vector<16x1xi32>
    %37 = arith.cmpi eq, %9, %36 : vector<16x1xi32>
    %38 = arith.subf %20, %26 : vector<16x256xf32>
    %39 = vector.shape_cast %37 : vector<16x1xi1> to vector<16x1xi1>
    %40 = vector.broadcast %39 : vector<16x1xi1> to vector<16x256xi1>
    %41 = arith.select %40, %38, %35 : vector<16x256xi1>, vector<16x256xf32>
    %42 = arith.mulf %41, %41 : vector<16x256xf32>
    %43 = vector.extract_strided_slice %20 {offsets = [0, 16], sizes = [16, 240], strides = [1, 1]} : vector<16x256xf32> to vector<16x240xf32>
    %44 = vector.extract_strided_slice %20 {offsets = [0, 0], sizes = [16, 16], strides = [1, 1]} : vector<16x256xf32> to vector<16x16xf32>
    %45 = tpu.concatenate %43, %44 in 1 : vector<16x240xf32>, vector<16x16xf32> -> vector<16x256xf32>
    %46 = vector.extract_strided_slice %20 {offsets = [0, 240], sizes = [16, 16], strides = [1, 1]} : vector<16x256xf32> to vector<16x16xf32>
    %47 = vector.extract_strided_slice %20 {offsets = [0, 0], sizes = [16, 240], strides = [1, 1]} : vector<16x256xf32> to vector<16x240xf32>
    %48 = tpu.concatenate %46, %47 in 1 : vector<16x16xf32>, vector<16x240xf32> -> vector<16x256xf32>
    %49 = arith.subf %45, %48 : vector<16x256xf32>
    %cst_14 = arith.constant 5.000000e-01 : f32
    %50 = vector.broadcast %cst_14 : f32 to vector<16x256xf32>
    %51 = arith.mulf %50, %49 : vector<16x256xf32>
    %c0_i32_15 = arith.constant 0 : i32
    %52 = vector.broadcast %c0_i32_15 : i32 to vector<1x256xi32>
    %53 = arith.cmpi eq, %11, %52 : vector<1x256xi32>
    %54 = arith.subf %45, %20 : vector<16x256xf32>
    %55 = vector.shape_cast %53 : vector<1x256xi1> to vector<1x256xi1>
    %56 = vector.broadcast %55 : vector<1x256xi1> to vector<16x256xi1>
    %57 = arith.select %56, %54, %51 : vector<16x256xi1>, vector<16x256xf32>
    %c15_i32_16 = arith.constant 15 : i32
    %58 = vector.broadcast %c15_i32_16 : i32 to vector<1x256xi32>
    %59 = arith.cmpi eq, %11, %58 : vector<1x256xi32>
    %60 = arith.subf %20, %48 : vector<16x256xf32>
    %61 = vector.shape_cast %59 : vector<1x256xi1> to vector<1x256xi1>
    %62 = vector.broadcast %61 : vector<1x256xi1> to vector<16x256xi1>
    %63 = arith.select %62, %60, %57 : vector<16x256xi1>, vector<16x256xf32>
    %64 = arith.mulf %63, %63 : vector<16x256xf32>
    %65 = arith.addf %42, %64 : vector<16x256xf32>
    %66 = vector.extract_strided_slice %20 {offsets = [0, 1], sizes = [16, 255], strides = [1, 1]} : vector<16x256xf32> to vector<16x255xf32>
    %67 = vector.extract_strided_slice %20 {offsets = [0, 0], sizes = [16, 1], strides = [1, 1]} : vector<16x256xf32> to vector<16x1xf32>
    %68 = tpu.concatenate %66, %67 in 1 : vector<16x255xf32>, vector<16x1xf32> -> vector<16x256xf32>
    %69 = vector.extract_strided_slice %20 {offsets = [0, 255], sizes = [16, 1], strides = [1, 1]} : vector<16x256xf32> to vector<16x1xf32>
    %70 = vector.extract_strided_slice %20 {offsets = [0, 0], sizes = [16, 255], strides = [1, 1]} : vector<16x256xf32> to vector<16x255xf32>
    %71 = tpu.concatenate %69, %70 in 1 : vector<16x1xf32>, vector<16x255xf32> -> vector<16x256xf32>
    %72 = arith.subf %68, %71 : vector<16x256xf32>
    %cst_17 = arith.constant 5.000000e-01 : f32
    %73 = vector.broadcast %cst_17 : f32 to vector<16x256xf32>
    %74 = arith.mulf %73, %72 : vector<16x256xf32>
    %c0_i32_18 = arith.constant 0 : i32
    %75 = vector.broadcast %c0_i32_18 : i32 to vector<1x256xi32>
    %76 = arith.cmpi eq, %12, %75 : vector<1x256xi32>
    %77 = arith.subf %68, %20 : vector<16x256xf32>
    %78 = vector.shape_cast %76 : vector<1x256xi1> to vector<1x256xi1>
    %79 = vector.broadcast %78 : vector<1x256xi1> to vector<16x256xi1>
    %80 = arith.select %79, %77, %74 : vector<16x256xi1>, vector<16x256xf32>
    %c15_i32_19 = arith.constant 15 : i32
    %81 = vector.broadcast %c15_i32_19 : i32 to vector<1x256xi32>
    %82 = arith.cmpi eq, %12, %81 : vector<1x256xi32>
    %83 = arith.subf %20, %71 : vector<16x256xf32>
    %84 = vector.shape_cast %82 : vector<1x256xi1> to vector<1x256xi1>
    %85 = vector.broadcast %84 : vector<1x256xi1> to vector<16x256xi1>
    %86 = arith.select %85, %83, %80 : vector<16x256xi1>, vector<16x256xf32>
    %87 = arith.mulf %86, %86 : vector<16x256xf32>
    %88 = arith.addf %65, %87 : vector<16x256xf32>
    %89 = math.sqrt %88 : vector<16x256xf32>
    %90 = vector.extract_strided_slice %89 {offsets = [1, 0], sizes = [15, 256], strides = [1, 1]} : vector<16x256xf32> to vector<15x256xf32>
    %91 = vector.extract_strided_slice %89 {offsets = [15, 0], sizes = [1, 256], strides = [1, 1]} : vector<16x256xf32> to vector<1x256xf32>
    %92 = tpu.concatenate %90, %91 in 0 : vector<15x256xf32>, vector<1x256xf32> -> vector<16x256xf32>
    %93 = vector.extract_strided_slice %89 {offsets = [2, 0], sizes = [14, 256], strides = [1, 1]} : vector<16x256xf32> to vector<14x256xf32>
    %94 = vector.extract_strided_slice %89 {offsets = [14, 0], sizes = [2, 256], strides = [1, 1]} : vector<16x256xf32> to vector<2x256xf32>
    %95 = tpu.concatenate %93, %94 in 0 : vector<14x256xf32>, vector<2x256xf32> -> vector<16x256xf32>
    %96 = vector.extract_strided_slice %89 {offsets = [0, 0], sizes = [1, 256], strides = [1, 1]} : vector<16x256xf32> to vector<1x256xf32>
    %97 = vector.extract_strided_slice %89 {offsets = [0, 0], sizes = [15, 256], strides = [1, 1]} : vector<16x256xf32> to vector<15x256xf32>
    %98 = tpu.concatenate %96, %97 in 0 : vector<1x256xf32>, vector<15x256xf32> -> vector<16x256xf32>
    %99 = vector.extract_strided_slice %89 {offsets = [0, 0], sizes = [2, 256], strides = [1, 1]} : vector<16x256xf32> to vector<2x256xf32>
    %100 = vector.extract_strided_slice %89 {offsets = [0, 0], sizes = [14, 256], strides = [1, 1]} : vector<16x256xf32> to vector<14x256xf32>
    %101 = tpu.concatenate %99, %100 in 0 : vector<2x256xf32>, vector<14x256xf32> -> vector<16x256xf32>
    %cst_20 = arith.constant 0.369546473 : f32
    %102 = vector.broadcast %cst_20 : f32 to vector<16x256xf32>
    %103 = arith.mulf %102, %89 : vector<16x256xf32>
    %104 = arith.addf %92, %98 : vector<16x256xf32>
    %cst_21 = arith.constant 0.244460404 : f32
    %105 = vector.broadcast %cst_21 : f32 to vector<16x256xf32>
    %106 = arith.mulf %105, %104 : vector<16x256xf32>
    %107 = arith.addf %103, %106 : vector<16x256xf32>
    %108 = arith.addf %95, %101 : vector<16x256xf32>
    %cst_22 = arith.constant 0.0707663745 : f32
    %109 = vector.broadcast %cst_22 : f32 to vector<16x256xf32>
    %110 = arith.mulf %109, %108 : vector<16x256xf32>
    %111 = arith.addf %107, %110 : vector<16x256xf32>
    %c1_i32_23 = arith.constant 1 : i32
    %112 = vector.broadcast %c1_i32_23 : i32 to vector<16x1xi32>
    %113 = arith.cmpi eq, %9, %112 : vector<16x1xi32>
    %cst_24 = arith.constant 0.244460404 : f32
    %114 = vector.broadcast %cst_24 : f32 to vector<16x256xf32>
    %115 = arith.mulf %114, %98 : vector<16x256xf32>
    %cst_25 = arith.constant 0.440312833 : f32
    %116 = vector.broadcast %cst_25 : f32 to vector<16x256xf32>
    %117 = arith.mulf %116, %89 : vector<16x256xf32>
    %118 = arith.addf %115, %117 : vector<16x256xf32>
    %cst_26 = arith.constant 0.244460404 : f32
    %119 = vector.broadcast %cst_26 : f32 to vector<16x256xf32>
    %120 = arith.mulf %119, %92 : vector<16x256xf32>
    %121 = arith.addf %118, %120 : vector<16x256xf32>
    %cst_27 = arith.constant 0.0707663745 : f32
    %122 = vector.broadcast %cst_27 : f32 to vector<16x256xf32>
    %123 = arith.mulf %122, %95 : vector<16x256xf32>
    %124 = arith.addf %121, %123 : vector<16x256xf32>
    %125 = vector.shape_cast %113 : vector<16x1xi1> to vector<16x1xi1>
    %126 = vector.broadcast %125 : vector<16x1xi1> to vector<16x256xi1>
    %127 = arith.select %126, %124, %111 : vector<16x256xi1>, vector<16x256xf32>
    %c14_i32 = arith.constant 14 : i32
    %128 = vector.broadcast %c14_i32 : i32 to vector<16x1xi32>
    %129 = arith.cmpi eq, %9, %128 : vector<16x1xi32>
    %cst_28 = arith.constant 0.244460404 : f32
    %130 = vector.broadcast %cst_28 : f32 to vector<16x256xf32>
    %131 = arith.mulf %130, %92 : vector<16x256xf32>
    %cst_29 = arith.constant 0.440312833 : f32
    %132 = vector.broadcast %cst_29 : f32 to vector<16x256xf32>
    %133 = arith.mulf %132, %89 : vector<16x256xf32>
    %134 = arith.addf %131, %133 : vector<16x256xf32>
    %cst_30 = arith.constant 0.244460404 : f32
    %135 = vector.broadcast %cst_30 : f32 to vector<16x256xf32>
    %136 = arith.mulf %135, %98 : vector<16x256xf32>
    %137 = arith.addf %134, %136 : vector<16x256xf32>
    %cst_31 = arith.constant 0.0707663745 : f32
    %138 = vector.broadcast %cst_31 : f32 to vector<16x256xf32>
    %139 = arith.mulf %138, %101 : vector<16x256xf32>
    %140 = arith.addf %137, %139 : vector<16x256xf32>
    %141 = vector.shape_cast %129 : vector<16x1xi1> to vector<16x1xi1>
    %142 = vector.broadcast %141 : vector<16x1xi1> to vector<16x256xi1>
    %143 = arith.select %142, %140, %127 : vector<16x256xi1>, vector<16x256xf32>
    %c0_i32_32 = arith.constant 0 : i32
    %144 = vector.broadcast %c0_i32_32 : i32 to vector<16x1xi32>
    %145 = arith.cmpi eq, %9, %144 : vector<16x1xi32>
    %cst_33 = arith.constant 0.369546473 : f32
    %146 = vector.broadcast %cst_33 : f32 to vector<16x256xf32>
    %147 = arith.mulf %146, %89 : vector<16x256xf32>
    %cst_34 = arith.constant 0.488920808 : f32
    %148 = vector.broadcast %cst_34 : f32 to vector<16x256xf32>
    %149 = arith.mulf %148, %92 : vector<16x256xf32>
    %150 = arith.addf %147, %149 : vector<16x256xf32>
    %cst_35 = arith.constant 0.141532749 : f32
    %151 = vector.broadcast %cst_35 : f32 to vector<16x256xf32>
    %152 = arith.mulf %151, %95 : vector<16x256xf32>
    %153 = arith.addf %150, %152 : vector<16x256xf32>
    %154 = vector.shape_cast %145 : vector<16x1xi1> to vector<16x1xi1>
    %155 = vector.broadcast %154 : vector<16x1xi1> to vector<16x256xi1>
    %156 = arith.select %155, %153, %143 : vector<16x256xi1>, vector<16x256xf32>
    %c15_i32_36 = arith.constant 15 : i32
    %157 = vector.broadcast %c15_i32_36 : i32 to vector<16x1xi32>
    %158 = arith.cmpi eq, %9, %157 : vector<16x1xi32>
    %cst_37 = arith.constant 0.369546473 : f32
    %159 = vector.broadcast %cst_37 : f32 to vector<16x256xf32>
    %160 = arith.mulf %159, %89 : vector<16x256xf32>
    %cst_38 = arith.constant 0.488920808 : f32
    %161 = vector.broadcast %cst_38 : f32 to vector<16x256xf32>
    %162 = arith.mulf %161, %98 : vector<16x256xf32>
    %163 = arith.addf %160, %162 : vector<16x256xf32>
    %cst_39 = arith.constant 0.141532749 : f32
    %164 = vector.broadcast %cst_39 : f32 to vector<16x256xf32>
    %165 = arith.mulf %164, %101 : vector<16x256xf32>
    %166 = arith.addf %163, %165 : vector<16x256xf32>
    %167 = vector.shape_cast %158 : vector<16x1xi1> to vector<16x1xi1>
    %168 = vector.broadcast %167 : vector<16x1xi1> to vector<16x256xi1>
    %169 = arith.select %168, %166, %156 : vector<16x256xi1>, vector<16x256xf32>
    %170 = vector.extract_strided_slice %169 {offsets = [0, 16], sizes = [16, 240], strides = [1, 1]} : vector<16x256xf32> to vector<16x240xf32>
    %171 = vector.extract_strided_slice %169 {offsets = [0, 0], sizes = [16, 16], strides = [1, 1]} : vector<16x256xf32> to vector<16x16xf32>
    %172 = tpu.concatenate %170, %171 in 1 : vector<16x240xf32>, vector<16x16xf32> -> vector<16x256xf32>
    %173 = vector.extract_strided_slice %169 {offsets = [0, 32], sizes = [16, 224], strides = [1, 1]} : vector<16x256xf32> to vector<16x224xf32>
    %174 = vector.extract_strided_slice %169 {offsets = [0, 0], sizes = [16, 32], strides = [1, 1]} : vector<16x256xf32> to vector<16x32xf32>
    %175 = tpu.concatenate %173, %174 in 1 : vector<16x224xf32>, vector<16x32xf32> -> vector<16x256xf32>
    %176 = vector.extract_strided_slice %169 {offsets = [0, 240], sizes = [16, 16], strides = [1, 1]} : vector<16x256xf32> to vector<16x16xf32>
    %177 = vector.extract_strided_slice %169 {offsets = [0, 0], sizes = [16, 240], strides = [1, 1]} : vector<16x256xf32> to vector<16x240xf32>
    %178 = tpu.concatenate %176, %177 in 1 : vector<16x16xf32>, vector<16x240xf32> -> vector<16x256xf32>
    %179 = vector.extract_strided_slice %169 {offsets = [0, 224], sizes = [16, 32], strides = [1, 1]} : vector<16x256xf32> to vector<16x32xf32>
    %180 = vector.extract_strided_slice %169 {offsets = [0, 0], sizes = [16, 224], strides = [1, 1]} : vector<16x256xf32> to vector<16x224xf32>
    %181 = tpu.concatenate %179, %180 in 1 : vector<16x32xf32>, vector<16x224xf32> -> vector<16x256xf32>
    %cst_40 = arith.constant 0.369546473 : f32
    %182 = vector.broadcast %cst_40 : f32 to vector<16x256xf32>
    %183 = arith.mulf %182, %169 : vector<16x256xf32>
    %184 = arith.addf %172, %178 : vector<16x256xf32>
    %cst_41 = arith.constant 0.244460404 : f32
    %185 = vector.broadcast %cst_41 : f32 to vector<16x256xf32>
    %186 = arith.mulf %185, %184 : vector<16x256xf32>
    %187 = arith.addf %183, %186 : vector<16x256xf32>
    %188 = arith.addf %175, %181 : vector<16x256xf32>
    %cst_42 = arith.constant 0.0707663745 : f32
    %189 = vector.broadcast %cst_42 : f32 to vector<16x256xf32>
    %190 = arith.mulf %189, %188 : vector<16x256xf32>
    %191 = arith.addf %187, %190 : vector<16x256xf32>
    %c1_i32_43 = arith.constant 1 : i32
    %192 = vector.broadcast %c1_i32_43 : i32 to vector<1x256xi32>
    %193 = arith.cmpi eq, %11, %192 : vector<1x256xi32>
    %cst_44 = arith.constant 0.244460404 : f32
    %194 = vector.broadcast %cst_44 : f32 to vector<16x256xf32>
    %195 = arith.mulf %194, %178 : vector<16x256xf32>
    %cst_45 = arith.constant 0.440312833 : f32
    %196 = vector.broadcast %cst_45 : f32 to vector<16x256xf32>
    %197 = arith.mulf %196, %169 : vector<16x256xf32>
    %198 = arith.addf %195, %197 : vector<16x256xf32>
    %cst_46 = arith.constant 0.244460404 : f32
    %199 = vector.broadcast %cst_46 : f32 to vector<16x256xf32>
    %200 = arith.mulf %199, %172 : vector<16x256xf32>
    %201 = arith.addf %198, %200 : vector<16x256xf32>
    %cst_47 = arith.constant 0.0707663745 : f32
    %202 = vector.broadcast %cst_47 : f32 to vector<16x256xf32>
    %203 = arith.mulf %202, %175 : vector<16x256xf32>
    %204 = arith.addf %201, %203 : vector<16x256xf32>
    %205 = vector.shape_cast %193 : vector<1x256xi1> to vector<1x256xi1>
    %206 = vector.broadcast %205 : vector<1x256xi1> to vector<16x256xi1>
    %207 = arith.select %206, %204, %191 : vector<16x256xi1>, vector<16x256xf32>
    %c14_i32_48 = arith.constant 14 : i32
    %208 = vector.broadcast %c14_i32_48 : i32 to vector<1x256xi32>
    %209 = arith.cmpi eq, %11, %208 : vector<1x256xi32>
    %cst_49 = arith.constant 0.244460404 : f32
    %210 = vector.broadcast %cst_49 : f32 to vector<16x256xf32>
    %211 = arith.mulf %210, %172 : vector<16x256xf32>
    %cst_50 = arith.constant 0.440312833 : f32
    %212 = vector.broadcast %cst_50 : f32 to vector<16x256xf32>
    %213 = arith.mulf %212, %169 : vector<16x256xf32>
    %214 = arith.addf %211, %213 : vector<16x256xf32>
    %cst_51 = arith.constant 0.244460404 : f32
    %215 = vector.broadcast %cst_51 : f32 to vector<16x256xf32>
    %216 = arith.mulf %215, %178 : vector<16x256xf32>
    %217 = arith.addf %214, %216 : vector<16x256xf32>
    %cst_52 = arith.constant 0.0707663745 : f32
    %218 = vector.broadcast %cst_52 : f32 to vector<16x256xf32>
    %219 = arith.mulf %218, %181 : vector<16x256xf32>
    %220 = arith.addf %217, %219 : vector<16x256xf32>
    %221 = vector.shape_cast %209 : vector<1x256xi1> to vector<1x256xi1>
    %222 = vector.broadcast %221 : vector<1x256xi1> to vector<16x256xi1>
    %223 = arith.select %222, %220, %207 : vector<16x256xi1>, vector<16x256xf32>
    %c0_i32_53 = arith.constant 0 : i32
    %224 = vector.broadcast %c0_i32_53 : i32 to vector<1x256xi32>
    %225 = arith.cmpi eq, %11, %224 : vector<1x256xi32>
    %cst_54 = arith.constant 0.369546473 : f32
    %226 = vector.broadcast %cst_54 : f32 to vector<16x256xf32>
    %227 = arith.mulf %226, %169 : vector<16x256xf32>
    %cst_55 = arith.constant 0.488920808 : f32
    %228 = vector.broadcast %cst_55 : f32 to vector<16x256xf32>
    %229 = arith.mulf %228, %172 : vector<16x256xf32>
    %230 = arith.addf %227, %229 : vector<16x256xf32>
    %cst_56 = arith.constant 0.141532749 : f32
    %231 = vector.broadcast %cst_56 : f32 to vector<16x256xf32>
    %232 = arith.mulf %231, %175 : vector<16x256xf32>
    %233 = arith.addf %230, %232 : vector<16x256xf32>
    %234 = vector.shape_cast %225 : vector<1x256xi1> to vector<1x256xi1>
    %235 = vector.broadcast %234 : vector<1x256xi1> to vector<16x256xi1>
    %236 = arith.select %235, %233, %223 : vector<16x256xi1>, vector<16x256xf32>
    %c15_i32_57 = arith.constant 15 : i32
    %237 = vector.broadcast %c15_i32_57 : i32 to vector<1x256xi32>
    %238 = arith.cmpi eq, %11, %237 : vector<1x256xi32>
    %cst_58 = arith.constant 0.369546473 : f32
    %239 = vector.broadcast %cst_58 : f32 to vector<16x256xf32>
    %240 = arith.mulf %239, %169 : vector<16x256xf32>
    %cst_59 = arith.constant 0.488920808 : f32
    %241 = vector.broadcast %cst_59 : f32 to vector<16x256xf32>
    %242 = arith.mulf %241, %178 : vector<16x256xf32>
    %243 = arith.addf %240, %242 : vector<16x256xf32>
    %cst_60 = arith.constant 0.141532749 : f32
    %244 = vector.broadcast %cst_60 : f32 to vector<16x256xf32>
    %245 = arith.mulf %244, %181 : vector<16x256xf32>
    %246 = arith.addf %243, %245 : vector<16x256xf32>
    %247 = vector.shape_cast %238 : vector<1x256xi1> to vector<1x256xi1>
    %248 = vector.broadcast %247 : vector<1x256xi1> to vector<16x256xi1>
    %249 = arith.select %248, %246, %236 : vector<16x256xi1>, vector<16x256xf32>
    %250 = vector.extract_strided_slice %249 {offsets = [0, 1], sizes = [16, 255], strides = [1, 1]} : vector<16x256xf32> to vector<16x255xf32>
    %251 = vector.extract_strided_slice %249 {offsets = [0, 0], sizes = [16, 1], strides = [1, 1]} : vector<16x256xf32> to vector<16x1xf32>
    %252 = tpu.concatenate %250, %251 in 1 : vector<16x255xf32>, vector<16x1xf32> -> vector<16x256xf32>
    %253 = vector.extract_strided_slice %249 {offsets = [0, 2], sizes = [16, 254], strides = [1, 1]} : vector<16x256xf32> to vector<16x254xf32>
    %254 = vector.extract_strided_slice %249 {offsets = [0, 0], sizes = [16, 2], strides = [1, 1]} : vector<16x256xf32> to vector<16x2xf32>
    %255 = tpu.concatenate %253, %254 in 1 : vector<16x254xf32>, vector<16x2xf32> -> vector<16x256xf32>
    %256 = vector.extract_strided_slice %249 {offsets = [0, 255], sizes = [16, 1], strides = [1, 1]} : vector<16x256xf32> to vector<16x1xf32>
    %257 = vector.extract_strided_slice %249 {offsets = [0, 0], sizes = [16, 255], strides = [1, 1]} : vector<16x256xf32> to vector<16x255xf32>
    %258 = tpu.concatenate %256, %257 in 1 : vector<16x1xf32>, vector<16x255xf32> -> vector<16x256xf32>
    %259 = vector.extract_strided_slice %249 {offsets = [0, 254], sizes = [16, 2], strides = [1, 1]} : vector<16x256xf32> to vector<16x2xf32>
    %260 = vector.extract_strided_slice %249 {offsets = [0, 0], sizes = [16, 254], strides = [1, 1]} : vector<16x256xf32> to vector<16x254xf32>
    %261 = tpu.concatenate %259, %260 in 1 : vector<16x2xf32>, vector<16x254xf32> -> vector<16x256xf32>
    %cst_61 = arith.constant 0.369546473 : f32
    %262 = vector.broadcast %cst_61 : f32 to vector<16x256xf32>
    %263 = arith.mulf %262, %249 : vector<16x256xf32>
    %264 = arith.addf %252, %258 : vector<16x256xf32>
    %cst_62 = arith.constant 0.244460404 : f32
    %265 = vector.broadcast %cst_62 : f32 to vector<16x256xf32>
    %266 = arith.mulf %265, %264 : vector<16x256xf32>
    %267 = arith.addf %263, %266 : vector<16x256xf32>
    %268 = arith.addf %255, %261 : vector<16x256xf32>
    %cst_63 = arith.constant 0.0707663745 : f32
    %269 = vector.broadcast %cst_63 : f32 to vector<16x256xf32>
    %270 = arith.mulf %269, %268 : vector<16x256xf32>
    %271 = arith.addf %267, %270 : vector<16x256xf32>
    %c1_i32_64 = arith.constant 1 : i32
    %272 = vector.broadcast %c1_i32_64 : i32 to vector<1x256xi32>
    %273 = arith.cmpi eq, %12, %272 : vector<1x256xi32>
    %cst_65 = arith.constant 0.244460404 : f32
    %274 = vector.broadcast %cst_65 : f32 to vector<16x256xf32>
    %275 = arith.mulf %274, %258 : vector<16x256xf32>
    %cst_66 = arith.constant 0.440312833 : f32
    %276 = vector.broadcast %cst_66 : f32 to vector<16x256xf32>
    %277 = arith.mulf %276, %249 : vector<16x256xf32>
    %278 = arith.addf %275, %277 : vector<16x256xf32>
    %cst_67 = arith.constant 0.244460404 : f32
    %279 = vector.broadcast %cst_67 : f32 to vector<16x256xf32>
    %280 = arith.mulf %279, %252 : vector<16x256xf32>
    %281 = arith.addf %278, %280 : vector<16x256xf32>
    %cst_68 = arith.constant 0.0707663745 : f32
    %282 = vector.broadcast %cst_68 : f32 to vector<16x256xf32>
    %283 = arith.mulf %282, %255 : vector<16x256xf32>
    %284 = arith.addf %281, %283 : vector<16x256xf32>
    %285 = vector.shape_cast %273 : vector<1x256xi1> to vector<1x256xi1>
    %286 = vector.broadcast %285 : vector<1x256xi1> to vector<16x256xi1>
    %287 = arith.select %286, %284, %271 : vector<16x256xi1>, vector<16x256xf32>
    %c14_i32_69 = arith.constant 14 : i32
    %288 = vector.broadcast %c14_i32_69 : i32 to vector<1x256xi32>
    %289 = arith.cmpi eq, %12, %288 : vector<1x256xi32>
    %cst_70 = arith.constant 0.244460404 : f32
    %290 = vector.broadcast %cst_70 : f32 to vector<16x256xf32>
    %291 = arith.mulf %290, %252 : vector<16x256xf32>
    %cst_71 = arith.constant 0.440312833 : f32
    %292 = vector.broadcast %cst_71 : f32 to vector<16x256xf32>
    %293 = arith.mulf %292, %249 : vector<16x256xf32>
    %294 = arith.addf %291, %293 : vector<16x256xf32>
    %cst_72 = arith.constant 0.244460404 : f32
    %295 = vector.broadcast %cst_72 : f32 to vector<16x256xf32>
    %296 = arith.mulf %295, %258 : vector<16x256xf32>
    %297 = arith.addf %294, %296 : vector<16x256xf32>
    %cst_73 = arith.constant 0.0707663745 : f32
    %298 = vector.broadcast %cst_73 : f32 to vector<16x256xf32>
    %299 = arith.mulf %298, %261 : vector<16x256xf32>
    %300 = arith.addf %297, %299 : vector<16x256xf32>
    %301 = vector.shape_cast %289 : vector<1x256xi1> to vector<1x256xi1>
    %302 = vector.broadcast %301 : vector<1x256xi1> to vector<16x256xi1>
    %303 = arith.select %302, %300, %287 : vector<16x256xi1>, vector<16x256xf32>
    %c0_i32_74 = arith.constant 0 : i32
    %304 = vector.broadcast %c0_i32_74 : i32 to vector<1x256xi32>
    %305 = arith.cmpi eq, %12, %304 : vector<1x256xi32>
    %cst_75 = arith.constant 0.369546473 : f32
    %306 = vector.broadcast %cst_75 : f32 to vector<16x256xf32>
    %307 = arith.mulf %306, %249 : vector<16x256xf32>
    %cst_76 = arith.constant 0.488920808 : f32
    %308 = vector.broadcast %cst_76 : f32 to vector<16x256xf32>
    %309 = arith.mulf %308, %252 : vector<16x256xf32>
    %310 = arith.addf %307, %309 : vector<16x256xf32>
    %cst_77 = arith.constant 0.141532749 : f32
    %311 = vector.broadcast %cst_77 : f32 to vector<16x256xf32>
    %312 = arith.mulf %311, %255 : vector<16x256xf32>
    %313 = arith.addf %310, %312 : vector<16x256xf32>
    %314 = vector.shape_cast %305 : vector<1x256xi1> to vector<1x256xi1>
    %315 = vector.broadcast %314 : vector<1x256xi1> to vector<16x256xi1>
    %316 = arith.select %315, %313, %303 : vector<16x256xi1>, vector<16x256xf32>
    %c15_i32_78 = arith.constant 15 : i32
    %317 = vector.broadcast %c15_i32_78 : i32 to vector<1x256xi32>
    %318 = arith.cmpi eq, %12, %317 : vector<1x256xi32>
    %cst_79 = arith.constant 0.369546473 : f32
    %319 = vector.broadcast %cst_79 : f32 to vector<16x256xf32>
    %320 = arith.mulf %319, %249 : vector<16x256xf32>
    %cst_80 = arith.constant 0.488920808 : f32
    %321 = vector.broadcast %cst_80 : f32 to vector<16x256xf32>
    %322 = arith.mulf %321, %258 : vector<16x256xf32>
    %323 = arith.addf %320, %322 : vector<16x256xf32>
    %cst_81 = arith.constant 0.141532749 : f32
    %324 = vector.broadcast %cst_81 : f32 to vector<16x256xf32>
    %325 = arith.mulf %324, %261 : vector<16x256xf32>
    %326 = arith.addf %323, %325 : vector<16x256xf32>
    %327 = vector.shape_cast %318 : vector<1x256xi1> to vector<1x256xi1>
    %328 = vector.broadcast %327 : vector<1x256xi1> to vector<16x256xi1>
    %329 = arith.select %328, %326, %316 : vector<16x256xi1>, vector<16x256xf32>
    %cst_82 = arith.constant 2.000000e+00 : f32
    %330 = vector.broadcast %cst_82 : f32 to vector<16x256xf32>
    %331 = arith.mulf %330, %329 : vector<16x256xf32>
    %cst_83 = arith.constant 1.000000e+00 : f32
    %332 = vector.broadcast %cst_83 : f32 to vector<16x256xf32>
    %333 = arith.addf %332, %331 : vector<16x256xf32>
    %cst_84 = arith.constant 1.000000e-01 : f32
    %cst_85 = arith.constant 1.000000e+01 : f32
    %334 = vector.broadcast %cst_84 : f32 to vector<16x256xf32>
    %335 = arith.maximumf %334, %333 : vector<16x256xf32>
    %336 = vector.broadcast %cst_85 : f32 to vector<16x256xf32>
    %337 = arith.minimumf %336, %335 : vector<16x256xf32>
    %cst_86 = arith.constant 1.500000e+00 : f32
    %338 = vector.broadcast %cst_86 : f32 to vector<16x256xf32>
    %339 = arith.mulf %338, %329 : vector<16x256xf32>
    %cst_87 = arith.constant 5.000000e-01 : f32
    %340 = vector.broadcast %cst_87 : f32 to vector<16x256xf32>
    %341 = arith.addf %340, %339 : vector<16x256xf32>
    %cst_88 = arith.constant 1.000000e-01 : f32
    %cst_89 = arith.constant 1.000000e+01 : f32
    %342 = vector.broadcast %cst_88 : f32 to vector<16x256xf32>
    %343 = arith.maximumf %342, %341 : vector<16x256xf32>
    %344 = vector.broadcast %cst_89 : f32 to vector<16x256xf32>
    %345 = arith.minimumf %344, %343 : vector<16x256xf32>
    %cst_90 = arith.constant 3.000000e+00 : f32
    %346 = vector.broadcast %cst_90 : f32 to vector<16x256xf32>
    %347 = arith.mulf %346, %329 : vector<16x256xf32>
    %cst_91 = arith.constant 1.000000e+00 : f32
    %348 = vector.broadcast %cst_91 : f32 to vector<16x256xf32>
    %349 = arith.addf %348, %347 : vector<16x256xf32>
    %c0_i32_92 = arith.constant 0 : i32
    %c0_i32_93 = arith.constant 0 : i32
    %c0_i32_94 = arith.constant 0 : i32
    %c0_i32_95 = arith.constant 0 : i32
    %c0_i32_96 = arith.constant 0 : i32
    %c0_i32_97 = arith.constant 0 : i32
    %350 = tpu.memref_slice %arg2[%arg0, %c0_i32_95, %c0_i32_96, %c0_i32_97] : memref<2x3x16x256xf32, #tpu.memory_space<any>> -> memref<1x3x16x256xf32, #tpu.memory_space<any>>
    %351 = tpu.memref_squeeze %350 : memref<1x3x16x256xf32, #tpu.memory_space<any>> -> memref<3x16x256xf32, #tpu.memory_space<any>>
    %c0_i32_98 = arith.constant 0 : i32
    %c0_i32_99 = arith.constant 0 : i32
    %c0_i32_100 = arith.constant 0 : i32
    %352 = tpu.memref_slice %arg6[%c0_i32_92, %c0_i32_98, %c0_i32_99, %c0_i32_100] : memref<1x3x16x256xf32, #tpu.memory_space<vmem>> -> memref<1x3x16x256xf32, #tpu.memory_space<vmem>>
    %353 = tpu.memref_squeeze %352 : memref<1x3x16x256xf32, #tpu.memory_space<vmem>> -> memref<3x16x256xf32, #tpu.memory_space<vmem>>
    %354 = tpu.memref_slice %arg8[%c0_i32_93, %c0_i32_94] : memref<1x2x!tpu.dma_semaphore, #tpu.memory_space<semaphore_mem>> -> memref<1x1x!tpu.dma_semaphore, #tpu.memory_space<semaphore_mem>>
    %355 = tpu.memref_squeeze %354 : memref<1x1x!tpu.dma_semaphore, #tpu.memory_space<semaphore_mem>> -> memref<!tpu.dma_semaphore, #tpu.memory_space<semaphore_mem>>
    tpu.wait_dma2 semaphore(%355 : memref<!tpu.dma_semaphore, #tpu.memory_space<semaphore_mem>>) src(%351 : memref<3x16x256xf32, #tpu.memory_space<any>>) dst(%353 : memref<3x16x256xf32, #tpu.memory_space<vmem>>)
    %c0_101 = arith.constant 0 : index
    %c0_102 = arith.constant 0 : index
    %c0_103 = arith.constant 0 : index
    %c0_104 = arith.constant 0 : index
    %356 = vector.load %arg6[%c0_101, %c0_102, %c0_103, %c0_104] : memref<1x3x16x256xf32, #tpu.memory_space<vmem>>, vector<1x1x16x256xf32>
    %357 = vector.shape_cast %356 : vector<1x1x16x256xf32> to vector<16x256xf32>
    %c0_105 = arith.constant 0 : index
    %c1 = arith.constant 1 : index
    %c0_106 = arith.constant 0 : index
    %c0_107 = arith.constant 0 : index
    %358 = vector.load %arg6[%c0_105, %c1, %c0_106, %c0_107] : memref<1x3x16x256xf32, #tpu.memory_space<vmem>>, vector<1x1x16x256xf32>
    %359 = vector.shape_cast %358 : vector<1x1x16x256xf32> to vector<16x256xf32>
    %c0_108 = arith.constant 0 : index
    %c2 = arith.constant 2 : index
    %c0_109 = arith.constant 0 : index
    %c0_110 = arith.constant 0 : index
    %360 = vector.load %arg6[%c0_108, %c2, %c0_109, %c0_110] : memref<1x3x16x256xf32, #tpu.memory_space<vmem>>, vector<1x1x16x256xf32>
    %361 = vector.shape_cast %360 : vector<1x1x16x256xf32> to vector<16x256xf32>
    %362 = vector.extract_strided_slice %357 {offsets = [1, 0], sizes = [15, 256], strides = [1, 1]} : vector<16x256xf32> to vector<15x256xf32>
    %363 = vector.extract_strided_slice %357 {offsets = [15, 0], sizes = [1, 256], strides = [1, 1]} : vector<16x256xf32> to vector<1x256xf32>
    %364 = tpu.concatenate %362, %363 in 0 : vector<15x256xf32>, vector<1x256xf32> -> vector<16x256xf32>
    %365 = vector.extract_strided_slice %357 {offsets = [0, 0], sizes = [1, 256], strides = [1, 1]} : vector<16x256xf32> to vector<1x256xf32>
    %366 = vector.extract_strided_slice %357 {offsets = [0, 0], sizes = [15, 256], strides = [1, 1]} : vector<16x256xf32> to vector<15x256xf32>
    %367 = tpu.concatenate %365, %366 in 0 : vector<1x256xf32>, vector<15x256xf32> -> vector<16x256xf32>
    %368 = arith.subf %364, %367 : vector<16x256xf32>
    %cst_111 = arith.constant 5.000000e-01 : f32
    %369 = vector.broadcast %cst_111 : f32 to vector<16x256xf32>
    %370 = arith.mulf %369, %368 : vector<16x256xf32>
    %c0_i32_112 = arith.constant 0 : i32
    %371 = vector.broadcast %c0_i32_112 : i32 to vector<16x1xi32>
    %372 = arith.cmpi eq, %9, %371 : vector<16x1xi32>
    %373 = arith.subf %364, %357 : vector<16x256xf32>
    %374 = vector.shape_cast %372 : vector<16x1xi1> to vector<16x1xi1>
    %375 = vector.broadcast %374 : vector<16x1xi1> to vector<16x256xi1>
    %376 = arith.select %375, %373, %370 : vector<16x256xi1>, vector<16x256xf32>
    %c15_i32_113 = arith.constant 15 : i32
    %377 = vector.broadcast %c15_i32_113 : i32 to vector<16x1xi32>
    %378 = arith.cmpi eq, %9, %377 : vector<16x1xi32>
    %379 = arith.subf %357, %367 : vector<16x256xf32>
    %380 = vector.shape_cast %378 : vector<16x1xi1> to vector<16x1xi1>
    %381 = vector.broadcast %380 : vector<16x1xi1> to vector<16x256xi1>
    %382 = arith.select %381, %379, %376 : vector<16x256xi1>, vector<16x256xf32>
    %383 = vector.extract_strided_slice %359 {offsets = [0, 16], sizes = [16, 240], strides = [1, 1]} : vector<16x256xf32> to vector<16x240xf32>
    %384 = vector.extract_strided_slice %359 {offsets = [0, 0], sizes = [16, 16], strides = [1, 1]} : vector<16x256xf32> to vector<16x16xf32>
    %385 = tpu.concatenate %383, %384 in 1 : vector<16x240xf32>, vector<16x16xf32> -> vector<16x256xf32>
    %386 = vector.extract_strided_slice %359 {offsets = [0, 240], sizes = [16, 16], strides = [1, 1]} : vector<16x256xf32> to vector<16x16xf32>
    %387 = vector.extract_strided_slice %359 {offsets = [0, 0], sizes = [16, 240], strides = [1, 1]} : vector<16x256xf32> to vector<16x240xf32>
    %388 = tpu.concatenate %386, %387 in 1 : vector<16x16xf32>, vector<16x240xf32> -> vector<16x256xf32>
    %389 = arith.subf %385, %388 : vector<16x256xf32>
    %cst_114 = arith.constant 5.000000e-01 : f32
    %390 = vector.broadcast %cst_114 : f32 to vector<16x256xf32>
    %391 = arith.mulf %390, %389 : vector<16x256xf32>
    %c0_i32_115 = arith.constant 0 : i32
    %392 = vector.broadcast %c0_i32_115 : i32 to vector<1x256xi32>
    %393 = arith.cmpi eq, %11, %392 : vector<1x256xi32>
    %394 = arith.subf %385, %359 : vector<16x256xf32>
    %395 = vector.shape_cast %393 : vector<1x256xi1> to vector<1x256xi1>
    %396 = vector.broadcast %395 : vector<1x256xi1> to vector<16x256xi1>
    %397 = arith.select %396, %394, %391 : vector<16x256xi1>, vector<16x256xf32>
    %c15_i32_116 = arith.constant 15 : i32
    %398 = vector.broadcast %c15_i32_116 : i32 to vector<1x256xi32>
    %399 = arith.cmpi eq, %11, %398 : vector<1x256xi32>
    %400 = arith.subf %359, %388 : vector<16x256xf32>
    %401 = vector.shape_cast %399 : vector<1x256xi1> to vector<1x256xi1>
    %402 = vector.broadcast %401 : vector<1x256xi1> to vector<16x256xi1>
    %403 = arith.select %402, %400, %397 : vector<16x256xi1>, vector<16x256xf32>
    %404 = vector.extract_strided_slice %361 {offsets = [0, 1], sizes = [16, 255], strides = [1, 1]} : vector<16x256xf32> to vector<16x255xf32>
    %405 = vector.extract_strided_slice %361 {offsets = [0, 0], sizes = [16, 1], strides = [1, 1]} : vector<16x256xf32> to vector<16x1xf32>
    %406 = tpu.concatenate %404, %405 in 1 : vector<16x255xf32>, vector<16x1xf32> -> vector<16x256xf32>
    %407 = vector.extract_strided_slice %361 {offsets = [0, 255], sizes = [16, 1], strides = [1, 1]} : vector<16x256xf32> to vector<16x1xf32>
    %408 = vector.extract_strided_slice %361 {offsets = [0, 0], sizes = [16, 255], strides = [1, 1]} : vector<16x256xf32> to vector<16x255xf32>
    %409 = tpu.concatenate %407, %408 in 1 : vector<16x1xf32>, vector<16x255xf32> -> vector<16x256xf32>
    %410 = arith.subf %406, %409 : vector<16x256xf32>
    %cst_117 = arith.constant 5.000000e-01 : f32
    %411 = vector.broadcast %cst_117 : f32 to vector<16x256xf32>
    %412 = arith.mulf %411, %410 : vector<16x256xf32>
    %c0_i32_118 = arith.constant 0 : i32
    %413 = vector.broadcast %c0_i32_118 : i32 to vector<1x256xi32>
    %414 = arith.cmpi eq, %12, %413 : vector<1x256xi32>
    %415 = arith.subf %406, %361 : vector<16x256xf32>
    %416 = vector.shape_cast %414 : vector<1x256xi1> to vector<1x256xi1>
    %417 = vector.broadcast %416 : vector<1x256xi1> to vector<16x256xi1>
    %418 = arith.select %417, %415, %412 : vector<16x256xi1>, vector<16x256xf32>
    %c15_i32_119 = arith.constant 15 : i32
    %419 = vector.broadcast %c15_i32_119 : i32 to vector<1x256xi32>
    %420 = arith.cmpi eq, %12, %419 : vector<1x256xi32>
    %421 = arith.subf %361, %409 : vector<16x256xf32>
    %422 = vector.shape_cast %420 : vector<1x256xi1> to vector<1x256xi1>
    %423 = vector.broadcast %422 : vector<1x256xi1> to vector<16x256xi1>
    %424 = arith.select %423, %421, %418 : vector<16x256xi1>, vector<16x256xf32>
    %425 = arith.addf %382, %403 : vector<16x256xf32>
    %426 = arith.addf %425, %424 : vector<16x256xf32>
    %427 = arith.mulf %382, %382 : vector<16x256xf32>
    %428 = arith.mulf %403, %403 : vector<16x256xf32>
    %429 = arith.addf %427, %428 : vector<16x256xf32>
    %430 = arith.mulf %424, %424 : vector<16x256xf32>
    %431 = arith.addf %429, %430 : vector<16x256xf32>
    %432 = vector.extract_strided_slice %357 {offsets = [0, 16], sizes = [16, 240], strides = [1, 1]} : vector<16x256xf32> to vector<16x240xf32>
    %433 = vector.extract_strided_slice %357 {offsets = [0, 0], sizes = [16, 16], strides = [1, 1]} : vector<16x256xf32> to vector<16x16xf32>
    %434 = tpu.concatenate %432, %433 in 1 : vector<16x240xf32>, vector<16x16xf32> -> vector<16x256xf32>
    %435 = vector.extract_strided_slice %357 {offsets = [0, 240], sizes = [16, 16], strides = [1, 1]} : vector<16x256xf32> to vector<16x16xf32>
    %436 = vector.extract_strided_slice %357 {offsets = [0, 0], sizes = [16, 240], strides = [1, 1]} : vector<16x256xf32> to vector<16x240xf32>
    %437 = tpu.concatenate %435, %436 in 1 : vector<16x16xf32>, vector<16x240xf32> -> vector<16x256xf32>
    %438 = arith.subf %434, %437 : vector<16x256xf32>
    %cst_120 = arith.constant 5.000000e-01 : f32
    %439 = vector.broadcast %cst_120 : f32 to vector<16x256xf32>
    %440 = arith.mulf %439, %438 : vector<16x256xf32>
    %c0_i32_121 = arith.constant 0 : i32
    %441 = vector.broadcast %c0_i32_121 : i32 to vector<1x256xi32>
    %442 = arith.cmpi eq, %11, %441 : vector<1x256xi32>
    %443 = arith.subf %434, %357 : vector<16x256xf32>
    %444 = vector.shape_cast %442 : vector<1x256xi1> to vector<1x256xi1>
    %445 = vector.broadcast %444 : vector<1x256xi1> to vector<16x256xi1>
    %446 = arith.select %445, %443, %440 : vector<16x256xi1>, vector<16x256xf32>
    %c15_i32_122 = arith.constant 15 : i32
    %447 = vector.broadcast %c15_i32_122 : i32 to vector<1x256xi32>
    %448 = arith.cmpi eq, %11, %447 : vector<1x256xi32>
    %449 = arith.subf %357, %437 : vector<16x256xf32>
    %450 = vector.shape_cast %448 : vector<1x256xi1> to vector<1x256xi1>
    %451 = vector.broadcast %450 : vector<1x256xi1> to vector<16x256xi1>
    %452 = arith.select %451, %449, %446 : vector<16x256xi1>, vector<16x256xf32>
    %453 = vector.extract_strided_slice %359 {offsets = [1, 0], sizes = [15, 256], strides = [1, 1]} : vector<16x256xf32> to vector<15x256xf32>
    %454 = vector.extract_strided_slice %359 {offsets = [15, 0], sizes = [1, 256], strides = [1, 1]} : vector<16x256xf32> to vector<1x256xf32>
    %455 = tpu.concatenate %453, %454 in 0 : vector<15x256xf32>, vector<1x256xf32> -> vector<16x256xf32>
    %456 = vector.extract_strided_slice %359 {offsets = [0, 0], sizes = [1, 256], strides = [1, 1]} : vector<16x256xf32> to vector<1x256xf32>
    %457 = vector.extract_strided_slice %359 {offsets = [0, 0], sizes = [15, 256], strides = [1, 1]} : vector<16x256xf32> to vector<15x256xf32>
    %458 = tpu.concatenate %456, %457 in 0 : vector<1x256xf32>, vector<15x256xf32> -> vector<16x256xf32>
    %459 = arith.subf %455, %458 : vector<16x256xf32>
    %cst_123 = arith.constant 5.000000e-01 : f32
    %460 = vector.broadcast %cst_123 : f32 to vector<16x256xf32>
    %461 = arith.mulf %460, %459 : vector<16x256xf32>
    %c0_i32_124 = arith.constant 0 : i32
    %462 = vector.broadcast %c0_i32_124 : i32 to vector<16x1xi32>
    %463 = arith.cmpi eq, %9, %462 : vector<16x1xi32>
    %464 = arith.subf %455, %359 : vector<16x256xf32>
    %465 = vector.shape_cast %463 : vector<16x1xi1> to vector<16x1xi1>
    %466 = vector.broadcast %465 : vector<16x1xi1> to vector<16x256xi1>
    %467 = arith.select %466, %464, %461 : vector<16x256xi1>, vector<16x256xf32>
    %c15_i32_125 = arith.constant 15 : i32
    %468 = vector.broadcast %c15_i32_125 : i32 to vector<16x1xi32>
    %469 = arith.cmpi eq, %9, %468 : vector<16x1xi32>
    %470 = arith.subf %359, %458 : vector<16x256xf32>
    %471 = vector.shape_cast %469 : vector<16x1xi1> to vector<16x1xi1>
    %472 = vector.broadcast %471 : vector<16x1xi1> to vector<16x256xi1>
    %473 = arith.select %472, %470, %467 : vector<16x256xi1>, vector<16x256xf32>
    %474 = arith.addf %452, %473 : vector<16x256xf32>
    %cst_126 = arith.constant 5.000000e-01 : f32
    %475 = vector.broadcast %cst_126 : f32 to vector<16x256xf32>
    %476 = arith.mulf %475, %474 : vector<16x256xf32>
    %477 = arith.mulf %476, %476 : vector<16x256xf32>
    %cst_127 = arith.constant 2.000000e+00 : f32
    %478 = vector.broadcast %cst_127 : f32 to vector<16x256xf32>
    %479 = arith.mulf %478, %477 : vector<16x256xf32>
    %480 = arith.addf %431, %479 : vector<16x256xf32>
    %481 = vector.extract_strided_slice %357 {offsets = [0, 1], sizes = [16, 255], strides = [1, 1]} : vector<16x256xf32> to vector<16x255xf32>
    %482 = vector.extract_strided_slice %357 {offsets = [0, 0], sizes = [16, 1], strides = [1, 1]} : vector<16x256xf32> to vector<16x1xf32>
    %483 = tpu.concatenate %481, %482 in 1 : vector<16x255xf32>, vector<16x1xf32> -> vector<16x256xf32>
    %484 = vector.extract_strided_slice %357 {offsets = [0, 255], sizes = [16, 1], strides = [1, 1]} : vector<16x256xf32> to vector<16x1xf32>
    %485 = vector.extract_strided_slice %357 {offsets = [0, 0], sizes = [16, 255], strides = [1, 1]} : vector<16x256xf32> to vector<16x255xf32>
    %486 = tpu.concatenate %484, %485 in 1 : vector<16x1xf32>, vector<16x255xf32> -> vector<16x256xf32>
    %487 = arith.subf %483, %486 : vector<16x256xf32>
    %cst_128 = arith.constant 5.000000e-01 : f32
    %488 = vector.broadcast %cst_128 : f32 to vector<16x256xf32>
    %489 = arith.mulf %488, %487 : vector<16x256xf32>
    %c0_i32_129 = arith.constant 0 : i32
    %490 = vector.broadcast %c0_i32_129 : i32 to vector<1x256xi32>
    %491 = arith.cmpi eq, %12, %490 : vector<1x256xi32>
    %492 = arith.subf %483, %357 : vector<16x256xf32>
    %493 = vector.shape_cast %491 : vector<1x256xi1> to vector<1x256xi1>
    %494 = vector.broadcast %493 : vector<1x256xi1> to vector<16x256xi1>
    %495 = arith.select %494, %492, %489 : vector<16x256xi1>, vector<16x256xf32>
    %c15_i32_130 = arith.constant 15 : i32
    %496 = vector.broadcast %c15_i32_130 : i32 to vector<1x256xi32>
    %497 = arith.cmpi eq, %12, %496 : vector<1x256xi32>
    %498 = arith.subf %357, %486 : vector<16x256xf32>
    %499 = vector.shape_cast %497 : vector<1x256xi1> to vector<1x256xi1>
    %500 = vector.broadcast %499 : vector<1x256xi1> to vector<16x256xi1>
    %501 = arith.select %500, %498, %495 : vector<16x256xi1>, vector<16x256xf32>
    %502 = vector.extract_strided_slice %361 {offsets = [1, 0], sizes = [15, 256], strides = [1, 1]} : vector<16x256xf32> to vector<15x256xf32>
    %503 = vector.extract_strided_slice %361 {offsets = [15, 0], sizes = [1, 256], strides = [1, 1]} : vector<16x256xf32> to vector<1x256xf32>
    %504 = tpu.concatenate %502, %503 in 0 : vector<15x256xf32>, vector<1x256xf32> -> vector<16x256xf32>
    %505 = vector.extract_strided_slice %361 {offsets = [0, 0], sizes = [1, 256], strides = [1, 1]} : vector<16x256xf32> to vector<1x256xf32>
    %506 = vector.extract_strided_slice %361 {offsets = [0, 0], sizes = [15, 256], strides = [1, 1]} : vector<16x256xf32> to vector<15x256xf32>
    %507 = tpu.concatenate %505, %506 in 0 : vector<1x256xf32>, vector<15x256xf32> -> vector<16x256xf32>
    %508 = arith.subf %504, %507 : vector<16x256xf32>
    %cst_131 = arith.constant 5.000000e-01 : f32
    %509 = vector.broadcast %cst_131 : f32 to vector<16x256xf32>
    %510 = arith.mulf %509, %508 : vector<16x256xf32>
    %c0_i32_132 = arith.constant 0 : i32
    %511 = vector.broadcast %c0_i32_132 : i32 to vector<16x1xi32>
    %512 = arith.cmpi eq, %9, %511 : vector<16x1xi32>
    %513 = arith.subf %504, %361 : vector<16x256xf32>
    %514 = vector.shape_cast %512 : vector<16x1xi1> to vector<16x1xi1>
    %515 = vector.broadcast %514 : vector<16x1xi1> to vector<16x256xi1>
    %516 = arith.select %515, %513, %510 : vector<16x256xi1>, vector<16x256xf32>
    %c15_i32_133 = arith.constant 15 : i32
    %517 = vector.broadcast %c15_i32_133 : i32 to vector<16x1xi32>
    %518 = arith.cmpi eq, %9, %517 : vector<16x1xi32>
    %519 = arith.subf %361, %507 : vector<16x256xf32>
    %520 = vector.shape_cast %518 : vector<16x1xi1> to vector<16x1xi1>
    %521 = vector.broadcast %520 : vector<16x1xi1> to vector<16x256xi1>
    %522 = arith.select %521, %519, %516 : vector<16x256xi1>, vector<16x256xf32>
    %523 = arith.addf %501, %522 : vector<16x256xf32>
    %cst_134 = arith.constant 5.000000e-01 : f32
    %524 = vector.broadcast %cst_134 : f32 to vector<16x256xf32>
    %525 = arith.mulf %524, %523 : vector<16x256xf32>
    %526 = arith.mulf %525, %525 : vector<16x256xf32>
    %cst_135 = arith.constant 2.000000e+00 : f32
    %527 = vector.broadcast %cst_135 : f32 to vector<16x256xf32>
    %528 = arith.mulf %527, %526 : vector<16x256xf32>
    %529 = arith.addf %480, %528 : vector<16x256xf32>
    %530 = vector.extract_strided_slice %359 {offsets = [0, 1], sizes = [16, 255], strides = [1, 1]} : vector<16x256xf32> to vector<16x255xf32>
    %531 = vector.extract_strided_slice %359 {offsets = [0, 0], sizes = [16, 1], strides = [1, 1]} : vector<16x256xf32> to vector<16x1xf32>
    %532 = tpu.concatenate %530, %531 in 1 : vector<16x255xf32>, vector<16x1xf32> -> vector<16x256xf32>
    %533 = vector.extract_strided_slice %359 {offsets = [0, 255], sizes = [16, 1], strides = [1, 1]} : vector<16x256xf32> to vector<16x1xf32>
    %534 = vector.extract_strided_slice %359 {offsets = [0, 0], sizes = [16, 255], strides = [1, 1]} : vector<16x256xf32> to vector<16x255xf32>
    %535 = tpu.concatenate %533, %534 in 1 : vector<16x1xf32>, vector<16x255xf32> -> vector<16x256xf32>
    %536 = arith.subf %532, %535 : vector<16x256xf32>
    %cst_136 = arith.constant 5.000000e-01 : f32
    %537 = vector.broadcast %cst_136 : f32 to vector<16x256xf32>
    %538 = arith.mulf %537, %536 : vector<16x256xf32>
    %c0_i32_137 = arith.constant 0 : i32
    %539 = vector.broadcast %c0_i32_137 : i32 to vector<1x256xi32>
    %540 = arith.cmpi eq, %12, %539 : vector<1x256xi32>
    %541 = arith.subf %532, %359 : vector<16x256xf32>
    %542 = vector.shape_cast %540 : vector<1x256xi1> to vector<1x256xi1>
    %543 = vector.broadcast %542 : vector<1x256xi1> to vector<16x256xi1>
    %544 = arith.select %543, %541, %538 : vector<16x256xi1>, vector<16x256xf32>
    %c15_i32_138 = arith.constant 15 : i32
    %545 = vector.broadcast %c15_i32_138 : i32 to vector<1x256xi32>
    %546 = arith.cmpi eq, %12, %545 : vector<1x256xi32>
    %547 = arith.subf %359, %535 : vector<16x256xf32>
    %548 = vector.shape_cast %546 : vector<1x256xi1> to vector<1x256xi1>
    %549 = vector.broadcast %548 : vector<1x256xi1> to vector<16x256xi1>
    %550 = arith.select %549, %547, %544 : vector<16x256xi1>, vector<16x256xf32>
    %551 = vector.extract_strided_slice %361 {offsets = [0, 16], sizes = [16, 240], strides = [1, 1]} : vector<16x256xf32> to vector<16x240xf32>
    %552 = vector.extract_strided_slice %361 {offsets = [0, 0], sizes = [16, 16], strides = [1, 1]} : vector<16x256xf32> to vector<16x16xf32>
    %553 = tpu.concatenate %551, %552 in 1 : vector<16x240xf32>, vector<16x16xf32> -> vector<16x256xf32>
    %554 = vector.extract_strided_slice %361 {offsets = [0, 240], sizes = [16, 16], strides = [1, 1]} : vector<16x256xf32> to vector<16x16xf32>
    %555 = vector.extract_strided_slice %361 {offsets = [0, 0], sizes = [16, 240], strides = [1, 1]} : vector<16x256xf32> to vector<16x240xf32>
    %556 = tpu.concatenate %554, %555 in 1 : vector<16x16xf32>, vector<16x240xf32> -> vector<16x256xf32>
    %557 = arith.subf %553, %556 : vector<16x256xf32>
    %cst_139 = arith.constant 5.000000e-01 : f32
    %558 = vector.broadcast %cst_139 : f32 to vector<16x256xf32>
    %559 = arith.mulf %558, %557 : vector<16x256xf32>
    %c0_i32_140 = arith.constant 0 : i32
    %560 = vector.broadcast %c0_i32_140 : i32 to vector<1x256xi32>
    %561 = arith.cmpi eq, %11, %560 : vector<1x256xi32>
    %562 = arith.subf %553, %361 : vector<16x256xf32>
    %563 = vector.shape_cast %561 : vector<1x256xi1> to vector<1x256xi1>
    %564 = vector.broadcast %563 : vector<1x256xi1> to vector<16x256xi1>
    %565 = arith.select %564, %562, %559 : vector<16x256xi1>, vector<16x256xf32>
    %c15_i32_141 = arith.constant 15 : i32
    %566 = vector.broadcast %c15_i32_141 : i32 to vector<1x256xi32>
    %567 = arith.cmpi eq, %11, %566 : vector<1x256xi32>
    %568 = arith.subf %361, %556 : vector<16x256xf32>
    %569 = vector.shape_cast %567 : vector<1x256xi1> to vector<1x256xi1>
    %570 = vector.broadcast %569 : vector<1x256xi1> to vector<16x256xi1>
    %571 = arith.select %570, %568, %565 : vector<16x256xi1>, vector<16x256xf32>
    %572 = arith.addf %550, %571 : vector<16x256xf32>
    %cst_142 = arith.constant 5.000000e-01 : f32
    %573 = vector.broadcast %cst_142 : f32 to vector<16x256xf32>
    %574 = arith.mulf %573, %572 : vector<16x256xf32>
    %575 = arith.mulf %574, %574 : vector<16x256xf32>
    %cst_143 = arith.constant 2.000000e+00 : f32
    %576 = vector.broadcast %cst_143 : f32 to vector<16x256xf32>
    %577 = arith.mulf %576, %575 : vector<16x256xf32>
    %578 = arith.addf %529, %577 : vector<16x256xf32>
    %cst_144 = arith.constant 5.000000e-01 : f32
    %579 = vector.broadcast %cst_144 : f32 to vector<16x256xf32>
    %580 = arith.mulf %579, %337 : vector<16x256xf32>
    %581 = arith.mulf %426, %426 : vector<16x256xf32>
    %582 = arith.mulf %580, %581 : vector<16x256xf32>
    %583 = arith.mulf %345, %578 : vector<16x256xf32>
    %584 = arith.addf %582, %583 : vector<16x256xf32>
    %585 = arith.mulf %349, %584 : vector<16x256xf32>
    %c16_i32_145 = arith.constant 16 : i32
    %586 = arith.muli %arg1, %c16_i32_145 : i32
    %c16_i32_146 = arith.constant 16 : i32
    %587 = arith.addi %586, %c16_i32_146 : i32
    %c16_i32_147 = arith.constant 16 : i32
    %588 = arith.minsi %587, %c16_i32_147 : i32
    %589 = vector.broadcast %586 : i32 to vector<16x1xi32>
    %590 = arith.cmpi sge, %9, %589 : vector<16x1xi32>
    %591 = vector.broadcast %588 : i32 to vector<16x1xi32>
    %592 = arith.cmpi slt, %9, %591 : vector<16x1xi32>
    %593 = arith.andi %590, %592 : vector<16x1xi1>
    %c16_i32_148 = arith.constant 16 : i32
    %594 = vector.broadcast %c16_i32_148 : i32 to vector<1x256xi32>
    %595 = arith.cmpi slt, %11, %594 : vector<1x256xi32>
    %596 = vector.broadcast %593 : vector<16x1xi1> to vector<16x256xi1>
    %597 = vector.broadcast %595 : vector<1x256xi1> to vector<16x256xi1>
    %598 = arith.andi %596, %597 : vector<16x256xi1>
    %cst_149 = arith.constant 0.000000e+00 : f32
    %599 = vector.broadcast %cst_149 : f32 to vector<16x256xf32>
    %600 = arith.select %598, %585, %599 : vector<16x256xi1>, vector<16x256xf32>
    %601 = vector.shape_cast %600 : vector<16x256xf32> to vector<1x16x256xf32>
    %cst_150 = arith.constant dense<0.000000e+00> : vector<1xf32>
    %602 = vector.multi_reduction <add>, %601, %cst_150 [1, 2] : vector<1x16x256xf32> to vector<1xf32>
    %603 = vector.shape_cast %602 : vector<1xf32> to vector<1x1x1xf32>
    %604 = vector.extract %603[0, 0, 0] : f32 from vector<1x1x1xf32>
    %605 = vector.broadcast %604 : f32 to vector<1x1xf32>
    %606 = vector.shape_cast %605 : vector<1x1xf32> to vector<1x1xf32>
    %607 = vector.broadcast %606 : vector<1x1xf32> to vector<8x128xf32>
    %c0_151 = arith.constant 0 : index
    %c0_152 = arith.constant 0 : index
    %c0_153 = arith.constant 0 : index
    %c0_154 = arith.constant 0 : index
    %608 = vector.load %arg5[%c0_151, %c0_152, %c0_153, %c0_154] : memref<1x1x8x128xf32, #tpu.memory_space<vmem>>, vector<1x1x8x128xf32>
    %609 = vector.shape_cast %608 : vector<1x1x8x128xf32> to vector<8x128xf32>
    %610 = vector.shape_cast %607 : vector<8x128xf32> to vector<1x1x8x128xf32>
    tpu.vector_store %arg5[%c0_151, %c0_152, %c0_153, %c0_154], %610 {strides = array<i32>} : memref<1x1x8x128xf32, #tpu.memory_space<vmem>>, vector<1x1x8x128xf32>,
    return
  }
  func.func @transform_2(%arg0: i32, %arg1: i32) -> (i32, i32) {
    %c0_i32 = arith.constant 0 : i32
    %c0_i32_0 = arith.constant 0 : i32
    %c0_i32_1 = arith.constant 0 : i32
    return %c0_i32, %c0_i32_0 : i32, i32
  }
  func.func @transform_3(%arg0: i32, %arg1: i32) -> (i32, i32, i32, i32) {
    %c0_i32 = arith.constant 0 : i32
    %c0_i32_0 = arith.constant 0 : i32
    %c0_i32_1 = arith.constant 0 : i32
    return %arg0, %arg1, %c0_i32, %c0_i32_0 : i32, i32, i32, i32
  }
}

</mosaic_0001>

<llo_original>
// kernel: tpu_custom_call.1
$region0: #{tpu_custom_call.1}
  #allocation0 [shape = 'u32[]', space=smem, size = 0x4, offset = 0x4, fixed_abs, tag = 'smem constant byte address 0x4 - core index']
  #allocation1 [shape = 'u32[144,128]{1,0:T(1,128)}', space=vmem, size = 0x12000, scoped, tag = 'internal scratch']
  %s0 = inlined_call_operand.hbm [shape: f32[16,256], index: 0, kind: input, shape index: {}]
  %s1 = inlined_call_operand.hbm [shape: f32[16,256], index: 1, kind: output, shape index: {}]
  %s2 = sld [smem:[#allocation0]]
  $region18: #{tpu_custom_call.1} parent=0
    _
  %s4 = ssub.s32 1, %s2
  %s5 = scalar_select 0, %s4, %s2
  $region1: #{tpu_custom_call.1} parent=0
    #allocation2 [shape = 'u8[16384]{0}', space=vmem, size = 0x4000, scoped, tag = 'input window, operand 0, single buffered']
    #allocation3 [shape = 's32[1]{0}', space=sflag, size = 0x4, scoped, tag = 'scoped memory for tpu_custom_call.1']
    #allocation4 [shape = 's32[1]{0}', space=sflag, size = 0x4, scoped, tag = 'scoped memory for tpu_custom_call.1']
    #allocation5 [shape = 'u8[16384]{0}', space=vmem, size = 0x4000, scoped, tag = 'output window, operand 0, single buffered']
    %6 = vsyncpa [#allocation3], 0
    %7 = vsyncpa [#allocation4], 0
    // Predicated region
    $region2: #{tpu_custom_call.1} parent=1 // pred_check
      _
    $region3: #{tpu_custom_call.1} parent=1 // pred_check_branch
      %9 = sbr.rel (0) target = $region5
    $region4: #{tpu_custom_call.1} parent=1 // pred_region
      %s11 = ssub.s32 512, 512
      %12 = vsyncadd [#allocation3], %s11
      %s13 = sshll.u32 [#allocation2], 4
      %s14 = int_to_ptr.vmem [resolvable:$true] %s13
      %19 = dma.hbm_to_vmem [thread:$0]  %s0, 512, %s14, [#allocation3], 256, 256, 16
    $region5: #{tpu_custom_call.1} parent=1 // pred_fallthru
      _
    // Predicated region
    $region6: #{tpu_custom_call.1} parent=1 // pred_check
      _
    $region7: #{tpu_custom_call.1} parent=1 // pred_check_branch
      %21 = sbr.rel (0) target = $region9
    $region8: #{tpu_custom_call.1} parent=1 // pred_region
      %22 = dma.done [#allocation3], 512
    $region9: #{tpu_custom_call.1} parent=1 // pred_fallthru
      _
    %v23 = vld [vmem:[#allocation2] sm:$0xff]
    %v24 = vld [vmem:[#allocation2 + $0x8] sm:$0xff]
    %v25 = vld [vmem:[#allocation2 + $0x10] sm:$0xff]
    %v26 = vld [vmem:[#allocation2 + $0x18] sm:$0xff]
    %27 = vrot.lane.b32.xlu0 %v23, 1
    %v28 = vpop.permute.xlu0 %27
    %29 = vrot.lane.b32.xlu0 %v25, 1
    %v30 = vpop.permute.xlu0 %29
    %31 = vrot.lane.b32.xlu0 %v24, 1
    %v32 = vpop.permute.xlu0 %31
    %33 = vrot.lane.b32.xlu0 %v26, 1
    %v34 = vpop.permute.xlu0 %33
    %v35 = vlaneseq
    %v36 = vand.u32 %v35, 127
    %vm37 = vcmp.lt.s32.totalorder %v36, 1
    %v38 = vsel %vm37, %v28, %v32
    %v39 = vsel %vm37, %v30, %v34
    %v40 = vsel %vm37, %v32, %v28
    %v41 = vsel %vm37, %v34, %v30
    %42 = vst [vmem:[#allocation5] sm:$0xff] %v40
    %43 = vst [vmem:[#allocation5 + $0x8] sm:$0xff] %v38
    %44 = vst [vmem:[#allocation5 + $0x10] sm:$0xff] %v41
    %45 = vst [vmem:[#allocation5 + $0x18] sm:$0xff] %v39
    // Predicated region
    $region10: #{tpu_custom_call.1} parent=1 // pred_check
      _
    $region11: #{tpu_custom_call.1} parent=1 // pred_check_branch
      %47 = sbr.rel (0) target = $region13
    $region12: #{tpu_custom_call.1} parent=1 // pred_region
      %s49 = ssub.s32 512, 512
      %50 = vsyncadd [#allocation4], %s49
      %s51 = sshll.u32 [#allocation5], 4
      %s52 = int_to_ptr.vmem [resolvable:$true] %s51
      %57 = dma.vmem_to_hbm [thread:$0]  %s52, 512, %s1, [#allocation4], 256, 256, 16
    $region13: #{tpu_custom_call.1} parent=1 // pred_fallthru
      _
    // Predicated region
    $region14: #{tpu_custom_call.1} parent=1 // pred_check
      _
    $region15: #{tpu_custom_call.1} parent=1 // pred_check_branch
      %59 = sbr.rel (0) target = $region17
    $region16: #{tpu_custom_call.1} parent=1 // pred_region
      %60 = dma.done [#allocation4], 512
    $region17: #{tpu_custom_call.1} parent=1 // pred_fallthru
      _
    %61 = vsyncpa [#allocation3], 1
    %62 = vsyncpa [#allocation4], 1

// kernel: tpu_custom_call.1
$region0: #{tpu_custom_call.1}
  #allocation0 [shape = 'u32[]', space=smem, size = 0x4, offset = 0x4, fixed_abs, tag = 'smem constant byte address 0x4 - core index']
  #allocation1 [shape = 'u32[144,128]{1,0:T(1,128)}', space=vmem, size = 0x12000, scoped, tag = 'internal scratch']
  %s0 = inlined_call_operand.hbm [shape: f32[16,256], index: 0, kind: input, shape index: {}]
  %s1 = inlined_call_operand.hbm [shape: f32[16,256], index: 1, kind: output, shape index: {}]
  %s2 = sld [smem:[#allocation0]]
  $region18: #{tpu_custom_call.1} parent=0
    _
  %s4 = ssub.s32 1, %s2
  %s5 = scalar_select 0, %s4, %s2
  $region1: #{tpu_custom_call.1} parent=0
    #allocation2 [shape = 'u8[16384]{0}', space=vmem, size = 0x4000, scoped, tag = 'input window, operand 0, single buffered']
    #allocation3 [shape = 's32[1]{0}', space=sflag, size = 0x4, scoped, tag = 'scoped memory for tpu_custom_call.1']
    #allocation4 [shape = 's32[1]{0}', space=sflag, size = 0x4, scoped, tag = 'scoped memory for tpu_custom_call.1']
    #allocation5 [shape = 'u8[16384]{0}', space=vmem, size = 0x4000, scoped, tag = 'output window, operand 0, single buffered']
    %6 = vsyncpa [#allocation3], 0
    %7 = vsyncpa [#allocation4], 0
    // Predicated region
    $region2: #{tpu_custom_call.1} parent=1 // pred_check
      _
    $region3: #{tpu_custom_call.1} parent=1 // pred_check_branch
      %9 = sbr.rel (0) target = $region5
    $region4: #{tpu_custom_call.1} parent=1 // pred_region
      %s11 = ssub.s32 512, 512
      %12 = vsyncadd [#allocation3], %s11
      %s13 = sshll.u32 [#allocation2], 4
      %s14 = int_to_ptr.vmem [resolvable:$true] %s13
      %19 = dma.hbm_to_vmem [thread:$0]  %s0, 512, %s14, [#allocation3], 256, 256, 16
    $region5: #{tpu_custom_call.1} parent=1 // pred_fallthru
      _
    // Predicated region
    $region6: #{tpu_custom_call.1} parent=1 // pred_check
      _
    $region7: #{tpu_custom_call.1} parent=1 // pred_check_branch
      %21 = sbr.rel (0) target = $region9
    $region8: #{tpu_custom_call.1} parent=1 // pred_region
      %22 = dma.done [#allocation3], 512
    $region9: #{tpu_custom_call.1} parent=1 // pred_fallthru
      _
    %v23 = vld [vmem:[#allocation2] sm:$0xff]
    %v24 = vld [vmem:[#allocation2 + $0x8] sm:$0xff]
    %v25 = vld [vmem:[#allocation2 + $0x10] sm:$0xff]
    %v26 = vld [vmem:[#allocation2 + $0x18] sm:$0xff]
    %v27 = vrot.slane %v23, 7
    %v28 = vrot.slane %v24, 7
    %v29 = vrot.slane %v25, 7
    %v30 = vrot.slane %v26, 7
    %v31 = vlaneseq
    %v32 = vshrl.u32 %v31, 7
    %vm33 = vcmp.lt.s32.totalorder %v32, 1
    %v34 = vsel %vm33, %v27, %v29
    %v35 = vsel %vm33, %v28, %v30
    %v36 = vsel %vm33, %v29, %v27
    %v37 = vsel %vm33, %v30, %v28
    %38 = vst [vmem:[#allocation5] sm:$0xff] %v36
    %39 = vst [vmem:[#allocation5 + $0x8] sm:$0xff] %v37
    %40 = vst [vmem:[#allocation5 + $0x10] sm:$0xff] %v34
    %41 = vst [vmem:[#allocation5 + $0x18] sm:$0xff] %v35
    // Predicated region
    $region10: #{tpu_custom_call.1} parent=1 // pred_check
      _
    $region11: #{tpu_custom_call.1} parent=1 // pred_check_branch
      %43 = sbr.rel (0) target = $region13
    $region12: #{tpu_custom_call.1} parent=1 // pred_region
      %s45 = ssub.s32 512, 512
      %46 = vsyncadd [#allocation4], %s45
      %s47 = sshll.u32 [#allocation5], 4
      %s48 = int_to_ptr.vmem [resolvable:$true] %s47
      %53 = dma.vmem_to_hbm [thread:$0]  %s48, 512, %s1, [#allocation4], 256, 256, 16
    $region13: #{tpu_custom_call.1} parent=1 // pred_fallthru
      _
    // Predicated region
    $region14: #{tpu_custom_call.1} parent=1 // pred_check
      _
    $region15: #{tpu_custom_call.1} parent=1 // pred_check_branch
      %55 = sbr.rel (0) target = $region17
    $region16: #{tpu_custom_call.1} parent=1 // pred_region
      %56 = dma.done [#allocation4], 512
    $region17: #{tpu_custom_call.1} parent=1 // pred_fallthru
      _
    %57 = vsyncpa [#allocation3], 1
    %58 = vsyncpa [#allocation4], 1

// kernel: squeeze.27
$region0: #{squeeze.27}
  %s0 = inlined_call_operand.vmem [shape: f32[2,8,8,8], index: 0, kind: input, shape index: {}]
  %s1 = inlined_call_operand.vmem [shape: f32[2,8,64], index: 1, kind: output, shape index: {}]
  %v2 = vld [vmem:[%s0] ss:$8 sm:$0xf]
  %v3 = vld [vmem:[%s0] ss:$8 sm:$0xf0]
  %vm4 = vcmask 1047556
  %v5 = vsel %vm4, %v3, %v2
  %vm6 = vcmask 64512
  %7 = vst.msk [vmem:[%s1] sm:$0xff] %vm6, %v5
  %s8 = scalar_lea.vmem %s0, 64
  %v9 = vld [vmem:[%s8] ss:$8 sm:$0xf]
  %s10 = scalar_lea.vmem %s0, 64
  %v11 = vld [vmem:[%s10] ss:$8 sm:$0xf0]
  %vm12 = vcmask 1047556
  %v13 = vsel %vm12, %v11, %v9
  %vm14 = vcmask 64512
  %s15 = scalar_lea.vmem %s1, 8
  %16 = vst.msk [vmem:[%s15] sm:$0xff] %vm14, %v13
  %s17 = scalar_lea.vmem %s0, 7
  %v18 = vld [vmem:[%s17] ss:$8 sm:$0xf]
  %s19 = scalar_lea.vmem %s0, 7
  %v20 = vld [vmem:[%s19] ss:$8 sm:$0xf0]
  %vm21 = vcmask 1047556
  %v22 = vsel %vm21, %v20, %v18
  %23 = vrot.lane.b32.xlu0 %v22, 56
  %v24 = vpop.permute.xlu0 %23
  %vm25 = vcmask 523712
  %26 = vst.msk [vmem:[%s1] sm:$0xff] %vm25, %v24
  %s27 = scalar_lea.vmem %s0, 71
  %v28 = vld [vmem:[%s27] ss:$8 sm:$0xf]
  %s29 = scalar_lea.vmem %s0, 71
  %v30 = vld [vmem:[%s29] ss:$8 sm:$0xf0]
  %vm31 = vcmask 1047556
  %v32 = vsel %vm31, %v30, %v28
  %33 = vrot.lane.b32.xlu0 %v32, 56
  %v34 = vpop.permute.xlu0 %33
  %vm35 = vcmask 523712
  %s36 = scalar_lea.vmem %s1, 8
  %37 = vst.msk [vmem:[%s36] sm:$0xff] %vm35, %v34
  %s38 = scalar_lea.vmem %s0, 6
  %v39 = vld [vmem:[%s38] ss:$8 sm:$0xf]
  %s40 = scalar_lea.vmem %s0, 6
  %v41 = vld [vmem:[%s40] ss:$8 sm:$0xf0]
  %vm42 = vcmask 1047556
  %v43 = vsel %vm42, %v41, %v39
  %44 = vrot.lane.b32.xlu0 %v43, 48
  %v45 = vpop.permute.xlu0 %44
  %vm46 = vcmask 458112
  %47 = vst.msk [vmem:[%s1] sm:$0xff] %vm46, %v45
  %s48 = scalar_lea.vmem %s0, 70
  %v49 = vld [vmem:[%s48] ss:$8 sm:$0xf]
  %s50 = scalar_lea.vmem %s0, 70
  %v51 = vld [vmem:[%s50] ss:$8 sm:$0xf0]
  %vm52 = vcmask 1047556
  %v53 = vsel %vm52, %v51, %v49
  %54 = vrot.lane.b32.xlu0 %v53, 48
  %v55 = vpop.permute.xlu0 %54
  %vm56 = vcmask 458112
  %s57 = scalar_lea.vmem %s1, 8
  %58 = vst.msk [vmem:[%s57] sm:$0xff] %vm56, %v55
  %s59 = scalar_lea.vmem %s0, 5
  %v60 = vld [vmem:[%s59] ss:$8 sm:$0xf]
  %s61 = scalar_lea.vmem %s0, 5
  %v62 = vld [vmem:[%s61] ss:$8 sm:$0xf0]
  %vm63 = vcmask 1047556
  %v64 = vsel %vm63, %v62, %v60
  %65 = vrot.lane.b32.xlu0 %v64, 40
  %v66 = vpop.permute.xlu0 %65
  %vm67 = vcmask 392512
  %68 = vst.msk [vmem:[%s1] sm:$0xff] %vm67, %v66
  %s69 = scalar_lea.vmem %s0, 69
  %v70 = vld [vmem:[%s69] ss:$8 sm:$0xf]
  %s71 = scalar_lea.vmem %s0, 69
  %v72 = vld [vmem:[%s71] ss:$8 sm:$0xf0]
  %vm73 = vcmask 1047556
  %v74 = vsel %vm73, %v72, %v70
  %75 = vrot.lane.b32.xlu0 %v74, 40
  %v76 = vpop.permute.xlu0 %75
  %vm77 = vcmask 392512
  %s78 = scalar_lea.vmem %s1, 8
  %79 = vst.msk [vmem:[%s78] sm:$0xff] %vm77, %v76
  %s80 = scalar_lea.vmem %s0, 4
  %v81 = vld [vmem:[%s80] ss:$8 sm:$0xf]
  %s82 = scalar_lea.vmem %s0, 4
  %v83 = vld [vmem:[%s82] ss:$8 sm:$0xf0]
  %vm84 = vcmask 1047556
  %v85 = vsel %vm84, %v83, %v81
  %86 = vrot.lane.b32.xlu0 %v85, 32
  %v87 = vpop.permute.xlu0 %86
  %vm88 = vcmask 326912
  %89 = vst.msk [vmem:[%s1] sm:$0xff] %vm88, %v87
  %s90 = scalar_lea.vmem %s0, 68
  %v91 = vld [vmem:[%s90] ss:$8 sm:$0xf]
  %s92 = scalar_lea.vmem %s0, 68
  %v93 = vld [vmem:[%s92] ss:$8 sm:$0xf0]
  %vm94 = vcmask 1047556
  %v95 = vsel %vm94, %v93, %v91
  %96 = vrot.lane.b32.xlu0 %v95, 32
  %v97 = vpop.permute.xlu0 %96
  %vm98 = vcmask 326912
  %s99 = scalar_lea.vmem %s1, 8
  %100 = vst.msk [vmem:[%s99] sm:$0xff] %vm98, %v97
  %s101 = scalar_lea.vmem %s0, 3
  %v102 = vld [vmem:[%s101] ss:$8 sm:$0xf]
  %s103 = scalar_lea.vmem %s0, 3
  %v104 = vld [vmem:[%s103] ss:$8 sm:$0xf0]
  %vm105 = vcmask 1047556
  %v106 = vsel %vm105, %v104, %v102
  %107 = vrot.lane.b32.xlu0 %v106, 24
  %v108 = vpop.permute.xlu0 %107
  %vm109 = vcmask 261312
  %110 = vst.msk [vmem:[%s1] sm:$0xff] %vm109, %v108
  %s111 = scalar_lea.vmem %s0, 67
  %v112 = vld [vmem:[%s111] ss:$8 sm:$0xf]
  %s113 = scalar_lea.vmem %s0, 67
  %v114 = vld [vmem:[%s113] ss:$8 sm:$0xf0]
  %vm115 = vcmask 1047556
  %v116 = vsel %vm115, %v114, %v112
  %117 = vrot.lane.b32.xlu0 %v116, 24
  %v118 = vpop.permute.xlu0 %117
  %vm119 = vcmask 261312
  %s120 = scalar_lea.vmem %s1, 8
  %121 = vst.msk [vmem:[%s120] sm:$0xff] %vm119, %v118
  %s122 = scalar_lea.vmem %s0, 2
  %v123 = vld [vmem:[%s122] ss:$8 sm:$0xf]
  %s124 = scalar_lea.vmem %s0, 2
  %v125 = vld [vmem:[%s124] ss:$8 sm:$0xf0]
  %vm126 = vcmask 1047556
  %v127 = vsel %vm126, %v125, %v123
  %128 = vrot.lane.b32.xlu0 %v127, 16
  %v129 = vpop.permute.xlu0 %128
  %vm130 = vcmask 195712
  %131 = vst.msk [vmem:[%s1] sm:$0xff] %vm130, %v129
  %s132 = scalar_lea.vmem %s0, 66
  %v133 = vld [vmem:[%s132] ss:$8 sm:$0xf]
  %s134 = scalar_lea.vmem %s0, 66
  %v135 = vld [vmem:[%s134] ss:$8 sm:$0xf0]
  %vm136 = vcmask 1047556
  %v137 = vsel %vm136, %v135, %v133
  %138 = vrot.lane.b32.xlu0 %v137, 16
  %v139 = vpop.permute.xlu0 %138
  %vm140 = vcmask 195712
  %s141 = scalar_lea.vmem %s1, 8
  %142 = vst.msk [vmem:[%s141] sm:$0xff] %vm140, %v139
  %s143 = scalar_lea.vmem %s0, 1
  %v144 = vld [vmem:[%s143] ss:$8 sm:$0xf]
  %s145 = scalar_lea.vmem %s0, 1
  %v146 = vld [vmem:[%s145] ss:$8 sm:$0xf0]
  %vm147 = vcmask 1047556
  %v148 = vsel %vm147, %v146, %v144
  %149 = vrot.lane.b32.xlu0 %v148, 8
  %v150 = vpop.permute.xlu0 %149
  %vm151 = vcmask 130112
  %152 = vst.msk [vmem:[%s1] sm:$0xff] %vm151, %v150
  %s153 = scalar_lea.vmem %s0, 65
  %v154 = vld [vmem:[%s153] ss:$8 sm:$0xf]
  %s155 = scalar_lea.vmem %s0, 65
  %v156 = vld [vmem:[%s155] ss:$8 sm:$0xf0]
  %vm157 = vcmask 1047556
  %v158 = vsel %vm157, %v156, %v154
  %159 = vrot.lane.b32.xlu0 %v158, 8
  %v160 = vpop.permute.xlu0 %159
  %vm161 = vcmask 130112
  %s162 = scalar_lea.vmem %s1, 8
  %163 = vst.msk [vmem:[%s162] sm:$0xff] %vm161, %v160

// kernel: squeeze.25
$region0: #{squeeze.25}
  %s0 = inlined_call_operand.vmem [shape: f32[2,1,16,16,16], index: 0, kind: input, shape index: {}]
  %s1 = inlined_call_operand.vmem [shape: f32[2,16,256], index: 1, kind: output, shape index: {}]
  %v2 = vld [vmem:[%s0] ss:$8 sm:$0xf]
  %v3 = vld [vmem:[%s0] ss:$8 sm:$0xf0]
  %vm4 = vcmask 1047556
  %v5 = vsel %vm4, %v3, %v2
  %vm6 = vcmask 130048
  %7 = vst.msk [vmem:[%s1] ss:$8 sm:$0x3] %vm6, %v5
  %s8 = scalar_lea.vmem %s1, 4294967281
  %9 = vst.msk [vmem:[%s8] ss:$8 sm:$0xc] %vm6, %v5
  %s10 = scalar_lea.vmem %s1, 4294967266
  %11 = vst.msk [vmem:[%s10] ss:$8 sm:$0x30] %vm6, %v5
  %s12 = scalar_lea.vmem %s1, 4294967251
  %13 = vst.msk [vmem:[%s12] ss:$8 sm:$0xc0] %vm6, %v5
  %s14 = scalar_lea.vmem %s0, 64
  %v15 = vld [vmem:[%s14] ss:$8 sm:$0xf]
  %s16 = scalar_lea.vmem %s0, 64
  %v17 = vld [vmem:[%s16] ss:$8 sm:$0xf0]
  %vm18 = vcmask 1047556
  %v19 = vsel %vm18, %v17, %v15
  %vm20 = vcmask 130048
  %s21 = scalar_lea.vmem %s1, 4
  %22 = vst.msk [vmem:[%s21] ss:$8 sm:$0x3] %vm20, %v19
  %s23 = scalar_lea.vmem %s1, 4294967285
  %24 = vst.msk [vmem:[%s23] ss:$8 sm:$0xc] %vm20, %v19
  %s25 = scalar_lea.vmem %s1, 4294967270
  %26 = vst.msk [vmem:[%s25] ss:$8 sm:$0x30] %vm20, %v19
  %s27 = scalar_lea.vmem %s1, 4294967255
  %28 = vst.msk [vmem:[%s27] ss:$8 sm:$0xc0] %vm20, %v19
  %s29 = scalar_lea.vmem %s0, 128
  %v30 = vld [vmem:[%s29] ss:$8 sm:$0xf]
  %s31 = scalar_lea.vmem %s0, 128
  %v32 = vld [vmem:[%s31] ss:$8 sm:$0xf0]
  %vm33 = vcmask 1047556
  %v34 = vsel %vm33, %v32, %v30
  %vm35 = vcmask 130048
  %s36 = scalar_lea.vmem %s1, 16
  %37 = vst.msk [vmem:[%s36] ss:$8 sm:$0x3] %vm35, %v34
  %s38 = scalar_lea.vmem %s1, 1
  %39 = vst.msk [vmem:[%s38] ss:$8 sm:$0xc] %vm35, %v34
  %s40 = scalar_lea.vmem %s1, 4294967282
  %41 = vst.msk [vmem:[%s40] ss:$8 sm:$0x30] %vm35, %v34
  %s42 = scalar_lea.vmem %s1, 4294967267
  %43 = vst.msk [vmem:[%s42] ss:$8 sm:$0xc0] %vm35, %v34
  %s44 = scalar_lea.vmem %s0, 192
  %v45 = vld [vmem:[%s44] ss:$8 sm:$0xf]
  %s46 = scalar_lea.vmem %s0, 192
  %v47 = vld [vmem:[%s46] ss:$8 sm:$0xf0]
  %vm48 = vcmask 1047556
  %v49 = vsel %vm48, %v47, %v45
  %vm50 = vcmask 130048
  %s51 = scalar_lea.vmem %s1, 20
  %52 = vst.msk [vmem:[%s51] ss:$8 sm:$0x3] %vm50, %v49
  %s53 = scalar_lea.vmem %s1, 5
  %54 = vst.msk [vmem:[%s53] ss:$8 sm:$0xc] %vm50, %v49
  %s55 = scalar_lea.vmem %s1, 4294967286
  %56 = vst.msk [vmem:[%s55] ss:$8 sm:$0x30] %vm50, %v49
  %s57 = scalar_lea.vmem %s1, 4294967271
  %58 = vst.msk [vmem:[%s57] ss:$8 sm:$0xc0] %vm50, %v49
  %s59 = scalar_lea.vmem %s0, 256
  %v60 = vld [vmem:[%s59] ss:$8 sm:$0xf]
  %s61 = scalar_lea.vmem %s0, 256
  %v62 = vld [vmem:[%s61] ss:$8 sm:$0xf0]
  %vm63 = vcmask 1047556
  %v64 = vsel %vm63, %v62, %v60
  %vm65 = vcmask 130048
  %s66 = scalar_lea.vmem %s1, 32
  %67 = vst.msk [vmem:[%s66] ss:$8 sm:$0x3] %vm65, %v64
  %s68 = scalar_lea.vmem %s1, 17
  %69 = vst.msk [vmem:[%s68] ss:$8 sm:$0xc] %vm65, %v64
  %s70 = scalar_lea.vmem %s1, 2
  %71 = vst.msk [vmem:[%s70] ss:$8 sm:$0x30] %vm65, %v64
  %s72 = scalar_lea.vmem %s1, 4294967283
  %73 = vst.msk [vmem:[%s72] ss:$8 sm:$0xc0] %vm65, %v64
  %s74 = scalar_lea.vmem %s0, 320
  %v75 = vld [vmem:[%s74] ss:$8 sm:$0xf]
  %s76 = scalar_lea.vmem %s0, 320
  %v77 = vld [vmem:[%s76] ss:$8 sm:$0xf0]
  %vm78 = vcmask 1047556
  %v79 = vsel %vm78, %v77, %v75
  %vm80 = vcmask 130048
  %s81 = scalar_lea.vmem %s1, 36
  %82 = vst.msk [vmem:[%s81] ss:$8 sm:$0x3] %vm80, %v79
  %s83 = scalar_lea.vmem %s1, 21
  %84 = vst.msk [vmem:[%s83] ss:$8 sm:$0xc] %vm80, %v79
  %s85 = scalar_lea.vmem %s1, 6
  %86 = vst.msk [vmem:[%s85] ss:$8 sm:$0x30] %vm80, %v79
  %s87 = scalar_lea.vmem %s1, 4294967287
  %88 = vst.msk [vmem:[%s87] ss:$8 sm:$0xc0] %vm80, %v79
  %s89 = scalar_lea.vmem %s0, 384
  %v90 = vld [vmem:[%s89] ss:$8 sm:$0xf]
  %s91 = scalar_lea.vmem %s0, 384
  %v92 = vld [vmem:[%s91] ss:$8 sm:$0xf0]
  %vm93 = vcmask 1047556
  %v94 = vsel %vm93, %v92, %v90
  %vm95 = vcmask 130048
  %s96 = scalar_lea.vmem %s1, 48
  %97 = vst.msk [vmem:[%s96] ss:$8 sm:$0x3] %vm95, %v94
  %s98 = scalar_lea.vmem %s1, 33
  %99 = vst.msk [vmem:[%s98] ss:$8 sm:$0xc] %vm95, %v94
  %s100 = scalar_lea.vmem %s1, 18
  %101 = vst.msk [vmem:[%s100] ss:$8 sm:$0x30] %vm95, %v94
  %s102 = scalar_lea.vmem %s1, 3
  %103 = vst.msk [vmem:[%s102] ss:$8 sm:$0xc0] %vm95, %v94
  %s104 = scalar_lea.vmem %s0, 448
  %v105 = vld [vmem:[%s104] ss:$8 sm:$0xf]
  %s106 = scalar_lea.vmem %s0, 448
  %v107 = vld [vmem:[%s106] ss:$8 sm:$0xf0]
  %vm108 = vcmask 1047556
  %v109 = vsel %vm108, %v107, %v105
  %vm110 = vcmask 130048
  %s111 = scalar_lea.vmem %s1, 52
  %112 = vst.msk [vmem:[%s111] ss:$8 sm:$0x3] %vm110, %v109
  %s113 = scalar_lea.vmem %s1, 37
  %114 = vst.msk [vmem:[%s113] ss:$8 sm:$0xc] %vm110, %v109
  %s115 = scalar_lea.vmem %s1, 22
  %116 = vst.msk [vmem:[%s115] ss:$8 sm:$0x30] %vm110, %v109
  %s117 = scalar_lea.vmem %s1, 7
  %118 = vst.msk [vmem:[%s117] ss:$8 sm:$0xc0] %vm110, %v109
  %s119 = scalar_lea.vmem %s0, 7
  %s120 = smov 3
  %v121 = vld [vmem:[%s119] ss:$16 sm:%s120]
  %s122 = scalar_lea.vmem %s0, 7
  %s123 = smov 12
  %v124 = vld [vmem:[%s122] ss:$16 sm:%s123]
  %vm125 = vcmask 1043458
  %v126 = vsel %vm125, %v124, %v121
  %s127 = scalar_lea.vmem %s0, 7
  %s128 = smov 48
  %v129 = vld [vmem:[%s127] ss:$16 sm:%s128]
  %vm130 = vcmask 1045508
  %v131 = vsel %vm130, %v129, %v126
  %s132 = scalar_lea.vmem %s0, 7
  %s133 = smov 192
  %v134 = vld [vmem:[%s132] ss:$16 sm:%s133]
  %vm135 = vcmask 1047558
  %v136 = vsel %vm135, %v134, %v131
  %137 = vrot.lane.b32.xlu0 %v136, 112
  %v138 = vpop.permute.xlu0 %137
  %vm139 = vcmask 1048448
  %140 = vst.msk [vmem:[%s1] sm:$0xff] %vm139, %v138
  %s141 = scalar_lea.vmem %s0, 263
  %s142 = smov 3
  %v143 = vld [vmem:[%s141] ss:$16 sm:%s142]
  %s144 = scalar_lea.vmem %s0, 263
  %s145 = smov 12
  %v146 = vld [vmem:[%s144] ss:$16 sm:%s145]
  %vm147 = vcmask 1043458
  %v148 = vsel %vm147, %v146, %v143
  %s149 = scalar_lea.vmem %s0, 263
  %s150 = smov 48
  %v151 = vld [vmem:[%s149] ss:$16 sm:%s150]
  %vm152 = vcmask 1045508
  %v153 = vsel %vm152, %v151, %v148
  %s154 = scalar_lea.vmem %s0, 263
  %s155 = smov 192
  %v156 = vld [vmem:[%s154] ss:$16 sm:%s155]
  %vm157 = vcmask 1047558
  %v158 = vsel %vm157, %v156, %v153
  %159 = vrot.lane.b32.xlu0 %v158, 112
  %v160 = vpop.permute.xlu0 %159
  %vm161 = vcmask 1048448
  %s162 = scalar_lea.vmem %s1, 32
  %163 = vst.msk [vmem:[%s162] sm:$0xff] %vm161, %v160
  %s164 = scalar_lea.vmem %s0, 15
  %s165 = smov 3
  %v166 = vld [vmem:[%s164] ss:$16 sm:%s165]
  %s167 = scalar_lea.vmem %s0, 15
  %s168 = smov 12
  %v169 = vld [vmem:[%s167] ss:$16 sm:%s168]
  %vm170 = vcmask 1043458
  %v171 = vsel %vm170, %v169, %v166
  %s172 = scalar_lea.vmem %s0, 15
  %s173 = smov 48
  %v174 = vld [vmem:[%s172] ss:$16 sm:%s173]
  %vm175 = vcmask 1045508
  %v176 = vsel %vm175, %v174, %v171
  %s177 = scalar_lea.vmem %s0, 15
  %s178 = smov 192
  %v179 = vld [vmem:[%s177] ss:$16 sm:%s178]
  %vm180 = vcmask 1047558
  %v181 = vsel %vm180, %v179, %v176
  %182 = vrot.lane.b32.xlu0 %v181, 112
  %v183 = vpop.permute.xlu0 %182
  %vm184 = vcmask 1048448
  %s185 = scalar_lea.vmem %s1, 8
  %186 = vst.msk [vmem:[%s185] sm:$0xff] %vm184, %v183
  %s187 = scalar_lea.vmem %s0, 271
  %s188 = smov 3
  %v189 = vld [vmem:[%s187] ss:$16 sm:%s188]
  %s190 = scalar_lea.vmem %s0, 271
  %s191 = smov 12
  %v192 = vld [vmem:[%s190] ss:$16 sm:%s191]
  %vm193 = vcmask 1043458
  %v194 = vsel %vm193, %v192, %v189
  %s195 = scalar_lea.vmem %s0, 271
  %s196 = smov 48
  %v197 = vld [vmem:[%s195] ss:$16 sm:%s196]
  %vm198 = vcmask 1045508
  %v199 = vsel %vm198, %v197, %v194
  %s200 = scalar_lea.vmem %s0, 271
  %s201 = smov 192
  %v202 = vld [vmem:[%s200] ss:$16 sm:%s201]
  %vm203 = vcmask 1047558
  %v204 = vsel %vm203, %v202, %v199
  %205 = vrot.lane.b32.xlu0 %v204, 112
  %v206 = vpop.permute.xlu0 %205
  %vm207 = vcmask 1048448
  %s208 = scalar_lea.vmem %s1, 40
  %209 = vst.msk [vmem:[%s208] sm:$0xff] %vm207, %v206
  %s210 = scalar_lea.vmem %s0, 135
  %s211 = smov 3
  %v212 = vld [vmem:[%s210] ss:$16 sm:%s211]
  %s213 = scalar_lea.vmem %s0, 135
  %s214 = smov 12
  %v215 = vld [vmem:[%s213] ss:$16 sm:%s214]
  %vm216 = vcmask 1043458
  %v217 = vsel %vm216, %v215, %v212
  %s218 = scalar_lea.vmem %s0, 135
  %s219 = smov 48
  %v220 = vld [vmem:[%s218] ss:$16 sm:%s219]
  %vm221 = vcmask 1045508
  %v222 = vsel %vm221, %v220, %v217
  %s223 = scalar_lea.vmem %s0, 135
  %s224 = smov 192
  %v225 = vld [vmem:[%s223] ss:$16 sm:%s224]
  %vm226 = vcmask 1047558
  %v227 = vsel %vm226, %v225, %v222
  %228 = vrot.lane.b32.xlu0 %v227, 112
  %v229 = vpop.permute.xlu0 %228
  %vm230 = vcmask 1048448
  %s231 = scalar_lea.vmem %s1, 16
  %232 = vst.msk [vmem:[%s231] sm:$0xff] %vm230, %v229
  %s233 = scalar_lea.vmem %s0, 391
  %s234 = smov 3
  %v235 = vld [vmem:[%s233] ss:$16 sm:%s234]
  %s236 = scalar_lea.vmem %s0, 391
  %s237 = smov 12
  %v238 = vld [vmem:[%s236] ss:$16 sm:%s237]
  %vm239 = vcmask 1043458
  %v240 = vsel %vm239, %v238, %v235
  %s241 = scalar_lea.vmem %s0, 391
  %s242 = smov 48
  %v243 = vld [vmem:[%s241] ss:$16 sm:%s242]
  %vm244 = vcmask 1045508
  %v245 = vsel %vm244, %v243, %v240
  %s246 = scalar_lea.vmem %s0, 391
  %s247 = smov 192
  %v248 = vld [vmem:[%s246] ss:$16 sm:%s247]
  %vm249 = vcmask 1047558
  %v250 = vsel %vm249, %v248, %v245
  %251 = vrot.lane.b32.xlu0 %v250, 112
  %v252 = vpop.permute.xlu0 %251
  %vm253 = vcmask 1048448
  %s254 = scalar_lea.vmem %s1, 48
  %255 = vst.msk [vmem:[%s254] sm:$0xff] %vm253, %v252
  %s256 = scalar_lea.vmem %s0, 143
  %s257 = smov 3
  %v258 = vld [vmem:[%s256] ss:$16 sm:%s257]
  %s259 = scalar_lea.vmem %s0, 143
  %s260 = smov 12
  %v261 = vld [vmem:[%s259] ss:$16 sm:%s260]
  %vm262 = vcmask 1043458
  %v263 = vsel %vm262, %v261, %v258
  %s264 = scalar_lea.vmem %s0, 143
  %s265 = smov 48
  %v266 = vld [vmem:[%s264] ss:$16 sm:%s265]
  %vm267 = vcmask 1045508
  %v268 = vsel %vm267, %v266, %v263
  %s269 = scalar_lea.vmem %s0, 143
  %s270 = smov 192
  %v271 = vld [vmem:[%s269] ss:$16 sm:%s270]
  %vm272 = vcmask 1047558
  %v273 = vsel %vm272, %v271, %v268
  %274 = vrot.lane.b32.xlu0 %v273, 112
  %v275 = vpop.permute.xlu0 %274
  %vm276 = vcmask 1048448
  %s277 = scalar_lea.vmem %s1, 24
  %278 = vst.msk [vmem:[%s277] sm:$0xff] %vm276, %v275
  %s279 = scalar_lea.vmem %s0, 399
  %s280 = smov 3
  %v281 = vld [vmem:[%s279] ss:$16 sm:%s280]
  %s282 = scalar_lea.vmem %s0, 399
  %s283 = smov 12
  %v284 = vld [vmem:[%s282] ss:$16 sm:%s283]
  %vm285 = vcmask 1043458
  %v286 = vsel %vm285, %v284, %v281
  %s287 = scalar_lea.vmem %s0, 399
  %s288 = smov 48
  %v289 = vld [vmem:[%s287] ss:$16 sm:%s288]
  %vm290 = vcmask 1045508
  %v291 = vsel %vm290, %v289, %v286
  %s292 = scalar_lea.vmem %s0, 399
  %s293 = smov 192
  %v294 = vld [vmem:[%s292] ss:$16 sm:%s293]
  %vm295 = vcmask 1047558
  %v296 = vsel %vm295, %v294, %v291
  %297 = vrot.lane.b32.xlu0 %v296, 112
  %v298 = vpop.permute.xlu0 %297
  %vm299 = vcmask 1048448
  %s300 = scalar_lea.vmem %s1, 56
  %301 = vst.msk [vmem:[%s300] sm:$0xff] %vm299, %v298
  %s302 = scalar_lea.vmem %s0, 6
  %s303 = smov 3
  %v304 = vld [vmem:[%s302] ss:$16 sm:%s303]
  %s305 = scalar_lea.vmem %s0, 6
  %s306 = smov 12
  %v307 = vld [vmem:[%s305] ss:$16 sm:%s306]
  %vm308 = vcmask 1043458
  %v309 = vsel %vm308, %v307, %v304
  %s310 = scalar_lea.vmem %s0, 6
  %s311 = smov 48
  %v312 = vld [vmem:[%s310] ss:$16 sm:%s311]
  %vm313 = vcmask 1045508
  %v314 = vsel %vm313, %v312, %v309
  %s315 = scalar_lea.vmem %s0, 6
  %s316 = smov 192
  %v317 = vld [vmem:[%s315] ss:$16 sm:%s316]
  %vm318 = vcmask 1047558
  %v319 = vsel %vm318, %v317, %v314
  %320 = vrot.lane.b32.xlu0 %v319, 96
  %v321 = vpop.permute.xlu0 %320
  %vm322 = vcmask 917248
  %323 = vst.msk [vmem:[%s1] sm:$0xff] %vm322, %v321
  %s324 = scalar_lea.vmem %s0, 262
  %s325 = smov 3
  %v326 = vld [vmem:[%s324] ss:$16 sm:%s325]
  %s327 = scalar_lea.vmem %s0, 262
  %s328 = smov 12
  %v329 = vld [vmem:[%s327] ss:$16 sm:%s328]
  %vm330 = vcmask 1043458
  %v331 = vsel %vm330, %v329, %v326
  %s332 = scalar_lea.vmem %s0, 262
  %s333 = smov 48
  %v334 = vld [vmem:[%s332] ss:$16 sm:%s333]
  %vm335 = vcmask 1045508
  %v336 = vsel %vm335, %v334, %v331
  %s337 = scalar_lea.vmem %s0, 262
  %s338 = smov 192
  %v339 = vld [vmem:[%s337] ss:$16 sm:%s338]
  %vm340 = vcmask 1047558
  %v341 = vsel %vm340, %v339, %v336
  %342 = vrot.lane.b32.xlu0 %v341, 96
  %v343 = vpop.permute.xlu0 %342
  %vm344 = vcmask 917248
  %s345 = scalar_lea.vmem %s1, 32
  %346 = vst.msk [vmem:[%s345] sm:$0xff] %vm344, %v343
  %s347 = scalar_lea.vmem %s0, 14
  %s348 = smov 3
  %v349 = vld [vmem:[%s347] ss:$16 sm:%s348]
  %s350 = scalar_lea.vmem %s0, 14
  %s351 = smov 12
  %v352 = vld [vmem:[%s350] ss:$16 sm:%s351]
  %vm353 = vcmask 1043458
  %v354 = vsel %vm353, %v352, %v349
  %s355 = scalar_lea.vmem %s0, 14
  %s356 = smov 48
  %v357 = vld [vmem:[%s355] ss:$16 sm:%s356]
  %vm358 = vcmask 1045508
  %v359 = vsel %vm358, %v357, %v354
  %s360 = scalar_lea.vmem %s0, 14
  %s361 = smov 192
  %v362 = vld [vmem:[%s360] ss:$16 sm:%s361]
  %vm363 = vcmask 1047558
  %v364 = vsel %vm363, %v362, %v359
  %365 = vrot.lane.b32.xlu0 %v364, 96
  %v366 = vpop.permute.xlu0 %365
  %vm367 = vcmask 917248
  %s368 = scalar_lea.vmem %s1, 8
  %369 = vst.msk [vmem:[%s368] sm:$0xff] %vm367, %v366
  %s370 = scalar_lea.vmem %s0, 270
  %s371 = smov 3
  %v372 = vld [vmem:[%s370] ss:$16 sm:%s371]
  %s373 = scalar_lea.vmem %s0, 270
  %s374 = smov 12
  %v375 = vld [vmem:[%s373] ss:$16 sm:%s374]
  %vm376 = vcmask 1043458
  %v377 = vsel %vm376, %v375, %v372
  %s378 = scalar_lea.vmem %s0, 270
  %s379 = smov 48
  %v380 = vld [vmem:[%s378] ss:$16 sm:%s379]
  %vm381 = vcmask 1045508
  %v382 = vsel %vm381, %v380, %v377
  %s383 = scalar_lea.vmem %s0, 270
  %s384 = smov 192
  %v385 = vld [vmem:[%s383] ss:$16 sm:%s384]
  %vm386 = vcmask 1047558
  %v387 = vsel %vm386, %v385, %v382
  %388 = vrot.lane.b32.xlu0 %v387, 96
  %v389 = vpop.permute.xlu0 %388
  %vm390 = vcmask 917248
  %s391 = scalar_lea.vmem %s1, 40
  %392 = vst.msk [vmem:[%s391] sm:$0xff] %vm390, %v389
  %s393 = scalar_lea.vmem %s0, 134
  %s394 = smov 3
  %v395 = vld [vmem:[%s393] ss:$16 sm:%s394]
  %s396 = scalar_lea.vmem %s0, 134
  %s397 = smov 12
  %v398 = vld [vmem:[%s396] ss:$16 sm:%s397]
  %vm399 = vcmask 1043458
  %v400 = vsel %vm399, %v398, %v395
  %s401 = scalar_lea.vmem %s0, 134
  %s402 = smov 48
  %v403 = vld [vmem:[%s401] ss:$16 sm:%s402]
  %vm404 = vcmask 1045508
  %v405 = vsel %vm404, %v403, %v400
  %s406 = scalar_lea.vmem %s0, 134
  %s407 = smov 192
  %v408 = vld [vmem:[%s406] ss:$16 sm:%s407]
  %vm409 = vcmask 1047558
  %v410 = vsel %vm409, %v408, %v405
  %411 = vrot.lane.b32.xlu0 %v410, 96
  %v412 = vpop.permute.xlu0 %411
  %vm413 = vcmask 917248
  %s414 = scalar_lea.vmem %s1, 16
  %415 = vst.msk [vmem:[%s414] sm:$0xff] %vm413, %v412
  %s416 = scalar_lea.vmem %s0, 390
  %s417 = smov 3
  %v418 = vld [vmem:[%s416] ss:$16 sm:%s417]
  %s419 = scalar_lea.vmem %s0, 390
  %s420 = smov 12
  %v421 = vld [vmem:[%s419] ss:$16 sm:%s420]
  %vm422 = vcmask 1043458
  %v423 = vsel %vm422, %v421, %v418
  %s424 = scalar_lea.vmem %s0, 390
  %s425 = smov 48
  %v426 = vld [vmem:[%s424] ss:$16 sm:%s425]
  %vm427 = vcmask 1045508
  %v428 = vsel %vm427, %v426, %v423
  %s429 = scalar_lea.vmem %s0, 390
  %s430 = smov 192
  %v431 = vld [vmem:[%s429] ss:$16 sm:%s430]
  %vm432 = vcmask 1047558
  %v433 = vsel %vm432, %v431, %v428
  %434 = vrot.lane.b32.xlu0 %v433, 96
  %v435 = vpop.permute.xlu0 %434
  %vm436 = vcmask 917248
  %s437 = scalar_lea.vmem %s1, 48
  %438 = vst.msk [vmem:[%s437] sm:$0xff] %vm436, %v435
  %s439 = scalar_lea.vmem %s0, 142
  %s440 = smov 3
  %v441 = vld [vmem:[%s439] ss:$16 sm:%s440]
  %s442 = scalar_lea.vmem %s0, 142
  %s443 = smov 12
  %v444 = vld [vmem:[%s442] ss:$16 sm:%s443]
  %vm445 = vcmask 1043458
  %v446 = vsel %vm445, %v444, %v441
  %s447 = scalar_lea.vmem %s0, 142
  %s448 = smov 48
  %v449 = vld [vmem:[%s447] ss:$16 sm:%s448]
  %vm450 = vcmask 1045508
  %v451 = vsel %vm450, %v449, %v446
  %s452 = scalar_lea.vmem %s0, 142
  %s453 = smov 192
  %v454 = vld [vmem:[%s452] ss:$16 sm:%s453]
  %vm455 = vcmask 1047558
  %v456 = vsel %vm455, %v454, %v451
  %457 = vrot.lane.b32.xlu0 %v456, 96
  %v458 = vpop.permute.xlu0 %457
  %vm459 = vcmask 917248
  %s460 = scalar_lea.vmem %s1, 24
  %461 = vst.msk [vmem:[%s460] sm:$0xff] %vm459, %v458
  %s462 = scalar_lea.vmem %s0, 398
  %s463 = smov 3
  %v464 = vld [vmem:[%s462] ss:$16 sm:%s463]
  %s465 = scalar_lea.vmem %s0, 398
  %s466 = smov 12
  %v467 = vld [vmem:[%s465] ss:$16 sm:%s466]
  %vm468 = vcmask 1043458
  %v469 = vsel %vm468, %v467, %v464
  %s470 = scalar_lea.vmem %s0, 398
  %s471 = smov 48
  %v472 = vld [vmem:[%s470] ss:$16 sm:%s471]
  %vm473 = vcmask 1045508
  %v474 = vsel %vm473, %v472, %v469
  %s475 = scalar_lea.vmem %s0, 398
  %s476 = smov 192
  %v477 = vld [vmem:[%s475] ss:$16 sm:%s476]
  %vm478 = vcmask 1047558
  %v479 = vsel %vm478, %v477, %v474
  %480 = vrot.lane.b32.xlu0 %v479, 96
  %v481 = vpop.permute.xlu0 %480
  %vm482 = vcmask 917248
  %s483 = scalar_lea.vmem %s1, 56
  %484 = vst.msk [vmem:[%s483] sm:$0xff] %vm482, %v481
  %s485 = scalar_lea.vmem %s0, 5
  %s486 = smov 3
  %v487 = vld [vmem:[%s485] ss:$16 sm:%s486]
  %s488 = scalar_lea.vmem %s0, 5
  %s489 = smov 12
  %v490 = vld [vmem:[%s488] ss:$16 sm:%s489]
  %vm491 = vcmask 1043458
  %v492 = vsel %vm491, %v490, %v487
  %s493 = scalar_lea.vmem %s0, 5
  %s494 = smov 48
  %v495 = vld [vmem:[%s493] ss:$16 sm:%s494]
  %vm496 = vcmask 1045508
  %v497 = vsel %vm496, %v495, %v492
  %s498 = scalar_lea.vmem %s0, 5
  %s499 = smov 192
  %v500 = vld [vmem:[%s498] ss:$16 sm:%s499]
  %vm501 = vcmask 1047558
  %v502 = vsel %vm501, %v500, %v497
  %503 = vrot.lane.b32.xlu0 %v502, 80
  %v504 = vpop.permute.xlu0 %503
  %vm505 = vcmask 786048
  %506 = vst.msk [vmem:[%s1] sm:$0xff] %vm505, %v504
  %s507 = scalar_lea.vmem %s0, 261
  %s508 = smov 3
  %v509 = vld [vmem:[%s507] ss:$16 sm:%s508]
  %s510 = scalar_lea.vmem %s0, 261
  %s511 = smov 12
  %v512 = vld [vmem:[%s510] ss:$16 sm:%s511]
  %vm513 = vcmask 1043458
  %v514 = vsel %vm513, %v512, %v509
  %s515 = scalar_lea.vmem %s0, 261
  %s516 = smov 48
  %v517 = vld [vmem:[%s515] ss:$16 sm:%s516]
  %vm518 = vcmask 1045508
  %v519 = vsel %vm518, %v517, %v514
  %s520 = scalar_lea.vmem %s0, 261
  %s521 = smov 192
  %v522 = vld [vmem:[%s520] ss:$16 sm:%s521]
  %vm523 = vcmask 1047558
  %v524 = vsel %vm523, %v522, %v519
  %525 = vrot.lane.b32.xlu0 %v524, 80
  %v526 = vpop.permute.xlu0 %525
  %vm527 = vcmask 786048
  %s528 = scalar_lea.vmem %s1, 32
  %529 = vst.msk [vmem:[%s528] sm:$0xff] %vm527, %v526
  %s530 = scalar_lea.vmem %s0, 13
  %s531 = smov 3
  %v532 = vld [vmem:[%s530] ss:$16 sm:%s531]
  %s533 = scalar_lea.vmem %s0, 13
  %s534 = smov 12
  %v535 = vld [vmem:[%s533] ss:$16 sm:%s534]
  %vm536 = vcmask 1043458
  %v537 = vsel %vm536, %v535, %v532
  %s538 = scalar_lea.vmem %s0, 13
  %s539 = smov 48
  %v540 = vld [vmem:[%s538] ss:$16 sm:%s539]
  %vm541 = vcmask 1045508
  %v542 = vsel %vm541, %v540, %v537
  %s543 = scalar_lea.vmem %s0, 13
  %s544 = smov 192
  %v545 = vld [vmem:[%s543] ss:$16 sm:%s544]
  %vm546 = vcmask 1047558
  %v547 = vsel %vm546, %v545, %v542
  %548 = vrot.lane.b32.xlu0 %v547, 80
  %v549 = vpop.permute.xlu0 %548
  %vm550 = vcmask 786048
  %s551 = scalar_lea.vmem %s1, 8
  %552 = vst.msk [vmem:[%s551] sm:$0xff] %vm550, %v549
  %s553 = scalar_lea.vmem %s0, 269
  %s554 = smov 3
  %v555 = vld [vmem:[%s553] ss:$16 sm:%s554]
  %s556 = scalar_lea.vmem %s0, 269
  %s557 = smov 12
  %v558 = vld [vmem:[%s556] ss:$16 sm:%s557]
  %vm559 = vcmask 1043458
  %v560 = vsel %vm559, %v558, %v555
  %s561 = scalar_lea.vmem %s0, 269
  %s562 = smov 48
  %v563 = vld [vmem:[%s561] ss:$16 sm:%s562]
  %vm564 = vcmask 1045508
  %v565 = vsel %vm564, %v563, %v560
  %s566 = scalar_lea.vmem %s0, 269
  %s567 = smov 192
  %v568 = vld [vmem:[%s566] ss:$16 sm:%s567]
  %vm569 = vcmask 1047558
  %v570 = vsel %vm569, %v568, %v565
  %571 = vrot.lane.b32.xlu0 %v570, 80
  %v572 = vpop.permute.xlu0 %571
  %vm573 = vcmask 786048
  %s574 = scalar_lea.vmem %s1, 40
  %575 = vst.msk [vmem:[%s574] sm:$0xff] %vm573, %v572
  %s576 = scalar_lea.vmem %s0, 133
  %s577 = smov 3
  %v578 = vld [vmem:[%s576] ss:$16 sm:%s577]
  %s579 = scalar_lea.vmem %s0, 133
  %s580 = smov 12
  %v581 = vld [vmem:[%s579] ss:$16 sm:%s580]
  %vm582 = vcmask 1043458
  %v583 = vsel %vm582, %v581, %v578
  %s584 = scalar_lea.vmem %s0, 133
  %s585 = smov 48
  %v586 = vld [vmem:[%s584] ss:$16 sm:%s585]
  %vm587 = vcmask 1045508
  %v588 = vsel %vm587, %v586, %v583
  %s589 = scalar_lea.vmem %s0, 133
  %s590 = smov 192
  %v591 = vld [vmem:[%s589] ss:$16 sm:%s590]
  %vm592 = vcmask 1047558
  %v593 = vsel %vm592, %v591, %v588
  %594 = vrot.lane.b32.xlu0 %v593, 80
  %v595 = vpop.permute.xlu0 %594
  %vm596 = vcmask 786048
  %s597 = scalar_lea.vmem %s1, 16
  %598 = vst.msk [vmem:[%s597] sm:$0xff] %vm596, %v595
  %s599 = scalar_lea.vmem %s0, 389
  %s600 = smov 3
  %v601 = vld [vmem:[%s599] ss:$16 sm:%s600]
  %s602 = scalar_lea.vmem %s0, 389
  %s603 = smov 12
  %v604 = vld [vmem:[%s602] ss:$16 sm:%s603]
  %vm605 = vcmask 1043458
  %v606 = vsel %vm605, %v604, %v601
  %s607 = scalar_lea.vmem %s0, 389
  %s608 = smov 48
  %v609 = vld [vmem:[%s607] ss:$16 sm:%s608]
  %vm610 = vcmask 1045508
  %v611 = vsel %vm610, %v609, %v606
  %s612 = scalar_lea.vmem %s0, 389
  %s613 = smov 192
  %v614 = vld [vmem:[%s612] ss:$16 sm:%s613]
  %vm615 = vcmask 1047558
  %v616 = vsel %vm615, %v614, %v611
  %617 = vrot.lane.b32.xlu0 %v616, 80
  %v618 = vpop.permute.xlu0 %617
  %vm619 = vcmask 786048
  %s620 = scalar_lea.vmem %s1, 48
  %621 = vst.msk [vmem:[%s620] sm:$0xff] %vm619, %v618
  %s622 = scalar_lea.vmem %s0, 141
  %s623 = smov 3
  %v624 = vld [vmem:[%s622] ss:$16 sm:%s623]
  %s625 = scalar_lea.vmem %s0, 141
  %s626 = smov 12
  %v627 = vld [vmem:[%s625] ss:$16 sm:%s626]
  %vm628 = vcmask 1043458
  %v629 = vsel %vm628, %v627, %v624
  %s630 = scalar_lea.vmem %s0, 141
  %s631 = smov 48
  %v632 = vld [vmem:[%s630] ss:$16 sm:%s631]
  %vm633 = vcmask 1045508
  %v634 = vsel %vm633, %v632, %v629
  %s635 = scalar_lea.vmem %s0, 141
  %s636 = smov 192
  %v637 = vld [vmem:[%s635] ss:$16 sm:%s636]
  %vm638 = vcmask 1047558
  %v639 = vsel %vm638, %v637, %v634
  %640 = vrot.lane.b32.xlu0 %v639, 80
  %v641 = vpop.permute.xlu0 %640
  %vm642 = vcmask 786048
  %s643 = scalar_lea.vmem %s1, 24
  %644 = vst.msk [vmem:[%s643] sm:$0xff] %vm642, %v641
  %s645 = scalar_lea.vmem %s0, 397
  %s646 = smov 3
  %v647 = vld [vmem:[%s645] ss:$16 sm:%s646]
  %s648 = scalar_lea.vmem %s0, 397
  %s649 = smov 12
  %v650 = vld [vmem:[%s648] ss:$16 sm:%s649]
  %vm651 = vcmask 1043458
  %v652 = vsel %vm651, %v650, %v647
  %s653 = scalar_lea.vmem %s0, 397
  %s654 = smov 48
  %v655 = vld [vmem:[%s653] ss:$16 sm:%s654]
  %vm656 = vcmask 1045508
  %v657 = vsel %vm656, %v655, %v652
  %s658 = scalar_lea.vmem %s0, 397
  %s659 = smov 192
  %v660 = vld [vmem:[%s658] ss:$16 sm:%s659]
  %vm661 = vcmask 1047558
  %v662 = vsel %vm661, %v660, %v657
  %663 = vrot.lane.b32.xlu0 %v662, 80
  %v664 = vpop.permute.xlu0 %663
  %vm665 = vcmask 786048
  %s666 = scalar_lea.vmem %s1, 56
  %667 = vst.msk [vmem:[%s666] sm:$0xff] %vm665, %v664
  %s668 = scalar_lea.vmem %s0, 4
  %s669 = smov 3
  %v670 = vld [vmem:[%s668] ss:$16 sm:%s669]
  %s671 = scalar_lea.vmem %s0, 4
  %s672 = smov 12
  %v673 = vld [vmem:[%s671] ss:$16 sm:%s672]
  %vm674 = vcmask 1043458
  %v675 = vsel %vm674, %v673, %v670
  %s676 = scalar_lea.vmem %s0, 4
  %s677 = smov 48
  %v678 = vld [vmem:[%s676] ss:$16 sm:%s677]
  %vm679 = vcmask 1045508
  %v680 = vsel %vm679, %v678, %v675
  %s681 = scalar_lea.vmem %s0, 4
  %s682 = smov 192
  %v683 = vld [vmem:[%s681] ss:$16 sm:%s682]
  %vm684 = vcmask 1047558
  %v685 = vsel %vm684, %v683, %v680
  %686 = vrot.lane.b32.xlu0 %v685, 64
  %v687 = vpop.permute.xlu0 %686
  %vm688 = vcmask 654848
  %689 = vst.msk [vmem:[%s1] sm:$0xff] %vm688, %v687
  %s690 = scalar_lea.vmem %s0, 260
  %s691 = smov 3
  %v692 = vld [vmem:[%s690] ss:$16 sm:%s691]
  %s693 = scalar_lea.vmem %s0, 260
  %s694 = smov 12
  %v695 = vld [vmem:[%s693] ss:$16 sm:%s694]
  %vm696 = vcmask 1043458
  %v697 = vsel %vm696, %v695, %v692
  %s698 = scalar_lea.vmem %s0, 260
  %s699 = smov 48
  %v700 = vld [vmem:[%s698] ss:$16 sm:%s699]
  %vm701 = vcmask 1045508
  %v702 = vsel %vm701, %v700, %v697
  %s703 = scalar_lea.vmem %s0, 260
  %s704 = smov 192
  %v705 = vld [vmem:[%s703] ss:$16 sm:%s704]
  %vm706 = vcmask 1047558
  %v707 = vsel %vm706, %v705, %v702
  %708 = vrot.lane.b32.xlu0 %v707, 64
  %v709 = vpop.permute.xlu0 %708
  %vm710 = vcmask 654848
  %s711 = scalar_lea.vmem %s1, 32
  %712 = vst.msk [vmem:[%s711] sm:$0xff] %vm710, %v709
  %s713 = scalar_lea.vmem %s0, 12
  %s714 = smov 3
  %v715 = vld [vmem:[%s713] ss:$16 sm:%s714]
  %s716 = scalar_lea.vmem %s0, 12
  %s717 = smov 12
  %v718 = vld [vmem:[%s716] ss:$16 sm:%s717]
  %vm719 = vcmask 1043458
  %v720 = vsel %vm719, %v718, %v715
  %s721 = scalar_lea.vmem %s0, 12
  %s722 = smov 48
  %v723 = vld [vmem:[%s721] ss:$16 sm:%s722]
  %vm724 = vcmask 1045508
  %v725 = vsel %vm724, %v723, %v720
  %s726 = scalar_lea.vmem %s0, 12
  %s727 = smov 192
  %v728 = vld [vmem:[%s726] ss:$16 sm:%s727]
  %vm729 = vcmask 1047558
  %v730 = vsel %vm729, %v728, %v725
  %731 = vrot.lane.b32.xlu0 %v730, 64
  %v732 = vpop.permute.xlu0 %731
  %vm733 = vcmask 654848
  %s734 = scalar_lea.vmem %s1, 8
  %735 = vst.msk [vmem:[%s734] sm:$0xff] %vm733, %v732
  %s736 = scalar_lea.vmem %s0, 268
  %s737 = smov 3
  %v738 = vld [vmem:[%s736] ss:$16 sm:%s737]
  %s739 = scalar_lea.vmem %s0, 268
  %s740 = smov 12
  %v741 = vld [vmem:[%s739] ss:$16 sm:%s740]
  %vm742 = vcmask 1043458
  %v743 = vsel %vm742, %v741, %v738
  %s744 = scalar_lea.vmem %s0, 268
  %s745 = smov 48
  %v746 = vld [vmem:[%s744] ss:$16 sm:%s745]
  %vm747 = vcmask 1045508
  %v748 = vsel %vm747, %v746, %v743
  %s749 = scalar_lea.vmem %s0, 268
  %s750 = smov 192
  %v751 = vld [vmem:[%s749] ss:$16 sm:%s750]
  %vm752 = vcmask 1047558
  %v753 = vsel %vm752, %v751, %v748
  %754 = vrot.lane.b32.xlu0 %v753, 64
  %v755 = vpop.permute.xlu0 %754
  %vm756 = vcmask 654848
  %s757 = scalar_lea.vmem %s1, 40
  %758 = vst.msk [vmem:[%s757] sm:$0xff] %vm756, %v755
  %s759 = scalar_lea.vmem %s0, 132
  %s760 = smov 3
  %v761 = vld [vmem:[%s759] ss:$16 sm:%s760]
  %s762 = scalar_lea.vmem %s0, 132
  %s763 = smov 12
  %v764 = vld [vmem:[%s762] ss:$16 sm:%s763]
  %vm765 = vcmask 1043458
  %v766 = vsel %vm765, %v764, %v761
  %s767 = scalar_lea.vmem %s0, 132
  %s768 = smov 48
  %v769 = vld [vmem:[%s767] ss:$16 sm:%s768]
  %vm770 = vcmask 1045508
  %v771 = vsel %vm770, %v769, %v766
  %s772 = scalar_lea.vmem %s0, 132
  %s773 = smov 192
  %v774 = vld [vmem:[%s772] ss:$16 sm:%s773]
  %vm775 = vcmask 1047558
  %v776 = vsel %vm775, %v774, %v771
  %777 = vrot.lane.b32.xlu0 %v776, 64
  %v778 = vpop.permute.xlu0 %777
  %vm779 = vcmask 654848
  %s780 = scalar_lea.vmem %s1, 16
  %781 = vst.msk [vmem:[%s780] sm:$0xff] %vm779, %v778
  %s782 = scalar_lea.vmem %s0, 388
  %s783 = smov 3
  %v784 = vld [vmem:[%s782] ss:$16 sm:%s783]
  %s785 = scalar_lea.vmem %s0, 388
  %s786 = smov 12
  %v787 = vld [vmem:[%s785] ss:$16 sm:%s786]
  %vm788 = vcmask 1043458
  %v789 = vsel %vm788, %v787, %v784
  %s790 = scalar_lea.vmem %s0, 388
  %s791 = smov 48
  %v792 = vld [vmem:[%s790] ss:$16 sm:%s791]
  %vm793 = vcmask 1045508
  %v794 = vsel %vm793, %v792, %v789
  %s795 = scalar_lea.vmem %s0, 388
  %s796 = smov 192
  %v797 = vld [vmem:[%s795] ss:$16 sm:%s796]
  %vm798 = vcmask 1047558
  %v799 = vsel %vm798, %v797, %v794
  %800 = vrot.lane.b32.xlu0 %v799, 64
  %v801 = vpop.permute.xlu0 %800
  %vm802 = vcmask 654848
  %s803 = scalar_lea.vmem %s1, 48
  %804 = vst.msk [vmem:[%s803] sm:$0xff] %vm802, %v801
  %s805 = scalar_lea.vmem %s0, 140
  %s806 = smov 3
  %v807 = vld [vmem:[%s805] ss:$16 sm:%s806]
  %s808 = scalar_lea.vmem %s0, 140
  %s809 = smov 12
  %v810 = vld [vmem:[%s808] ss:$16 sm:%s809]
  %vm811 = vcmask 1043458
  %v812 = vsel %vm811, %v810, %v807
  %s813 = scalar_lea.vmem %s0, 140
  %s814 = smov 48
  %v815 = vld [vmem:[%s813] ss:$16 sm:%s814]
  %vm816 = vcmask 1045508
  %v817 = vsel %vm816, %v815, %v812
  %s818 = scalar_lea.vmem %s0, 140
  %s819 = smov 192
  %v820 = vld [vmem:[%s818] ss:$16 sm:%s819]
  %vm821 = vcmask 1047558
  %v822 = vsel %vm821, %v820, %v817
  %823 = vrot.lane.b32.xlu0 %v822, 64
  %v824 = vpop.permute.xlu0 %823
  %vm825 = vcmask 654848
  %s826 = scalar_lea.vmem %s1, 24
  %827 = vst.msk [vmem:[%s826] sm:$0xff] %vm825, %v824
  %s828 = scalar_lea.vmem %s0, 396
  %s829 = smov 3
  %v830 = vld [vmem:[%s828] ss:$16 sm:%s829]
  %s831 = scalar_lea.vmem %s0, 396
  %s832 = smov 12
  %v833 = vld [vmem:[%s831] ss:$16 sm:%s832]
  %vm834 = vcmask 1043458
  %v835 = vsel %vm834, %v833, %v830
  %s836 = scalar_lea.vmem %s0, 396
  %s837 = smov 48
  %v838 = vld [vmem:[%s836] ss:$16 sm:%s837]
  %vm839 = vcmask 1045508
  %v840 = vsel %vm839, %v838, %v835
  %s841 = scalar_lea.vmem %s0, 396
  %s842 = smov 192
  %v843 = vld [vmem:[%s841] ss:$16 sm:%s842]
  %vm844 = vcmask 1047558
  %v845 = vsel %vm844, %v843, %v840
  %846 = vrot.lane.b32.xlu0 %v845, 64
  %v847 = vpop.permute.xlu0 %846
  %vm848 = vcmask 654848
  %s849 = scalar_lea.vmem %s1, 56
  %850 = vst.msk [vmem:[%s849] sm:$0xff] %vm848, %v847
  %s851 = scalar_lea.vmem %s0, 3
  %s852 = smov 3
  %v853 = vld [vmem:[%s851] ss:$16 sm:%s852]
  %s854 = scalar_lea.vmem %s0, 3
  %s855 = smov 12
  %v856 = vld [vmem:[%s854] ss:$16 sm:%s855]
  %vm857 = vcmask 1043458
  %v858 = vsel %vm857, %v856, %v853
  %s859 = scalar_lea.vmem %s0, 3
  %s860 = smov 48
  %v861 = vld [vmem:[%s859] ss:$16 sm:%s860]
  %vm862 = vcmask 1045508
  %v863 = vsel %vm862, %v861, %v858
  %s864 = scalar_lea.vmem %s0, 3
  %s865 = smov 192
  %v866 = vld [vmem:[%s864] ss:$16 sm:%s865]
  %vm867 = vcmask 1047558
  %v868 = vsel %vm867, %v866, %v863
  %869 = vrot.lane.b32.xlu0 %v868, 48
  %v870 = vpop.permute.xlu0 %869
  %vm871 = vcmask 523648
  %872 = vst.msk [vmem:[%s1] sm:$0xff] %vm871, %v870
  %s873 = scalar_lea.vmem %s0, 259
  %s874 = smov 3
  %v875 = vld [vmem:[%s873] ss:$16 sm:%s874]
  %s876 = scalar_lea.vmem %s0, 259
  %s877 = smov 12
  %v878 = vld [vmem:[%s876] ss:$16 sm:%s877]
  %vm879 = vcmask 1043458
  %v880 = vsel %vm879, %v878, %v875
  %s881 = scalar_lea.vmem %s0, 259
  %s882 = smov 48
  %v883 = vld [vmem:[%s881] ss:$16 sm:%s882]
  %vm884 = vcmask 1045508
  %v885 = vsel %vm884, %v883, %v880
  %s886 = scalar_lea.vmem %s0, 259
  %s887 = smov 192
  %v888 = vld [vmem:[%s886] ss:$16 sm:%s887]
  %vm889 = vcmask 1047558
  %v890 = vsel %vm889, %v888, %v885
  %891 = vrot.lane.b32.xlu0 %v890, 48
  %v892 = vpop.permute.xlu0 %891
  %vm893 = vcmask 523648
  %s894 = scalar_lea.vmem %s1, 32
  %895 = vst.msk [vmem:[%s894] sm:$0xff] %vm893, %v892
  %s896 = scalar_lea.vmem %s0, 11
  %s897 = smov 3
  %v898 = vld [vmem:[%s896] ss:$16 sm:%s897]
  %s899 = scalar_lea.vmem %s0, 11
  %s900 = smov 12
  %v901 = vld [vmem:[%s899] ss:$16 sm:%s900]
  %vm902 = vcmask 1043458
  %v903 = vsel %vm902, %v901, %v898
  %s904 = scalar_lea.vmem %s0, 11
  %s905 = smov 48
  %v906 = vld [vmem:[%s904] ss:$16 sm:%s905]
  %vm907 = vcmask 1045508
  %v908 = vsel %vm907, %v906, %v903
  %s909 = scalar_lea.vmem %s0, 11
  %s910 = smov 192
  %v911 = vld [vmem:[%s909] ss:$16 sm:%s910]
  %vm912 = vcmask 1047558
  %v913 = vsel %vm912, %v911, %v908
  %914 = vrot.lane.b32.xlu0 %v913, 48
  %v915 = vpop.permute.xlu0 %914
  %vm916 = vcmask 523648
  %s917 = scalar_lea.vmem %s1, 8
  %918 = vst.msk [vmem:[%s917] sm:$0xff] %vm916, %v915
  %s919 = scalar_lea.vmem %s0, 267
  %s920 = smov 3
  %v921 = vld [vmem:[%s919] ss:$16 sm:%s920]
  %s922 = scalar_lea.vmem %s0, 267
  %s923 = smov 12
  %v924 = vld [vmem:[%s922] ss:$16 sm:%s923]
  %vm925 = vcmask 1043458
  %v926 = vsel %vm925, %v924, %v921
  %s927 = scalar_lea.vmem %s0, 267
  %s928 = smov 48
  %v929 = vld [vmem:[%s927] ss:$16 sm:%s928]
  %vm930 = vcmask 1045508
  %v931 = vsel %vm930, %v929, %v926
  %s932 = scalar_lea.vmem %s0, 267
  %s933 = smov 192
  %v934 = vld [vmem:[%s932] ss:$16 sm:%s933]
  %vm935 = vcmask 1047558
  %v936 = vsel %vm935, %v934, %v931
  %937 = vrot.lane.b32.xlu0 %v936, 48
  %v938 = vpop.permute.xlu0 %937
  %vm939 = vcmask 523648
  %s940 = scalar_lea.vmem %s1, 40
  %941 = vst.msk [vmem:[%s940] sm:$0xff] %vm939, %v938
  %s942 = scalar_lea.vmem %s0, 131
  %s943 = smov 3
  %v944 = vld [vmem:[%s942] ss:$16 sm:%s943]
  %s945 = scalar_lea.vmem %s0, 131
  %s946 = smov 12
  %v947 = vld [vmem:[%s945] ss:$16 sm:%s946]
  %vm948 = vcmask 1043458
  %v949 = vsel %vm948, %v947, %v944
  %s950 = scalar_lea.vmem %s0, 131
  %s951 = smov 48
  %v952 = vld [vmem:[%s950] ss:$16 sm:%s951]
  %vm953 = vcmask 1045508
  %v954 = vsel %vm953, %v952, %v949
  %s955 = scalar_lea.vmem %s0, 131
  %s956 = smov 192
  %v957 = vld [vmem:[%s955] ss:$16 sm:%s956]
  %vm958 = vcmask 1047558
  %v959 = vsel %vm958, %v957, %v954
  %960 = vrot.lane.b32.xlu0 %v959, 48
  %v961 = vpop.permute.xlu0 %960
  %vm962 = vcmask 523648
  %s963 = scalar_lea.vmem %s1, 16
  %964 = vst.msk [vmem:[%s963] sm:$0xff] %vm962, %v961
  %s965 = scalar_lea.vmem %s0, 387
  %s966 = smov 3
  %v967 = vld [vmem:[%s965] ss:$16 sm:%s966]
  %s968 = scalar_lea.vmem %s0, 387
  %s969 = smov 12
  %v970 = vld [vmem:[%s968] ss:$16 sm:%s969]
  %vm971 = vcmask 1043458
  %v972 = vsel %vm971, %v970, %v967
  %s973 = scalar_lea.vmem %s0, 387
  %s974 = smov 48
  %v975 = vld [vmem:[%s973] ss:$16 sm:%s974]
  %vm976 = vcmask 1045508
  %v977 = vsel %vm976, %v975, %v972
  %s978 = scalar_lea.vmem %s0, 387
  %s979 = smov 192
  %v980 = vld [vmem:[%s978] ss:$16 sm:%s979]
  %vm981 = vcmask 1047558
  %v982 = vsel %vm981, %v980, %v977
  %983 = vrot.lane.b32.xlu0 %v982, 48
  %v984 = vpop.permute.xlu0 %983
  %vm985 = vcmask 523648
  %s986 = scalar_lea.vmem %s1, 48
  %987 = vst.msk [vmem:[%s986] sm:$0xff] %vm985, %v984
  %s988 = scalar_lea.vmem %s0, 139
  %s989 = smov 3
  %v990 = vld [vmem:[%s988] ss:$16 sm:%s989]
  %s991 = scalar_lea.vmem %s0, 139
  %s992 = smov 12
  %v993 = vld [vmem:[%s991] ss:$16 sm:%s992]
  %vm994 = vcmask 1043458
  %v995 = vsel %vm994, %v993, %v990
  %s996 = scalar_lea.vmem %s0, 139
  %s997 = smov 48
  %v998 = vld [vmem:[%s996] ss:$16 sm:%s997]
  %vm999 = vcmask 1045508
  %v1000 = vsel %vm999, %v998, %v995
  %s1001 = scalar_lea.vmem %s0, 139
  %s1002 = smov 192
  %v1003 = vld [vmem:[%s1001] ss:$16 sm:%s1002]
  %vm1004 = vcmask 1047558
  %v1005 = vsel %vm1004, %v1003, %v1000
  %1006 = vrot.lane.b32.xlu0 %v1005, 48
  %v1007 = vpop.permute.xlu0 %1006
  %vm1008 = vcmask 523648
  %s1009 = scalar_lea.vmem %s1, 24
  %1010 = vst.msk [vmem:[%s1009] sm:$0xff] %vm1008, %v1007
  %s1011 = scalar_lea.vmem %s0, 395
  %s1012 = smov 3
  %v1013 = vld [vmem:[%s1011] ss:$16 sm:%s1012]
  %s1014 = scalar_lea.vmem %s0, 395
  %s1015 = smov 12
  %v1016 = vld [vmem:[%s1014] ss:$16 sm:%s1015]
  %vm1017 = vcmask 1043458
  %v1018 = vsel %vm1017, %v1016, %v1013
  %s1019 = scalar_lea.vmem %s0, 395
  %s1020 = smov 48
  %v1021 = vld [vmem:[%s1019] ss:$16 sm:%s1020]
  %vm1022 = vcmask 1045508
  %v1023 = vsel %vm1022, %v1021, %v1018
  %s1024 = scalar_lea.vmem %s0, 395
  %s1025 = smov 192
  %v1026 = vld [vmem:[%s1024] ss:$16 sm:%s1025]
  %vm1027 = vcmask 1047558
  %v1028 = vsel %vm1027, %v1026, %v1023
  %1029 = vrot.lane.b32.xlu0 %v1028, 48
  %v1030 = vpop.permute.xlu0 %1029
  %vm1031 = vcmask 523648
  %s1032 = scalar_lea.vmem %s1, 56
  %1033 = vst.msk [vmem:[%s1032] sm:$0xff] %vm1031, %v1030
  %s1034 = scalar_lea.vmem %s0, 2
  %s1035 = smov 3
  %v1036 = vld [vmem:[%s1034] ss:$16 sm:%s1035]
  %s1037 = scalar_lea.vmem %s0, 2
  %s1038 = smov 12
  %v1039 = vld [vmem:[%s1037] ss:$16 sm:%s1038]
  %vm1040 = vcmask 1043458
  %v1041 = vsel %vm1040, %v1039, %v1036
  %s1042 = scalar_lea.vmem %s0, 2
  %s1043 = smov 48
  %v1044 = vld [vmem:[%s1042] ss:$16 sm:%s1043]
  %vm1045 = vcmask 1045508
  %v1046 = vsel %vm1045, %v1044, %v1041
  %s1047 = scalar_lea.vmem %s0, 2
  %s1048 = smov 192
  %v1049 = vld [vmem:[%s1047] ss:$16 sm:%s1048]
  %vm1050 = vcmask 1047558
  %v1051 = vsel %vm1050, %v1049, %v1046
  %1052 = vrot.lane.b32.xlu0 %v1051, 32
  %v1053 = vpop.permute.xlu0 %1052
  %vm1054 = vcmask 392448
  %1055 = vst.msk [vmem:[%s1] sm:$0xff] %vm1054, %v1053
  %s1056 = scalar_lea.vmem %s0, 258
  %s1057 = smov 3
  %v1058 = vld [vmem:[%s1056] ss:$16 sm:%s1057]
  %s1059 = scalar_lea.vmem %s0, 258
  %s1060 = smov 12
  %v1061 = vld [vmem:[%s1059] ss:$16 sm:%s1060]
  %vm1062 = vcmask 1043458
  %v1063 = vsel %vm1062, %v1061, %v1058
  %s1064 = scalar_lea.vmem %s0, 258
  %s1065 = smov 48
  %v1066 = vld [vmem:[%s1064] ss:$16 sm:%s1065]
  %vm1067 = vcmask 1045508
  %v1068 = vsel %vm1067, %v1066, %v1063
  %s1069 = scalar_lea.vmem %s0, 258
  %s1070 = smov 192
  %v1071 = vld [vmem:[%s1069] ss:$16 sm:%s1070]
  %vm1072 = vcmask 1047558
  %v1073 = vsel %vm1072, %v1071, %v1068
  %1074 = vrot.lane.b32.xlu0 %v1073, 32
  %v1075 = vpop.permute.xlu0 %1074
  %vm1076 = vcmask 392448
  %s1077 = scalar_lea.vmem %s1, 32
  %1078 = vst.msk [vmem:[%s1077] sm:$0xff] %vm1076, %v1075
  %s1079 = scalar_lea.vmem %s0, 10
  %s1080 = smov 3
  %v1081 = vld [vmem:[%s1079] ss:$16 sm:%s1080]
  %s1082 = scalar_lea.vmem %s0, 10
  %s1083 = smov 12
  %v1084 = vld [vmem:[%s1082] ss:$16 sm:%s1083]
  %vm1085 = vcmask 1043458
  %v1086 = vsel %vm1085, %v1084, %v1081
  %s1087 = scalar_lea.vmem %s0, 10
  %s1088 = smov 48
  %v1089 = vld [vmem:[%s1087] ss:$16 sm:%s1088]
  %vm1090 = vcmask 1045508
  %v1091 = vsel %vm1090, %v1089, %v1086
  %s1092 = scalar_lea.vmem %s0, 10
  %s1093 = smov 192
  %v1094 = vld [vmem:[%s1092] ss:$16 sm:%s1093]
  %vm1095 = vcmask 1047558
  %v1096 = vsel %vm1095, %v1094, %v1091
  %1097 = vrot.lane.b32.xlu0 %v1096, 32
  %v1098 = vpop.permute.xlu0 %1097
  %vm1099 = vcmask 392448
  %s1100 = scalar_lea.vmem %s1, 8
  %1101 = vst.msk [vmem:[%s1100] sm:$0xff] %vm1099, %v1098
  %s1102 = scalar_lea.vmem %s0, 266
  %s1103 = smov 3
  %v1104 = vld [vmem:[%s1102] ss:$16 sm:%s1103]
  %s1105 = scalar_lea.vmem %s0, 266
  %s1106 = smov 12
  %v1107 = vld [vmem:[%s1105] ss:$16 sm:%s1106]
  %vm1108 = vcmask 1043458
  %v1109 = vsel %vm1108, %v1107, %v1104
  %s1110 = scalar_lea.vmem %s0, 266
  %s1111 = smov 48
  %v1112 = vld [vmem:[%s1110] ss:$16 sm:%s1111]
  %vm1113 = vcmask 1045508
  %v1114 = vsel %vm1113, %v1112, %v1109
  %s1115 = scalar_lea.vmem %s0, 266
  %s1116 = smov 192
  %v1117 = vld [vmem:[%s1115] ss:$16 sm:%s1116]
  %vm1118 = vcmask 1047558
  %v1119 = vsel %vm1118, %v1117, %v1114
  %1120 = vrot.lane.b32.xlu0 %v1119, 32
  %v1121 = vpop.permute.xlu0 %1120
  %vm1122 = vcmask 392448
  %s1123 = scalar_lea.vmem %s1, 40
  %1124 = vst.msk [vmem:[%s1123] sm:$0xff] %vm1122, %v1121
  %s1125 = scalar_lea.vmem %s0, 130
  %s1126 = smov 3
  %v1127 = vld [vmem:[%s1125] ss:$16 sm:%s1126]
  %s1128 = scalar_lea.vmem %s0, 130
  %s1129 = smov 12
  %v1130 = vld [vmem:[%s1128] ss:$16 sm:%s1129]
  %vm1131 = vcmask 1043458
  %v1132 = vsel %vm1131, %v1130, %v1127
  %s1133 = scalar_lea.vmem %s0, 130
  %s1134 = smov 48
  %v1135 = vld [vmem:[%s1133] ss:$16 sm:%s1134]
  %vm1136 = vcmask 1045508
  %v1137 = vsel %vm1136, %v1135, %v1132
  %s1138 = scalar_lea.vmem %s0, 130
  %s1139 = smov 192
  %v1140 = vld [vmem:[%s1138] ss:$16 sm:%s1139]
  %vm1141 = vcmask 1047558
  %v1142 = vsel %vm1141, %v1140, %v1137
  %1143 = vrot.lane.b32.xlu0 %v1142, 32
  %v1144 = vpop.permute.xlu0 %1143
  %vm1145 = vcmask 392448
  %s1146 = scalar_lea.vmem %s1, 16
  %1147 = vst.msk [vmem:[%s1146] sm:$0xff] %vm1145, %v1144
  %s1148 = scalar_lea.vmem %s0, 386
  %s1149 = smov 3
  %v1150 = vld [vmem:[%s1148] ss:$16 sm:%s1149]
  %s1151 = scalar_lea.vmem %s0, 386
  %s1152 = smov 12
  %v1153 = vld [vmem:[%s1151] ss:$16 sm:%s1152]
  %vm1154 = vcmask 1043458
  %v1155 = vsel %vm1154, %v1153, %v1150
  %s1156 = scalar_lea.vmem %s0, 386
  %s1157 = smov 48
  %v1158 = vld [vmem:[%s1156] ss:$16 sm:%s1157]
  %vm1159 = vcmask 1045508
  %v1160 = vsel %vm1159, %v1158, %v1155
  %s1161 = scalar_lea.vmem %s0, 386
  %s1162 = smov 192
  %v1163 = vld [vmem:[%s1161] ss:$16 sm:%s1162]
  %vm1164 = vcmask 1047558
  %v1165 = vsel %vm1164, %v1163, %v1160
  %1166 = vrot.lane.b32.xlu0 %v1165, 32
  %v1167 = vpop.permute.xlu0 %1166
  %vm1168 = vcmask 392448
  %s1169 = scalar_lea.vmem %s1, 48
  %1170 = vst.msk [vmem:[%s1169] sm:$0xff] %vm1168, %v1167
  %s1171 = scalar_lea.vmem %s0, 138
  %s1172 = smov 3
  %v1173 = vld [vmem:[%s1171] ss:$16 sm:%s1172]
  %s1174 = scalar_lea.vmem %s0, 138
  %s1175 = smov 12
  %v1176 = vld [vmem:[%s1174] ss:$16 sm:%s1175]
  %vm1177 = vcmask 1043458
  %v1178 = vsel %vm1177, %v1176, %v1173
  %s1179 = scalar_lea.vmem %s0, 138
  %s1180 = smov 48
  %v1181 = vld [vmem:[%s1179] ss:$16 sm:%s1180]
  %vm1182 = vcmask 1045508
  %v1183 = vsel %vm1182, %v1181, %v1178
  %s1184 = scalar_lea.vmem %s0, 138
  %s1185 = smov 192
  %v1186 = vld [vmem:[%s1184] ss:$16 sm:%s1185]
  %vm1187 = vcmask 1047558
  %v1188 = vsel %vm1187, %v1186, %v1183
  %1189 = vrot.lane.b32.xlu0 %v1188, 32
  %v1190 = vpop.permute.xlu0 %1189
  %vm1191 = vcmask 392448
  %s1192 = scalar_lea.vmem %s1, 24
  %1193 = vst.msk [vmem:[%s1192] sm:$0xff] %vm1191, %v1190
  %s1194 = scalar_lea.vmem %s0, 394
  %s1195 = smov 3
  %v1196 = vld [vmem:[%s1194] ss:$16 sm:%s1195]
  %s1197 = scalar_lea.vmem %s0, 394
  %s1198 = smov 12
  %v1199 = vld [vmem:[%s1197] ss:$16 sm:%s1198]
  %vm1200 = vcmask 1043458
  %v1201 = vsel %vm1200, %v1199, %v1196
  %s1202 = scalar_lea.vmem %s0, 394
  %s1203 = smov 48
  %v1204 = vld [vmem:[%s1202] ss:$16 sm:%s1203]
  %vm1205 = vcmask 1045508
  %v1206 = vsel %vm1205, %v1204, %v1201
  %s1207 = scalar_lea.vmem %s0, 394
  %s1208 = smov 192
  %v1209 = vld [vmem:[%s1207] ss:$16 sm:%s1208]
  %vm1210 = vcmask 1047558
  %v1211 = vsel %vm1210, %v1209, %v1206
  %1212 = vrot.lane.b32.xlu0 %v1211, 32
  %v1213 = vpop.permute.xlu0 %1212
  %vm1214 = vcmask 392448
  %s1215 = scalar_lea.vmem %s1, 56
  %1216 = vst.msk [vmem:[%s1215] sm:$0xff] %vm1214, %v1213
  %s1217 = scalar_lea.vmem %s0, 1
  %s1218 = smov 3
  %v1219 = vld [vmem:[%s1217] ss:$16 sm:%s1218]
  %s1220 = scalar_lea.vmem %s0, 1
  %s1221 = smov 12
  %v1222 = vld [vmem:[%s1220] ss:$16 sm:%s1221]
  %vm1223 = vcmask 1043458
  %v1224 = vsel %vm1223, %v1222, %v1219
  %s1225 = scalar_lea.vmem %s0, 1
  %s1226 = smov 48
  %v1227 = vld [vmem:[%s1225] ss:$16 sm:%s1226]
  %vm1228 = vcmask 1045508
  %v1229 = vsel %vm1228, %v1227, %v1224
  %s1230 = scalar_lea.vmem %s0, 1
  %s1231 = smov 192
  %v1232 = vld [vmem:[%s1230] ss:$16 sm:%s1231]
  %vm1233 = vcmask 1047558
  %v1234 = vsel %vm1233, %v1232, %v1229
  %1235 = vrot.lane.b32.xlu0 %v1234, 16
  %v1236 = vpop.permute.xlu0 %1235
  %vm1237 = vcmask 261248
  %1238 = vst.msk [vmem:[%s1] sm:$0xff] %vm1237, %v1236
  %s1239 = scalar_lea.vmem %s0, 257
  %s1240 = smov 3
  %v1241 = vld [vmem:[%s1239] ss:$16 sm:%s1240]
  %s1242 = scalar_lea.vmem %s0, 257
  %s1243 = smov 12
  %v1244 = vld [vmem:[%s1242] ss:$16 sm:%s1243]
  %vm1245 = vcmask 1043458
  %v1246 = vsel %vm1245, %v1244, %v1241
  %s1247 = scalar_lea.vmem %s0, 257
  %s1248 = smov 48
  %v1249 = vld [vmem:[%s1247] ss:$16 sm:%s1248]
  %vm1250 = vcmask 1045508
  %v1251 = vsel %vm1250, %v1249, %v1246
  %s1252 = scalar_lea.vmem %s0, 257
  %s1253 = smov 192
  %v1254 = vld [vmem:[%s1252] ss:$16 sm:%s1253]
  %vm1255 = vcmask 1047558
  %v1256 = vsel %vm1255, %v1254, %v1251
  %1257 = vrot.lane.b32.xlu0 %v1256, 16
  %v1258 = vpop.permute.xlu0 %1257
  %vm1259 = vcmask 261248
  %s1260 = scalar_lea.vmem %s1, 32
  %1261 = vst.msk [vmem:[%s1260] sm:$0xff] %vm1259, %v1258
  %s1262 = scalar_lea.vmem %s0, 9
  %s1263 = smov 3
  %v1264 = vld [vmem:[%s1262] ss:$16 sm:%s1263]
  %s1265 = scalar_lea.vmem %s0, 9
  %s1266 = smov 12
  %v1267 = vld [vmem:[%s1265] ss:$16 sm:%s1266]
  %vm1268 = vcmask 1043458
  %v1269 = vsel %vm1268, %v1267, %v1264
  %s1270 = scalar_lea.vmem %s0, 9
  %s1271 = smov 48
  %v1272 = vld [vmem:[%s1270] ss:$16 sm:%s1271]
  %vm1273 = vcmask 1045508
  %v1274 = vsel %vm1273, %v1272, %v1269
  %s1275 = scalar_lea.vmem %s0, 9
  %s1276 = smov 192
  %v1277 = vld [vmem:[%s1275] ss:$16 sm:%s1276]
  %vm1278 = vcmask 1047558
  %v1279 = vsel %vm1278, %v1277, %v1274
  %1280 = vrot.lane.b32.xlu0 %v1279, 16
  %v1281 = vpop.permute.xlu0 %1280
  %vm1282 = vcmask 261248
  %s1283 = scalar_lea.vmem %s1, 8
  %1284 = vst.msk [vmem:[%s1283] sm:$0xff] %vm1282, %v1281
  %s1285 = scalar_lea.vmem %s0, 265
  %s1286 = smov 3
  %v1287 = vld [vmem:[%s1285] ss:$16 sm:%s1286]
  %s1288 = scalar_lea.vmem %s0, 265
  %s1289 = smov 12
  %v1290 = vld [vmem:[%s1288] ss:$16 sm:%s1289]
  %vm1291 = vcmask 1043458
  %v1292 = vsel %vm1291, %v1290, %v1287
  %s1293 = scalar_lea.vmem %s0, 265
  %s1294 = smov 48
  %v1295 = vld [vmem:[%s1293] ss:$16 sm:%s1294]
  %vm1296 = vcmask 1045508
  %v1297 = vsel %vm1296, %v1295, %v1292
  %s1298 = scalar_lea.vmem %s0, 265
  %s1299 = smov 192
  %v1300 = vld [vmem:[%s1298] ss:$16 sm:%s1299]
  %vm1301 = vcmask 1047558
  %v1302 = vsel %vm1301, %v1300, %v1297
  %1303 = vrot.lane.b32.xlu0 %v1302, 16
  %v1304 = vpop.permute.xlu0 %1303
  %vm1305 = vcmask 261248
  %s1306 = scalar_lea.vmem %s1, 40
  %1307 = vst.msk [vmem:[%s1306] sm:$0xff] %vm1305, %v1304
  %s1308 = scalar_lea.vmem %s0, 129
  %s1309 = smov 3
  %v1310 = vld [vmem:[%s1308] ss:$16 sm:%s1309]
  %s1311 = scalar_lea.vmem %s0, 129
  %s1312 = smov 12
  %v1313 = vld [vmem:[%s1311] ss:$16 sm:%s1312]
  %vm1314 = vcmask 1043458
  %v1315 = vsel %vm1314, %v1313, %v1310
  %s1316 = scalar_lea.vmem %s0, 129
  %s1317 = smov 48
  %v1318 = vld [vmem:[%s1316] ss:$16 sm:%s1317]
  %vm1319 = vcmask 1045508
  %v1320 = vsel %vm1319, %v1318, %v1315
  %s1321 = scalar_lea.vmem %s0, 129
  %s1322 = smov 192
  %v1323 = vld [vmem:[%s1321] ss:$16 sm:%s1322]
  %vm1324 = vcmask 1047558
  %v1325 = vsel %vm1324, %v1323, %v1320
  %1326 = vrot.lane.b32.xlu0 %v1325, 16
  %v1327 = vpop.permute.xlu0 %1326
  %vm1328 = vcmask 261248
  %s1329 = scalar_lea.vmem %s1, 16
  %1330 = vst.msk [vmem:[%s1329] sm:$0xff] %vm1328, %v1327
  %s1331 = scalar_lea.vmem %s0, 385
  %s1332 = smov 3
  %v1333 = vld [vmem:[%s1331] ss:$16 sm:%s1332]
  %s1334 = scalar_lea.vmem %s0, 385
  %s1335 = smov 12
  %v1336 = vld [vmem:[%s1334] ss:$16 sm:%s1335]
  %vm1337 = vcmask 1043458
  %v1338 = vsel %vm1337, %v1336, %v1333
  %s1339 = scalar_lea.vmem %s0, 385
  %s1340 = smov 48
  %v1341 = vld [vmem:[%s1339] ss:$16 sm:%s1340]
  %vm1342 = vcmask 1045508
  %v1343 = vsel %vm1342, %v1341, %v1338
  %s1344 = scalar_lea.vmem %s0, 385
  %s1345 = smov 192
  %v1346 = vld [vmem:[%s1344] ss:$16 sm:%s1345]
  %vm1347 = vcmask 1047558
  %v1348 = vsel %vm1347, %v1346, %v1343
  %1349 = vrot.lane.b32.xlu0 %v1348, 16
  %v1350 = vpop.permute.xlu0 %1349
  %vm1351 = vcmask 261248
  %s1352 = scalar_lea.vmem %s1, 48
  %1353 = vst.msk [vmem:[%s1352] sm:$0xff] %vm1351, %v1350
  %s1354 = scalar_lea.vmem %s0, 137
  %s1355 = smov 3
  %v1356 = vld [vmem:[%s1354] ss:$16 sm:%s1355]
  %s1357 = scalar_lea.vmem %s0, 137
  %s1358 = smov 12
  %v1359 = vld [vmem:[%s1357] ss:$16 sm:%s1358]
  %vm1360 = vcmask 1043458
  %v1361 = vsel %vm1360, %v1359, %v1356
  %s1362 = scalar_lea.vmem %s0, 137
  %s1363 = smov 48
  %v1364 = vld [vmem:[%s1362] ss:$16 sm:%s1363]
  %vm1365 = vcmask 1045508
  %v1366 = vsel %vm1365, %v1364, %v1361
  %s1367 = scalar_lea.vmem %s0, 137
  %s1368 = smov 192
  %v1369 = vld [vmem:[%s1367] ss:$16 sm:%s1368]
  %vm1370 = vcmask 1047558
  %v1371 = vsel %vm1370, %v1369, %v1366
  %1372 = vrot.lane.b32.xlu0 %v1371, 16
  %v1373 = vpop.permute.xlu0 %1372
  %vm1374 = vcmask 261248
  %s1375 = scalar_lea.vmem %s1, 24
  %1376 = vst.msk [vmem:[%s1375] sm:$0xff] %vm1374, %v1373
  %s1377 = scalar_lea.vmem %s0, 393
  %s1378 = smov 3
  %v1379 = vld [vmem:[%s1377] ss:$16 sm:%s1378]
  %s1380 = scalar_lea.vmem %s0, 393
  %s1381 = smov 12
  %v1382 = vld [vmem:[%s1380] ss:$16 sm:%s1381]
  %vm1383 = vcmask 1043458
  %v1384 = vsel %vm1383, %v1382, %v1379
  %s1385 = scalar_lea.vmem %s0, 393
  %s1386 = smov 48
  %v1387 = vld [vmem:[%s1385] ss:$16 sm:%s1386]
  %vm1388 = vcmask 1045508
  %v1389 = vsel %vm1388, %v1387, %v1384
  %s1390 = scalar_lea.vmem %s0, 393
  %s1391 = smov 192
  %v1392 = vld [vmem:[%s1390] ss:$16 sm:%s1391]
  %vm1393 = vcmask 1047558
  %v1394 = vsel %vm1393, %v1392, %v1389
  %1395 = vrot.lane.b32.xlu0 %v1394, 16
  %v1396 = vpop.permute.xlu0 %1395
  %vm1397 = vcmask 261248
  %s1398 = scalar_lea.vmem %s1, 56
  %1399 = vst.msk [vmem:[%s1398] sm:$0xff] %vm1397, %v1396

// kernel: enhanced_multiscale_adaptive_elasticity_loss_with_lame.3
$region0: #{enhanced_multiscale_adaptive_elasticity_loss_with_lame.3}
  #allocation0 [shape = 'u32[]', space=smem, size = 0x4, offset = 0x4, fixed_abs, tag = 'smem constant byte address 0x4 - core index']
  #allocation1 [shape = 'u32[144,128]{1,0:T(1,128)}', space=vmem, size = 0x12000, scoped, tag = 'internal scratch']
  #allocation2 [shape = 'f32[1,3,8,128]{3,2,1,0:T(8,128)}', space=vmem, size = 0x3000, scoped, tag = 'scratch operand']
  #allocation3 [shape = 'f32[1,8,128]{2,1,0:T(8,128)}', space=vmem, size = 0x1000, scoped, tag = 'scratch operand']
  #allocation4 [shape = 's32[2]{0}', space=sflag, size = 0x8, scoped, tag = 'scratch operand']
  #allocation5 [shape = 's32[]', space=sflag, size = 0x4, offset = 0, fixed_abs, tag = 'sflag constant byte address 0x0 - dummy sync flag']
  #allocation6 [shape = 's32[]', space=sflag, size = 0x4, offset = 0, fixed_abs, tag = 'sflag constant byte address 0x0 - dummy sync flag']
  %s0 = inlined_call_operand.vmem [shape: f32[2,3,8,128], index: 0, kind: input, shape index: {}]
  %s1 = inlined_call_operand.vmem [shape: f32[2,8,128], index: 1, kind: input, shape index: {}]
  %s2 = inlined_call_operand.vmem [shape: s32[2,128], index: 2, kind: input, shape index: {}]
  %s3 = inlined_call_operand.vmem [shape: f32[2,1,8,128], index: 3, kind: output, shape index: {}]
  %s4 = sld [smem:[#allocation0]]
  $region109: #{enhanced_multiscale_adaptive_elasticity_loss_with_lame.3} parent=0
    _
  %s6 = ssub.s32 1, %s4
  %s7 = scalar_select 0, %s6, %s4
  loop: start=0, step=1, limit=4
  $region2: #{enhanced_multiscale_adaptive_elasticity_loss_with_lame.3} parent=0 // loop_pre_header
    _
  $region3: #{enhanced_multiscale_adaptive_elasticity_loss_with_lame.3} parent=0 // loop_header
    %s9 = sphi 0, %s13
    %p10 = scmp.ge.s32.totalorder %s9, 4
    %s16 = sphi 0, %s28
    %s17 = sphi 0, %s24
    %s18 = sphi 0, %s16
    %s19 = sphi 0, %s17
    %s20 = sphi 0, %s18
    %s21 = sphi 0, %s19
    %s29 = sphi 0, %s29
    %s31 = sphi 0, %s29
    %s32 = sphi 0, %s31
    %s46 = sphi 0, %s32
    %s54 = sphi 0, %s56
    %s57 = sphi 0, %s54
    %s58 = sphi 0, %s57
    %s74 = sphi 0, %s58
  $region4: #{enhanced_multiscale_adaptive_elasticity_loss_with_lame.3} parent=0 // loop_header_branch
    %12 = sbr.rel (%p10) target = $region8
  $region5: #{enhanced_multiscale_adaptive_elasticity_loss_with_lame.3} parent=0 // loop_body
    %s14 = ssub.s32 %s9, 1
    %s15 = ssub.s32 %s9, 2
    %s22 = sadd.s32 1, %s17
    %p23 = scmp.ge.s32.totalorder %s22, 1
    %s24 = scalar_select %p23, 0, %s22
    %s25 = sadd.s32 1, %s16
    %s26 = scalar_select %p23, %s25, %s16
    %p27 = scmp.ge.s32.totalorder %s26, 2
    %s28 = scalar_select %p27, 0, %s26
    %s30 = sadd.s32 %s29, 1
    %p33 = scmp.eq.s32.totalorder %s9, 1
    %p34 = scmp.ne.s32.totalorder %s29, %s31
    %p35 = scmp.eq.s32.totalorder %s9, 0
    %p36 = por %p34, %p35
    %p37 = scmp.ne.s32.totalorder %s29, %s31
    %p38 = scmp.eq.s32.totalorder %s14, 1
    %p39 = por %p37, %p38
    %p40 = scmp.ne.s32.totalorder %s31, %s32
    %p41 = scmp.eq.s32.totalorder %s14, 0
    %p42 = por %p40, %p41
    %p43 = scmp.ne.s32.totalorder %s31, %s32
    %p44 = scmp.eq.s32.totalorder %s15, 1
    %p45 = por %p43, %p44
    %p47 = scmp.ne.s32.totalorder %s32, %s46
    %p48 = scmp.eq.s32.totalorder %s15, 0
    %p49 = por %p47, %p48
    %s50 = ssub.s32 %s16, %s28
    %s51 = ssub.s32 %s17, %s24
    %s52 = sor.u32 %s50, %s51
    %p53 = scmp.eq.s32.totalorder %s52, 0
    %s55 = sadd.s32 %s54, 1
    %s56 = scalar_select %p53, %s54, %s55
    %p59 = pneg %p53
    %p60 = scmp.eq.s32.totalorder %s9, 1
    %p61 = por %p59, %p60
    %p62 = scmp.ne.s32.totalorder %s54, %s57
    %p63 = scmp.eq.s32.totalorder %s9, 0
    %p64 = por %p62, %p63
    %p65 = scmp.ne.s32.totalorder %s54, %s57
    %p66 = scmp.eq.s32.totalorder %s14, 1
    %p67 = por %p65, %p66
    %p68 = scmp.ne.s32.totalorder %s57, %s58
    %p69 = scmp.eq.s32.totalorder %s14, 0
    %p70 = por %p68, %p69
    %p71 = scmp.ne.s32.totalorder %s57, %s58
    %p72 = scmp.eq.s32.totalorder %s15, 1
    %p73 = por %p71, %p72
    %p75 = scmp.ne.s32.totalorder %s58, %s74
    %p76 = scmp.eq.s32.totalorder %s15, 0
    %p77 = por %p75, %p76
    %p78 = scmp.le.s32.totalorder 1, %s9
    %p79 = scmp.lt.s32.totalorder %s9, 3
    %p80 = pnand %p78, %p79
    %p81 = pneg %p80
    // Predicated region
    $region9: #{enhanced_multiscale_adaptive_elasticity_loss_with_lame.3} parent=5 // pred_check
      _
    $region10: #{enhanced_multiscale_adaptive_elasticity_loss_with_lame.3} parent=5 // pred_check_branch
      %83 = sbr.rel (%p80) target = $region12
    $region11: #{enhanced_multiscale_adaptive_elasticity_loss_with_lame.3} parent=5 // pred_region
      %s84 = ssub.s32 %s9, 1
      // Predicated region
      $region13: #{enhanced_multiscale_adaptive_elasticity_loss_with_lame.3} parent=11 // pred_check
        %p85 = pneg %p42
      $region14: #{enhanced_multiscale_adaptive_elasticity_loss_with_lame.3} parent=11 // pred_check_branch
        %87 = sbr.rel (%p85) target = $region16
      $region15: #{enhanced_multiscale_adaptive_elasticity_loss_with_lame.3} parent=11 // pred_region
        _
      $region16: #{enhanced_multiscale_adaptive_elasticity_loss_with_lame.3} parent=11 // pred_fallthru
        _
    $region12: #{enhanced_multiscale_adaptive_elasticity_loss_with_lame.3} parent=5 // pred_fallthru
      _
    %p88 = scmp.lt.s32.totalorder %s9, 2
    // Predicated region
    $region17: #{enhanced_multiscale_adaptive_elasticity_loss_with_lame.3} parent=5 // pred_check
      %p89 = pneg %p88
    $region18: #{enhanced_multiscale_adaptive_elasticity_loss_with_lame.3} parent=5 // pred_check_branch
      %91 = sbr.rel (%p89) target = $region20
    $region19: #{enhanced_multiscale_adaptive_elasticity_loss_with_lame.3} parent=5 // pred_region
      _
    $region20: #{enhanced_multiscale_adaptive_elasticity_loss_with_lame.3} parent=5 // pred_fallthru
      _
    %p92 = scmp.le.s32.totalorder 1, %s9
    %p93 = scmp.lt.s32.totalorder %s9, 3
    %p94 = pnand %p92, %p93
    %p95 = pneg %p94
    // Predicated region
    $region21: #{enhanced_multiscale_adaptive_elasticity_loss_with_lame.3} parent=5 // pred_check
      _
    $region22: #{enhanced_multiscale_adaptive_elasticity_loss_with_lame.3} parent=5 // pred_check_branch
      %97 = sbr.rel (%p94) target = $region24
    $region23: #{enhanced_multiscale_adaptive_elasticity_loss_with_lame.3} parent=5 // pred_region
      %s98 = ssub.s32 %s9, 1
      %p99 = pneg %p42
      %p100 = pneg %p39
      %p101 = pneg %p70
      %p102 = pneg %p67
      %p103 = scmp.lt.s32.totalorder %s18, 1
      %s104 = scalar_select %p103, %s18, 1
      %p105 = scmp.lt.s32.totalorder %s19, 0
      %s106 = scalar_select %p105, %s19, 0
      %s107 = sadd.s32 %s106, %s104
      %s108 = smul.addr %s107, 8
      %s109 = scalar_lea.vmem %s3, %s108
      %p110 = scmp.lt.s32.totalorder %s18, 1
      %s111 = scalar_select %p110, %s18, 1
      %p112 = scmp.lt.s32.totalorder %s19, 0
      %s113 = scalar_select %p112, %s19, 0
      %s114 = sadd.s32 %s113, %s111
      %s115 = smul.addr %s114, 8
      %s116 = scalar_lea.vmem %s3, %s115
      %p117 = scmp.eq.s32.totalorder %s19, 0
      // Predicated region
      $region25: #{enhanced_multiscale_adaptive_elasticity_loss_with_lame.3} parent=23 // pred_check
        %p118 = pneg %p117
      $region26: #{enhanced_multiscale_adaptive_elasticity_loss_with_lame.3} parent=23 // pred_check_branch
        %120 = sbr.rel (%p118) target = $region28
      $region27: #{enhanced_multiscale_adaptive_elasticity_loss_with_lame.3} parent=23 // pred_region
        %s121 = smul.u32 %s18, 24
        %s122 = scalar_lea.vmem %s0, %s121
        %p124 = scmp.lt.u32.totalorder 24, 8
        %p125 = pneg %p124
        // Predicated region
        $region29: #{enhanced_multiscale_adaptive_elasticity_loss_with_lame.3} parent=27 // pred_check
          _
        $region30: #{enhanced_multiscale_adaptive_elasticity_loss_with_lame.3} parent=27 // pred_check_branch
          %127 = sbr.rel (%p124) target = $region32
        $region31: #{enhanced_multiscale_adaptive_elasticity_loss_with_lame.3} parent=27 // pred_region
          %s143 = sand.u32 24, 7
          %p144 = scmp.eq.s32.totalorder %s143, 0
          // Predicated region
          $region44: #{enhanced_multiscale_adaptive_elasticity_loss_with_lame.3} parent=31 // pred_check
            %p145 = pneg %p144
          $region45: #{enhanced_multiscale_adaptive_elasticity_loss_with_lame.3} parent=31 // pred_check_branch
            %147 = sbr.rel (%p145) target = $region47
          $region46: #{enhanced_multiscale_adaptive_elasticity_loss_with_lame.3} parent=31 // pred_region
            loop: start=0, step=1, limit=1
            $region48: #{enhanced_multiscale_adaptive_elasticity_loss_with_lame.3} parent=46 // loop_pre_header
              _
            $region49: #{enhanced_multiscale_adaptive_elasticity_loss_with_lame.3} parent=46 // loop_header
              %s149 = sphi 0, %s153
              %p150 = scmp.ge.s32.totalorder %s149, 1
              %s154 = sphi %s122, %s122
              %s155 = sphi [#allocation2], [#allocation2]
            $region50: #{enhanced_multiscale_adaptive_elasticity_loss_with_lame.3} parent=46 // loop_header_branch
              %152 = sbr.rel (%p150) target = $region54
            $region51: #{enhanced_multiscale_adaptive_elasticity_loss_with_lame.3} parent=46 // loop_body
              %v156 = vld [vmem:[%s154] sm:$0xff]
              %157 = vst [vmem:[%s155] sm:$0xff] %v156
              %v158 = vld [vmem:[%s154 + $0x8] sm:$0xff]
              %159 = vst [vmem:[%s155 + $0x8] sm:$0xff] %v158
              %v160 = vld [vmem:[%s154 + $0x10] sm:$0xff]
              %161 = vst [vmem:[%s155 + $0x10] sm:$0xff] %v160
            $region52: #{enhanced_multiscale_adaptive_elasticity_loss_with_lame.3} parent=46 // loop_footer
              %s153 = sadd.s32 1, %s149
            $region53: #{enhanced_multiscale_adaptive_elasticity_loss_with_lame.3} parent=46 // loop_footer_branch
              %148 = sbr.rel target = $region49
            $region54: #{enhanced_multiscale_adaptive_elasticity_loss_with_lame.3} parent=46 // loop_exit
              _
          $region47: #{enhanced_multiscale_adaptive_elasticity_loss_with_lame.3} parent=31 // pred_fallthru
            _
          %p162 = pneg %p144
          // Predicated region
          $region55: #{enhanced_multiscale_adaptive_elasticity_loss_with_lame.3} parent=31 // pred_check
            _
          $region56: #{enhanced_multiscale_adaptive_elasticity_loss_with_lame.3} parent=31 // pred_check_branch
            %164 = sbr.rel (%p144) target = $region58
          $region57: #{enhanced_multiscale_adaptive_elasticity_loss_with_lame.3} parent=31 // pred_region
            %s165 = sand.u32 24, 7
          $region58: #{enhanced_multiscale_adaptive_elasticity_loss_with_lame.3} parent=31 // pred_fallthru
            _
        $region32: #{enhanced_multiscale_adaptive_elasticity_loss_with_lame.3} parent=27 // pred_fallthru
          _
        // Predicated region
        $region33: #{enhanced_multiscale_adaptive_elasticity_loss_with_lame.3} parent=27 // pred_check
          %p128 = pneg %p124
        $region34: #{enhanced_multiscale_adaptive_elasticity_loss_with_lame.3} parent=27 // pred_check_branch
          %130 = sbr.rel (%p128) target = $region36
        $region35: #{enhanced_multiscale_adaptive_elasticity_loss_with_lame.3} parent=27 // pred_region
          %s131 = sshll.u32 1, 24
          %s132 = ssub.s32 %s131, 1
          loop: start=0, step=1, limit=1
          $region37: #{enhanced_multiscale_adaptive_elasticity_loss_with_lame.3} parent=35 // loop_pre_header
            _
          $region38: #{enhanced_multiscale_adaptive_elasticity_loss_with_lame.3} parent=35 // loop_header
            %s134 = sphi 0, %s138
            %p135 = scmp.ge.s32.totalorder %s134, 1
            %s139 = sphi %s122, %s122
            %s140 = sphi [#allocation2], [#allocation2]
          $region39: #{enhanced_multiscale_adaptive_elasticity_loss_with_lame.3} parent=35 // loop_header_branch
            %137 = sbr.rel (%p135) target = $region43
          $region40: #{enhanced_multiscale_adaptive_elasticity_loss_with_lame.3} parent=35 // loop_body
            %v141 = vld [vmem:[%s139] sm:%s132]
            %142 = vst [vmem:[%s140] sm:%s132] %v141
          $region41: #{enhanced_multiscale_adaptive_elasticity_loss_with_lame.3} parent=35 // loop_footer
            %s138 = sadd.s32 1, %s134
          $region42: #{enhanced_multiscale_adaptive_elasticity_loss_with_lame.3} parent=35 // loop_footer_branch
            %133 = sbr.rel target = $region38
          $region43: #{enhanced_multiscale_adaptive_elasticity_loss_with_lame.3} parent=35 // loop_exit
            _
        $region36: #{enhanced_multiscale_adaptive_elasticity_loss_with_lame.3} parent=27 // pred_fallthru
          _
        // Predicated region
        $region59: #{enhanced_multiscale_adaptive_elasticity_loss_with_lame.3} parent=27 // pred_check
          _
        $region60: #{enhanced_multiscale_adaptive_elasticity_loss_with_lame.3} parent=27 // pred_check_branch
          %168 = sbr.rel (0) target = $region62
        $region61: #{enhanced_multiscale_adaptive_elasticity_loss_with_lame.3} parent=27 // pred_region
          %169 = vsyncadd [#allocation4], 384
        $region62: #{enhanced_multiscale_adaptive_elasticity_loss_with_lame.3} parent=27 // pred_fallthru
          _
        %s170 = smul.u32 %s18, 8
        %s171 = scalar_lea.vmem %s1, %s170
        %s172 = scalar_lea.sflag [#allocation4], 1
        %p174 = scmp.lt.u32.totalorder 8, 8
        %p175 = pneg %p174
        // Predicated region
        $region63: #{enhanced_multiscale_adaptive_elasticity_loss_with_lame.3} parent=27 // pred_check
          _
        $region64: #{enhanced_multiscale_adaptive_elasticity_loss_with_lame.3} parent=27 // pred_check_branch
          %177 = sbr.rel (%p174) target = $region66
        $region65: #{enhanced_multiscale_adaptive_elasticity_loss_with_lame.3} parent=27 // pred_region
          %s193 = sand.u32 8, 7
          %p194 = scmp.eq.s32.totalorder %s193, 0
          // Predicated region
          $region78: #{enhanced_multiscale_adaptive_elasticity_loss_with_lame.3} parent=65 // pred_check
            %p195 = pneg %p194
          $region79: #{enhanced_multiscale_adaptive_elasticity_loss_with_lame.3} parent=65 // pred_check_branch
            %197 = sbr.rel (%p195) target = $region81
          $region80: #{enhanced_multiscale_adaptive_elasticity_loss_with_lame.3} parent=65 // pred_region
            loop: start=0, step=1, limit=1
            $region82: #{enhanced_multiscale_adaptive_elasticity_loss_with_lame.3} parent=80 // loop_pre_header
              _
            $region83: #{enhanced_multiscale_adaptive_elasticity_loss_with_lame.3} parent=80 // loop_header
              %s199 = sphi 0, %s203
              %p200 = scmp.ge.s32.totalorder %s199, 1
              %s204 = sphi %s171, %s171
              %s205 = sphi [#allocation3], [#allocation3]
            $region84: #{enhanced_multiscale_adaptive_elasticity_loss_with_lame.3} parent=80 // loop_header_branch
              %202 = sbr.rel (%p200) target = $region88
            $region85: #{enhanced_multiscale_adaptive_elasticity_loss_with_lame.3} parent=80 // loop_body
              %v206 = vld [vmem:[%s204] sm:$0xff]
              %207 = vst [vmem:[%s205] sm:$0xff] %v206
            $region86: #{enhanced_multiscale_adaptive_elasticity_loss_with_lame.3} parent=80 // loop_footer
              %s203 = sadd.s32 1, %s199
            $region87: #{enhanced_multiscale_adaptive_elasticity_loss_with_lame.3} parent=80 // loop_footer_branch
              %198 = sbr.rel target = $region83
            $region88: #{enhanced_multiscale_adaptive_elasticity_loss_with_lame.3} parent=80 // loop_exit
              _
          $region81: #{enhanced_multiscale_adaptive_elasticity_loss_with_lame.3} parent=65 // pred_fallthru
            _
          %p208 = pneg %p194
          // Predicated region
          $region89: #{enhanced_multiscale_adaptive_elasticity_loss_with_lame.3} parent=65 // pred_check
            _
          $region90: #{enhanced_multiscale_adaptive_elasticity_loss_with_lame.3} parent=65 // pred_check_branch
            %210 = sbr.rel (%p194) target = $region92
          $region91: #{enhanced_multiscale_adaptive_elasticity_loss_with_lame.3} parent=65 // pred_region
            %s211 = sand.u32 8, 7
          $region92: #{enhanced_multiscale_adaptive_elasticity_loss_with_lame.3} parent=65 // pred_fallthru
            _
        $region66: #{enhanced_multiscale_adaptive_elasticity_loss_with_lame.3} parent=27 // pred_fallthru
          _
        // Predicated region
        $region67: #{enhanced_multiscale_adaptive_elasticity_loss_with_lame.3} parent=27 // pred_check
          %p178 = pneg %p174
        $region68: #{enhanced_multiscale_adaptive_elasticity_loss_with_lame.3} parent=27 // pred_check_branch
          %180 = sbr.rel (%p178) target = $region70
        $region69: #{enhanced_multiscale_adaptive_elasticity_loss_with_lame.3} parent=27 // pred_region
          %s181 = sshll.u32 1, 8
          %s182 = ssub.s32 %s181, 1
          loop: start=0, step=1, limit=1
          $region71: #{enhanced_multiscale_adaptive_elasticity_loss_with_lame.3} parent=69 // loop_pre_header
            _
          $region72: #{enhanced_multiscale_adaptive_elasticity_loss_with_lame.3} parent=69 // loop_header
            %s184 = sphi 0, %s188
            %p185 = scmp.ge.s32.totalorder %s184, 1
            %s189 = sphi %s171, %s171
            %s190 = sphi [#allocation3], [#allocation3]
          $region73: #{enhanced_multiscale_adaptive_elasticity_loss_with_lame.3} parent=69 // loop_header_branch
            %187 = sbr.rel (%p185) target = $region77
          $region74: #{enhanced_multiscale_adaptive_elasticity_loss_with_lame.3} parent=69 // loop_body
            %v191 = vld [vmem:[%s189] sm:%s182]
            %192 = vst [vmem:[%s190] sm:%s182] %v191
          $region75: #{enhanced_multiscale_adaptive_elasticity_loss_with_lame.3} parent=69 // loop_footer
            %s188 = sadd.s32 1, %s184
          $region76: #{enhanced_multiscale_adaptive_elasticity_loss_with_lame.3} parent=69 // loop_footer_branch
            %183 = sbr.rel target = $region72
          $region77: #{enhanced_multiscale_adaptive_elasticity_loss_with_lame.3} parent=69 // loop_exit
            _
        $region70: #{enhanced_multiscale_adaptive_elasticity_loss_with_lame.3} parent=27 // pred_fallthru
          _
        // Predicated region
        $region93: #{enhanced_multiscale_adaptive_elasticity_loss_with_lame.3} parent=27 // pred_check
          _
        $region94: #{enhanced_multiscale_adaptive_elasticity_loss_with_lame.3} parent=27 // pred_check_branch
          %214 = sbr.rel (0) target = $region96
        $region95: #{enhanced_multiscale_adaptive_elasticity_loss_with_lame.3} parent=27 // pred_region
          %215 = vsyncadd %s172, 128
        $region96: #{enhanced_multiscale_adaptive_elasticity_loss_with_lame.3} parent=27 // pred_fallthru
          _
      $region28: #{enhanced_multiscale_adaptive_elasticity_loss_with_lame.3} parent=23 // pred_fallthru
        _
      %s216 = smul.u32 %s19, 8
      %s217 = ssub.s32 %s216, 3
      %p218 = scmp.gt.s32.totalorder %s217, 0
      %s219 = scalar_select %p218, %s217, 0
      %p220 = scmp.lt.s32.totalorder %s219, 0
      %s221 = scalar_select %p220, %s219, 0
      %v222 = vlaneseq
      %v223 = vshrl.u32 %v222, 7
      %v224 = vstv %s221
      %v225 = vadd.s32 %v224, %v223
      %v226 = vld [vmem:[%s2] sm:$0x3]
      %s227 = scalar_lea.sflag [#allocation4], 1
      %s228 = smul.u32 8, 1
      %s229 = sshll.u32 %s228, 4
      %230 = dma.done %s227, %s229
      %v231 = vld [vmem:[#allocation3] sm:$0xff]
      %v233 = vrot.slane %v231, 1
      %vm235 = vcmask 1046528
      %v236 = vsel %vm235, %v233, %v231
      %v237 = vrot.slane %v231, 7
      %vm239 = vcmask 1040384
      %v240 = vsel %vm239, %v231, %v237
      %v241 = vsub.f32 %v236, %v240
      %v242 = vmul.f32 %v241, 0.5
      %vm243 = vcmp.eq.s32.totalorder %v225, 0
      %v244 = vsub.f32 %v236, %v231
      %v245 = vsel %vm243, 1, 0
      %vm246 = vcmp.eq.s32.totalorder %v245, 1
      %v247 = vsel %vm246, %v244, %v242
      %vm248 = vcmp.eq.s32.totalorder %v225, 7
      %v249 = vsub.f32 %v231, %v240
      %v250 = vsel %vm248, 1, 0
      %vm251 = vcmp.eq.s32.totalorder %v250, 1
      %v252 = vsel %vm251, %v249, %v247
      %v253 = vmul.f32 %v252, %v252
      %254 = vrot.lane.b32.xlu0 %v231, 120
      %v255 = vpop.permute.xlu0 %254
      %257 = vrot.lane.b32.xlu0 %v231, 8
      %v258 = vpop.permute.xlu0 %257
      %v260 = vsub.f32 %v255, %v258
      %v261 = vmul.f32 %v260, 0.5
      %vm262 = vcmp.eq.s32.totalorder %v226, 0
      %v263 = vsub.f32 %v255, %v231
      %v264 = vsel %vm262, 1, 0
      %v265 = vlaneseq
      %v266 = vshrl.u32 %v265, 7
      %v267 = vsub.s32 0, %v266
      %v268 = vrot.slane %v264, %v267
      %vm269 = vcmp.eq.s32.totalorder %v268, 1
      %v270 = vsel %vm269, %v263, %v261
      %vm271 = vcmp.eq.s32.totalorder %v226, 7
      %v272 = vsub.f32 %v231, %v258
      %v273 = vsel %vm271, 1, 0
      %v274 = vlaneseq
      %v275 = vshrl.u32 %v274, 7
      %v276 = vsub.s32 0, %v275
      %v277 = vrot.slane %v273, %v276
      %vm278 = vcmp.eq.s32.totalorder %v277, 1
      %v279 = vsel %vm278, %v272, %v270
      %v280 = vmul.f32 %v279, %v279
      %v281 = vadd.f32 %v253, %v280
      %282 = vrot.lane.b32.xlu0 %v231, 127
      %v283 = vpop.permute.xlu0 %282
      %285 = vrot.lane.b32.xlu0 %v231, 1
      %v286 = vpop.permute.xlu0 %285
      %v288 = vsub.f32 %v283, %v286
      %v289 = vmul.f32 %v288, 0.5
      %v290 = vsub.f32 %v283, %v231
      %v291 = vlaneseq
      %v292 = vshrl.u32 %v291, 7
      %v293 = vsub.s32 1, %v292
      %v294 = vrot.slane %v264, %v293
      %vm295 = vcmp.eq.s32.totalorder %v294, 1
      %v296 = vsel %vm295, %v290, %v289
      %v297 = vsub.f32 %v231, %v286
      %v298 = vlaneseq
      %v299 = vshrl.u32 %v298, 7
      %v300 = vsub.s32 1, %v299
      %v301 = vrot.slane %v273, %v300
      %vm302 = vcmp.eq.s32.totalorder %v301, 1
      %v303 = vsel %vm302, %v297, %v296
      %v304 = vmul.f32 %v303, %v303
      %v305 = vadd.f32 %v281, %v304
      %v306 = vrsqrt.pop %v305
      %v307 = vmul.f32 %v305, %v306
      %vm308 = vcmp.eq.f32.partialorder %v305, inf
      %v309 = vsel %vm308, %v305, %v307
      %vm310 = vcmp.eq.f32.partialorder %v305, 0.0
      %v311 = vand.u32 %v305, 2147483648
      %v312 = vsel %vm310, %v311, %v309
      %v314 = vrot.slane %v312, 1
      %v316 = vsel %vm235, %v314, %v312
      %v317 = vrot.slane %v312, 2
      %vm319 = vcmask 1045504
      %v320 = vsel %vm319, %v317, %v312
      %v321 = vrot.slane %v312, 7
      %v323 = vsel %vm239, %v312, %v321
      %v324 = vrot.slane %v312, 6
      %vm326 = vcmask 1041408
      %v327 = vsel %vm326, %v312, %v324
      %v328 = vmul.f32 %v312, 0.36954647
      %v329 = vadd.f32 %v316, %v323
      %v330 = vmul.f32 %v329, 0.2444604
      %v331 = vadd.f32 %v328, %v330
      %v332 = vadd.f32 %v320, %v327
      %v333 = vmul.f32 %v332, 0.070766374
      %v334 = vadd.f32 %v331, %v333
      %vm335 = vcmp.eq.s32.totalorder %v225, 1
      %v336 = vmul.f32 %v323, 0.2444604
      %v337 = vmul.f32 %v312, 0.44031283
      %v338 = vadd.f32 %v336, %v337
      %v339 = vmul.f32 %v316, 0.2444604
      %v340 = vadd.f32 %v338, %v339
      %v341 = vmul.f32 %v320, 0.070766374
      %v342 = vadd.f32 %v340, %v341
      %v343 = vsel %vm335, 1, 0
      %vm344 = vcmp.eq.s32.totalorder %v343, 1
      %v345 = vsel %vm344, %v342, %v334
      %vm346 = vcmp.eq.s32.totalorder %v225, 6
      %v347 = vadd.f32 %v339, %v337
      %v348 = vadd.f32 %v347, %v336
      %v349 = vmul.f32 %v327, 0.070766374
      %v350 = vadd.f32 %v348, %v349
      %v351 = vsel %vm346, 1, 0
      %vm352 = vcmp.eq.s32.totalorder %v351, 1
      %v353 = vsel %vm352, %v350, %v345
      %v354 = vmul.f32 %v316, 0.4889208
      %v355 = vadd.f32 %v328, %v354
      %v356 = vmul.f32 %v320, 0.14153275
      %v357 = vadd.f32 %v355, %v356
      %v358 = vsel %vm246, %v357, %v353
      %v359 = vmul.f32 %v323, 0.4889208
      %v360 = vadd.f32 %v328, %v359
      %v361 = vmul.f32 %v327, 0.14153275
      %v362 = vadd.f32 %v360, %v361
      %v363 = vsel %vm251, %v362, %v358
      %365 = vrot.lane.b32.xlu0 %v363, 120
      %v366 = vpop.permute.xlu0 %365
      %368 = vrot.lane.b32.xlu0 %v363, 112
      %v369 = vpop.permute.xlu0 %368
      %371 = vrot.lane.b32.xlu0 %v363, 8
      %v372 = vpop.permute.xlu0 %371
      %374 = vrot.lane.b32.xlu0 %v363, 16
      %v375 = vpop.permute.xlu0 %374
      %v377 = vmul.f32 %v363, 0.36954647
      %v378 = vadd.f32 %v366, %v372
      %v379 = vmul.f32 %v378, 0.2444604
      %v380 = vadd.f32 %v377, %v379
      %v381 = vadd.f32 %v369, %v375
      %v382 = vmul.f32 %v381, 0.070766374
      %v383 = vadd.f32 %v380, %v382
      %vm384 = vcmp.eq.s32.totalorder %v226, 1
      %v385 = vmul.f32 %v372, 0.2444604
      %v386 = vmul.f32 %v363, 0.44031283
      %v387 = vadd.f32 %v385, %v386
      %v388 = vmul.f32 %v366, 0.2444604
      %v389 = vadd.f32 %v387, %v388
      %v390 = vmul.f32 %v369, 0.070766374
      %v391 = vadd.f32 %v389, %v390
      %v392 = vsel %vm384, 1, 0
      %v393 = vlaneseq
      %v394 = vshrl.u32 %v393, 7
      %v395 = vsub.s32 0, %v394
      %v396 = vrot.slane %v392, %v395
      %vm397 = vcmp.eq.s32.totalorder %v396, 1
      %v398 = vsel %vm397, %v391, %v383
      %vm399 = vcmp.eq.s32.totalorder %v226, 6
      %v400 = vadd.f32 %v388, %v386
      %v401 = vadd.f32 %v400, %v385
      %v402 = vmul.f32 %v375, 0.070766374
      %v403 = vadd.f32 %v401, %v402
      %v404 = vsel %vm399, 1, 0
      %v405 = vlaneseq
      %v406 = vshrl.u32 %v405, 7
      %v407 = vsub.s32 0, %v406
      %v408 = vrot.slane %v404, %v407
      %vm409 = vcmp.eq.s32.totalorder %v408, 1
      %v410 = vsel %vm409, %v403, %v398
      %v411 = vmul.f32 %v366, 0.4889208
      %v412 = vadd.f32 %v377, %v411
      %v413 = vmul.f32 %v369, 0.14153275
      %v414 = vadd.f32 %v412, %v413
      %v415 = vsel %vm269, %v414, %v410
      %v416 = vmul.f32 %v372, 0.4889208
      %v417 = vadd.f32 %v377, %v416
      %v418 = vmul.f32 %v375, 0.14153275
      %v419 = vadd.f32 %v417, %v418
      %v420 = vsel %vm278, %v419, %v415
      %422 = vrot.lane.b32.xlu0 %v420, 127
      %v423 = vpop.permute.xlu0 %422
      %425 = vrot.lane.b32.xlu0 %v420, 126
      %v426 = vpop.permute.xlu0 %425
      %428 = vrot.lane.b32.xlu0 %v420, 1
      %v429 = vpop.permute.xlu0 %428
      %431 = vrot.lane.b32.xlu0 %v420, 2
      %v432 = vpop.permute.xlu0 %431
      %v434 = vmul.f32 %v420, 0.36954647
      %v435 = vadd.f32 %v423, %v429
      %v436 = vmul.f32 %v435, 0.2444604
      %v437 = vadd.f32 %v434, %v436
      %v438 = vadd.f32 %v426, %v432
      %v439 = vmul.f32 %v438, 0.070766374
      %v440 = vadd.f32 %v437, %v439
      %v441 = vmul.f32 %v429, 0.2444604
      %v442 = vmul.f32 %v420, 0.44031283
      %v443 = vadd.f32 %v441, %v442
      %v444 = vmul.f32 %v423, 0.2444604
      %v445 = vadd.f32 %v443, %v444
      %v446 = vmul.f32 %v426, 0.070766374
      %v447 = vadd.f32 %v445, %v446
      %v448 = vlaneseq
      %v449 = vshrl.u32 %v448, 7
      %v450 = vsub.s32 1, %v449
      %v451 = vrot.slane %v392, %v450
      %vm452 = vcmp.eq.s32.totalorder %v451, 1
      %v453 = vsel %vm452, %v447, %v440
      %v454 = vadd.f32 %v444, %v442
      %v455 = vadd.f32 %v454, %v441
      %v456 = vmul.f32 %v432, 0.070766374
      %v457 = vadd.f32 %v455, %v456
      %v458 = vlaneseq
      %v459 = vshrl.u32 %v458, 7
      %v460 = vsub.s32 1, %v459
      %v461 = vrot.slane %v404, %v460
      %vm462 = vcmp.eq.s32.totalorder %v461, 1
      %v463 = vsel %vm462, %v457, %v453
      %v464 = vmul.f32 %v423, 0.4889208
      %v465 = vadd.f32 %v434, %v464
      %v466 = vmul.f32 %v426, 0.14153275
      %v467 = vadd.f32 %v465, %v466
      %v468 = vsel %vm295, %v467, %v463
      %v469 = vmul.f32 %v429, 0.4889208
      %v470 = vadd.f32 %v434, %v469
      %v471 = vmul.f32 %v432, 0.14153275
      %v472 = vadd.f32 %v470, %v471
      %v473 = vsel %vm302, %v472, %v468
      %v474 = vmul.f32 %v473, 2.0
      %v475 = vadd.f32 %v474, 1.0
      %v476 = vmax.f32 %v475, 0.1
      %v477 = vmin.f32 %v476, 10.0
      %v478 = vmul.f32 %v473, 1.5
      %v479 = vadd.f32 %v478, 0.5
      %v480 = vmax.f32 %v479, 0.1
      %v481 = vmin.f32 %v480, 10.0
      %v482 = vmul.f32 %v473, 3.0
      %v483 = vadd.f32 %v482, 1.0
      %s484 = smul.u32 3, 8
      %s485 = smul.u32 %s484, 1
      %s486 = sshll.u32 %s485, 4
      %487 = dma.done [#allocation4], %s486
      %v488 = vld [vmem:[#allocation2] sm:$0xff]
      %s489 = scalar_lea.vmem [#allocation2], 8
      %v490 = vld [vmem:[%s489] sm:$0xff]
      %s491 = scalar_lea.vmem [#allocation2], 16
      %v492 = vld [vmem:[%s491] sm:$0xff]
      %v494 = vrot.slane %v488, 1
      %v496 = vsel %vm235, %v494, %v488
      %v497 = vrot.slane %v488, 7
      %v499 = vsel %vm239, %v488, %v497
      %v500 = vsub.f32 %v496, %v499
      %v501 = vmul.f32 %v500, 0.5
      %v502 = vsub.f32 %v496, %v488
      %v503 = vsel %vm246, %v502, %v501
      %v504 = vsub.f32 %v488, %v499
      %v505 = vsel %vm251, %v504, %v503
      %507 = vrot.lane.b32.xlu0 %v490, 120
      %v508 = vpop.permute.xlu0 %507
      %510 = vrot.lane.b32.xlu0 %v490, 8
      %v511 = vpop.permute.xlu0 %510
      %v513 = vsub.f32 %v508, %v511
      %v514 = vmul.f32 %v513, 0.5
      %v515 = vsub.f32 %v508, %v490
      %v516 = vsel %vm269, %v515, %v514
      %v517 = vsub.f32 %v490, %v511
      %v518 = vsel %vm278, %v517, %v516
      %520 = vrot.lane.b32.xlu0 %v492, 127
      %v521 = vpop.permute.xlu0 %520
      %523 = vrot.lane.b32.xlu0 %v492, 1
      %v524 = vpop.permute.xlu0 %523
      %v526 = vsub.f32 %v521, %v524
      %v527 = vmul.f32 %v526, 0.5
      %v528 = vsub.f32 %v521, %v492
      %v529 = vsel %vm295, %v528, %v527
      %v530 = vsub.f32 %v492, %v524
      %v531 = vsel %vm302, %v530, %v529
      %v532 = vadd.f32 %v505, %v518
      %v533 = vadd.f32 %v532, %v531
      %v534 = vmul.f32 %v505, %v505
      %v535 = vmul.f32 %v518, %v518
      %v536 = vadd.f32 %v534, %v535
      %v537 = vmul.f32 %v531, %v531
      %v538 = vadd.f32 %v536, %v537
      %539 = vrot.lane.b32.xlu0 %v488, 120
      %v540 = vpop.permute.xlu0 %539
      %542 = vrot.lane.b32.xlu0 %v488, 8
      %v543 = vpop.permute.xlu0 %542
      %v545 = vsub.f32 %v540, %v543
      %v546 = vmul.f32 %v545, 0.5
      %v547 = vsub.f32 %v540, %v488
      %v548 = vsel %vm269, %v547, %v546
      %v549 = vsub.f32 %v488, %v543
      %v550 = vsel %vm278, %v549, %v548
      %v551 = vrot.slane %v490, 1
      %v553 = vsel %vm235, %v551, %v490
      %v554 = vrot.slane %v490, 7
      %v556 = vsel %vm239, %v490, %v554
      %v557 = vsub.f32 %v553, %v556
      %v558 = vmul.f32 %v557, 0.5
      %v559 = vsub.f32 %v553, %v490
      %v560 = vsel %vm246, %v559, %v558
      %v561 = vsub.f32 %v490, %v556
      %v562 = vsel %vm251, %v561, %v560
      %v563 = vadd.f32 %v550, %v562
      %v564 = vmul.f32 %v563, 0.5
      %v565 = vmul.f32 %v564, %v564
      %v566 = vmul.f32 %v565, 2.0
      %v567 = vadd.f32 %v538, %v566
      %568 = vrot.lane.b32.xlu0 %v488, 127
      %v569 = vpop.permute.xlu0 %568
      %571 = vrot.lane.b32.xlu0 %v488, 1
      %v572 = vpop.permute.xlu0 %571
      %v574 = vsub.f32 %v569, %v572
      %v575 = vmul.f32 %v574, 0.5
      %v576 = vsub.f32 %v569, %v488
      %v577 = vsel %vm295, %v576, %v575
      %v578 = vsub.f32 %v488, %v572
      %v579 = vsel %vm302, %v578, %v577
      %v580 = vrot.slane %v492, 1
      %v582 = vsel %vm235, %v580, %v492
      %v583 = vrot.slane %v492, 7
      %v585 = vsel %vm239, %v492, %v583
      %v586 = vsub.f32 %v582, %v585
      %v587 = vmul.f32 %v586, 0.5
      %v588 = vsub.f32 %v582, %v492
      %v589 = vsel %vm246, %v588, %v587
      %v590 = vsub.f32 %v492, %v585
      %v591 = vsel %vm251, %v590, %v589
      %v592 = vadd.f32 %v579, %v591
      %v593 = vmul.f32 %v592, 0.5
      %v594 = vmul.f32 %v593, %v593
      %v595 = vmul.f32 %v594, 2.0
      %v596 = vadd.f32 %v567, %v595
      %597 = vrot.lane.b32.xlu0 %v490, 127
      %v598 = vpop.permute.xlu0 %597
      %600 = vrot.lane.b32.xlu0 %v490, 1
      %v601 = vpop.permute.xlu0 %600
      %v603 = vsub.f32 %v598, %v601
      %v604 = vmul.f32 %v603, 0.5
      %v605 = vsub.f32 %v598, %v490
      %v606 = vsel %vm295, %v605, %v604
      %v607 = vsub.f32 %v490, %v601
      %v608 = vsel %vm302, %v607, %v606
      %609 = vrot.lane.b32.xlu0 %v492, 120
      %v610 = vpop.permute.xlu0 %609
      %612 = vrot.lane.b32.xlu0 %v492, 8
      %v613 = vpop.permute.xlu0 %612
      %v615 = vsub.f32 %v610, %v613
      %v616 = vmul.f32 %v615, 0.5
      %v617 = vsub.f32 %v610, %v492
      %v618 = vsel %vm269, %v617, %v616
      %v619 = vsub.f32 %v492, %v613
      %v620 = vsel %vm278, %v619, %v618
      %v621 = vadd.f32 %v608, %v620
      %v622 = vmul.f32 %v621, 0.5
      %v623 = vmul.f32 %v622, %v622
      %v624 = vmul.f32 %v623, 2.0
      %v625 = vadd.f32 %v596, %v624
      %v626 = vmul.f32 %v477, 0.5
      %v627 = vmul.f32 %v533, %v533
      %v628 = vmul.f32 %v626, %v627
      %v629 = vmul.f32 %v481, %v625
      %v630 = vadd.f32 %v628, %v629
      %v631 = vmul.f32 %v483, %v630
      %s632 = sadd.s32 %s216, 8
      %p633 = scmp.lt.s32.totalorder %s632, 8
      %s634 = scalar_select %p633, %s632, 8
      %v635 = vstv %s216
      %vm636 = vcmp.ge.s32.totalorder %v225, %v635
      %v637 = vstv %s634
      %vm638 = vcmp.lt.s32.totalorder %v225, %v637
      %vm639 = vmand %vm636, %vm638
      %vm640 = vcmp.lt.s32.totalorder %v226, 8
      %v641 = vsel %vm639, 1, 0
      %vm642 = vcmp.eq.s32.totalorder %v641, 1
      %v643 = vsel %vm640, 1, 0
      %v644 = vlaneseq
      %v645 = vshrl.u32 %v644, 7
      %v646 = vsub.s32 0, %v645
      %v647 = vrot.slane %v643, %v646
      %vm648 = vcmp.eq.s32.totalorder %v647, 1
      %vm649 = vmand %vm642, %vm648
      %v650 = vsel %vm649, %v631, 0.0
      %651 = vadd.xlane.f32.xlu0 %v650
      %v652 = vpop.xlane.xlu0 %651
      %v653 = vrot.slane %v652, 4
      %v654 = vadd.f32 %v652, %v653
      %v655 = vrot.slane %v654, 2
      %v656 = vadd.f32 %v654, %v655
      %v657 = vrot.slane %v656, 1
      %v658 = vadd.f32 %v656, %v657
      %s659 = vtos %v658
      %v660 = vstv %s659
      %661 = vst [vmem:[%s116] sm:$0xff] %v660
      %p662 = scmp.lt.s32.totalorder %s18, 1
      %s663 = scalar_select %p662, %s18, 1
      %p664 = scmp.lt.s32.totalorder %s19, 0
      %s665 = scalar_select %p664, %s19, 0
      %s666 = sadd.s32 %s665, %s663
      %s667 = smul.addr %s666, 8
      %s668 = scalar_lea.vmem %s3, %s667
      // Predicated region
      $region97: #{enhanced_multiscale_adaptive_elasticity_loss_with_lame.3} parent=23 // pred_check
        %p669 = pneg %p67
      $region98: #{enhanced_multiscale_adaptive_elasticity_loss_with_lame.3} parent=23 // pred_check_branch
        %671 = sbr.rel (%p669) target = $region100
      $region99: #{enhanced_multiscale_adaptive_elasticity_loss_with_lame.3} parent=23 // pred_region
        _
      $region100: #{enhanced_multiscale_adaptive_elasticity_loss_with_lame.3} parent=23 // pred_fallthru
        _
    $region24: #{enhanced_multiscale_adaptive_elasticity_loss_with_lame.3} parent=5 // pred_fallthru
      _
    %p672 = scmp.le.s32.totalorder 2, %s9
    // Predicated region
    $region101: #{enhanced_multiscale_adaptive_elasticity_loss_with_lame.3} parent=5 // pred_check
      %p673 = pneg %p672
    $region102: #{enhanced_multiscale_adaptive_elasticity_loss_with_lame.3} parent=5 // pred_check_branch
      %675 = sbr.rel (%p673) target = $region104
    $region103: #{enhanced_multiscale_adaptive_elasticity_loss_with_lame.3} parent=5 // pred_region
      %s676 = ssub.s32 %s9, 2
      // Predicated region
      $region105: #{enhanced_multiscale_adaptive_elasticity_loss_with_lame.3} parent=103 // pred_check
        %p677 = pneg %p73
      $region106: #{enhanced_multiscale_adaptive_elasticity_loss_with_lame.3} parent=103 // pred_check_branch
        %679 = sbr.rel (%p677) target = $region108
      $region107: #{enhanced_multiscale_adaptive_elasticity_loss_with_lame.3} parent=103 // pred_region
        %p680 = scmp.lt.s32.totalorder %s20, 1
        %s681 = scalar_select %p680, %s20, 1
        %p682 = scmp.lt.s32.totalorder %s21, 0
        %s683 = scalar_select %p682, %s21, 0
        %s684 = sadd.s32 %s683, %s681
        %s685 = smul.addr %s684, 8
        %s686 = scalar_lea.vmem %s3, %s685
      $region108: #{enhanced_multiscale_adaptive_elasticity_loss_with_lame.3} parent=103 // pred_fallthru
        _
    $region104: #{enhanced_multiscale_adaptive_elasticity_loss_with_lame.3} parent=5 // pred_fallthru
      _
  $region6: #{enhanced_multiscale_adaptive_elasticity_loss_with_lame.3} parent=0 // loop_footer
    %s13 = sadd.s32 1, %s9
  $region7: #{enhanced_multiscale_adaptive_elasticity_loss_with_lame.3} parent=0 // loop_footer_branch
    %8 = sbr.rel target = $region3
  $region8: #{enhanced_multiscale_adaptive_elasticity_loss_with_lame.3} parent=0 // loop_exit
    _
  %687 = vsyncmov [#allocation4]
  %s688 = vpop.sfrf %687
  %p689 = scmp.eq.s32.totalorder %s688, 0
  %p690 = pneg %p689
  %692 = shalt.err (%p690)
  %s693 = scalar_lea.sflag [#allocation4], 1
  %694 = vsyncmov %s693
  %s695 = vpop.sfrf %694
  %p696 = scmp.eq.s32.totalorder %s695, 0
  %p697 = pneg %p696
  %699 = shalt.err (%p697)

// kernel: enhanced_multiscale_adaptive_elasticity_loss_with_lame.2
$region0: #{enhanced_multiscale_adaptive_elasticity_loss_with_lame.2}
  #allocation0 [shape = 'u32[]', space=smem, size = 0x4, offset = 0x4, fixed_abs, tag = 'smem constant byte address 0x4 - core index']
  #allocation1 [shape = 'u32[144,128]{1,0:T(1,128)}', space=vmem, size = 0x12000, scoped, tag = 'internal scratch']
  #allocation2 [shape = 'f32[1,3,16,256]{3,2,1,0:T(8,128)}', space=vmem, size = 0xc000, scoped, tag = 'scratch operand']
  #allocation3 [shape = 'f32[1,16,256]{2,1,0:T(8,128)}', space=vmem, size = 0x4000, scoped, tag = 'scratch operand']
  #allocation4 [shape = 's32[2]{0}', space=sflag, size = 0x8, scoped, tag = 'scratch operand']
  #allocation5 [shape = 's32[]', space=sflag, size = 0x4, offset = 0, fixed_abs, tag = 'sflag constant byte address 0x0 - dummy sync flag']
  #allocation6 [shape = 's32[]', space=sflag, size = 0x4, offset = 0, fixed_abs, tag = 'sflag constant byte address 0x0 - dummy sync flag']
  %s0 = inlined_call_operand.vmem [shape: f32[2,3,16,256], index: 0, kind: input, shape index: {}]
  %s1 = inlined_call_operand.vmem [shape: f32[2,16,256], index: 1, kind: input, shape index: {}]
  %s2 = inlined_call_operand.vmem [shape: s32[2,256], index: 2, kind: input, shape index: {}]
  %s3 = inlined_call_operand.vmem [shape: f32[2,1,8,128], index: 3, kind: output, shape index: {}]
  %s4 = sld [smem:[#allocation0]]
  $region109: #{enhanced_multiscale_adaptive_elasticity_loss_with_lame.2} parent=0
    _
  %s6 = ssub.s32 1, %s4
  %s7 = scalar_select 0, %s6, %s4
  loop: start=0, step=1, limit=4
  $region2: #{enhanced_multiscale_adaptive_elasticity_loss_with_lame.2} parent=0 // loop_pre_header
    _
  $region3: #{enhanced_multiscale_adaptive_elasticity_loss_with_lame.2} parent=0 // loop_header
    %s9 = sphi 0, %s13
    %p10 = scmp.ge.s32.totalorder %s9, 4
    %s16 = sphi 0, %s28
    %s17 = sphi 0, %s24
    %s18 = sphi 0, %s16
    %s19 = sphi 0, %s17
    %s20 = sphi 0, %s18
    %s21 = sphi 0, %s19
    %s29 = sphi 0, %s29
    %s31 = sphi 0, %s29
    %s32 = sphi 0, %s31
    %s46 = sphi 0, %s32
    %s54 = sphi 0, %s56
    %s57 = sphi 0, %s54
    %s58 = sphi 0, %s57
    %s74 = sphi 0, %s58
  $region4: #{enhanced_multiscale_adaptive_elasticity_loss_with_lame.2} parent=0 // loop_header_branch
    %12 = sbr.rel (%p10) target = $region8
  $region5: #{enhanced_multiscale_adaptive_elasticity_loss_with_lame.2} parent=0 // loop_body
    %s14 = ssub.s32 %s9, 1
    %s15 = ssub.s32 %s9, 2
    %s22 = sadd.s32 1, %s17
    %p23 = scmp.ge.s32.totalorder %s22, 1
    %s24 = scalar_select %p23, 0, %s22
    %s25 = sadd.s32 1, %s16
    %s26 = scalar_select %p23, %s25, %s16
    %p27 = scmp.ge.s32.totalorder %s26, 2
    %s28 = scalar_select %p27, 0, %s26
    %s30 = sadd.s32 %s29, 1
    %p33 = scmp.eq.s32.totalorder %s9, 1
    %p34 = scmp.ne.s32.totalorder %s29, %s31
    %p35 = scmp.eq.s32.totalorder %s9, 0
    %p36 = por %p34, %p35
    %p37 = scmp.ne.s32.totalorder %s29, %s31
    %p38 = scmp.eq.s32.totalorder %s14, 1
    %p39 = por %p37, %p38
    %p40 = scmp.ne.s32.totalorder %s31, %s32
    %p41 = scmp.eq.s32.totalorder %s14, 0
    %p42 = por %p40, %p41
    %p43 = scmp.ne.s32.totalorder %s31, %s32
    %p44 = scmp.eq.s32.totalorder %s15, 1
    %p45 = por %p43, %p44
    %p47 = scmp.ne.s32.totalorder %s32, %s46
    %p48 = scmp.eq.s32.totalorder %s15, 0
    %p49 = por %p47, %p48
    %s50 = ssub.s32 %s16, %s28
    %s51 = ssub.s32 %s17, %s24
    %s52 = sor.u32 %s50, %s51
    %p53 = scmp.eq.s32.totalorder %s52, 0
    %s55 = sadd.s32 %s54, 1
    %s56 = scalar_select %p53, %s54, %s55
    %p59 = pneg %p53
    %p60 = scmp.eq.s32.totalorder %s9, 1
    %p61 = por %p59, %p60
    %p62 = scmp.ne.s32.totalorder %s54, %s57
    %p63 = scmp.eq.s32.totalorder %s9, 0
    %p64 = por %p62, %p63
    %p65 = scmp.ne.s32.totalorder %s54, %s57
    %p66 = scmp.eq.s32.totalorder %s14, 1
    %p67 = por %p65, %p66
    %p68 = scmp.ne.s32.totalorder %s57, %s58
    %p69 = scmp.eq.s32.totalorder %s14, 0
    %p70 = por %p68, %p69
    %p71 = scmp.ne.s32.totalorder %s57, %s58
    %p72 = scmp.eq.s32.totalorder %s15, 1
    %p73 = por %p71, %p72
    %p75 = scmp.ne.s32.totalorder %s58, %s74
    %p76 = scmp.eq.s32.totalorder %s15, 0
    %p77 = por %p75, %p76
    %p78 = scmp.le.s32.totalorder 1, %s9
    %p79 = scmp.lt.s32.totalorder %s9, 3
    %p80 = pnand %p78, %p79
    %p81 = pneg %p80
    // Predicated region
    $region9: #{enhanced_multiscale_adaptive_elasticity_loss_with_lame.2} parent=5 // pred_check
      _
    $region10: #{enhanced_multiscale_adaptive_elasticity_loss_with_lame.2} parent=5 // pred_check_branch
      %83 = sbr.rel (%p80) target = $region12
    $region11: #{enhanced_multiscale_adaptive_elasticity_loss_with_lame.2} parent=5 // pred_region
      %s84 = ssub.s32 %s9, 1
      // Predicated region
      $region13: #{enhanced_multiscale_adaptive_elasticity_loss_with_lame.2} parent=11 // pred_check
        %p85 = pneg %p42
      $region14: #{enhanced_multiscale_adaptive_elasticity_loss_with_lame.2} parent=11 // pred_check_branch
        %87 = sbr.rel (%p85) target = $region16
      $region15: #{enhanced_multiscale_adaptive_elasticity_loss_with_lame.2} parent=11 // pred_region
        _
      $region16: #{enhanced_multiscale_adaptive_elasticity_loss_with_lame.2} parent=11 // pred_fallthru
        _
    $region12: #{enhanced_multiscale_adaptive_elasticity_loss_with_lame.2} parent=5 // pred_fallthru
      _
    %p88 = scmp.lt.s32.totalorder %s9, 2
    // Predicated region
    $region17: #{enhanced_multiscale_adaptive_elasticity_loss_with_lame.2} parent=5 // pred_check
      %p89 = pneg %p88
    $region18: #{enhanced_multiscale_adaptive_elasticity_loss_with_lame.2} parent=5 // pred_check_branch
      %91 = sbr.rel (%p89) target = $region20
    $region19: #{enhanced_multiscale_adaptive_elasticity_loss_with_lame.2} parent=5 // pred_region
      _
    $region20: #{enhanced_multiscale_adaptive_elasticity_loss_with_lame.2} parent=5 // pred_fallthru
      _
    %p92 = scmp.le.s32.totalorder 1, %s9
    %p93 = scmp.lt.s32.totalorder %s9, 3
    %p94 = pnand %p92, %p93
    %p95 = pneg %p94
    // Predicated region
    $region21: #{enhanced_multiscale_adaptive_elasticity_loss_with_lame.2} parent=5 // pred_check
      _
    $region22: #{enhanced_multiscale_adaptive_elasticity_loss_with_lame.2} parent=5 // pred_check_branch
      %97 = sbr.rel (%p94) target = $region24
    $region23: #{enhanced_multiscale_adaptive_elasticity_loss_with_lame.2} parent=5 // pred_region
      %s98 = ssub.s32 %s9, 1
      %p99 = pneg %p42
      %p100 = pneg %p39
      %p101 = pneg %p70
      %p102 = pneg %p67
      %p103 = scmp.lt.s32.totalorder %s18, 1
      %s104 = scalar_select %p103, %s18, 1
      %p105 = scmp.lt.s32.totalorder %s19, 0
      %s106 = scalar_select %p105, %s19, 0
      %s107 = sadd.s32 %s106, %s104
      %s108 = smul.addr %s107, 8
      %s109 = scalar_lea.vmem %s3, %s108
      %p110 = scmp.lt.s32.totalorder %s18, 1
      %s111 = scalar_select %p110, %s18, 1
      %p112 = scmp.lt.s32.totalorder %s19, 0
      %s113 = scalar_select %p112, %s19, 0
      %s114 = sadd.s32 %s113, %s111
      %s115 = smul.addr %s114, 8
      %s116 = scalar_lea.vmem %s3, %s115
      %p117 = scmp.eq.s32.totalorder %s19, 0
      // Predicated region
      $region25: #{enhanced_multiscale_adaptive_elasticity_loss_with_lame.2} parent=23 // pred_check
        %p118 = pneg %p117
      $region26: #{enhanced_multiscale_adaptive_elasticity_loss_with_lame.2} parent=23 // pred_check_branch
        %120 = sbr.rel (%p118) target = $region28
      $region27: #{enhanced_multiscale_adaptive_elasticity_loss_with_lame.2} parent=23 // pred_region
        %s121 = smul.u32 %s18, 12
        %s122 = smul.addr %s121, 8
        %s123 = scalar_lea.vmem %s0, %s122
        %p125 = scmp.lt.u32.totalorder 96, 8
        %p126 = pneg %p125
        // Predicated region
        $region29: #{enhanced_multiscale_adaptive_elasticity_loss_with_lame.2} parent=27 // pred_check
          _
        $region30: #{enhanced_multiscale_adaptive_elasticity_loss_with_lame.2} parent=27 // pred_check_branch
          %128 = sbr.rel (%p125) target = $region32
        $region31: #{enhanced_multiscale_adaptive_elasticity_loss_with_lame.2} parent=27 // pred_region
          %s144 = sand.u32 96, 7
          %p145 = scmp.eq.s32.totalorder %s144, 0
          // Predicated region
          $region44: #{enhanced_multiscale_adaptive_elasticity_loss_with_lame.2} parent=31 // pred_check
            %p146 = pneg %p145
          $region45: #{enhanced_multiscale_adaptive_elasticity_loss_with_lame.2} parent=31 // pred_check_branch
            %148 = sbr.rel (%p146) target = $region47
          $region46: #{enhanced_multiscale_adaptive_elasticity_loss_with_lame.2} parent=31 // pred_region
            loop: start=0, step=1, limit=1
            $region48: #{enhanced_multiscale_adaptive_elasticity_loss_with_lame.2} parent=46 // loop_pre_header
              _
            $region49: #{enhanced_multiscale_adaptive_elasticity_loss_with_lame.2} parent=46 // loop_header
              %s150 = sphi 0, %s154
              %p151 = scmp.ge.s32.totalorder %s150, 1
              %s155 = sphi %s123, %s123
              %s156 = sphi [#allocation2], [#allocation2]
            $region50: #{enhanced_multiscale_adaptive_elasticity_loss_with_lame.2} parent=46 // loop_header_branch
              %153 = sbr.rel (%p151) target = $region54
            $region51: #{enhanced_multiscale_adaptive_elasticity_loss_with_lame.2} parent=46 // loop_body
              %v157 = vld [vmem:[%s155] sm:$0xff]
              %158 = vst [vmem:[%s156] sm:$0xff] %v157
              %v159 = vld [vmem:[%s155 + $0x8] sm:$0xff]
              %160 = vst [vmem:[%s156 + $0x8] sm:$0xff] %v159
              %v161 = vld [vmem:[%s155 + $0x10] sm:$0xff]
              %162 = vst [vmem:[%s156 + $0x10] sm:$0xff] %v161
              %v163 = vld [vmem:[%s155 + $0x18] sm:$0xff]
              %164 = vst [vmem:[%s156 + $0x18] sm:$0xff] %v163
              %v165 = vld [vmem:[%s155 + $0x20] sm:$0xff]
              %166 = vst [vmem:[%s156 + $0x20] sm:$0xff] %v165
              %v167 = vld [vmem:[%s155 + $0x28] sm:$0xff]
              %168 = vst [vmem:[%s156 + $0x28] sm:$0xff] %v167
              %v169 = vld [vmem:[%s155 + $0x30] sm:$0xff]
              %170 = vst [vmem:[%s156 + $0x30] sm:$0xff] %v169
              %v171 = vld [vmem:[%s155 + $0x38] sm:$0xff]
              %172 = vst [vmem:[%s156 + $0x38] sm:$0xff] %v171
              %v173 = vld [vmem:[%s155 + $0x40] sm:$0xff]
              %174 = vst [vmem:[%s156 + $0x40] sm:$0xff] %v173
              %v175 = vld [vmem:[%s155 + $0x48] sm:$0xff]
              %176 = vst [vmem:[%s156 + $0x48] sm:$0xff] %v175
              %v177 = vld [vmem:[%s155 + $0x50] sm:$0xff]
              %178 = vst [vmem:[%s156 + $0x50] sm:$0xff] %v177
              %v179 = vld [vmem:[%s155 + $0x58] sm:$0xff]
              %180 = vst [vmem:[%s156 + $0x58] sm:$0xff] %v179
            $region52: #{enhanced_multiscale_adaptive_elasticity_loss_with_lame.2} parent=46 // loop_footer
              %s154 = sadd.s32 1, %s150
            $region53: #{enhanced_multiscale_adaptive_elasticity_loss_with_lame.2} parent=46 // loop_footer_branch
              %149 = sbr.rel target = $region49
            $region54: #{enhanced_multiscale_adaptive_elasticity_loss_with_lame.2} parent=46 // loop_exit
              _
          $region47: #{enhanced_multiscale_adaptive_elasticity_loss_with_lame.2} parent=31 // pred_fallthru
            _
          %p181 = pneg %p145
          // Predicated region
          $region55: #{enhanced_multiscale_adaptive_elasticity_loss_with_lame.2} parent=31 // pred_check
            _
          $region56: #{enhanced_multiscale_adaptive_elasticity_loss_with_lame.2} parent=31 // pred_check_branch
            %183 = sbr.rel (%p145) target = $region58
          $region57: #{enhanced_multiscale_adaptive_elasticity_loss_with_lame.2} parent=31 // pred_region
            %s184 = sand.u32 96, 7
          $region58: #{enhanced_multiscale_adaptive_elasticity_loss_with_lame.2} parent=31 // pred_fallthru
            _
        $region32: #{enhanced_multiscale_adaptive_elasticity_loss_with_lame.2} parent=27 // pred_fallthru
          _
        // Predicated region
        $region33: #{enhanced_multiscale_adaptive_elasticity_loss_with_lame.2} parent=27 // pred_check
          %p129 = pneg %p125
        $region34: #{enhanced_multiscale_adaptive_elasticity_loss_with_lame.2} parent=27 // pred_check_branch
          %131 = sbr.rel (%p129) target = $region36
        $region35: #{enhanced_multiscale_adaptive_elasticity_loss_with_lame.2} parent=27 // pred_region
          %s132 = sshll.u32 1, 96
          %s133 = ssub.s32 %s132, 1
          loop: start=0, step=1, limit=1
          $region37: #{enhanced_multiscale_adaptive_elasticity_loss_with_lame.2} parent=35 // loop_pre_header
            _
          $region38: #{enhanced_multiscale_adaptive_elasticity_loss_with_lame.2} parent=35 // loop_header
            %s135 = sphi 0, %s139
            %p136 = scmp.ge.s32.totalorder %s135, 1
            %s140 = sphi %s123, %s123
            %s141 = sphi [#allocation2], [#allocation2]
          $region39: #{enhanced_multiscale_adaptive_elasticity_loss_with_lame.2} parent=35 // loop_header_branch
            %138 = sbr.rel (%p136) target = $region43
          $region40: #{enhanced_multiscale_adaptive_elasticity_loss_with_lame.2} parent=35 // loop_body
            %v142 = vld [vmem:[%s140] sm:%s133]
            %143 = vst [vmem:[%s141] sm:%s133] %v142
          $region41: #{enhanced_multiscale_adaptive_elasticity_loss_with_lame.2} parent=35 // loop_footer
            %s139 = sadd.s32 1, %s135
          $region42: #{enhanced_multiscale_adaptive_elasticity_loss_with_lame.2} parent=35 // loop_footer_branch
            %134 = sbr.rel target = $region38
          $region43: #{enhanced_multiscale_adaptive_elasticity_loss_with_lame.2} parent=35 // loop_exit
            _
        $region36: #{enhanced_multiscale_adaptive_elasticity_loss_with_lame.2} parent=27 // pred_fallthru
          _
        // Predicated region
        $region59: #{enhanced_multiscale_adaptive_elasticity_loss_with_lame.2} parent=27 // pred_check
          _
        $region60: #{enhanced_multiscale_adaptive_elasticity_loss_with_lame.2} parent=27 // pred_check_branch
          %187 = sbr.rel (0) target = $region62
        $region61: #{enhanced_multiscale_adaptive_elasticity_loss_with_lame.2} parent=27 // pred_region
          %188 = vsyncadd [#allocation4], 1536
        $region62: #{enhanced_multiscale_adaptive_elasticity_loss_with_lame.2} parent=27 // pred_fallthru
          _
        %s189 = smul.u32 %s18, 4
        %s190 = smul.addr %s189, 8
        %s191 = scalar_lea.vmem %s1, %s190
        %s192 = scalar_lea.sflag [#allocation4], 1
        %p194 = scmp.lt.u32.totalorder 32, 8
        %p195 = pneg %p194
        // Predicated region
        $region63: #{enhanced_multiscale_adaptive_elasticity_loss_with_lame.2} parent=27 // pred_check
          _
        $region64: #{enhanced_multiscale_adaptive_elasticity_loss_with_lame.2} parent=27 // pred_check_branch
          %197 = sbr.rel (%p194) target = $region66
        $region65: #{enhanced_multiscale_adaptive_elasticity_loss_with_lame.2} parent=27 // pred_region
          %s213 = sand.u32 32, 7
          %p214 = scmp.eq.s32.totalorder %s213, 0
          // Predicated region
          $region78: #{enhanced_multiscale_adaptive_elasticity_loss_with_lame.2} parent=65 // pred_check
            %p215 = pneg %p214
          $region79: #{enhanced_multiscale_adaptive_elasticity_loss_with_lame.2} parent=65 // pred_check_branch
            %217 = sbr.rel (%p215) target = $region81
          $region80: #{enhanced_multiscale_adaptive_elasticity_loss_with_lame.2} parent=65 // pred_region
            loop: start=0, step=1, limit=1
            $region82: #{enhanced_multiscale_adaptive_elasticity_loss_with_lame.2} parent=80 // loop_pre_header
              _
            $region83: #{enhanced_multiscale_adaptive_elasticity_loss_with_lame.2} parent=80 // loop_header
              %s219 = sphi 0, %s223
              %p220 = scmp.ge.s32.totalorder %s219, 1
              %s224 = sphi %s191, %s191
              %s225 = sphi [#allocation3], [#allocation3]
            $region84: #{enhanced_multiscale_adaptive_elasticity_loss_with_lame.2} parent=80 // loop_header_branch
              %222 = sbr.rel (%p220) target = $region88
            $region85: #{enhanced_multiscale_adaptive_elasticity_loss_with_lame.2} parent=80 // loop_body
              %v226 = vld [vmem:[%s224] sm:$0xff]
              %227 = vst [vmem:[%s225] sm:$0xff] %v226
              %v228 = vld [vmem:[%s224 + $0x8] sm:$0xff]
              %229 = vst [vmem:[%s225 + $0x8] sm:$0xff] %v228
              %v230 = vld [vmem:[%s224 + $0x10] sm:$0xff]
              %231 = vst [vmem:[%s225 + $0x10] sm:$0xff] %v230
              %v232 = vld [vmem:[%s224 + $0x18] sm:$0xff]
              %233 = vst [vmem:[%s225 + $0x18] sm:$0xff] %v232
            $region86: #{enhanced_multiscale_adaptive_elasticity_loss_with_lame.2} parent=80 // loop_footer
              %s223 = sadd.s32 1, %s219
            $region87: #{enhanced_multiscale_adaptive_elasticity_loss_with_lame.2} parent=80 // loop_footer_branch
              %218 = sbr.rel target = $region83
            $region88: #{enhanced_multiscale_adaptive_elasticity_loss_with_lame.2} parent=80 // loop_exit
              _
          $region81: #{enhanced_multiscale_adaptive_elasticity_loss_with_lame.2} parent=65 // pred_fallthru
            _
          %p234 = pneg %p214
          // Predicated region
          $region89: #{enhanced_multiscale_adaptive_elasticity_loss_with_lame.2} parent=65 // pred_check
            _
          $region90: #{enhanced_multiscale_adaptive_elasticity_loss_with_lame.2} parent=65 // pred_check_branch
            %236 = sbr.rel (%p214) target = $region92
          $region91: #{enhanced_multiscale_adaptive_elasticity_loss_with_lame.2} parent=65 // pred_region
            %s237 = sand.u32 32, 7
          $region92: #{enhanced_multiscale_adaptive_elasticity_loss_with_lame.2} parent=65 // pred_fallthru
            _
        $region66: #{enhanced_multiscale_adaptive_elasticity_loss_with_lame.2} parent=27 // pred_fallthru
          _
        // Predicated region
        $region67: #{enhanced_multiscale_adaptive_elasticity_loss_with_lame.2} parent=27 // pred_check
          %p198 = pneg %p194
        $region68: #{enhanced_multiscale_adaptive_elasticity_loss_with_lame.2} parent=27 // pred_check_branch
          %200 = sbr.rel (%p198) target = $region70
        $region69: #{enhanced_multiscale_adaptive_elasticity_loss_with_lame.2} parent=27 // pred_region
          %s201 = sshll.u32 1, 32
          %s202 = ssub.s32 %s201, 1
          loop: start=0, step=1, limit=1
          $region71: #{enhanced_multiscale_adaptive_elasticity_loss_with_lame.2} parent=69 // loop_pre_header
            _
          $region72: #{enhanced_multiscale_adaptive_elasticity_loss_with_lame.2} parent=69 // loop_header
            %s204 = sphi 0, %s208
            %p205 = scmp.ge.s32.totalorder %s204, 1
            %s209 = sphi %s191, %s191
            %s210 = sphi [#allocation3], [#allocation3]
          $region73: #{enhanced_multiscale_adaptive_elasticity_loss_with_lame.2} parent=69 // loop_header_branch
            %207 = sbr.rel (%p205) target = $region77
          $region74: #{enhanced_multiscale_adaptive_elasticity_loss_with_lame.2} parent=69 // loop_body
            %v211 = vld [vmem:[%s209] sm:%s202]
            %212 = vst [vmem:[%s210] sm:%s202] %v211
          $region75: #{enhanced_multiscale_adaptive_elasticity_loss_with_lame.2} parent=69 // loop_footer
            %s208 = sadd.s32 1, %s204
          $region76: #{enhanced_multiscale_adaptive_elasticity_loss_with_lame.2} parent=69 // loop_footer_branch
            %203 = sbr.rel target = $region72
          $region77: #{enhanced_multiscale_adaptive_elasticity_loss_with_lame.2} parent=69 // loop_exit
            _
        $region70: #{enhanced_multiscale_adaptive_elasticity_loss_with_lame.2} parent=27 // pred_fallthru
          _
        // Predicated region
        $region93: #{enhanced_multiscale_adaptive_elasticity_loss_with_lame.2} parent=27 // pred_check
          _
        $region94: #{enhanced_multiscale_adaptive_elasticity_loss_with_lame.2} parent=27 // pred_check_branch
          %240 = sbr.rel (0) target = $region96
        $region95: #{enhanced_multiscale_adaptive_elasticity_loss_with_lame.2} parent=27 // pred_region
          %241 = vsyncadd %s192, 512
        $region96: #{enhanced_multiscale_adaptive_elasticity_loss_with_lame.2} parent=27 // pred_fallthru
          _
      $region28: #{enhanced_multiscale_adaptive_elasticity_loss_with_lame.2} parent=23 // pred_fallthru
        _
      %s242 = smul.u32 %s19, 16
      %s243 = ssub.s32 %s242, 3
      %p244 = scmp.gt.s32.totalorder %s243, 0
      %s245 = scalar_select %p244, %s243, 0
      %p246 = scmp.lt.s32.totalorder %s245, 0
      %s247 = scalar_select %p246, %s245, 0
      %v248 = vlaneseq
      %v249 = vshrl.u32 %v248, 7
      %v250 = vadd.s32 %v249, 8
      %v251 = vstv %s247
      %v252 = vadd.s32 %v251, %v249
      %v253 = vadd.s32 %v251, %v250
      %v254 = vld [vmem:[%s2] sm:$0xf]
      %s255 = scalar_lea.sflag [#allocation4], 1
      %s256 = smul.u32 8, 2
      %s257 = smul.u32 %s256, 2
      %s258 = sshll.u32 %s257, 4
      %259 = dma.done %s255, %s258
      %v260 = vld [vmem:[#allocation3] sm:$0xff]
      %v261 = vld [vmem:[#allocation3 + $0x8] sm:$0xff]
      %v262 = vld [vmem:[#allocation3 + $0x10] sm:$0xff]
      %v263 = vld [vmem:[#allocation3 + $0x18] sm:$0xff]
      %vm268 = vcmask 1046528
      %v269 = vrot.slane %v260, 1
      %v270 = vrot.slane %v262, 1
      %v271 = vsel %vm268, %v269, %v270
      %v272 = vrot.slane %v261, 1
      %v273 = vrot.slane %v263, 1
      %v274 = vsel %vm268, %v272, %v273
      %v279 = vsel %vm268, %v270, %v262
      %v280 = vsel %vm268, %v273, %v263
      %vm281 = vcmask 1040384
      %v282 = vrot.slane %v260, 7
      %v283 = vrot.slane %v261, 7
      %v284 = vrot.slane %v262, 7
      %v285 = vsel %vm281, %v282, %v284
      %v286 = vrot.slane %v263, 7
      %v287 = vsel %vm281, %v283, %v286
      %v292 = vsel %vm281, %v260, %v282
      %v293 = vsel %vm281, %v261, %v283
      %v294 = vsub.f32 %v271, %v292
      %v295 = vsub.f32 %v274, %v293
      %v296 = vsub.f32 %v279, %v285
      %v297 = vsub.f32 %v280, %v287
      %v298 = vmul.f32 %v294, 0.5
      %v299 = vmul.f32 %v295, 0.5
      %v300 = vmul.f32 %v296, 0.5
      %v301 = vmul.f32 %v297, 0.5
      %vm302 = vcmp.eq.s32.totalorder %v252, 0
      %vm303 = vcmp.eq.s32.totalorder %v253, 0
      %v304 = vsub.f32 %v271, %v260
      %v305 = vsub.f32 %v274, %v261
      %v306 = vsub.f32 %v279, %v262
      %v307 = vsub.f32 %v280, %v263
      %v308 = vsel %vm302, 1, 0
      %v309 = vsel %vm303, 1, 0
      %vm310 = vcmp.eq.s32.totalorder %v308, 1
      %vm311 = vcmp.eq.s32.totalorder %v309, 1
      %v312 = vsel %vm310, %v304, %v298
      %v313 = vsel %vm310, %v305, %v299
      %v314 = vsel %vm311, %v306, %v300
      %v315 = vsel %vm311, %v307, %v301
      %vm316 = vcmp.eq.s32.totalorder %v252, 15
      %vm317 = vcmp.eq.s32.totalorder %v253, 15
      %v318 = vsub.f32 %v260, %v292
      %v319 = vsub.f32 %v261, %v293
      %v320 = vsub.f32 %v262, %v285
      %v321 = vsub.f32 %v263, %v287
      %v322 = vsel %vm316, 1, 0
      %v323 = vsel %vm317, 1, 0
      %vm324 = vcmp.eq.s32.totalorder %v322, 1
      %vm325 = vcmp.eq.s32.totalorder %v323, 1
      %v326 = vsel %vm324, %v318, %v312
      %v327 = vsel %vm324, %v319, %v313
      %v328 = vsel %vm325, %v320, %v314
      %v329 = vsel %vm325, %v321, %v315
      %v330 = vmul.f32 %v326, %v326
      %v331 = vmul.f32 %v327, %v327
      %v332 = vmul.f32 %v328, %v328
      %v333 = vmul.f32 %v329, %v329
      %334 = vrot.lane.b32.xlu0 %v260, 112
      %v335 = vpop.permute.xlu0 %334
      %336 = vrot.lane.b32.xlu0 %v261, 112
      %v337 = vpop.permute.xlu0 %336
      %338 = vrot.lane.b32.xlu0 %v262, 112
      %v339 = vpop.permute.xlu0 %338
      %340 = vrot.lane.b32.xlu0 %v263, 112
      %v341 = vpop.permute.xlu0 %340
      %vm342 = vcmask 916480
      %v343 = vsel %vm342, %v335, %v337
      %v344 = vsel %vm342, %v339, %v341
      %v351 = vsel %vm342, %v337, %v335
      %v352 = vsel %vm342, %v341, %v339
      %353 = vrot.lane.b32.xlu0 %v261, 16
      %v354 = vpop.permute.xlu0 %353
      %355 = vrot.lane.b32.xlu0 %v263, 16
      %v356 = vpop.permute.xlu0 %355
      %359 = vrot.lane.b32.xlu0 %v260, 16
      %v360 = vpop.permute.xlu0 %359
      %361 = vrot.lane.b32.xlu0 %v262, 16
      %v362 = vpop.permute.xlu0 %361
      %vm363 = vcmask 130048
      %v364 = vsel %vm363, %v360, %v354
      %v365 = vsel %vm363, %v362, %v356
      %v370 = vsel %vm363, %v354, %v360
      %v371 = vsel %vm363, %v356, %v362
      %v372 = vsub.f32 %v343, %v370
      %v373 = vsub.f32 %v351, %v364
      %v374 = vsub.f32 %v344, %v371
      %v375 = vsub.f32 %v352, %v365
      %v376 = vmul.f32 %v372, 0.5
      %v377 = vmul.f32 %v373, 0.5
      %v378 = vmul.f32 %v374, 0.5
      %v379 = vmul.f32 %v375, 0.5
      %vm380 = vcmp.eq.s32.totalorder %v254, 0
      %v381 = vsub.f32 %v343, %v260
      %v382 = vsub.f32 %v351, %v261
      %v383 = vsub.f32 %v344, %v262
      %v384 = vsub.f32 %v352, %v263
      %v385 = vsel %vm380, 1, 0
      %v386 = vlaneseq
      %v387 = vshrl.u32 %v386, 7
      %v388 = vsub.s32 0, %v387
      %v389 = vrot.slane %v385, %v388
      %v390 = vlaneseq
      %v391 = vshrl.u32 %v390, 7
      %v392 = vsub.s32 2, %v391
      %v393 = vrot.slane %v385, %v392
      %v394 = vlaneseq
      %v395 = vshrl.u32 %v394, 7
      %v396 = vsub.s32 0, %v395
      %v397 = vrot.slane %v389, %v396
      %v398 = vlaneseq
      %v399 = vshrl.u32 %v398, 7
      %v400 = vsub.s32 0, %v399
      %v401 = vrot.slane %v393, %v400
      %vm402 = vcmp.eq.s32.totalorder %v397, 1
      %vm403 = vcmp.eq.s32.totalorder %v401, 1
      %v404 = vsel %vm402, %v381, %v376
      %v405 = vsel %vm403, %v382, %v377
      %v406 = vsel %vm402, %v383, %v378
      %v407 = vsel %vm403, %v384, %v379
      %vm408 = vcmp.eq.s32.totalorder %v254, 15
      %v409 = vsub.f32 %v260, %v370
      %v410 = vsub.f32 %v261, %v364
      %v411 = vsub.f32 %v262, %v371
      %v412 = vsub.f32 %v263, %v365
      %v413 = vsel %vm408, 1, 0
      %v414 = vlaneseq
      %v415 = vshrl.u32 %v414, 7
      %v416 = vsub.s32 0, %v415
      %v417 = vrot.slane %v413, %v416
      %v418 = vlaneseq
      %v419 = vshrl.u32 %v418, 7
      %v420 = vsub.s32 2, %v419
      %v421 = vrot.slane %v413, %v420
      %v422 = vlaneseq
      %v423 = vshrl.u32 %v422, 7
      %v424 = vsub.s32 0, %v423
      %v425 = vrot.slane %v417, %v424
      %v426 = vlaneseq
      %v427 = vshrl.u32 %v426, 7
      %v428 = vsub.s32 0, %v427
      %v429 = vrot.slane %v421, %v428
      %vm430 = vcmp.eq.s32.totalorder %v425, 1
      %vm431 = vcmp.eq.s32.totalorder %v429, 1
      %v432 = vsel %vm430, %v409, %v404
      %v433 = vsel %vm431, %v410, %v405
      %v434 = vsel %vm430, %v411, %v406
      %v435 = vsel %vm431, %v412, %v407
      %v436 = vmul.f32 %v432, %v432
      %v437 = vmul.f32 %v433, %v433
      %v438 = vmul.f32 %v434, %v434
      %v439 = vmul.f32 %v435, %v435
      %v440 = vadd.f32 %v330, %v436
      %v441 = vadd.f32 %v331, %v437
      %v442 = vadd.f32 %v332, %v438
      %v443 = vadd.f32 %v333, %v439
      %444 = vrot.lane.b32.xlu0 %v260, 127
      %v445 = vpop.permute.xlu0 %444
      %446 = vrot.lane.b32.xlu0 %v261, 127
      %v447 = vpop.permute.xlu0 %446
      %448 = vrot.lane.b32.xlu0 %v262, 127
      %v449 = vpop.permute.xlu0 %448
      %450 = vrot.lane.b32.xlu0 %v263, 127
      %v451 = vpop.permute.xlu0 %450
      %vm452 = vcmask 1039360
      %v453 = vsel %vm452, %v445, %v447
      %v454 = vsel %vm452, %v449, %v451
      %v461 = vsel %vm452, %v447, %v445
      %v462 = vsel %vm452, %v451, %v449
      %463 = vrot.lane.b32.xlu0 %v261, 1
      %v464 = vpop.permute.xlu0 %463
      %465 = vrot.lane.b32.xlu0 %v263, 1
      %v466 = vpop.permute.xlu0 %465
      %469 = vrot.lane.b32.xlu0 %v260, 1
      %v470 = vpop.permute.xlu0 %469
      %471 = vrot.lane.b32.xlu0 %v262, 1
      %v472 = vpop.permute.xlu0 %471
      %vm473 = vcmask 7168
      %v474 = vsel %vm473, %v470, %v464
      %v475 = vsel %vm473, %v472, %v466
      %v480 = vsel %vm473, %v464, %v470
      %v481 = vsel %vm473, %v466, %v472
      %v482 = vsub.f32 %v453, %v480
      %v483 = vsub.f32 %v461, %v474
      %v484 = vsub.f32 %v454, %v481
      %v485 = vsub.f32 %v462, %v475
      %v486 = vmul.f32 %v482, 0.5
      %v487 = vmul.f32 %v483, 0.5
      %v488 = vmul.f32 %v484, 0.5
      %v489 = vmul.f32 %v485, 0.5
      %v490 = vsub.f32 %v453, %v260
      %v491 = vsub.f32 %v461, %v261
      %v492 = vsub.f32 %v454, %v262
      %v493 = vsub.f32 %v462, %v263
      %v494 = vlaneseq
      %v495 = vshrl.u32 %v494, 7
      %v496 = vsub.s32 1, %v495
      %v497 = vrot.slane %v385, %v496
      %v498 = vlaneseq
      %v499 = vshrl.u32 %v498, 7
      %v500 = vsub.s32 3, %v499
      %v501 = vrot.slane %v385, %v500
      %v502 = vlaneseq
      %v503 = vshrl.u32 %v502, 7
      %v504 = vsub.s32 1, %v503
      %v505 = vrot.slane %v497, %v504
      %v506 = vlaneseq
      %v507 = vshrl.u32 %v506, 7
      %v508 = vsub.s32 1, %v507
      %v509 = vrot.slane %v501, %v508
      %vm510 = vcmp.eq.s32.totalorder %v505, 1
      %vm511 = vcmp.eq.s32.totalorder %v509, 1
      %v512 = vsel %vm510, %v490, %v486
      %v513 = vsel %vm511, %v491, %v487
      %v514 = vsel %vm510, %v492, %v488
      %v515 = vsel %vm511, %v493, %v489
      %v516 = vsub.f32 %v260, %v480
      %v517 = vsub.f32 %v261, %v474
      %v518 = vsub.f32 %v262, %v481
      %v519 = vsub.f32 %v263, %v475
      %v520 = vlaneseq
      %v521 = vshrl.u32 %v520, 7
      %v522 = vsub.s32 1, %v521
      %v523 = vrot.slane %v413, %v522
      %v524 = vlaneseq
      %v525 = vshrl.u32 %v524, 7
      %v526 = vsub.s32 3, %v525
      %v527 = vrot.slane %v413, %v526
      %v528 = vlaneseq
      %v529 = vshrl.u32 %v528, 7
      %v530 = vsub.s32 1, %v529
      %v531 = vrot.slane %v523, %v530
      %v532 = vlaneseq
      %v533 = vshrl.u32 %v532, 7
      %v534 = vsub.s32 1, %v533
      %v535 = vrot.slane %v527, %v534
      %vm536 = vcmp.eq.s32.totalorder %v531, 1
      %vm537 = vcmp.eq.s32.totalorder %v535, 1
      %v538 = vsel %vm536, %v516, %v512
      %v539 = vsel %vm537, %v517, %v513
      %v540 = vsel %vm536, %v518, %v514
      %v541 = vsel %vm537, %v519, %v515
      %v542 = vmul.f32 %v538, %v538
      %v543 = vmul.f32 %v539, %v539
      %v544 = vmul.f32 %v540, %v540
      %v545 = vmul.f32 %v541, %v541
      %v546 = vadd.f32 %v440, %v542
      %v547 = vadd.f32 %v441, %v543
      %v548 = vadd.f32 %v442, %v544
      %v549 = vadd.f32 %v443, %v545
      %v550 = vrsqrt.pop %v546
      %v551 = vmul.f32 %v546, %v550
      %vm552 = vcmp.eq.f32.partialorder %v546, inf
      %v553 = vsel %vm552, %v546, %v551
      %vm554 = vcmp.eq.f32.partialorder %v546, 0.0
      %v555 = vand.u32 %v546, 2147483648
      %v556 = vsel %vm554, %v555, %v553
      %v557 = vrsqrt.pop %v547
      %v558 = vmul.f32 %v547, %v557
      %vm559 = vcmp.eq.f32.partialorder %v547, inf
      %v560 = vsel %vm559, %v547, %v558
      %vm561 = vcmp.eq.f32.partialorder %v547, 0.0
      %v562 = vand.u32 %v547, 2147483648
      %v563 = vsel %vm561, %v562, %v560
      %v564 = vrsqrt.pop %v548
      %v565 = vmul.f32 %v548, %v564
      %vm566 = vcmp.eq.f32.partialorder %v548, inf
      %v567 = vsel %vm566, %v548, %v565
      %vm568 = vcmp.eq.f32.partialorder %v548, 0.0
      %v569 = vand.u32 %v548, 2147483648
      %v570 = vsel %vm568, %v569, %v567
      %v571 = vrsqrt.pop %v549
      %v572 = vmul.f32 %v549, %v571
      %vm573 = vcmp.eq.f32.partialorder %v549, inf
      %v574 = vsel %vm573, %v549, %v572
      %vm575 = vcmp.eq.f32.partialorder %v549, 0.0
      %v576 = vand.u32 %v549, 2147483648
      %v577 = vsel %vm575, %v576, %v574
      %v582 = vrot.slane %v556, 1
      %v583 = vrot.slane %v570, 1
      %v584 = vsel %vm268, %v582, %v583
      %v585 = vrot.slane %v563, 1
      %v586 = vrot.slane %v577, 1
      %v587 = vsel %vm268, %v585, %v586
      %v592 = vsel %vm268, %v583, %v570
      %v593 = vsel %vm268, %v586, %v577
      %vm594 = vcmask 1045504
      %v595 = vrot.slane %v556, 2
      %v596 = vrot.slane %v570, 2
      %v597 = vsel %vm594, %v595, %v596
      %v598 = vrot.slane %v563, 2
      %v599 = vrot.slane %v577, 2
      %v600 = vsel %vm594, %v598, %v599
      %v605 = vsel %vm594, %v596, %v570
      %v606 = vsel %vm594, %v599, %v577
      %v607 = vrot.slane %v556, 7
      %v608 = vrot.slane %v563, 7
      %v609 = vrot.slane %v570, 7
      %v610 = vsel %vm281, %v607, %v609
      %v611 = vrot.slane %v577, 7
      %v612 = vsel %vm281, %v608, %v611
      %v617 = vsel %vm281, %v556, %v607
      %v618 = vsel %vm281, %v563, %v608
      %vm619 = vcmask 1041408
      %v620 = vrot.slane %v556, 6
      %v621 = vrot.slane %v563, 6
      %v622 = vrot.slane %v570, 6
      %v623 = vsel %vm619, %v620, %v622
      %v624 = vrot.slane %v577, 6
      %v625 = vsel %vm619, %v621, %v624
      %v630 = vsel %vm619, %v556, %v620
      %v631 = vsel %vm619, %v563, %v621
      %v632 = vmul.f32 %v556, 0.36954647
      %v633 = vmul.f32 %v563, 0.36954647
      %v634 = vmul.f32 %v570, 0.36954647
      %v635 = vmul.f32 %v577, 0.36954647
      %v636 = vadd.f32 %v584, %v617
      %v637 = vadd.f32 %v587, %v618
      %v638 = vadd.f32 %v592, %v610
      %v639 = vadd.f32 %v593, %v612
      %v640 = vmul.f32 %v636, 0.2444604
      %v641 = vmul.f32 %v637, 0.2444604
      %v642 = vmul.f32 %v638, 0.2444604
      %v643 = vmul.f32 %v639, 0.2444604
      %v644 = vadd.f32 %v632, %v640
      %v645 = vadd.f32 %v633, %v641
      %v646 = vadd.f32 %v634, %v642
      %v647 = vadd.f32 %v635, %v643
      %v648 = vadd.f32 %v597, %v630
      %v649 = vadd.f32 %v600, %v631
      %v650 = vadd.f32 %v605, %v623
      %v651 = vadd.f32 %v606, %v625
      %v652 = vmul.f32 %v648, 0.070766374
      %v653 = vmul.f32 %v649, 0.070766374
      %v654 = vmul.f32 %v650, 0.070766374
      %v655 = vmul.f32 %v651, 0.070766374
      %v656 = vadd.f32 %v644, %v652
      %v657 = vadd.f32 %v645, %v653
      %v658 = vadd.f32 %v646, %v654
      %v659 = vadd.f32 %v647, %v655
      %vm660 = vcmp.eq.s32.totalorder %v252, 1
      %vm661 = vcmp.eq.s32.totalorder %v253, 1
      %v662 = vmul.f32 %v617, 0.2444604
      %v663 = vmul.f32 %v618, 0.2444604
      %v664 = vmul.f32 %v610, 0.2444604
      %v665 = vmul.f32 %v612, 0.2444604
      %v666 = vmul.f32 %v556, 0.44031283
      %v667 = vmul.f32 %v563, 0.44031283
      %v668 = vmul.f32 %v570, 0.44031283
      %v669 = vmul.f32 %v577, 0.44031283
      %v670 = vadd.f32 %v662, %v666
      %v671 = vadd.f32 %v663, %v667
      %v672 = vadd.f32 %v664, %v668
      %v673 = vadd.f32 %v665, %v669
      %v674 = vmul.f32 %v584, 0.2444604
      %v675 = vmul.f32 %v587, 0.2444604
      %v676 = vmul.f32 %v592, 0.2444604
      %v677 = vmul.f32 %v593, 0.2444604
      %v678 = vadd.f32 %v670, %v674
      %v679 = vadd.f32 %v671, %v675
      %v680 = vadd.f32 %v672, %v676
      %v681 = vadd.f32 %v673, %v677
      %v682 = vmul.f32 %v597, 0.070766374
      %v683 = vmul.f32 %v600, 0.070766374
      %v684 = vmul.f32 %v605, 0.070766374
      %v685 = vmul.f32 %v606, 0.070766374
      %v686 = vadd.f32 %v678, %v682
      %v687 = vadd.f32 %v679, %v683
      %v688 = vadd.f32 %v680, %v684
      %v689 = vadd.f32 %v681, %v685
      %v690 = vsel %vm660, 1, 0
      %v691 = vsel %vm661, 1, 0
      %vm692 = vcmp.eq.s32.totalorder %v690, 1
      %vm693 = vcmp.eq.s32.totalorder %v691, 1
      %v694 = vsel %vm692, %v686, %v656
      %v695 = vsel %vm692, %v687, %v657
      %v696 = vsel %vm693, %v688, %v658
      %v697 = vsel %vm693, %v689, %v659
      %vm698 = vcmp.eq.s32.totalorder %v252, 14
      %vm699 = vcmp.eq.s32.totalorder %v253, 14
      %v700 = vadd.f32 %v674, %v666
      %v701 = vadd.f32 %v675, %v667
      %v702 = vadd.f32 %v676, %v668
      %v703 = vadd.f32 %v677, %v669
      %v704 = vadd.f32 %v700, %v662
      %v705 = vadd.f32 %v701, %v663
      %v706 = vadd.f32 %v702, %v664
      %v707 = vadd.f32 %v703, %v665
      %v708 = vmul.f32 %v630, 0.070766374
      %v709 = vmul.f32 %v631, 0.070766374
      %v710 = vmul.f32 %v623, 0.070766374
      %v711 = vmul.f32 %v625, 0.070766374
      %v712 = vadd.f32 %v704, %v708
      %v713 = vadd.f32 %v705, %v709
      %v714 = vadd.f32 %v706, %v710
      %v715 = vadd.f32 %v707, %v711
      %v716 = vsel %vm698, 1, 0
      %v717 = vsel %vm699, 1, 0
      %vm718 = vcmp.eq.s32.totalorder %v716, 1
      %vm719 = vcmp.eq.s32.totalorder %v717, 1
      %v720 = vsel %vm718, %v712, %v694
      %v721 = vsel %vm718, %v713, %v695
      %v722 = vsel %vm719, %v714, %v696
      %v723 = vsel %vm719, %v715, %v697
      %v724 = vmul.f32 %v584, 0.4889208
      %v725 = vmul.f32 %v587, 0.4889208
      %v726 = vmul.f32 %v592, 0.4889208
      %v727 = vmul.f32 %v593, 0.4889208
      %v728 = vadd.f32 %v632, %v724
      %v729 = vadd.f32 %v633, %v725
      %v730 = vadd.f32 %v634, %v726
      %v731 = vadd.f32 %v635, %v727
      %v732 = vmul.f32 %v597, 0.14153275
      %v733 = vmul.f32 %v600, 0.14153275
      %v734 = vmul.f32 %v605, 0.14153275
      %v735 = vmul.f32 %v606, 0.14153275
      %v736 = vadd.f32 %v728, %v732
      %v737 = vadd.f32 %v729, %v733
      %v738 = vadd.f32 %v730, %v734
      %v739 = vadd.f32 %v731, %v735
      %v740 = vsel %vm310, %v736, %v720
      %v741 = vsel %vm310, %v737, %v721
      %v742 = vsel %vm311, %v738, %v722
      %v743 = vsel %vm311, %v739, %v723
      %v744 = vmul.f32 %v617, 0.4889208
      %v745 = vmul.f32 %v618, 0.4889208
      %v746 = vmul.f32 %v610, 0.4889208
      %v747 = vmul.f32 %v612, 0.4889208
      %v748 = vadd.f32 %v632, %v744
      %v749 = vadd.f32 %v633, %v745
      %v750 = vadd.f32 %v634, %v746
      %v751 = vadd.f32 %v635, %v747
      %v752 = vmul.f32 %v630, 0.14153275
      %v753 = vmul.f32 %v631, 0.14153275
      %v754 = vmul.f32 %v623, 0.14153275
      %v755 = vmul.f32 %v625, 0.14153275
      %v756 = vadd.f32 %v748, %v752
      %v757 = vadd.f32 %v749, %v753
      %v758 = vadd.f32 %v750, %v754
      %v759 = vadd.f32 %v751, %v755
      %v760 = vsel %vm324, %v756, %v740
      %v761 = vsel %vm324, %v757, %v741
      %v762 = vsel %vm325, %v758, %v742
      %v763 = vsel %vm325, %v759, %v743
      %768 = vrot.lane.b32.xlu0 %v760, 112
      %v769 = vpop.permute.xlu0 %768
      %770 = vrot.lane.b32.xlu0 %v761, 112
      %v771 = vpop.permute.xlu0 %770
      %772 = vrot.lane.b32.xlu0 %v762, 112
      %v773 = vpop.permute.xlu0 %772
      %774 = vrot.lane.b32.xlu0 %v763, 112
      %v775 = vpop.permute.xlu0 %774
      %v776 = vsel %vm342, %v769, %v771
      %v777 = vsel %vm342, %v773, %v775
      %v784 = vsel %vm342, %v771, %v769
      %v785 = vsel %vm342, %v775, %v773
      %786 = vrot.lane.b32.xlu0 %v760, 96
      %v787 = vpop.permute.xlu0 %786
      %788 = vrot.lane.b32.xlu0 %v761, 96
      %v789 = vpop.permute.xlu0 %788
      %790 = vrot.lane.b32.xlu0 %v762, 96
      %v791 = vpop.permute.xlu0 %790
      %792 = vrot.lane.b32.xlu0 %v763, 96
      %v793 = vpop.permute.xlu0 %792
      %vm794 = vcmask 785408
      %v795 = vsel %vm794, %v787, %v789
      %v796 = vsel %vm794, %v791, %v793
      %v803 = vsel %vm794, %v789, %v787
      %v804 = vsel %vm794, %v793, %v791
      %805 = vrot.lane.b32.xlu0 %v761, 16
      %v806 = vpop.permute.xlu0 %805
      %807 = vrot.lane.b32.xlu0 %v763, 16
      %v808 = vpop.permute.xlu0 %807
      %811 = vrot.lane.b32.xlu0 %v760, 16
      %v812 = vpop.permute.xlu0 %811
      %813 = vrot.lane.b32.xlu0 %v762, 16
      %v814 = vpop.permute.xlu0 %813
      %v815 = vsel %vm363, %v812, %v806
      %v816 = vsel %vm363, %v814, %v808
      %v821 = vsel %vm363, %v806, %v812
      %v822 = vsel %vm363, %v808, %v814
      %823 = vrot.lane.b32.xlu0 %v761, 32
      %v824 = vpop.permute.xlu0 %823
      %825 = vrot.lane.b32.xlu0 %v763, 32
      %v826 = vpop.permute.xlu0 %825
      %829 = vrot.lane.b32.xlu0 %v760, 32
      %v830 = vpop.permute.xlu0 %829
      %831 = vrot.lane.b32.xlu0 %v762, 32
      %v832 = vpop.permute.xlu0 %831
      %vm833 = vcmask 261120
      %v834 = vsel %vm833, %v830, %v824
      %v835 = vsel %vm833, %v832, %v826
      %v840 = vsel %vm833, %v824, %v830
      %v841 = vsel %vm833, %v826, %v832
      %v842 = vmul.f32 %v760, 0.36954647
      %v843 = vmul.f32 %v761, 0.36954647
      %v844 = vmul.f32 %v762, 0.36954647
      %v845 = vmul.f32 %v763, 0.36954647
      %v846 = vadd.f32 %v776, %v821
      %v847 = vadd.f32 %v784, %v815
      %v848 = vadd.f32 %v777, %v822
      %v849 = vadd.f32 %v785, %v816
      %v850 = vmul.f32 %v846, 0.2444604
      %v851 = vmul.f32 %v847, 0.2444604
      %v852 = vmul.f32 %v848, 0.2444604
      %v853 = vmul.f32 %v849, 0.2444604
      %v854 = vadd.f32 %v842, %v850
      %v855 = vadd.f32 %v843, %v851
      %v856 = vadd.f32 %v844, %v852
      %v857 = vadd.f32 %v845, %v853
      %v858 = vadd.f32 %v795, %v840
      %v859 = vadd.f32 %v803, %v834
      %v860 = vadd.f32 %v796, %v841
      %v861 = vadd.f32 %v804, %v835
      %v862 = vmul.f32 %v858, 0.070766374
      %v863 = vmul.f32 %v859, 0.070766374
      %v864 = vmul.f32 %v860, 0.070766374
      %v865 = vmul.f32 %v861, 0.070766374
      %v866 = vadd.f32 %v854, %v862
      %v867 = vadd.f32 %v855, %v863
      %v868 = vadd.f32 %v856, %v864
      %v869 = vadd.f32 %v857, %v865
      %vm870 = vcmp.eq.s32.totalorder %v254, 1
      %v871 = vmul.f32 %v821, 0.2444604
      %v872 = vmul.f32 %v815, 0.2444604
      %v873 = vmul.f32 %v822, 0.2444604
      %v874 = vmul.f32 %v816, 0.2444604
      %v875 = vmul.f32 %v760, 0.44031283
      %v876 = vmul.f32 %v761, 0.44031283
      %v877 = vmul.f32 %v762, 0.44031283
      %v878 = vmul.f32 %v763, 0.44031283
      %v879 = vadd.f32 %v871, %v875
      %v880 = vadd.f32 %v872, %v876
      %v881 = vadd.f32 %v873, %v877
      %v882 = vadd.f32 %v874, %v878
      %v883 = vmul.f32 %v776, 0.2444604
      %v884 = vmul.f32 %v784, 0.2444604
      %v885 = vmul.f32 %v777, 0.2444604
      %v886 = vmul.f32 %v785, 0.2444604
      %v887 = vadd.f32 %v879, %v883
      %v888 = vadd.f32 %v880, %v884
      %v889 = vadd.f32 %v881, %v885
      %v890 = vadd.f32 %v882, %v886
      %v891 = vmul.f32 %v795, 0.070766374
      %v892 = vmul.f32 %v803, 0.070766374
      %v893 = vmul.f32 %v796, 0.070766374
      %v894 = vmul.f32 %v804, 0.070766374
      %v895 = vadd.f32 %v887, %v891
      %v896 = vadd.f32 %v888, %v892
      %v897 = vadd.f32 %v889, %v893
      %v898 = vadd.f32 %v890, %v894
      %v899 = vsel %vm870, 1, 0
      %v900 = vlaneseq
      %v901 = vshrl.u32 %v900, 7
      %v902 = vsub.s32 0, %v901
      %v903 = vrot.slane %v899, %v902
      %v904 = vlaneseq
      %v905 = vshrl.u32 %v904, 7
      %v906 = vsub.s32 2, %v905
      %v907 = vrot.slane %v899, %v906
      %v908 = vlaneseq
      %v909 = vshrl.u32 %v908, 7
      %v910 = vsub.s32 0, %v909
      %v911 = vrot.slane %v903, %v910
      %v912 = vlaneseq
      %v913 = vshrl.u32 %v912, 7
      %v914 = vsub.s32 0, %v913
      %v915 = vrot.slane %v907, %v914
      %vm916 = vcmp.eq.s32.totalorder %v911, 1
      %vm917 = vcmp.eq.s32.totalorder %v915, 1
      %v918 = vsel %vm916, %v895, %v866
      %v919 = vsel %vm917, %v896, %v867
      %v920 = vsel %vm916, %v897, %v868
      %v921 = vsel %vm917, %v898, %v869
      %vm922 = vcmp.eq.s32.totalorder %v254, 14
      %v923 = vadd.f32 %v883, %v875
      %v924 = vadd.f32 %v884, %v876
      %v925 = vadd.f32 %v885, %v877
      %v926 = vadd.f32 %v886, %v878
      %v927 = vadd.f32 %v923, %v871
      %v928 = vadd.f32 %v924, %v872
      %v929 = vadd.f32 %v925, %v873
      %v930 = vadd.f32 %v926, %v874
      %v931 = vmul.f32 %v840, 0.070766374
      %v932 = vmul.f32 %v834, 0.070766374
      %v933 = vmul.f32 %v841, 0.070766374
      %v934 = vmul.f32 %v835, 0.070766374
      %v935 = vadd.f32 %v927, %v931
      %v936 = vadd.f32 %v928, %v932
      %v937 = vadd.f32 %v929, %v933
      %v938 = vadd.f32 %v930, %v934
      %v939 = vsel %vm922, 1, 0
      %v940 = vlaneseq
      %v941 = vshrl.u32 %v940, 7
      %v942 = vsub.s32 0, %v941
      %v943 = vrot.slane %v939, %v942
      %v944 = vlaneseq
      %v945 = vshrl.u32 %v944, 7
      %v946 = vsub.s32 2, %v945
      %v947 = vrot.slane %v939, %v946
      %v948 = vlaneseq
      %v949 = vshrl.u32 %v948, 7
      %v950 = vsub.s32 0, %v949
      %v951 = vrot.slane %v943, %v950
      %v952 = vlaneseq
      %v953 = vshrl.u32 %v952, 7
      %v954 = vsub.s32 0, %v953
      %v955 = vrot.slane %v947, %v954
      %vm956 = vcmp.eq.s32.totalorder %v951, 1
      %vm957 = vcmp.eq.s32.totalorder %v955, 1
      %v958 = vsel %vm956, %v935, %v918
      %v959 = vsel %vm957, %v936, %v919
      %v960 = vsel %vm956, %v937, %v920
      %v961 = vsel %vm957, %v938, %v921
      %v962 = vmul.f32 %v776, 0.4889208
      %v963 = vmul.f32 %v784, 0.4889208
      %v964 = vmul.f32 %v777, 0.4889208
      %v965 = vmul.f32 %v785, 0.4889208
      %v966 = vadd.f32 %v842, %v962
      %v967 = vadd.f32 %v843, %v963
      %v968 = vadd.f32 %v844, %v964
      %v969 = vadd.f32 %v845, %v965
      %v970 = vmul.f32 %v795, 0.14153275
      %v971 = vmul.f32 %v803, 0.14153275
      %v972 = vmul.f32 %v796, 0.14153275
      %v973 = vmul.f32 %v804, 0.14153275
      %v974 = vadd.f32 %v966, %v970
      %v975 = vadd.f32 %v967, %v971
      %v976 = vadd.f32 %v968, %v972
      %v977 = vadd.f32 %v969, %v973
      %v978 = vsel %vm402, %v974, %v958
      %v979 = vsel %vm403, %v975, %v959
      %v980 = vsel %vm402, %v976, %v960
      %v981 = vsel %vm403, %v977, %v961
      %v982 = vmul.f32 %v821, 0.4889208
      %v983 = vmul.f32 %v815, 0.4889208
      %v984 = vmul.f32 %v822, 0.4889208
      %v985 = vmul.f32 %v816, 0.4889208
      %v986 = vadd.f32 %v842, %v982
      %v987 = vadd.f32 %v843, %v983
      %v988 = vadd.f32 %v844, %v984
      %v989 = vadd.f32 %v845, %v985
      %v990 = vmul.f32 %v840, 0.14153275
      %v991 = vmul.f32 %v834, 0.14153275
      %v992 = vmul.f32 %v841, 0.14153275
      %v993 = vmul.f32 %v835, 0.14153275
      %v994 = vadd.f32 %v986, %v990
      %v995 = vadd.f32 %v987, %v991
      %v996 = vadd.f32 %v988, %v992
      %v997 = vadd.f32 %v989, %v993
      %v998 = vsel %vm430, %v994, %v978
      %v999 = vsel %vm431, %v995, %v979
      %v1000 = vsel %vm430, %v996, %v980
      %v1001 = vsel %vm431, %v997, %v981
      %1006 = vrot.lane.b32.xlu0 %v998, 127
      %v1007 = vpop.permute.xlu0 %1006
      %1008 = vrot.lane.b32.xlu0 %v999, 127
      %v1009 = vpop.permute.xlu0 %1008
      %1010 = vrot.lane.b32.xlu0 %v1000, 127
      %v1011 = vpop.permute.xlu0 %1010
      %1012 = vrot.lane.b32.xlu0 %v1001, 127
      %v1013 = vpop.permute.xlu0 %1012
      %v1014 = vsel %vm452, %v1007, %v1009
      %v1015 = vsel %vm452, %v1011, %v1013
      %v1022 = vsel %vm452, %v1009, %v1007
      %v1023 = vsel %vm452, %v1013, %v1011
      %1024 = vrot.lane.b32.xlu0 %v998, 126
      %v1025 = vpop.permute.xlu0 %1024
      %1026 = vrot.lane.b32.xlu0 %v999, 126
      %v1027 = vpop.permute.xlu0 %1026
      %1028 = vrot.lane.b32.xlu0 %v1000, 126
      %v1029 = vpop.permute.xlu0 %1028
      %1030 = vrot.lane.b32.xlu0 %v1001, 126
      %v1031 = vpop.permute.xlu0 %1030
      %vm1032 = vcmask 1031168
      %v1033 = vsel %vm1032, %v1025, %v1027
      %v1034 = vsel %vm1032, %v1029, %v1031
      %v1041 = vsel %vm1032, %v1027, %v1025
      %v1042 = vsel %vm1032, %v1031, %v1029
      %1043 = vrot.lane.b32.xlu0 %v999, 1
      %v1044 = vpop.permute.xlu0 %1043
      %1045 = vrot.lane.b32.xlu0 %v1001, 1
      %v1046 = vpop.permute.xlu0 %1045
      %1049 = vrot.lane.b32.xlu0 %v998, 1
      %v1050 = vpop.permute.xlu0 %1049
      %1051 = vrot.lane.b32.xlu0 %v1000, 1
      %v1052 = vpop.permute.xlu0 %1051
      %v1053 = vsel %vm473, %v1050, %v1044
      %v1054 = vsel %vm473, %v1052, %v1046
      %v1059 = vsel %vm473, %v1044, %v1050
      %v1060 = vsel %vm473, %v1046, %v1052
      %1061 = vrot.lane.b32.xlu0 %v999, 2
      %v1062 = vpop.permute.xlu0 %1061
      %1063 = vrot.lane.b32.xlu0 %v1001, 2
      %v1064 = vpop.permute.xlu0 %1063
      %1067 = vrot.lane.b32.xlu0 %v998, 2
      %v1068 = vpop.permute.xlu0 %1067
      %1069 = vrot.lane.b32.xlu0 %v1000, 2
      %v1070 = vpop.permute.xlu0 %1069
      %vm1071 = vcmask 15360
      %v1072 = vsel %vm1071, %v1068, %v1062
      %v1073 = vsel %vm1071, %v1070, %v1064
      %v1078 = vsel %vm1071, %v1062, %v1068
      %v1079 = vsel %vm1071, %v1064, %v1070
      %v1080 = vmul.f32 %v998, 0.36954647
      %v1081 = vmul.f32 %v999, 0.36954647
      %v1082 = vmul.f32 %v1000, 0.36954647
      %v1083 = vmul.f32 %v1001, 0.36954647
      %v1084 = vadd.f32 %v1014, %v1059
      %v1085 = vadd.f32 %v1022, %v1053
      %v1086 = vadd.f32 %v1015, %v1060
      %v1087 = vadd.f32 %v1023, %v1054
      %v1088 = vmul.f32 %v1084, 0.2444604
      %v1089 = vmul.f32 %v1085, 0.2444604
      %v1090 = vmul.f32 %v1086, 0.2444604
      %v1091 = vmul.f32 %v1087, 0.2444604
      %v1092 = vadd.f32 %v1080, %v1088
      %v1093 = vadd.f32 %v1081, %v1089
      %v1094 = vadd.f32 %v1082, %v1090
      %v1095 = vadd.f32 %v1083, %v1091
      %v1096 = vadd.f32 %v1033, %v1078
      %v1097 = vadd.f32 %v1041, %v1072
      %v1098 = vadd.f32 %v1034, %v1079
      %v1099 = vadd.f32 %v1042, %v1073
      %v1100 = vmul.f32 %v1096, 0.070766374
      %v1101 = vmul.f32 %v1097, 0.070766374
      %v1102 = vmul.f32 %v1098, 0.070766374
      %v1103 = vmul.f32 %v1099, 0.070766374
      %v1104 = vadd.f32 %v1092, %v1100
      %v1105 = vadd.f32 %v1093, %v1101
      %v1106 = vadd.f32 %v1094, %v1102
      %v1107 = vadd.f32 %v1095, %v1103
      %v1108 = vmul.f32 %v1059, 0.2444604
      %v1109 = vmul.f32 %v1053, 0.2444604
      %v1110 = vmul.f32 %v1060, 0.2444604
      %v1111 = vmul.f32 %v1054, 0.2444604
      %v1112 = vmul.f32 %v998, 0.44031283
      %v1113 = vmul.f32 %v999, 0.44031283
      %v1114 = vmul.f32 %v1000, 0.44031283
      %v1115 = vmul.f32 %v1001, 0.44031283
      %v1116 = vadd.f32 %v1108, %v1112
      %v1117 = vadd.f32 %v1109, %v1113
      %v1118 = vadd.f32 %v1110, %v1114
      %v1119 = vadd.f32 %v1111, %v1115
      %v1120 = vmul.f32 %v1014, 0.2444604
      %v1121 = vmul.f32 %v1022, 0.2444604
      %v1122 = vmul.f32 %v1015, 0.2444604
      %v1123 = vmul.f32 %v1023, 0.2444604
      %v1124 = vadd.f32 %v1116, %v1120
      %v1125 = vadd.f32 %v1117, %v1121
      %v1126 = vadd.f32 %v1118, %v1122
      %v1127 = vadd.f32 %v1119, %v1123
      %v1128 = vmul.f32 %v1033, 0.070766374
      %v1129 = vmul.f32 %v1041, 0.070766374
      %v1130 = vmul.f32 %v1034, 0.070766374
      %v1131 = vmul.f32 %v1042, 0.070766374
      %v1132 = vadd.f32 %v1124, %v1128
      %v1133 = vadd.f32 %v1125, %v1129
      %v1134 = vadd.f32 %v1126, %v1130
      %v1135 = vadd.f32 %v1127, %v1131
      %v1136 = vlaneseq
      %v1137 = vshrl.u32 %v1136, 7
      %v1138 = vsub.s32 1, %v1137
      %v1139 = vrot.slane %v899, %v1138
      %v1140 = vlaneseq
      %v1141 = vshrl.u32 %v1140, 7
      %v1142 = vsub.s32 3, %v1141
      %v1143 = vrot.slane %v899, %v1142
      %v1144 = vlaneseq
      %v1145 = vshrl.u32 %v1144, 7
      %v1146 = vsub.s32 1, %v1145
      %v1147 = vrot.slane %v1139, %v1146
      %v1148 = vlaneseq
      %v1149 = vshrl.u32 %v1148, 7
      %v1150 = vsub.s32 1, %v1149
      %v1151 = vrot.slane %v1143, %v1150
      %vm1152 = vcmp.eq.s32.totalorder %v1147, 1
      %vm1153 = vcmp.eq.s32.totalorder %v1151, 1
      %v1154 = vsel %vm1152, %v1132, %v1104
      %v1155 = vsel %vm1153, %v1133, %v1105
      %v1156 = vsel %vm1152, %v1134, %v1106
      %v1157 = vsel %vm1153, %v1135, %v1107
      %v1158 = vadd.f32 %v1120, %v1112
      %v1159 = vadd.f32 %v1121, %v1113
      %v1160 = vadd.f32 %v1122, %v1114
      %v1161 = vadd.f32 %v1123, %v1115
      %v1162 = vadd.f32 %v1158, %v1108
      %v1163 = vadd.f32 %v1159, %v1109
      %v1164 = vadd.f32 %v1160, %v1110
      %v1165 = vadd.f32 %v1161, %v1111
      %v1166 = vmul.f32 %v1078, 0.070766374
      %v1167 = vmul.f32 %v1072, 0.070766374
      %v1168 = vmul.f32 %v1079, 0.070766374
      %v1169 = vmul.f32 %v1073, 0.070766374
      %v1170 = vadd.f32 %v1162, %v1166
      %v1171 = vadd.f32 %v1163, %v1167
      %v1172 = vadd.f32 %v1164, %v1168
      %v1173 = vadd.f32 %v1165, %v1169
      %v1174 = vlaneseq
      %v1175 = vshrl.u32 %v1174, 7
      %v1176 = vsub.s32 1, %v1175
      %v1177 = vrot.slane %v939, %v1176
      %v1178 = vlaneseq
      %v1179 = vshrl.u32 %v1178, 7
      %v1180 = vsub.s32 3, %v1179
      %v1181 = vrot.slane %v939, %v1180
      %v1182 = vlaneseq
      %v1183 = vshrl.u32 %v1182, 7
      %v1184 = vsub.s32 1, %v1183
      %v1185 = vrot.slane %v1177, %v1184
      %v1186 = vlaneseq
      %v1187 = vshrl.u32 %v1186, 7
      %v1188 = vsub.s32 1, %v1187
      %v1189 = vrot.slane %v1181, %v1188
      %vm1190 = vcmp.eq.s32.totalorder %v1185, 1
      %vm1191 = vcmp.eq.s32.totalorder %v1189, 1
      %v1192 = vsel %vm1190, %v1170, %v1154
      %v1193 = vsel %vm1191, %v1171, %v1155
      %v1194 = vsel %vm1190, %v1172, %v1156
      %v1195 = vsel %vm1191, %v1173, %v1157
      %v1196 = vmul.f32 %v1014, 0.4889208
      %v1197 = vmul.f32 %v1022, 0.4889208
      %v1198 = vmul.f32 %v1015, 0.4889208
      %v1199 = vmul.f32 %v1023, 0.4889208
      %v1200 = vadd.f32 %v1080, %v1196
      %v1201 = vadd.f32 %v1081, %v1197
      %v1202 = vadd.f32 %v1082, %v1198
      %v1203 = vadd.f32 %v1083, %v1199
      %v1204 = vmul.f32 %v1033, 0.14153275
      %v1205 = vmul.f32 %v1041, 0.14153275
      %v1206 = vmul.f32 %v1034, 0.14153275
      %v1207 = vmul.f32 %v1042, 0.14153275
      %v1208 = vadd.f32 %v1200, %v1204
      %v1209 = vadd.f32 %v1201, %v1205
      %v1210 = vadd.f32 %v1202, %v1206
      %v1211 = vadd.f32 %v1203, %v1207
      %v1212 = vsel %vm510, %v1208, %v1192
      %v1213 = vsel %vm511, %v1209, %v1193
      %v1214 = vsel %vm510, %v1210, %v1194
      %v1215 = vsel %vm511, %v1211, %v1195
      %v1216 = vmul.f32 %v1059, 0.4889208
      %v1217 = vmul.f32 %v1053, 0.4889208
      %v1218 = vmul.f32 %v1060, 0.4889208
      %v1219 = vmul.f32 %v1054, 0.4889208
      %v1220 = vadd.f32 %v1080, %v1216
      %v1221 = vadd.f32 %v1081, %v1217
      %v1222 = vadd.f32 %v1082, %v1218
      %v1223 = vadd.f32 %v1083, %v1219
      %v1224 = vmul.f32 %v1078, 0.14153275
      %v1225 = vmul.f32 %v1072, 0.14153275
      %v1226 = vmul.f32 %v1079, 0.14153275
      %v1227 = vmul.f32 %v1073, 0.14153275
      %v1228 = vadd.f32 %v1220, %v1224
      %v1229 = vadd.f32 %v1221, %v1225
      %v1230 = vadd.f32 %v1222, %v1226
      %v1231 = vadd.f32 %v1223, %v1227
      %v1232 = vsel %vm536, %v1228, %v1212
      %v1233 = vsel %vm537, %v1229, %v1213
      %v1234 = vsel %vm536, %v1230, %v1214
      %v1235 = vsel %vm537, %v1231, %v1215
      %v1236 = vmul.f32 %v1232, 2.0
      %v1237 = vmul.f32 %v1233, 2.0
      %v1238 = vmul.f32 %v1234, 2.0
      %v1239 = vmul.f32 %v1235, 2.0
      %v1240 = vadd.f32 %v1236, 1.0
      %v1241 = vadd.f32 %v1237, 1.0
      %v1242 = vadd.f32 %v1238, 1.0
      %v1243 = vadd.f32 %v1239, 1.0
      %v1244 = vmax.f32 %v1240, 0.1
      %v1245 = vmax.f32 %v1241, 0.1
      %v1246 = vmax.f32 %v1242, 0.1
      %v1247 = vmax.f32 %v1243, 0.1
      %v1248 = vmin.f32 %v1244, 10.0
      %v1249 = vmin.f32 %v1245, 10.0
      %v1250 = vmin.f32 %v1246, 10.0
      %v1251 = vmin.f32 %v1247, 10.0
      %v1252 = vmul.f32 %v1232, 1.5
      %v1253 = vmul.f32 %v1233, 1.5
      %v1254 = vmul.f32 %v1234, 1.5
      %v1255 = vmul.f32 %v1235, 1.5
      %v1256 = vadd.f32 %v1252, 0.5
      %v1257 = vadd.f32 %v1253, 0.5
      %v1258 = vadd.f32 %v1254, 0.5
      %v1259 = vadd.f32 %v1255, 0.5
      %v1260 = vmax.f32 %v1256, 0.1
      %v1261 = vmax.f32 %v1257, 0.1
      %v1262 = vmax.f32 %v1258, 0.1
      %v1263 = vmax.f32 %v1259, 0.1
      %v1264 = vmin.f32 %v1260, 10.0
      %v1265 = vmin.f32 %v1261, 10.0
      %v1266 = vmin.f32 %v1262, 10.0
      %v1267 = vmin.f32 %v1263, 10.0
      %v1268 = vmul.f32 %v1232, 3.0
      %v1269 = vmul.f32 %v1233, 3.0
      %v1270 = vmul.f32 %v1234, 3.0
      %v1271 = vmul.f32 %v1235, 3.0
      %v1272 = vadd.f32 %v1268, 1.0
      %v1273 = vadd.f32 %v1269, 1.0
      %v1274 = vadd.f32 %v1270, 1.0
      %v1275 = vadd.f32 %v1271, 1.0
      %s1276 = smul.u32 8, 3
      %s1277 = smul.u32 %s1276, 2
      %s1278 = smul.u32 %s1277, 2
      %s1279 = sshll.u32 %s1278, 4
      %1280 = dma.done [#allocation4], %s1279
      %v1281 = vld [vmem:[#allocation2] sm:$0xff]
      %v1282 = vld [vmem:[#allocation2 + $0x8] sm:$0xff]
      %v1283 = vld [vmem:[#allocation2 + $0x10] sm:$0xff]
      %v1284 = vld [vmem:[#allocation2 + $0x18] sm:$0xff]
      %s1285 = scalar_lea.vmem [#allocation2], 32
      %v1286 = vld [vmem:[%s1285] sm:$0xff]
      %v1287 = vld [vmem:[%s1285 + $0x8] sm:$0xff]
      %v1288 = vld [vmem:[%s1285 + $0x10] sm:$0xff]
      %v1289 = vld [vmem:[%s1285 + $0x18] sm:$0xff]
      %s1290 = scalar_lea.vmem [#allocation2], 64
      %v1291 = vld [vmem:[%s1290] sm:$0xff]
      %v1292 = vld [vmem:[%s1290 + $0x8] sm:$0xff]
      %v1293 = vld [vmem:[%s1290 + $0x10] sm:$0xff]
      %v1294 = vld [vmem:[%s1290 + $0x18] sm:$0xff]
      %v1299 = vrot.slane %v1281, 1
      %v1300 = vrot.slane %v1283, 1
      %v1301 = vsel %vm268, %v1299, %v1300
      %v1302 = vrot.slane %v1282, 1
      %v1303 = vrot.slane %v1284, 1
      %v1304 = vsel %vm268, %v1302, %v1303
      %v1309 = vsel %vm268, %v1300, %v1283
      %v1310 = vsel %vm268, %v1303, %v1284
      %v1311 = vrot.slane %v1281, 7
      %v1312 = vrot.slane %v1282, 7
      %v1313 = vrot.slane %v1283, 7
      %v1314 = vsel %vm281, %v1311, %v1313
      %v1315 = vrot.slane %v1284, 7
      %v1316 = vsel %vm281, %v1312, %v1315
      %v1321 = vsel %vm281, %v1281, %v1311
      %v1322 = vsel %vm281, %v1282, %v1312
      %v1323 = vsub.f32 %v1301, %v1321
      %v1324 = vsub.f32 %v1304, %v1322
      %v1325 = vsub.f32 %v1309, %v1314
      %v1326 = vsub.f32 %v1310, %v1316
      %v1327 = vmul.f32 %v1323, 0.5
      %v1328 = vmul.f32 %v1324, 0.5
      %v1329 = vmul.f32 %v1325, 0.5
      %v1330 = vmul.f32 %v1326, 0.5
      %v1331 = vsub.f32 %v1301, %v1281
      %v1332 = vsub.f32 %v1304, %v1282
      %v1333 = vsub.f32 %v1309, %v1283
      %v1334 = vsub.f32 %v1310, %v1284
      %v1335 = vsel %vm310, %v1331, %v1327
      %v1336 = vsel %vm310, %v1332, %v1328
      %v1337 = vsel %vm311, %v1333, %v1329
      %v1338 = vsel %vm311, %v1334, %v1330
      %v1339 = vsub.f32 %v1281, %v1321
      %v1340 = vsub.f32 %v1282, %v1322
      %v1341 = vsub.f32 %v1283, %v1314
      %v1342 = vsub.f32 %v1284, %v1316
      %v1343 = vsel %vm324, %v1339, %v1335
      %v1344 = vsel %vm324, %v1340, %v1336
      %v1345 = vsel %vm325, %v1341, %v1337
      %v1346 = vsel %vm325, %v1342, %v1338
      %1351 = vrot.lane.b32.xlu0 %v1286, 112
      %v1352 = vpop.permute.xlu0 %1351
      %1353 = vrot.lane.b32.xlu0 %v1287, 112
      %v1354 = vpop.permute.xlu0 %1353
      %1355 = vrot.lane.b32.xlu0 %v1288, 112
      %v1356 = vpop.permute.xlu0 %1355
      %1357 = vrot.lane.b32.xlu0 %v1289, 112
      %v1358 = vpop.permute.xlu0 %1357
      %v1359 = vsel %vm342, %v1352, %v1354
      %v1360 = vsel %vm342, %v1356, %v1358
      %v1367 = vsel %vm342, %v1354, %v1352
      %v1368 = vsel %vm342, %v1358, %v1356
      %1369 = vrot.lane.b32.xlu0 %v1287, 16
      %v1370 = vpop.permute.xlu0 %1369
      %1371 = vrot.lane.b32.xlu0 %v1289, 16
      %v1372 = vpop.permute.xlu0 %1371
      %1375 = vrot.lane.b32.xlu0 %v1286, 16
      %v1376 = vpop.permute.xlu0 %1375
      %1377 = vrot.lane.b32.xlu0 %v1288, 16
      %v1378 = vpop.permute.xlu0 %1377
      %v1379 = vsel %vm363, %v1376, %v1370
      %v1380 = vsel %vm363, %v1378, %v1372
      %v1385 = vsel %vm363, %v1370, %v1376
      %v1386 = vsel %vm363, %v1372, %v1378
      %v1387 = vsub.f32 %v1359, %v1385
      %v1388 = vsub.f32 %v1367, %v1379
      %v1389 = vsub.f32 %v1360, %v1386
      %v1390 = vsub.f32 %v1368, %v1380
      %v1391 = vmul.f32 %v1387, 0.5
      %v1392 = vmul.f32 %v1388, 0.5
      %v1393 = vmul.f32 %v1389, 0.5
      %v1394 = vmul.f32 %v1390, 0.5
      %v1395 = vsub.f32 %v1359, %v1286
      %v1396 = vsub.f32 %v1367, %v1287
      %v1397 = vsub.f32 %v1360, %v1288
      %v1398 = vsub.f32 %v1368, %v1289
      %v1399 = vsel %vm402, %v1395, %v1391
      %v1400 = vsel %vm403, %v1396, %v1392
      %v1401 = vsel %vm402, %v1397, %v1393
      %v1402 = vsel %vm403, %v1398, %v1394
      %v1403 = vsub.f32 %v1286, %v1385
      %v1404 = vsub.f32 %v1287, %v1379
      %v1405 = vsub.f32 %v1288, %v1386
      %v1406 = vsub.f32 %v1289, %v1380
      %v1407 = vsel %vm430, %v1403, %v1399
      %v1408 = vsel %vm431, %v1404, %v1400
      %v1409 = vsel %vm430, %v1405, %v1401
      %v1410 = vsel %vm431, %v1406, %v1402
      %1415 = vrot.lane.b32.xlu0 %v1291, 127
      %v1416 = vpop.permute.xlu0 %1415
      %1417 = vrot.lane.b32.xlu0 %v1292, 127
      %v1418 = vpop.permute.xlu0 %1417
      %1419 = vrot.lane.b32.xlu0 %v1293, 127
      %v1420 = vpop.permute.xlu0 %1419
      %1421 = vrot.lane.b32.xlu0 %v1294, 127
      %v1422 = vpop.permute.xlu0 %1421
      %v1423 = vsel %vm452, %v1416, %v1418
      %v1424 = vsel %vm452, %v1420, %v1422
      %v1431 = vsel %vm452, %v1418, %v1416
      %v1432 = vsel %vm452, %v1422, %v1420
      %1433 = vrot.lane.b32.xlu0 %v1292, 1
      %v1434 = vpop.permute.xlu0 %1433
      %1435 = vrot.lane.b32.xlu0 %v1294, 1
      %v1436 = vpop.permute.xlu0 %1435
      %1439 = vrot.lane.b32.xlu0 %v1291, 1
      %v1440 = vpop.permute.xlu0 %1439
      %1441 = vrot.lane.b32.xlu0 %v1293, 1
      %v1442 = vpop.permute.xlu0 %1441
      %v1443 = vsel %vm473, %v1440, %v1434
      %v1444 = vsel %vm473, %v1442, %v1436
      %v1449 = vsel %vm473, %v1434, %v1440
      %v1450 = vsel %vm473, %v1436, %v1442
      %v1451 = vsub.f32 %v1423, %v1449
      %v1452 = vsub.f32 %v1431, %v1443
      %v1453 = vsub.f32 %v1424, %v1450
      %v1454 = vsub.f32 %v1432, %v1444
      %v1455 = vmul.f32 %v1451, 0.5
      %v1456 = vmul.f32 %v1452, 0.5
      %v1457 = vmul.f32 %v1453, 0.5
      %v1458 = vmul.f32 %v1454, 0.5
      %v1459 = vsub.f32 %v1423, %v1291
      %v1460 = vsub.f32 %v1431, %v1292
      %v1461 = vsub.f32 %v1424, %v1293
      %v1462 = vsub.f32 %v1432, %v1294
      %v1463 = vsel %vm510, %v1459, %v1455
      %v1464 = vsel %vm511, %v1460, %v1456
      %v1465 = vsel %vm510, %v1461, %v1457
      %v1466 = vsel %vm511, %v1462, %v1458
      %v1467 = vsub.f32 %v1291, %v1449
      %v1468 = vsub.f32 %v1292, %v1443
      %v1469 = vsub.f32 %v1293, %v1450
      %v1470 = vsub.f32 %v1294, %v1444
      %v1471 = vsel %vm536, %v1467, %v1463
      %v1472 = vsel %vm537, %v1468, %v1464
      %v1473 = vsel %vm536, %v1469, %v1465
      %v1474 = vsel %vm537, %v1470, %v1466
      %v1475 = vadd.f32 %v1343, %v1407
      %v1476 = vadd.f32 %v1344, %v1408
      %v1477 = vadd.f32 %v1345, %v1409
      %v1478 = vadd.f32 %v1346, %v1410
      %v1479 = vadd.f32 %v1475, %v1471
      %v1480 = vadd.f32 %v1476, %v1472
      %v1481 = vadd.f32 %v1477, %v1473
      %v1482 = vadd.f32 %v1478, %v1474
      %v1483 = vmul.f32 %v1343, %v1343
      %v1484 = vmul.f32 %v1344, %v1344
      %v1485 = vmul.f32 %v1345, %v1345
      %v1486 = vmul.f32 %v1346, %v1346
      %v1487 = vmul.f32 %v1407, %v1407
      %v1488 = vmul.f32 %v1408, %v1408
      %v1489 = vmul.f32 %v1409, %v1409
      %v1490 = vmul.f32 %v1410, %v1410
      %v1491 = vadd.f32 %v1483, %v1487
      %v1492 = vadd.f32 %v1484, %v1488
      %v1493 = vadd.f32 %v1485, %v1489
      %v1494 = vadd.f32 %v1486, %v1490
      %v1495 = vmul.f32 %v1471, %v1471
      %v1496 = vmul.f32 %v1472, %v1472
      %v1497 = vmul.f32 %v1473, %v1473
      %v1498 = vmul.f32 %v1474, %v1474
      %v1499 = vadd.f32 %v1491, %v1495
      %v1500 = vadd.f32 %v1492, %v1496
      %v1501 = vadd.f32 %v1493, %v1497
      %v1502 = vadd.f32 %v1494, %v1498
      %1503 = vrot.lane.b32.xlu0 %v1281, 112
      %v1504 = vpop.permute.xlu0 %1503
      %1505 = vrot.lane.b32.xlu0 %v1282, 112
      %v1506 = vpop.permute.xlu0 %1505
      %1507 = vrot.lane.b32.xlu0 %v1283, 112
      %v1508 = vpop.permute.xlu0 %1507
      %1509 = vrot.lane.b32.xlu0 %v1284, 112
      %v1510 = vpop.permute.xlu0 %1509
      %v1511 = vsel %vm342, %v1504, %v1506
      %v1512 = vsel %vm342, %v1508, %v1510
      %v1519 = vsel %vm342, %v1506, %v1504
      %v1520 = vsel %vm342, %v1510, %v1508
      %1521 = vrot.lane.b32.xlu0 %v1282, 16
      %v1522 = vpop.permute.xlu0 %1521
      %1523 = vrot.lane.b32.xlu0 %v1284, 16
      %v1524 = vpop.permute.xlu0 %1523
      %1527 = vrot.lane.b32.xlu0 %v1281, 16
      %v1528 = vpop.permute.xlu0 %1527
      %1529 = vrot.lane.b32.xlu0 %v1283, 16
      %v1530 = vpop.permute.xlu0 %1529
      %v1531 = vsel %vm363, %v1528, %v1522
      %v1532 = vsel %vm363, %v1530, %v1524
      %v1537 = vsel %vm363, %v1522, %v1528
      %v1538 = vsel %vm363, %v1524, %v1530
      %v1539 = vsub.f32 %v1511, %v1537
      %v1540 = vsub.f32 %v1519, %v1531
      %v1541 = vsub.f32 %v1512, %v1538
      %v1542 = vsub.f32 %v1520, %v1532
      %v1543 = vmul.f32 %v1539, 0.5
      %v1544 = vmul.f32 %v1540, 0.5
      %v1545 = vmul.f32 %v1541, 0.5
      %v1546 = vmul.f32 %v1542, 0.5
      %v1547 = vsub.f32 %v1511, %v1281
      %v1548 = vsub.f32 %v1519, %v1282
      %v1549 = vsub.f32 %v1512, %v1283
      %v1550 = vsub.f32 %v1520, %v1284
      %v1551 = vsel %vm402, %v1547, %v1543
      %v1552 = vsel %vm403, %v1548, %v1544
      %v1553 = vsel %vm402, %v1549, %v1545
      %v1554 = vsel %vm403, %v1550, %v1546
      %v1555 = vsub.f32 %v1281, %v1537
      %v1556 = vsub.f32 %v1282, %v1531
      %v1557 = vsub.f32 %v1283, %v1538
      %v1558 = vsub.f32 %v1284, %v1532
      %v1559 = vsel %vm430, %v1555, %v1551
      %v1560 = vsel %vm431, %v1556, %v1552
      %v1561 = vsel %vm430, %v1557, %v1553
      %v1562 = vsel %vm431, %v1558, %v1554
      %v1563 = vrot.slane %v1286, 1
      %v1564 = vrot.slane %v1288, 1
      %v1565 = vsel %vm268, %v1563, %v1564
      %v1566 = vrot.slane %v1287, 1
      %v1567 = vrot.slane %v1289, 1
      %v1568 = vsel %vm268, %v1566, %v1567
      %v1573 = vsel %vm268, %v1564, %v1288
      %v1574 = vsel %vm268, %v1567, %v1289
      %v1575 = vrot.slane %v1286, 7
      %v1576 = vrot.slane %v1287, 7
      %v1577 = vrot.slane %v1288, 7
      %v1578 = vsel %vm281, %v1575, %v1577
      %v1579 = vrot.slane %v1289, 7
      %v1580 = vsel %vm281, %v1576, %v1579
      %v1585 = vsel %vm281, %v1286, %v1575
      %v1586 = vsel %vm281, %v1287, %v1576
      %v1587 = vsub.f32 %v1565, %v1585
      %v1588 = vsub.f32 %v1568, %v1586
      %v1589 = vsub.f32 %v1573, %v1578
      %v1590 = vsub.f32 %v1574, %v1580
      %v1591 = vmul.f32 %v1587, 0.5
      %v1592 = vmul.f32 %v1588, 0.5
      %v1593 = vmul.f32 %v1589, 0.5
      %v1594 = vmul.f32 %v1590, 0.5
      %v1595 = vsub.f32 %v1565, %v1286
      %v1596 = vsub.f32 %v1568, %v1287
      %v1597 = vsub.f32 %v1573, %v1288
      %v1598 = vsub.f32 %v1574, %v1289
      %v1599 = vsel %vm310, %v1595, %v1591
      %v1600 = vsel %vm310, %v1596, %v1592
      %v1601 = vsel %vm311, %v1597, %v1593
      %v1602 = vsel %vm311, %v1598, %v1594
      %v1603 = vsub.f32 %v1286, %v1585
      %v1604 = vsub.f32 %v1287, %v1586
      %v1605 = vsub.f32 %v1288, %v1578
      %v1606 = vsub.f32 %v1289, %v1580
      %v1607 = vsel %vm324, %v1603, %v1599
      %v1608 = vsel %vm324, %v1604, %v1600
      %v1609 = vsel %vm325, %v1605, %v1601
      %v1610 = vsel %vm325, %v1606, %v1602
      %v1611 = vadd.f32 %v1559, %v1607
      %v1612 = vadd.f32 %v1560, %v1608
      %v1613 = vadd.f32 %v1561, %v1609
      %v1614 = vadd.f32 %v1562, %v1610
      %v1615 = vmul.f32 %v1611, 0.5
      %v1616 = vmul.f32 %v1612, 0.5
      %v1617 = vmul.f32 %v1613, 0.5
      %v1618 = vmul.f32 %v1614, 0.5
      %v1619 = vmul.f32 %v1615, %v1615
      %v1620 = vmul.f32 %v1616, %v1616
      %v1621 = vmul.f32 %v1617, %v1617
      %v1622 = vmul.f32 %v1618, %v1618
      %v1623 = vmul.f32 %v1619, 2.0
      %v1624 = vmul.f32 %v1620, 2.0
      %v1625 = vmul.f32 %v1621, 2.0
      %v1626 = vmul.f32 %v1622, 2.0
      %v1627 = vadd.f32 %v1499, %v1623
      %v1628 = vadd.f32 %v1500, %v1624
      %v1629 = vadd.f32 %v1501, %v1625
      %v1630 = vadd.f32 %v1502, %v1626
      %1631 = vrot.lane.b32.xlu0 %v1281, 127
      %v1632 = vpop.permute.xlu0 %1631
      %1633 = vrot.lane.b32.xlu0 %v1282, 127
      %v1634 = vpop.permute.xlu0 %1633
      %1635 = vrot.lane.b32.xlu0 %v1283, 127
      %v1636 = vpop.permute.xlu0 %1635
      %1637 = vrot.lane.b32.xlu0 %v1284, 127
      %v1638 = vpop.permute.xlu0 %1637
      %v1639 = vsel %vm452, %v1632, %v1634
      %v1640 = vsel %vm452, %v1636, %v1638
      %v1647 = vsel %vm452, %v1634, %v1632
      %v1648 = vsel %vm452, %v1638, %v1636
      %1649 = vrot.lane.b32.xlu0 %v1282, 1
      %v1650 = vpop.permute.xlu0 %1649
      %1651 = vrot.lane.b32.xlu0 %v1284, 1
      %v1652 = vpop.permute.xlu0 %1651
      %1655 = vrot.lane.b32.xlu0 %v1281, 1
      %v1656 = vpop.permute.xlu0 %1655
      %1657 = vrot.lane.b32.xlu0 %v1283, 1
      %v1658 = vpop.permute.xlu0 %1657
      %v1659 = vsel %vm473, %v1656, %v1650
      %v1660 = vsel %vm473, %v1658, %v1652
      %v1665 = vsel %vm473, %v1650, %v1656
      %v1666 = vsel %vm473, %v1652, %v1658
      %v1667 = vsub.f32 %v1639, %v1665
      %v1668 = vsub.f32 %v1647, %v1659
      %v1669 = vsub.f32 %v1640, %v1666
      %v1670 = vsub.f32 %v1648, %v1660
      %v1671 = vmul.f32 %v1667, 0.5
      %v1672 = vmul.f32 %v1668, 0.5
      %v1673 = vmul.f32 %v1669, 0.5
      %v1674 = vmul.f32 %v1670, 0.5
      %v1675 = vsub.f32 %v1639, %v1281
      %v1676 = vsub.f32 %v1647, %v1282
      %v1677 = vsub.f32 %v1640, %v1283
      %v1678 = vsub.f32 %v1648, %v1284
      %v1679 = vsel %vm510, %v1675, %v1671
      %v1680 = vsel %vm511, %v1676, %v1672
      %v1681 = vsel %vm510, %v1677, %v1673
      %v1682 = vsel %vm511, %v1678, %v1674
      %v1683 = vsub.f32 %v1281, %v1665
      %v1684 = vsub.f32 %v1282, %v1659
      %v1685 = vsub.f32 %v1283, %v1666
      %v1686 = vsub.f32 %v1284, %v1660
      %v1687 = vsel %vm536, %v1683, %v1679
      %v1688 = vsel %vm537, %v1684, %v1680
      %v1689 = vsel %vm536, %v1685, %v1681
      %v1690 = vsel %vm537, %v1686, %v1682
      %v1691 = vrot.slane %v1291, 1
      %v1692 = vrot.slane %v1293, 1
      %v1693 = vsel %vm268, %v1691, %v1692
      %v1694 = vrot.slane %v1292, 1
      %v1695 = vrot.slane %v1294, 1
      %v1696 = vsel %vm268, %v1694, %v1695
      %v1701 = vsel %vm268, %v1692, %v1293
      %v1702 = vsel %vm268, %v1695, %v1294
      %v1703 = vrot.slane %v1291, 7
      %v1704 = vrot.slane %v1292, 7
      %v1705 = vrot.slane %v1293, 7
      %v1706 = vsel %vm281, %v1703, %v1705
      %v1707 = vrot.slane %v1294, 7
      %v1708 = vsel %vm281, %v1704, %v1707
      %v1713 = vsel %vm281, %v1291, %v1703
      %v1714 = vsel %vm281, %v1292, %v1704
      %v1715 = vsub.f32 %v1693, %v1713
      %v1716 = vsub.f32 %v1696, %v1714
      %v1717 = vsub.f32 %v1701, %v1706
      %v1718 = vsub.f32 %v1702, %v1708
      %v1719 = vmul.f32 %v1715, 0.5
      %v1720 = vmul.f32 %v1716, 0.5
      %v1721 = vmul.f32 %v1717, 0.5
      %v1722 = vmul.f32 %v1718, 0.5
      %v1723 = vsub.f32 %v1693, %v1291
      %v1724 = vsub.f32 %v1696, %v1292
      %v1725 = vsub.f32 %v1701, %v1293
      %v1726 = vsub.f32 %v1702, %v1294
      %v1727 = vsel %vm310, %v1723, %v1719
      %v1728 = vsel %vm310, %v1724, %v1720
      %v1729 = vsel %vm311, %v1725, %v1721
      %v1730 = vsel %vm311, %v1726, %v1722
      %v1731 = vsub.f32 %v1291, %v1713
      %v1732 = vsub.f32 %v1292, %v1714
      %v1733 = vsub.f32 %v1293, %v1706
      %v1734 = vsub.f32 %v1294, %v1708
      %v1735 = vsel %vm324, %v1731, %v1727
      %v1736 = vsel %vm324, %v1732, %v1728
      %v1737 = vsel %vm325, %v1733, %v1729
      %v1738 = vsel %vm325, %v1734, %v1730
      %v1739 = vadd.f32 %v1687, %v1735
      %v1740 = vadd.f32 %v1688, %v1736
      %v1741 = vadd.f32 %v1689, %v1737
      %v1742 = vadd.f32 %v1690, %v1738
      %v1743 = vmul.f32 %v1739, 0.5
      %v1744 = vmul.f32 %v1740, 0.5
      %v1745 = vmul.f32 %v1741, 0.5
      %v1746 = vmul.f32 %v1742, 0.5
      %v1747 = vmul.f32 %v1743, %v1743
      %v1748 = vmul.f32 %v1744, %v1744
      %v1749 = vmul.f32 %v1745, %v1745
      %v1750 = vmul.f32 %v1746, %v1746
      %v1751 = vmul.f32 %v1747, 2.0
      %v1752 = vmul.f32 %v1748, 2.0
      %v1753 = vmul.f32 %v1749, 2.0
      %v1754 = vmul.f32 %v1750, 2.0
      %v1755 = vadd.f32 %v1627, %v1751
      %v1756 = vadd.f32 %v1628, %v1752
      %v1757 = vadd.f32 %v1629, %v1753
      %v1758 = vadd.f32 %v1630, %v1754
      %1759 = vrot.lane.b32.xlu0 %v1286, 127
      %v1760 = vpop.permute.xlu0 %1759
      %1761 = vrot.lane.b32.xlu0 %v1287, 127
      %v1762 = vpop.permute.xlu0 %1761
      %1763 = vrot.lane.b32.xlu0 %v1288, 127
      %v1764 = vpop.permute.xlu0 %1763
      %1765 = vrot.lane.b32.xlu0 %v1289, 127
      %v1766 = vpop.permute.xlu0 %1765
      %v1767 = vsel %vm452, %v1760, %v1762
      %v1768 = vsel %vm452, %v1764, %v1766
      %v1775 = vsel %vm452, %v1762, %v1760
      %v1776 = vsel %vm452, %v1766, %v1764
      %1777 = vrot.lane.b32.xlu0 %v1287, 1
      %v1778 = vpop.permute.xlu0 %1777
      %1779 = vrot.lane.b32.xlu0 %v1289, 1
      %v1780 = vpop.permute.xlu0 %1779
      %1783 = vrot.lane.b32.xlu0 %v1286, 1
      %v1784 = vpop.permute.xlu0 %1783
      %1785 = vrot.lane.b32.xlu0 %v1288, 1
      %v1786 = vpop.permute.xlu0 %1785
      %v1787 = vsel %vm473, %v1784, %v1778
      %v1788 = vsel %vm473, %v1786, %v1780
      %v1793 = vsel %vm473, %v1778, %v1784
      %v1794 = vsel %vm473, %v1780, %v1786
      %v1795 = vsub.f32 %v1767, %v1793
      %v1796 = vsub.f32 %v1775, %v1787
      %v1797 = vsub.f32 %v1768, %v1794
      %v1798 = vsub.f32 %v1776, %v1788
      %v1799 = vmul.f32 %v1795, 0.5
      %v1800 = vmul.f32 %v1796, 0.5
      %v1801 = vmul.f32 %v1797, 0.5
      %v1802 = vmul.f32 %v1798, 0.5
      %v1803 = vsub.f32 %v1767, %v1286
      %v1804 = vsub.f32 %v1775, %v1287
      %v1805 = vsub.f32 %v1768, %v1288
      %v1806 = vsub.f32 %v1776, %v1289
      %v1807 = vsel %vm510, %v1803, %v1799
      %v1808 = vsel %vm511, %v1804, %v1800
      %v1809 = vsel %vm510, %v1805, %v1801
      %v1810 = vsel %vm511, %v1806, %v1802
      %v1811 = vsub.f32 %v1286, %v1793
      %v1812 = vsub.f32 %v1287, %v1787
      %v1813 = vsub.f32 %v1288, %v1794
      %v1814 = vsub.f32 %v1289, %v1788
      %v1815 = vsel %vm536, %v1811, %v1807
      %v1816 = vsel %vm537, %v1812, %v1808
      %v1817 = vsel %vm536, %v1813, %v1809
      %v1818 = vsel %vm537, %v1814, %v1810
      %1819 = vrot.lane.b32.xlu0 %v1291, 112
      %v1820 = vpop.permute.xlu0 %1819
      %1821 = vrot.lane.b32.xlu0 %v1292, 112
      %v1822 = vpop.permute.xlu0 %1821
      %1823 = vrot.lane.b32.xlu0 %v1293, 112
      %v1824 = vpop.permute.xlu0 %1823
      %1825 = vrot.lane.b32.xlu0 %v1294, 112
      %v1826 = vpop.permute.xlu0 %1825
      %v1827 = vsel %vm342, %v1820, %v1822
      %v1828 = vsel %vm342, %v1824, %v1826
      %v1835 = vsel %vm342, %v1822, %v1820
      %v1836 = vsel %vm342, %v1826, %v1824
      %1837 = vrot.lane.b32.xlu0 %v1292, 16
      %v1838 = vpop.permute.xlu0 %1837
      %1839 = vrot.lane.b32.xlu0 %v1294, 16
      %v1840 = vpop.permute.xlu0 %1839
      %1843 = vrot.lane.b32.xlu0 %v1291, 16
      %v1844 = vpop.permute.xlu0 %1843
      %1845 = vrot.lane.b32.xlu0 %v1293, 16
      %v1846 = vpop.permute.xlu0 %1845
      %v1847 = vsel %vm363, %v1844, %v1838
      %v1848 = vsel %vm363, %v1846, %v1840
      %v1853 = vsel %vm363, %v1838, %v1844
      %v1854 = vsel %vm363, %v1840, %v1846
      %v1855 = vsub.f32 %v1827, %v1853
      %v1856 = vsub.f32 %v1835, %v1847
      %v1857 = vsub.f32 %v1828, %v1854
      %v1858 = vsub.f32 %v1836, %v1848
      %v1859 = vmul.f32 %v1855, 0.5
      %v1860 = vmul.f32 %v1856, 0.5
      %v1861 = vmul.f32 %v1857, 0.5
      %v1862 = vmul.f32 %v1858, 0.5
      %v1863 = vsub.f32 %v1827, %v1291
      %v1864 = vsub.f32 %v1835, %v1292
      %v1865 = vsub.f32 %v1828, %v1293
      %v1866 = vsub.f32 %v1836, %v1294
      %v1867 = vsel %vm402, %v1863, %v1859
      %v1868 = vsel %vm403, %v1864, %v1860
      %v1869 = vsel %vm402, %v1865, %v1861
      %v1870 = vsel %vm403, %v1866, %v1862
      %v1871 = vsub.f32 %v1291, %v1853
      %v1872 = vsub.f32 %v1292, %v1847
      %v1873 = vsub.f32 %v1293, %v1854
      %v1874 = vsub.f32 %v1294, %v1848
      %v1875 = vsel %vm430, %v1871, %v1867
      %v1876 = vsel %vm431, %v1872, %v1868
      %v1877 = vsel %vm430, %v1873, %v1869
      %v1878 = vsel %vm431, %v1874, %v1870
      %v1879 = vadd.f32 %v1815, %v1875
      %v1880 = vadd.f32 %v1816, %v1876
      %v1881 = vadd.f32 %v1817, %v1877
      %v1882 = vadd.f32 %v1818, %v1878
      %v1883 = vmul.f32 %v1879, 0.5
      %v1884 = vmul.f32 %v1880, 0.5
      %v1885 = vmul.f32 %v1881, 0.5
      %v1886 = vmul.f32 %v1882, 0.5
      %v1887 = vmul.f32 %v1883, %v1883
      %v1888 = vmul.f32 %v1884, %v1884
      %v1889 = vmul.f32 %v1885, %v1885
      %v1890 = vmul.f32 %v1886, %v1886
      %v1891 = vmul.f32 %v1887, 2.0
      %v1892 = vmul.f32 %v1888, 2.0
      %v1893 = vmul.f32 %v1889, 2.0
      %v1894 = vmul.f32 %v1890, 2.0
      %v1895 = vadd.f32 %v1755, %v1891
      %v1896 = vadd.f32 %v1756, %v1892
      %v1897 = vadd.f32 %v1757, %v1893
      %v1898 = vadd.f32 %v1758, %v1894
      %v1899 = vmul.f32 %v1248, 0.5
      %v1900 = vmul.f32 %v1249, 0.5
      %v1901 = vmul.f32 %v1250, 0.5
      %v1902 = vmul.f32 %v1251, 0.5
      %v1903 = vmul.f32 %v1479, %v1479
      %v1904 = vmul.f32 %v1480, %v1480
      %v1905 = vmul.f32 %v1481, %v1481
      %v1906 = vmul.f32 %v1482, %v1482
      %v1907 = vmul.f32 %v1899, %v1903
      %v1908 = vmul.f32 %v1900, %v1904
      %v1909 = vmul.f32 %v1901, %v1905
      %v1910 = vmul.f32 %v1902, %v1906
      %v1911 = vmul.f32 %v1264, %v1895
      %v1912 = vmul.f32 %v1265, %v1896
      %v1913 = vmul.f32 %v1266, %v1897
      %v1914 = vmul.f32 %v1267, %v1898
      %v1915 = vadd.f32 %v1907, %v1911
      %v1916 = vadd.f32 %v1908, %v1912
      %v1917 = vadd.f32 %v1909, %v1913
      %v1918 = vadd.f32 %v1910, %v1914
      %v1919 = vmul.f32 %v1272, %v1915
      %v1920 = vmul.f32 %v1273, %v1916
      %v1921 = vmul.f32 %v1274, %v1917
      %v1922 = vmul.f32 %v1275, %v1918
      %s1923 = sadd.s32 %s242, 16
      %p1924 = scmp.lt.s32.totalorder %s1923, 16
      %s1925 = scalar_select %p1924, %s1923, 16
      %v1926 = vstv %s242
      %vm1927 = vcmp.ge.s32.totalorder %v252, %v1926
      %vm1928 = vcmp.ge.s32.totalorder %v253, %v1926
      %v1929 = vstv %s1925
      %vm1930 = vcmp.lt.s32.totalorder %v252, %v1929
      %vm1931 = vcmp.lt.s32.totalorder %v253, %v1929
      %vm1932 = vmand %vm1927, %vm1930
      %vm1933 = vmand %vm1928, %vm1931
      %vm1934 = vcmp.lt.s32.totalorder %v254, 16
      %v1935 = vsel %vm1932, 1, 0
      %v1936 = vsel %vm1933, 1, 0
      %vm1937 = vcmp.eq.s32.totalorder %v1935, 1
      %vm1938 = vcmp.eq.s32.totalorder %v1936, 1
      %v1939 = vsel %vm1934, 1, 0
      %v1940 = vlaneseq
      %v1941 = vshrl.u32 %v1940, 7
      %v1942 = vsub.s32 0, %v1941
      %v1943 = vrot.slane %v1939, %v1942
      %v1944 = vlaneseq
      %v1945 = vshrl.u32 %v1944, 7
      %v1946 = vsub.s32 2, %v1945
      %v1947 = vrot.slane %v1939, %v1946
      %v1948 = vlaneseq
      %v1949 = vshrl.u32 %v1948, 7
      %v1950 = vsub.s32 0, %v1949
      %v1951 = vrot.slane %v1943, %v1950
      %v1952 = vlaneseq
      %v1953 = vshrl.u32 %v1952, 7
      %v1954 = vsub.s32 0, %v1953
      %v1955 = vrot.slane %v1947, %v1954
      %vm1956 = vcmp.eq.s32.totalorder %v1951, 1
      %vm1957 = vcmp.eq.s32.totalorder %v1955, 1
      %vm1958 = vmand %vm1937, %vm1956
      %vm1959 = vmand %vm1937, %vm1957
      %vm1960 = vmand %vm1938, %vm1956
      %vm1961 = vmand %vm1938, %vm1957
      %v1962 = vsel %vm1958, %v1919, 0.0
      %v1963 = vsel %vm1959, %v1920, 0.0
      %v1964 = vsel %vm1960, %v1921, 0.0
      %v1965 = vsel %vm1961, %v1922, 0.0
      %v1966 = vadd.f32 %v1962, %v1963
      %v1967 = vadd.f32 %v1966, %v1964
      %v1968 = vadd.f32 %v1967, %v1965
      %1969 = vadd.xlane.f32.xlu0 %v1968
      %v1970 = vpop.xlane.xlu0 %1969
      %v1971 = vrot.slane %v1970, 4
      %v1972 = vadd.f32 %v1970, %v1971
      %v1973 = vrot.slane %v1972, 2
      %v1974 = vadd.f32 %v1972, %v1973
      %v1975 = vrot.slane %v1974, 1
      %v1976 = vadd.f32 %v1974, %v1975
      %s1977 = vtos %v1976
      %v1978 = vstv %s1977
      %1979 = vst [vmem:[%s116] sm:$0xff] %v1978
      %p1980 = scmp.lt.s32.totalorder %s18, 1
      %s1981 = scalar_select %p1980, %s18, 1
      %p1982 = scmp.lt.s32.totalorder %s19, 0
      %s1983 = scalar_select %p1982, %s19, 0
      %s1984 = sadd.s32 %s1983, %s1981
      %s1985 = smul.addr %s1984, 8
      %s1986 = scalar_lea.vmem %s3, %s1985
      // Predicated region
      $region97: #{enhanced_multiscale_adaptive_elasticity_loss_with_lame.2} parent=23 // pred_check
        %p1987 = pneg %p67
      $region98: #{enhanced_multiscale_adaptive_elasticity_loss_with_lame.2} parent=23 // pred_check_branch
        %1989 = sbr.rel (%p1987) target = $region100
      $region99: #{enhanced_multiscale_adaptive_elasticity_loss_with_lame.2} parent=23 // pred_region
        _
      $region100: #{enhanced_multiscale_adaptive_elasticity_loss_with_lame.2} parent=23 // pred_fallthru
        _
    $region24: #{enhanced_multiscale_adaptive_elasticity_loss_with_lame.2} parent=5 // pred_fallthru
      _
    %p1990 = scmp.le.s32.totalorder 2, %s9
    // Predicated region
    $region101: #{enhanced_multiscale_adaptive_elasticity_loss_with_lame.2} parent=5 // pred_check
      %p1991 = pneg %p1990
    $region102: #{enhanced_multiscale_adaptive_elasticity_loss_with_lame.2} parent=5 // pred_check_branch
      %1993 = sbr.rel (%p1991) target = $region104
    $region103: #{enhanced_multiscale_adaptive_elasticity_loss_with_lame.2} parent=5 // pred_region
      %s1994 = ssub.s32 %s9, 2
      // Predicated region
      $region105: #{enhanced_multiscale_adaptive_elasticity_loss_with_lame.2} parent=103 // pred_check
        %p1995 = pneg %p73
      $region106: #{enhanced_multiscale_adaptive_elasticity_loss_with_lame.2} parent=103 // pred_check_branch
        %1997 = sbr.rel (%p1995) target = $region108
      $region107: #{enhanced_multiscale_adaptive_elasticity_loss_with_lame.2} parent=103 // pred_region
        %p1998 = scmp.lt.s32.totalorder %s20, 1
        %s1999 = scalar_select %p1998, %s20, 1
        %p2000 = scmp.lt.s32.totalorder %s21, 0
        %s2001 = scalar_select %p2000, %s21, 0
        %s2002 = sadd.s32 %s2001, %s1999
        %s2003 = smul.addr %s2002, 8
        %s2004 = scalar_lea.vmem %s3, %s2003
      $region108: #{enhanced_multiscale_adaptive_elasticity_loss_with_lame.2} parent=103 // pred_fallthru
        _
    $region104: #{enhanced_multiscale_adaptive_elasticity_loss_with_lame.2} parent=5 // pred_fallthru
      _
  $region6: #{enhanced_multiscale_adaptive_elasticity_loss_with_lame.2} parent=0 // loop_footer
    %s13 = sadd.s32 1, %s9
  $region7: #{enhanced_multiscale_adaptive_elasticity_loss_with_lame.2} parent=0 // loop_footer_branch
    %8 = sbr.rel target = $region3
  $region8: #{enhanced_multiscale_adaptive_elasticity_loss_with_lame.2} parent=0 // loop_exit
    _
  %2005 = vsyncmov [#allocation4]
  %s2006 = vpop.sfrf %2005
  %p2007 = scmp.eq.s32.totalorder %s2006, 0
  %p2008 = pneg %p2007
  %2010 = shalt.err (%p2008)
  %s2011 = scalar_lea.sflag [#allocation4], 1
  %2012 = vsyncmov %s2011
  %s2013 = vpop.sfrf %2012
  %p2014 = scmp.eq.s32.totalorder %s2013, 0
  %p2015 = pneg %p2014
  %2017 = shalt.err (%p2015)

</llo_original>
